<compile_context>
chip_gen: v5e
topology: v5e:2x2
jax: 0.10.0
libtpu: 0.0.40
codegen_flags: <defaults>
</compile_context>

<pallas_src>
import functools

import jax
import jax.numpy as jnp
from jax import lax
from jax.experimental import pallas as pl
from jax.experimental.pallas import tpu as pltpu

_EPS = 1e-5


def _pick_tile(n_points, max_rows):
    """Largest 128-multiple tile dividing N, capped at max_rows (bigger is fine on v6e)."""
    for t in (2048, 1024, 512, 256, 128):
        if t <= max_rows and n_points % t == 0:
            return t
    # TODO(synk): N not a multiple of 128 falls back to one un-tiled slab per
    # batch element instead of masked remainder tiles.
    return n_points


def _make_stage_kernel(depth, n_rows, apply_bn):
    """Streaming conv-stack kernel.

    Ref order (inputs then outputs):
      refs[0]            x tile (1, k, tn) f32
      refs[1], refs[2]   w1 (k,64) bf16, b1 (1,64) f32
      refs[3]            bn1 stats (2,64) f32            [depth >= 2]
      refs[4], refs[5]   w2 bf16, b2 f32                 [depth >= 2]
      refs[6]            bn2 stats (2,128) f32           [depth == 3]
      refs[7], refs[8]   w3 bf16, b3 f32                 [depth == 3]
      refs[3*depth]      partial-stats output (1, 2, C)
      refs[3*depth + 1]  running-max output  (1, 1, 1024) [depth == 3]
    """
    inv_n = 1.0 / float(n_rows)

    def bn_relu(h, s_ref):
        # Training-mode BatchNorm1d (biased var, eps=1e-5, gamma=1/beta=0) using
        # single-pass global stats; all vector math kept in f32 (v5e-safe).
        if not apply_bn:
            return jnp.maximum(h, 0.0)
        s = s_ref[...]
        mu = s[0:1, :] * inv_n
        var = jnp.maximum(s[1:2, :] * inv_n - mu * mu, 0.0)
        return jnp.maximum((h - mu) * lax.rsqrt(var + _EPS), 0.0)

    def kernel(*refs):
        t = pl.program_id(1)                      # point-tile index (reduction axis)

        # conv1: contract the k input channels of the (k, tn) slab -> (tn, 64).
        x_bf = refs[0][0].astype(jnp.bfloat16)
        h = lax.dot_general(x_bf, refs[1][...], (((0,), (0,)), ((), ())),
                            preferred_element_type=jnp.float32) + refs[2][...]

        if depth >= 2:    # bn1 + relu + conv2 -> (tn, 128)
            h = bn_relu(h, refs[3])
            h = jnp.dot(h.astype(jnp.bfloat16), refs[4][...],
                        preferred_element_type=jnp.float32) + refs[5][...]
        if depth >= 3:    # bn2 + relu + conv3 -> (tn, 1024)
            h = bn_relu(h, refs[6])
            h = jnp.dot(h.astype(jnp.bfloat16), refs[7][...],
                        preferred_element_type=jnp.float32) + refs[8][...]

        # Per-batch partial BN stats of the raw conv output (single traversal).
        s_out = refs[3 * depth]

        @pl.when(t == 0)
        def _init_stats():
            s_out[...] = jnp.zeros(s_out.shape, s_out.dtype)

        tile_sum = jnp.sum(h, axis=0, keepdims=True)
        tile_sq = jnp.sum(h * h, axis=0, keepdims=True)
        s_out[...] += jnp.concatenate([tile_sum, tile_sq], axis=0)[None]

        if depth == 3:
            # Running per-batch max of *raw* conv3 output; bn3+relu are monotone
            # per channel so they commute with the max-pool and are applied later.
            m_out = refs[3 * depth + 1]

            @pl.when(t == 0)
            def _init_max():
                m_out[...] = jnp.full(m_out.shape, -jnp.inf, dtype=m_out.dtype)

            m_out[...] = jnp.maximum(m_out[...],
                                     jnp.max(h, axis=0, keepdims=True)[None])

    return kernel


def _run_stage(depth, x, const_args, out_channels, *, tn, n_rows, apply_bn):
    B, k, N = x.shape
    nt = N // tn
    kern = _make_stage_kernel(depth, n_rows, apply_bn)

    # x: one (k, tn) slab of one batch element per step (lane-dense loads, no
    # transpose).  Weights / biases / stats: constant block index -> loaded once
    # and kept VMEM-resident across all grid steps.
    in_specs = [pl.BlockSpec((1, k, tn), lambda b, t: (b, 0, t))]
    in_specs += [pl.BlockSpec(a.shape, lambda b, t: (0, 0)) for a in const_args]

    stats_shape = jax.ShapeDtypeStruct((B, 2, out_channels), jnp.float32)
    stats_spec = pl.BlockSpec((1, 2, out_channels), lambda b, t: (b, 0, 0))
    if depth == 3:
        out_shape = (stats_shape,
                     jax.ShapeDtypeStruct((B, 1, out_channels), jnp.float32))
        out_specs = (stats_spec,
                     pl.BlockSpec((1, 1, out_channels), lambda b, t: (b, 0, 0)))
    else:
        out_shape = stats_shape
        out_specs = stats_spec

    return pl.pallas_call(
        kern,
        out_shape=out_shape,
        grid=(B, nt),
        in_specs=in_specs,
        out_specs=out_specs,
        compiler_params=pltpu.CompilerParams(
            # batch axis -> parallel (v7x 2 TensorCores); point-tile axis feeds
            # the running sum/sumsq/max accumulators -> arbitrary.
            dimension_semantics=("parallel", "arbitrary"),
            vmem_limit_bytes=48 * 1024 * 1024,
        ),
    )(x, *const_args)


def _make_head_kernel(n_rows, apply_bn):
    inv_n = 1.0 / float(n_rows)

    def bn_rows(h):
        # FC BatchNorms (over the batch dim): tiny tensors -> centered two-pass
        # form for numerical safety.
        if not apply_bn:
            return h
        mu = jnp.mean(h, axis=0, keepdims=True)
        var = jnp.mean((h - mu) ** 2, axis=0, keepdims=True)
        return (h - mu) * lax.rsqrt(var + _EPS)

    def kernel(g_ref, s3_ref, wf1_ref, bf1_ref, wf2_ref, bf2_ref,
               wf3_ref, bf3_ref, out_ref):
        g = g_ref[...]                              # (B, 1024) raw conv3 max
        if apply_bn:
            s3 = s3_ref[...]
            mu = s3[0:1, :] * inv_n
            var = jnp.maximum(s3[1:2, :] * inv_n - mu * mu, 0.0)
            # max_n relu(bn3(h)) == rsqrt(var+eps) * relu(max_n h - mu)
            g = jnp.maximum(g - mu, 0.0) * lax.rsqrt(var + _EPS)
        else:
            g = jnp.maximum(g, 0.0)

        f = jnp.dot(g.astype(jnp.bfloat16), wf1_ref[...],
                    preferred_element_type=jnp.float32) + bf1_ref[...]
        f = jnp.maximum(bn_rows(f), 0.0)
        f = jnp.dot(f.astype(jnp.bfloat16), wf2_ref[...],
                    preferred_element_type=jnp.float32) + bf2_ref[...]
        f = jnp.maximum(bn_rows(f), 0.0)
        f = jnp.dot(f.astype(jnp.bfloat16), wf3_ref[...],
                    preferred_element_type=jnp.float32) + bf3_ref[...]
        out_ref[...] = f                            # (B, kk_pad), lane-dense

    return kernel


def stnkd_forward(x, params, k, *, max_rows_per_tile=1024):
    """STNkd forward. x: (B, k, N) float32 (PyTorch Conv1d layout) -> (B, k, k)."""
    B, k_in, N = x.shape
    assert k_in == k
    apply_bn = B > 1            # BatchNormIfSample: BN only when batch size > 1
    n_rows = B * N
    tn = _pick_tile(N, max_rows_per_tile)

    f32, bf16 = jnp.float32, jnp.bfloat16
    # bf16 weights: MXU-native on v5e/v6e/v7x and halves weight DMA bytes.
    w1, w2, w3 = (params[n].astype(bf16) for n in ('w1', 'w2', 'w3'))
    wf1, wf2 = params['wf1'].astype(bf16), params['wf2'].astype(bf16)
    b1, b2, b3 = (params[n].astype(f32) for n in ('b1', 'b2', 'b3'))
    bfc1, bfc2 = params['bf1'].astype(f32), params['bf2'].astype(f32)

    # Pad fc3 to a 128-multiple output width (lane-dense stores); slice outside.
    kk = k * k
    kk_pad = ((kk + 127) // 128) * 128
    wf3 = jnp.zeros((params['wf3'].shape[0], kk_pad), bf16)
    wf3 = wf3.at[:, :kk].set(params['wf3'].astype(bf16))
    bfc3 = jnp.zeros((1, kk_pad), f32).at[:, :kk].set(params['bf3'].astype(f32))

    if apply_bn:
        # Training-mode BN needs global stats of each conv output *before* the
        # next conv, so the conv stack is streamed three times with cheap
        # recompute (never materializing (B*N, C) activations in HBM).
        s1 = jnp.sum(_run_stage(1, x, (w1, b1), 64,
                                tn=tn, n_rows=n_rows, apply_bn=apply_bn), axis=0)
        s2 = jnp.sum(_run_stage(2, x, (w1, b1, s1, w2, b2), 128,
                                tn=tn, n_rows=n_rows, apply_bn=apply_bn), axis=0)
    else:
        s1 = jnp.zeros((2, 64), f32)    # unused when BN is skipped (B == 1)
        s2 = jnp.zeros((2, 128), f32)

    s3p, mx = _run_stage(3, x, (w1, b1, s1, w2, b2, s2, w3, b3), 1024,
                         tn=tn, n_rows=n_rows, apply_bn=apply_bn)
    s3 = jnp.sum(s3p, axis=0)           # (2, 1024) global sum / sum-of-squares
    gmax = mx.reshape(B, 1024)          # per-batch max of raw conv3 output

    head = _make_head_kernel(n_rows, apply_bn)
    out_pad = pl.pallas_call(
        head,
        out_shape=jax.ShapeDtypeStruct((B, kk_pad), f32),
        in_specs=[pl.BlockSpec(memory_space=pltpu.MemorySpace.VMEM)] * 8,
        out_specs=pl.BlockSpec(memory_space=pltpu.MemorySpace.VMEM),
    )(gmax, s3, wf1, bfc1, wf2, bfc2, wf3, bfc3)

    # Identity add + un-pad kept outside the kernel (tiny, lane-sparse).
    iden = jnp.eye(k, dtype=f32).reshape(1, kk)
    out = out_pad[:, :kk] + iden
    return out.reshape(B, k, k)


def init_params(key, k):
    """Deterministic synthetic parameters with the shapes STNkd.__init__ implies.

    Conv1d(cin, cout, 1) weights are stored transposed as (cin, cout); Linear
    likewise. Biases are stored as (1, cout) for clean 2-D broadcasting.
    """
    dims = [
        ('w1', (k, 64)), ('b1', (1, 64)),
        ('w2', (64, 128)), ('b2', (1, 128)),
        ('w3', (128, 1024)), ('b3', (1, 1024)),
        ('wf1', (1024, 512)), ('bf1', (1, 512)),
        ('wf2', (512, 256)), ('bf2', (1, 256)),
        ('wf3', (256, k * k)), ('bf3', (1, k * k)),
    ]
    params = {}
    keys = jax.random.split(key, len(dims))
    for (name, shape), kk in zip(dims, keys):
        fan_in = shape[0] if name.startswith('w') else shape[1]
        scale = 1.0 / jnp.sqrt(jnp.float32(fan_in))
        params[name] = scale * jax.random.normal(kk, shape, dtype=jnp.float32)
    return params


def stnkd_reference(x, params, k):
    """Pure-JAX float32 reference of the PyTorch training-mode forward."""
    B = x.shape[0]
    apply_bn = B > 1

    def bn(h, axes):
        if not apply_bn:
            return h
        mu = jnp.mean(h, axis=axes, keepdims=True)
        var = jnp.mean((h - mu) ** 2, axis=axes, keepdims=True)
        return (h - mu) * lax.rsqrt(var + _EPS)

    h = jnp.einsum('bkn,kc->bnc', x, params['w1']) + params['b1']
    h = jnp.maximum(bn(h, (0, 1)), 0.0)
    h = jnp.einsum('bnc,cd->bnd', h, params['w2']) + params['b2']
    h = jnp.maximum(bn(h, (0, 1)), 0.0)
    h = jnp.einsum('bnc,cd->bnd', h, params['w3']) + params['b3']
    h = jnp.maximum(bn(h, (0, 1)), 0.0)
    g = jnp.max(h, axis=1)
    f = jnp.maximum(bn(g @ params['wf1'] + params['bf1'], (0,)), 0.0)
    f = jnp.maximum(bn(f @ params['wf2'] + params['bf2'], (0,)), 0.0)
    f = f @ params['wf3'] + params['bf3']
    f = f + jnp.eye(k, dtype=f.dtype).reshape(1, k * k)
    return f.reshape(B, k, k)


if __name__ == "__main__":
    # Small PointNet-style shapes: 4 clouds, k=8 transform, 512 points each.
    # max_rows_per_tile=256 -> grid (4, 2): exercises multi-tile accumulation.
    B, k, N = 4, 8, 512
    root = jax.random.PRNGKey(0)
    kx, kp = jax.random.split(root)

    x = jax.random.normal(kx, (B, k, N), dtype=jnp.float32)   # PyTorch (B, k, N)
    params = init_params(kp, k)

    fwd = jax.jit(functools.partial(stnkd_forward, k=k, max_rows_per_tile=256))
    out = fwd(x, params)
    jax.block_until_ready(out)
    assert out.shape == (B, k, k) and out.dtype == jnp.float32
    assert bool(jnp.all(jnp.isfinite(out)))

    # Loose sanity check vs f32 reference (kernel uses bf16 MXU operands and the
    # small-batch FC BatchNorms are ill-conditioned, so tolerance is generous).
    ref = stnkd_reference(x, params, k)
    err = float(jnp.max(jnp.abs(out - ref)))
    assert err < 1.0, f"output deviates from f32 reference: {err}"

    print("KERNEL_OK")
</pallas_src>

<mosaic_0001>
module attributes {stable_mosaic.version = 11 : i64} {
  func.func @kernel(%arg0: i32, %arg1: i32, %arg2: memref<1x8x256xf32, #tpu.memory_space<vmem>>, %arg3: memref<8x64xbf16, #tpu.memory_space<vmem>>, %arg4: memref<1x64xf32, #tpu.memory_space<vmem>>, %arg5: memref<1x2x64xf32, #tpu.memory_space<vmem>>) attributes {dimension_semantics = [#tpu.dimension_semantics<parallel>, #tpu.dimension_semantics<arbitrary>], iteration_bounds = array<i64: 4, 2>, scalar_prefetch = 0 : i64, scratch_operands = 0 : i64, tpu.core_type = #tpu.core_type<tc>, window_params = [{transform_indices = @transform_0, window_bounds = array<i64: 1, 8, 256>}, {pipeline_mode = #tpu.pipeline_mode<synchronous>, transform_indices = @transform_1, window_bounds = array<i64: 8, 64>}, {pipeline_mode = #tpu.pipeline_mode<synchronous>, transform_indices = @transform_2, window_bounds = array<i64: 1, 64>}, {transform_indices = @transform_3, window_bounds = array<i64: 1, 2, 64>}]} {
    %c0 = arith.constant 0 : index
    %c0_0 = arith.constant 0 : index
    %c0_1 = arith.constant 0 : index
    %0 = vector.load %arg2[%c0, %c0_0, %c0_1] : memref<1x8x256xf32, #tpu.memory_space<vmem>>, vector<1x8x256xf32>
    %1 = vector.shape_cast %0 : vector<1x8x256xf32> to vector<8x256xf32>
    %2 = arith.truncf %1 : vector<8x256xf32> to vector<8x256xbf16>
    %c0_2 = arith.constant 0 : index
    %c0_3 = arith.constant 0 : index
    %3 = vector.load %arg3[%c0_2, %c0_3] : memref<8x64xbf16, #tpu.memory_space<vmem>>, vector<8x64xbf16>
    %cst = arith.constant dense<0.000000e+00> : vector<256x64xf32>
    %4 = tpu.matmul %2, %3, %cst {dimension_numbers = #tpu.dot_dimension_numbers<[0], [0], [1], [1], [0, 1, 1, 1], [], []>} : vector<8x256xbf16>, vector<8x64xbf16>, vector<256x64xf32> -> vector<256x64xf32>
    %c0_4 = arith.constant 0 : index
    %c0_5 = arith.constant 0 : index
    %5 = vector.load %arg4[%c0_4, %c0_5] : memref<1x64xf32, #tpu.memory_space<vmem>>, vector<1x64xf32>
    %6 = vector.broadcast %5 : vector<1x64xf32> to vector<256x64xf32>
    %7 = arith.addf %4, %6 : vector<256x64xf32>
    %c0_i32 = arith.constant 0 : i32
    %8 = arith.cmpi eq, %arg1, %c0_i32 : i32
    %9 = arith.extui %8 : i1 to i32
    %c0_i32_6 = arith.constant 0 : i32
    %10 = arith.cmpi ne, %9, %c0_i32_6 : i32
    scf.if %10 {
      %cst_15 = arith.constant 0.000000e+00 : f32
      %21 = vector.broadcast %cst_15 : f32 to vector<1x2x64xf32>
      %c0_16 = arith.constant 0 : index
      %c0_17 = arith.constant 0 : index
      %c0_18 = arith.constant 0 : index
      %22 = vector.load %arg5[%c0_16, %c0_17, %c0_18] : memref<1x2x64xf32, #tpu.memory_space<vmem>>, vector<1x2x64xf32>
      tpu.vector_store %arg5[%c0_16, %c0_17, %c0_18], %21 {strides = array<i32>} : memref<1x2x64xf32, #tpu.memory_space<vmem>>, vector<1x2x64xf32>,
    } else {
    }
    %cst_7 = arith.constant dense<0.000000e+00> : vector<64xf32>
    %11 = vector.multi_reduction <add>, %7, %cst_7 [0] : vector<256x64xf32> to vector<64xf32>
    %12 = vector.shape_cast %11 : vector<64xf32> to vector<1x64xf32>
    %13 = arith.mulf %7, %7 : vector<256x64xf32>
    %cst_8 = arith.constant dense<0.000000e+00> : vector<64xf32>
    %14 = vector.multi_reduction <add>, %13, %cst_8 [0] : vector<256x64xf32> to vector<64xf32>
    %15 = vector.shape_cast %14 : vector<64xf32> to vector<1x64xf32>
    %c0_9 = arith.constant 0 : index
    %c0_10 = arith.constant 0 : index
    %c0_11 = arith.constant 0 : index
    %16 = vector.load %arg5[%c0_9, %c0_10, %c0_11] : memref<1x2x64xf32, #tpu.memory_space<vmem>>, vector<1x2x64xf32>
    %17 = tpu.concatenate %12, %15 in 0 : vector<1x64xf32>, vector<1x64xf32> -> vector<2x64xf32>
    %18 = vector.shape_cast %17 : vector<2x64xf32> to vector<1x2x64xf32>
    %19 = arith.addf %16, %18 : vector<1x2x64xf32>
    %c0_12 = arith.constant 0 : index
    %c0_13 = arith.constant 0 : index
    %c0_14 = arith.constant 0 : index
    %20 = vector.load %arg5[%c0_12, %c0_13, %c0_14] : memref<1x2x64xf32, #tpu.memory_space<vmem>>, vector<1x2x64xf32>
    tpu.vector_store %arg5[%c0_12, %c0_13, %c0_14], %19 {strides = array<i32>} : memref<1x2x64xf32, #tpu.memory_space<vmem>>, vector<1x2x64xf32>,
    return
  }
  func.func @transform_0(%arg0: i32, %arg1: i32) -> (i32, i32, i32) {
    %c0_i32 = arith.constant 0 : i32
    %c0_i32_0 = arith.constant 0 : i32
    return %arg0, %c0_i32, %arg1 : i32, i32, i32
  }
  func.func @transform_1(%arg0: i32, %arg1: i32) -> (i32, i32) {
    %c0_i32 = arith.constant 0 : i32
    %c0_i32_0 = arith.constant 0 : i32
    %c0_i32_1 = arith.constant 0 : i32
    return %c0_i32, %c0_i32_0 : i32, i32
  }
  func.func @transform_2(%arg0: i32, %arg1: i32) -> (i32, i32) {
    %c0_i32 = arith.constant 0 : i32
    %c0_i32_0 = arith.constant 0 : i32
    %c0_i32_1 = arith.constant 0 : i32
    return %c0_i32, %c0_i32_0 : i32, i32
  }
  func.func @transform_3(%arg0: i32, %arg1: i32) -> (i32, i32, i32) {
    %c0_i32 = arith.constant 0 : i32
    %c0_i32_0 = arith.constant 0 : i32
    %c0_i32_1 = arith.constant 0 : i32
    return %arg0, %c0_i32, %c0_i32_0 : i32, i32, i32
  }
}

module attributes {stable_mosaic.version = 11 : i64} {
  func.func @kernel(%arg0: i32, %arg1: i32, %arg2: memref<1x8x256xf32, #tpu.memory_space<vmem>>, %arg3: memref<8x64xbf16, #tpu.memory_space<vmem>>, %arg4: memref<1x64xf32, #tpu.memory_space<vmem>>, %arg5: memref<2x64xf32, #tpu.memory_space<vmem>>, %arg6: memref<64x128xbf16, #tpu.memory_space<vmem>>, %arg7: memref<1x128xf32, #tpu.memory_space<vmem>>, %arg8: memref<1x2x128xf32, #tpu.memory_space<vmem>>) attributes {dimension_semantics = [#tpu.dimension_semantics<parallel>, #tpu.dimension_semantics<arbitrary>], iteration_bounds = array<i64: 4, 2>, scalar_prefetch = 0 : i64, scratch_operands = 0 : i64, tpu.core_type = #tpu.core_type<tc>, window_params = [{transform_indices = @transform_0, window_bounds = array<i64: 1, 8, 256>}, {pipeline_mode = #tpu.pipeline_mode<synchronous>, transform_indices = @transform_1, window_bounds = array<i64: 8, 64>}, {pipeline_mode = #tpu.pipeline_mode<synchronous>, transform_indices = @transform_2, window_bounds = array<i64: 1, 64>}, {pipeline_mode = #tpu.pipeline_mode<synchronous>, transform_indices = @transform_3, window_bounds = array<i64: 2, 64>}, {pipeline_mode = #tpu.pipeline_mode<synchronous>, transform_indices = @transform_4, window_bounds = array<i64: 64, 128>}, {pipeline_mode = #tpu.pipeline_mode<synchronous>, transform_indices = @transform_5, window_bounds = array<i64: 1, 128>}, {transform_indices = @transform_6, window_bounds = array<i64: 1, 2, 128>}]} {
    %c0 = arith.constant 0 : index
    %c0_0 = arith.constant 0 : index
    %c0_1 = arith.constant 0 : index
    %0 = vector.load %arg2[%c0, %c0_0, %c0_1] : memref<1x8x256xf32, #tpu.memory_space<vmem>>, vector<1x8x256xf32>
    %1 = vector.shape_cast %0 : vector<1x8x256xf32> to vector<8x256xf32>
    %2 = arith.truncf %1 : vector<8x256xf32> to vector<8x256xbf16>
    %c0_2 = arith.constant 0 : index
    %c0_3 = arith.constant 0 : index
    %3 = vector.load %arg3[%c0_2, %c0_3] : memref<8x64xbf16, #tpu.memory_space<vmem>>, vector<8x64xbf16>
    %cst = arith.constant dense<0.000000e+00> : vector<256x64xf32>
    %4 = tpu.matmul %2, %3, %cst {dimension_numbers = #tpu.dot_dimension_numbers<[0], [0], [1], [1], [0, 1, 1, 1], [], []>} : vector<8x256xbf16>, vector<8x64xbf16>, vector<256x64xf32> -> vector<256x64xf32>
    %c0_4 = arith.constant 0 : index
    %c0_5 = arith.constant 0 : index
    %5 = vector.load %arg4[%c0_4, %c0_5] : memref<1x64xf32, #tpu.memory_space<vmem>>, vector<1x64xf32>
    %6 = vector.broadcast %5 : vector<1x64xf32> to vector<256x64xf32>
    %7 = arith.addf %4, %6 : vector<256x64xf32>
    %c0_6 = arith.constant 0 : index
    %c0_7 = arith.constant 0 : index
    %8 = vector.load %arg5[%c0_6, %c0_7] : memref<2x64xf32, #tpu.memory_space<vmem>>, vector<2x64xf32>
    %9 = vector.extract_strided_slice %8 {offsets = [0, 0], sizes = [1, 64], strides = [1, 1]} : vector<2x64xf32> to vector<1x64xf32>
    %cst_8 = arith.constant 4.8828125E-4 : f32
    %10 = vector.broadcast %cst_8 : f32 to vector<1x64xf32>
    %11 = arith.mulf %9, %10 : vector<1x64xf32>
    %12 = vector.extract_strided_slice %8 {offsets = [1, 0], sizes = [1, 64], strides = [1, 1]} : vector<2x64xf32> to vector<1x64xf32>
    %cst_9 = arith.constant 4.8828125E-4 : f32
    %13 = vector.broadcast %cst_9 : f32 to vector<1x64xf32>
    %14 = arith.mulf %12, %13 : vector<1x64xf32>
    %15 = arith.mulf %11, %11 : vector<1x64xf32>
    %16 = arith.subf %14, %15 : vector<1x64xf32>
    %cst_10 = arith.constant 0.000000e+00 : f32
    %17 = vector.broadcast %cst_10 : f32 to vector<1x64xf32>
    %18 = arith.maximumf %16, %17 : vector<1x64xf32>
    %19 = vector.broadcast %11 : vector<1x64xf32> to vector<256x64xf32>
    %20 = arith.subf %7, %19 : vector<256x64xf32>
    %cst_11 = arith.constant 9.99999974E-6 : f32
    %21 = vector.broadcast %cst_11 : f32 to vector<1x64xf32>
    %22 = arith.addf %18, %21 : vector<1x64xf32>
    %23 = math.rsqrt %22 : vector<1x64xf32>
    %24 = vector.broadcast %23 : vector<1x64xf32> to vector<256x64xf32>
    %25 = arith.mulf %20, %24 : vector<256x64xf32>
    %cst_12 = arith.constant 0.000000e+00 : f32
    %26 = vector.broadcast %cst_12 : f32 to vector<256x64xf32>
    %27 = arith.maximumf %25, %26 : vector<256x64xf32>
    %28 = arith.truncf %27 : vector<256x64xf32> to vector<256x64xbf16>
    %c0_13 = arith.constant 0 : index
    %c0_14 = arith.constant 0 : index
    %29 = vector.load %arg6[%c0_13, %c0_14] : memref<64x128xbf16, #tpu.memory_space<vmem>>, vector<64x128xbf16>
    %cst_15 = arith.constant dense<0.000000e+00> : vector<256x128xf32>
    %30 = tpu.matmul %28, %29, %cst_15 {dimension_numbers = #tpu.dot_dimension_numbers<[1], [0], [0], [1], [0, 0, 1, 1], [], []>} : vector<256x64xbf16>, vector<64x128xbf16>, vector<256x128xf32> -> vector<256x128xf32>
    %c0_16 = arith.constant 0 : index
    %c0_17 = arith.constant 0 : index
    %31 = vector.load %arg7[%c0_16, %c0_17] : memref<1x128xf32, #tpu.memory_space<vmem>>, vector<1x128xf32>
    %32 = vector.broadcast %31 : vector<1x128xf32> to vector<256x128xf32>
    %33 = arith.addf %30, %32 : vector<256x128xf32>
    %c0_i32 = arith.constant 0 : i32
    %34 = arith.cmpi eq, %arg1, %c0_i32 : i32
    %35 = arith.extui %34 : i1 to i32
    %c0_i32_18 = arith.constant 0 : i32
    %36 = arith.cmpi ne, %35, %c0_i32_18 : i32
    scf.if %36 {
      %cst_27 = arith.constant 0.000000e+00 : f32
      %47 = vector.broadcast %cst_27 : f32 to vector<1x2x128xf32>
      %c0_28 = arith.constant 0 : index
      %c0_29 = arith.constant 0 : index
      %c0_30 = arith.constant 0 : index
      %48 = vector.load %arg8[%c0_28, %c0_29, %c0_30] : memref<1x2x128xf32, #tpu.memory_space<vmem>>, vector<1x2x128xf32>
      tpu.vector_store %arg8[%c0_28, %c0_29, %c0_30], %47 {strides = array<i32>} : memref<1x2x128xf32, #tpu.memory_space<vmem>>, vector<1x2x128xf32>,
    } else {
    }
    %cst_19 = arith.constant dense<0.000000e+00> : vector<128xf32>
    %37 = vector.multi_reduction <add>, %33, %cst_19 [0] : vector<256x128xf32> to vector<128xf32>
    %38 = vector.shape_cast %37 : vector<128xf32> to vector<1x128xf32>
    %39 = arith.mulf %33, %33 : vector<256x128xf32>
    %cst_20 = arith.constant dense<0.000000e+00> : vector<128xf32>
    %40 = vector.multi_reduction <add>, %39, %cst_20 [0] : vector<256x128xf32> to vector<128xf32>
    %41 = vector.shape_cast %40 : vector<128xf32> to vector<1x128xf32>
    %c0_21 = arith.constant 0 : index
    %c0_22 = arith.constant 0 : index
    %c0_23 = arith.constant 0 : index
    %42 = vector.load %arg8[%c0_21, %c0_22, %c0_23] : memref<1x2x128xf32, #tpu.memory_space<vmem>>, vector<1x2x128xf32>
    %43 = tpu.concatenate %38, %41 in 0 : vector<1x128xf32>, vector<1x128xf32> -> vector<2x128xf32>
    %44 = vector.shape_cast %43 : vector<2x128xf32> to vector<1x2x128xf32>
    %45 = arith.addf %42, %44 : vector<1x2x128xf32>
    %c0_24 = arith.constant 0 : index
    %c0_25 = arith.constant 0 : index
    %c0_26 = arith.constant 0 : index
    %46 = vector.load %arg8[%c0_24, %c0_25, %c0_26] : memref<1x2x128xf32, #tpu.memory_space<vmem>>, vector<1x2x128xf32>
    tpu.vector_store %arg8[%c0_24, %c0_25, %c0_26], %45 {strides = array<i32>} : memref<1x2x128xf32, #tpu.memory_space<vmem>>, vector<1x2x128xf32>,
    return
  }
  func.func @transform_0(%arg0: i32, %arg1: i32) -> (i32, i32, i32) {
    %c0_i32 = arith.constant 0 : i32
    %c0_i32_0 = arith.constant 0 : i32
    return %arg0, %c0_i32, %arg1 : i32, i32, i32
  }
  func.func @transform_1(%arg0: i32, %arg1: i32) -> (i32, i32) {
    %c0_i32 = arith.constant 0 : i32
    %c0_i32_0 = arith.constant 0 : i32
    %c0_i32_1 = arith.constant 0 : i32
    return %c0_i32, %c0_i32_0 : i32, i32
  }
  func.func @transform_2(%arg0: i32, %arg1: i32) -> (i32, i32) {
    %c0_i32 = arith.constant 0 : i32
    %c0_i32_0 = arith.constant 0 : i32
    %c0_i32_1 = arith.constant 0 : i32
    return %c0_i32, %c0_i32_0 : i32, i32
  }
  func.func @transform_3(%arg0: i32, %arg1: i32) -> (i32, i32) {
    %c0_i32 = arith.constant 0 : i32
    %c0_i32_0 = arith.constant 0 : i32
    %c0_i32_1 = arith.constant 0 : i32
    return %c0_i32, %c0_i32_0 : i32, i32
  }
  func.func @transform_4(%arg0: i32, %arg1: i32) -> (i32, i32) {
    %c0_i32 = arith.constant 0 : i32
    %c0_i32_0 = arith.constant 0 : i32
    %c0_i32_1 = arith.constant 0 : i32
    return %c0_i32, %c0_i32_0 : i32, i32
  }
  func.func @transform_5(%arg0: i32, %arg1: i32) -> (i32, i32) {
    %c0_i32 = arith.constant 0 : i32
    %c0_i32_0 = arith.constant 0 : i32
    %c0_i32_1 = arith.constant 0 : i32
    return %c0_i32, %c0_i32_0 : i32, i32
  }
  func.func @transform_6(%arg0: i32, %arg1: i32) -> (i32, i32, i32) {
    %c0_i32 = arith.constant 0 : i32
    %c0_i32_0 = arith.constant 0 : i32
    %c0_i32_1 = arith.constant 0 : i32
    return %arg0, %c0_i32, %c0_i32_0 : i32, i32, i32
  }
}

module attributes {stable_mosaic.version = 11 : i64} {
  func.func @kernel(%arg0: i32, %arg1: i32, %arg2: memref<1x8x256xf32, #tpu.memory_space<vmem>>, %arg3: memref<8x64xbf16, #tpu.memory_space<vmem>>, %arg4: memref<1x64xf32, #tpu.memory_space<vmem>>, %arg5: memref<2x64xf32, #tpu.memory_space<vmem>>, %arg6: memref<64x128xbf16, #tpu.memory_space<vmem>>, %arg7: memref<1x128xf32, #tpu.memory_space<vmem>>, %arg8: memref<2x128xf32, #tpu.memory_space<vmem>>, %arg9: memref<128x1024xbf16, #tpu.memory_space<vmem>>, %arg10: memref<1x1024xf32, #tpu.memory_space<vmem>>, %arg11: memref<1x2x1024xf32, #tpu.memory_space<vmem>>, %arg12: memref<1x1x1024xf32, #tpu.memory_space<vmem>>) attributes {dimension_semantics = [#tpu.dimension_semantics<parallel>, #tpu.dimension_semantics<arbitrary>], iteration_bounds = array<i64: 4, 2>, scalar_prefetch = 0 : i64, scratch_operands = 0 : i64, tpu.core_type = #tpu.core_type<tc>, window_params = [{transform_indices = @transform_0, window_bounds = array<i64: 1, 8, 256>}, {pipeline_mode = #tpu.pipeline_mode<synchronous>, transform_indices = @transform_1, window_bounds = array<i64: 8, 64>}, {pipeline_mode = #tpu.pipeline_mode<synchronous>, transform_indices = @transform_2, window_bounds = array<i64: 1, 64>}, {pipeline_mode = #tpu.pipeline_mode<synchronous>, transform_indices = @transform_3, window_bounds = array<i64: 2, 64>}, {pipeline_mode = #tpu.pipeline_mode<synchronous>, transform_indices = @transform_4, window_bounds = array<i64: 64, 128>}, {pipeline_mode = #tpu.pipeline_mode<synchronous>, transform_indices = @transform_5, window_bounds = array<i64: 1, 128>}, {pipeline_mode = #tpu.pipeline_mode<synchronous>, transform_indices = @transform_6, window_bounds = array<i64: 2, 128>}, {pipeline_mode = #tpu.pipeline_mode<synchronous>, transform_indices = @transform_7, window_bounds = array<i64: 128, 1024>}, {pipeline_mode = #tpu.pipeline_mode<synchronous>, transform_indices = @transform_8, window_bounds = array<i64: 1, 1024>}, {transform_indices = @transform_9, window_bounds = array<i64: 1, 2, 1024>}, {transform_indices = @transform_10, window_bounds = array<i64: 1, 1, 1024>}]} {
    %c0 = arith.constant 0 : index
    %c0_0 = arith.constant 0 : index
    %c0_1 = arith.constant 0 : index
    %0 = vector.load %arg2[%c0, %c0_0, %c0_1] : memref<1x8x256xf32, #tpu.memory_space<vmem>>, vector<1x8x256xf32>
    %1 = vector.shape_cast %0 : vector<1x8x256xf32> to vector<8x256xf32>
    %2 = arith.truncf %1 : vector<8x256xf32> to vector<8x256xbf16>
    %c0_2 = arith.constant 0 : index
    %c0_3 = arith.constant 0 : index
    %3 = vector.load %arg3[%c0_2, %c0_3] : memref<8x64xbf16, #tpu.memory_space<vmem>>, vector<8x64xbf16>
    %cst = arith.constant dense<0.000000e+00> : vector<256x64xf32>
    %4 = tpu.matmul %2, %3, %cst {dimension_numbers = #tpu.dot_dimension_numbers<[0], [0], [1], [1], [0, 1, 1, 1], [], []>} : vector<8x256xbf16>, vector<8x64xbf16>, vector<256x64xf32> -> vector<256x64xf32>
    %c0_4 = arith.constant 0 : index
    %c0_5 = arith.constant 0 : index
    %5 = vector.load %arg4[%c0_4, %c0_5] : memref<1x64xf32, #tpu.memory_space<vmem>>, vector<1x64xf32>
    %6 = vector.broadcast %5 : vector<1x64xf32> to vector<256x64xf32>
    %7 = arith.addf %4, %6 : vector<256x64xf32>
    %c0_6 = arith.constant 0 : index
    %c0_7 = arith.constant 0 : index
    %8 = vector.load %arg5[%c0_6, %c0_7] : memref<2x64xf32, #tpu.memory_space<vmem>>, vector<2x64xf32>
    %9 = vector.extract_strided_slice %8 {offsets = [0, 0], sizes = [1, 64], strides = [1, 1]} : vector<2x64xf32> to vector<1x64xf32>
    %cst_8 = arith.constant 4.8828125E-4 : f32
    %10 = vector.broadcast %cst_8 : f32 to vector<1x64xf32>
    %11 = arith.mulf %9, %10 : vector<1x64xf32>
    %12 = vector.extract_strided_slice %8 {offsets = [1, 0], sizes = [1, 64], strides = [1, 1]} : vector<2x64xf32> to vector<1x64xf32>
    %cst_9 = arith.constant 4.8828125E-4 : f32
    %13 = vector.broadcast %cst_9 : f32 to vector<1x64xf32>
    %14 = arith.mulf %12, %13 : vector<1x64xf32>
    %15 = arith.mulf %11, %11 : vector<1x64xf32>
    %16 = arith.subf %14, %15 : vector<1x64xf32>
    %cst_10 = arith.constant 0.000000e+00 : f32
    %17 = vector.broadcast %cst_10 : f32 to vector<1x64xf32>
    %18 = arith.maximumf %16, %17 : vector<1x64xf32>
    %19 = vector.broadcast %11 : vector<1x64xf32> to vector<256x64xf32>
    %20 = arith.subf %7, %19 : vector<256x64xf32>
    %cst_11 = arith.constant 9.99999974E-6 : f32
    %21 = vector.broadcast %cst_11 : f32 to vector<1x64xf32>
    %22 = arith.addf %18, %21 : vector<1x64xf32>
    %23 = math.rsqrt %22 : vector<1x64xf32>
    %24 = vector.broadcast %23 : vector<1x64xf32> to vector<256x64xf32>
    %25 = arith.mulf %20, %24 : vector<256x64xf32>
    %cst_12 = arith.constant 0.000000e+00 : f32
    %26 = vector.broadcast %cst_12 : f32 to vector<256x64xf32>
    %27 = arith.maximumf %25, %26 : vector<256x64xf32>
    %28 = arith.truncf %27 : vector<256x64xf32> to vector<256x64xbf16>
    %c0_13 = arith.constant 0 : index
    %c0_14 = arith.constant 0 : index
    %29 = vector.load %arg6[%c0_13, %c0_14] : memref<64x128xbf16, #tpu.memory_space<vmem>>, vector<64x128xbf16>
    %cst_15 = arith.constant dense<0.000000e+00> : vector<256x128xf32>
    %30 = tpu.matmul %28, %29, %cst_15 {dimension_numbers = #tpu.dot_dimension_numbers<[1], [0], [0], [1], [0, 0, 1, 1], [], []>} : vector<256x64xbf16>, vector<64x128xbf16>, vector<256x128xf32> -> vector<256x128xf32>
    %c0_16 = arith.constant 0 : index
    %c0_17 = arith.constant 0 : index
    %31 = vector.load %arg7[%c0_16, %c0_17] : memref<1x128xf32, #tpu.memory_space<vmem>>, vector<1x128xf32>
    %32 = vector.broadcast %31 : vector<1x128xf32> to vector<256x128xf32>
    %33 = arith.addf %30, %32 : vector<256x128xf32>
    %c0_18 = arith.constant 0 : index
    %c0_19 = arith.constant 0 : index
    %34 = vector.load %arg8[%c0_18, %c0_19] : memref<2x128xf32, #tpu.memory_space<vmem>>, vector<2x128xf32>
    %35 = vector.extract_strided_slice %34 {offsets = [0, 0], sizes = [1, 128], strides = [1, 1]} : vector<2x128xf32> to vector<1x128xf32>
    %cst_20 = arith.constant 4.8828125E-4 : f32
    %36 = vector.broadcast %cst_20 : f32 to vector<1x128xf32>
    %37 = arith.mulf %35, %36 : vector<1x128xf32>
    %38 = vector.extract_strided_slice %34 {offsets = [1, 0], sizes = [1, 128], strides = [1, 1]} : vector<2x128xf32> to vector<1x128xf32>
    %cst_21 = arith.constant 4.8828125E-4 : f32
    %39 = vector.broadcast %cst_21 : f32 to vector<1x128xf32>
    %40 = arith.mulf %38, %39 : vector<1x128xf32>
    %41 = arith.mulf %37, %37 : vector<1x128xf32>
    %42 = arith.subf %40, %41 : vector<1x128xf32>
    %cst_22 = arith.constant 0.000000e+00 : f32
    %43 = vector.broadcast %cst_22 : f32 to vector<1x128xf32>
    %44 = arith.maximumf %42, %43 : vector<1x128xf32>
    %45 = vector.broadcast %37 : vector<1x128xf32> to vector<256x128xf32>
    %46 = arith.subf %33, %45 : vector<256x128xf32>
    %cst_23 = arith.constant 9.99999974E-6 : f32
    %47 = vector.broadcast %cst_23 : f32 to vector<1x128xf32>
    %48 = arith.addf %44, %47 : vector<1x128xf32>
    %49 = math.rsqrt %48 : vector<1x128xf32>
    %50 = vector.broadcast %49 : vector<1x128xf32> to vector<256x128xf32>
    %51 = arith.mulf %46, %50 : vector<256x128xf32>
    %cst_24 = arith.constant 0.000000e+00 : f32
    %52 = vector.broadcast %cst_24 : f32 to vector<256x128xf32>
    %53 = arith.maximumf %51, %52 : vector<256x128xf32>
    %54 = arith.truncf %53 : vector<256x128xf32> to vector<256x128xbf16>
    %c0_25 = arith.constant 0 : index
    %c0_26 = arith.constant 0 : index
    %55 = vector.load %arg9[%c0_25, %c0_26] : memref<128x1024xbf16, #tpu.memory_space<vmem>>, vector<128x1024xbf16>
    %cst_27 = arith.constant dense<0.000000e+00> : vector<256x1024xf32>
    %56 = tpu.matmul %54, %55, %cst_27 {dimension_numbers = #tpu.dot_dimension_numbers<[1], [0], [0], [1], [0, 0, 1, 1], [], []>} : vector<256x128xbf16>, vector<128x1024xbf16>, vector<256x1024xf32> -> vector<256x1024xf32>
    %c0_28 = arith.constant 0 : index
    %c0_29 = arith.constant 0 : index
    %57 = vector.load %arg10[%c0_28, %c0_29] : memref<1x1024xf32, #tpu.memory_space<vmem>>, vector<1x1024xf32>
    %58 = vector.broadcast %57 : vector<1x1024xf32> to vector<256x1024xf32>
    %59 = arith.addf %56, %58 : vector<256x1024xf32>
    %c0_i32 = arith.constant 0 : i32
    %60 = arith.cmpi eq, %arg1, %c0_i32 : i32
    %61 = arith.extui %60 : i1 to i32
    %c0_i32_30 = arith.constant 0 : i32
    %62 = arith.cmpi ne, %61, %c0_i32_30 : i32
    scf.if %62 {
      %cst_48 = arith.constant 0.000000e+00 : f32
      %82 = vector.broadcast %cst_48 : f32 to vector<1x2x1024xf32>
      %c0_49 = arith.constant 0 : index
      %c0_50 = arith.constant 0 : index
      %c0_51 = arith.constant 0 : index
      %83 = vector.load %arg11[%c0_49, %c0_50, %c0_51] : memref<1x2x1024xf32, #tpu.memory_space<vmem>>, vector<1x2x1024xf32>
      tpu.vector_store %arg11[%c0_49, %c0_50, %c0_51], %82 {strides = array<i32>} : memref<1x2x1024xf32, #tpu.memory_space<vmem>>, vector<1x2x1024xf32>,
    } else {
    }
    %cst_31 = arith.constant dense<0.000000e+00> : vector<1024xf32>
    %63 = vector.multi_reduction <add>, %59, %cst_31 [0] : vector<256x1024xf32> to vector<1024xf32>
    %64 = vector.shape_cast %63 : vector<1024xf32> to vector<1x1024xf32>
    %65 = arith.mulf %59, %59 : vector<256x1024xf32>
    %cst_32 = arith.constant dense<0.000000e+00> : vector<1024xf32>
    %66 = vector.multi_reduction <add>, %65, %cst_32 [0] : vector<256x1024xf32> to vector<1024xf32>
    %67 = vector.shape_cast %66 : vector<1024xf32> to vector<1x1024xf32>
    %c0_33 = arith.constant 0 : index
    %c0_34 = arith.constant 0 : index
    %c0_35 = arith.constant 0 : index
    %68 = vector.load %arg11[%c0_33, %c0_34, %c0_35] : memref<1x2x1024xf32, #tpu.memory_space<vmem>>, vector<1x2x1024xf32>
    %69 = tpu.concatenate %64, %67 in 0 : vector<1x1024xf32>, vector<1x1024xf32> -> vector<2x1024xf32>
    %70 = vector.shape_cast %69 : vector<2x1024xf32> to vector<1x2x1024xf32>
    %71 = arith.addf %68, %70 : vector<1x2x1024xf32>
    %c0_36 = arith.constant 0 : index
    %c0_37 = arith.constant 0 : index
    %c0_38 = arith.constant 0 : index
    %72 = vector.load %arg11[%c0_36, %c0_37, %c0_38] : memref<1x2x1024xf32, #tpu.memory_space<vmem>>, vector<1x2x1024xf32>
    tpu.vector_store %arg11[%c0_36, %c0_37, %c0_38], %71 {strides = array<i32>} : memref<1x2x1024xf32, #tpu.memory_space<vmem>>, vector<1x2x1024xf32>,
    %c0_i32_39 = arith.constant 0 : i32
    %73 = arith.cmpi eq, %arg1, %c0_i32_39 : i32
    %74 = arith.extui %73 : i1 to i32
    %c0_i32_40 = arith.constant 0 : i32
    %75 = arith.cmpi ne, %74, %c0_i32_40 : i32
    scf.if %75 {
      %cst_48 = arith.constant 0xFF800000 : f32
      %82 = vector.broadcast %cst_48 : f32 to vector<1x1x1024xf32>
      %c0_49 = arith.constant 0 : index
      %c0_50 = arith.constant 0 : index
      %c0_51 = arith.constant 0 : index
      %83 = vector.load %arg12[%c0_49, %c0_50, %c0_51] : memref<1x1x1024xf32, #tpu.memory_space<vmem>>, vector<1x1x1024xf32>
      tpu.vector_store %arg12[%c0_49, %c0_50, %c0_51], %82 {strides = array<i32>} : memref<1x1x1024xf32, #tpu.memory_space<vmem>>, vector<1x1x1024xf32>,
    } else {
    }
    %c0_41 = arith.constant 0 : index
    %c0_42 = arith.constant 0 : index
    %c0_43 = arith.constant 0 : index
    %76 = vector.load %arg12[%c0_41, %c0_42, %c0_43] : memref<1x1x1024xf32, #tpu.memory_space<vmem>>, vector<1x1x1024xf32>
    %cst_44 = arith.constant dense<0xFF800000> : vector<1024xf32>
    %77 = vector.multi_reduction <maximumf>, %59, %cst_44 [0] : vector<256x1024xf32> to vector<1024xf32>
    %78 = vector.shape_cast %77 : vector<1024xf32> to vector<1x1024xf32>
    %79 = vector.shape_cast %78 : vector<1x1024xf32> to vector<1x1x1024xf32>
    %80 = arith.maximumf %76, %79 : vector<1x1x1024xf32>
    %c0_45 = arith.constant 0 : index
    %c0_46 = arith.constant 0 : index
    %c0_47 = arith.constant 0 : index
    %81 = vector.load %arg12[%c0_45, %c0_46, %c0_47] : memref<1x1x1024xf32, #tpu.memory_space<vmem>>, vector<1x1x1024xf32>
    tpu.vector_store %arg12[%c0_45, %c0_46, %c0_47], %80 {strides = array<i32>} : memref<1x1x1024xf32, #tpu.memory_space<vmem>>, vector<1x1x1024xf32>,
    return
  }
  func.func @transform_0(%arg0: i32, %arg1: i32) -> (i32, i32, i32) {
    %c0_i32 = arith.constant 0 : i32
    %c0_i32_0 = arith.constant 0 : i32
    return %arg0, %c0_i32, %arg1 : i32, i32, i32
  }
  func.func @transform_1(%arg0: i32, %arg1: i32) -> (i32, i32) {
    %c0_i32 = arith.constant 0 : i32
    %c0_i32_0 = arith.constant 0 : i32
    %c0_i32_1 = arith.constant 0 : i32
    return %c0_i32, %c0_i32_0 : i32, i32
  }
  func.func @transform_2(%arg0: i32, %arg1: i32) -> (i32, i32) {
    %c0_i32 = arith.constant 0 : i32
    %c0_i32_0 = arith.constant 0 : i32
    %c0_i32_1 = arith.constant 0 : i32
    return %c0_i32, %c0_i32_0 : i32, i32
  }
  func.func @transform_3(%arg0: i32, %arg1: i32) -> (i32, i32) {
    %c0_i32 = arith.constant 0 : i32
    %c0_i32_0 = arith.constant 0 : i32
    %c0_i32_1 = arith.constant 0 : i32
    return %c0_i32, %c0_i32_0 : i32, i32
  }
  func.func @transform_4(%arg0: i32, %arg1: i32) -> (i32, i32) {
    %c0_i32 = arith.constant 0 : i32
    %c0_i32_0 = arith.constant 0 : i32
    %c0_i32_1 = arith.constant 0 : i32
    return %c0_i32, %c0_i32_0 : i32, i32
  }
  func.func @transform_5(%arg0: i32, %arg1: i32) -> (i32, i32) {
    %c0_i32 = arith.constant 0 : i32
    %c0_i32_0 = arith.constant 0 : i32
    %c0_i32_1 = arith.constant 0 : i32
    return %c0_i32, %c0_i32_0 : i32, i32
  }
  func.func @transform_6(%arg0: i32, %arg1: i32) -> (i32, i32) {
    %c0_i32 = arith.constant 0 : i32
    %c0_i32_0 = arith.constant 0 : i32
    %c0_i32_1 = arith.constant 0 : i32
    return %c0_i32, %c0_i32_0 : i32, i32
  }
  func.func @transform_7(%arg0: i32, %arg1: i32) -> (i32, i32) {
    %c0_i32 = arith.constant 0 : i32
    %c0_i32_0 = arith.constant 0 : i32
    %c0_i32_1 = arith.constant 0 : i32
    return %c0_i32, %c0_i32_0 : i32, i32
  }
  func.func @transform_8(%arg0: i32, %arg1: i32) -> (i32, i32) {
    %c0_i32 = arith.constant 0 : i32
    %c0_i32_0 = arith.constant 0 : i32
    %c0_i32_1 = arith.constant 0 : i32
    return %c0_i32, %c0_i32_0 : i32, i32
  }
  func.func @transform_9(%arg0: i32, %arg1: i32) -> (i32, i32, i32) {
    %c0_i32 = arith.constant 0 : i32
    %c0_i32_0 = arith.constant 0 : i32
    %c0_i32_1 = arith.constant 0 : i32
    return %arg0, %c0_i32, %c0_i32_0 : i32, i32, i32
  }
  func.func @transform_10(%arg0: i32, %arg1: i32) -> (i32, i32, i32) {
    %c0_i32 = arith.constant 0 : i32
    %c0_i32_0 = arith.constant 0 : i32
    %c0_i32_1 = arith.constant 0 : i32
    return %arg0, %c0_i32, %c0_i32_0 : i32, i32, i32
  }
}

module attributes {stable_mosaic.version = 11 : i64} {
  func.func @kernel(%arg0: memref<4x1024xf32, #tpu.memory_space<vmem>>, %arg1: memref<2x1024xf32, #tpu.memory_space<vmem>>, %arg2: memref<1024x512xbf16, #tpu.memory_space<vmem>>, %arg3: memref<1x512xf32, #tpu.memory_space<vmem>>, %arg4: memref<512x256xbf16, #tpu.memory_space<vmem>>, %arg5: memref<1x256xf32, #tpu.memory_space<vmem>>, %arg6: memref<256x128xbf16, #tpu.memory_space<vmem>>, %arg7: memref<1x128xf32, #tpu.memory_space<vmem>>, %arg8: memref<4x128xf32, #tpu.memory_space<vmem>>) attributes {dimension_semantics = [], scalar_prefetch = 0 : i64, scratch_operands = 0 : i64, tpu.core_type = #tpu.core_type<tc>} {
    %c0 = arith.constant 0 : index
    %c0_0 = arith.constant 0 : index
    %0 = vector.load %arg0[%c0, %c0_0] : memref<4x1024xf32, #tpu.memory_space<vmem>>, vector<4x1024xf32>
    %c0_1 = arith.constant 0 : index
    %c0_2 = arith.constant 0 : index
    %1 = vector.load %arg1[%c0_1, %c0_2] : memref<2x1024xf32, #tpu.memory_space<vmem>>, vector<2x1024xf32>
    %2 = vector.extract_strided_slice %1 {offsets = [0, 0], sizes = [1, 1024], strides = [1, 1]} : vector<2x1024xf32> to vector<1x1024xf32>
    %cst = arith.constant 4.8828125E-4 : f32
    %3 = vector.broadcast %cst : f32 to vector<1x1024xf32>
    %4 = arith.mulf %2, %3 : vector<1x1024xf32>
    %5 = vector.extract_strided_slice %1 {offsets = [1, 0], sizes = [1, 1024], strides = [1, 1]} : vector<2x1024xf32> to vector<1x1024xf32>
    %cst_3 = arith.constant 4.8828125E-4 : f32
    %6 = vector.broadcast %cst_3 : f32 to vector<1x1024xf32>
    %7 = arith.mulf %5, %6 : vector<1x1024xf32>
    %8 = arith.mulf %4, %4 : vector<1x1024xf32>
    %9 = arith.subf %7, %8 : vector<1x1024xf32>
    %cst_4 = arith.constant 0.000000e+00 : f32
    %10 = vector.broadcast %cst_4 : f32 to vector<1x1024xf32>
    %11 = arith.maximumf %9, %10 : vector<1x1024xf32>
    %12 = vector.broadcast %4 : vector<1x1024xf32> to vector<4x1024xf32>
    %13 = arith.subf %0, %12 : vector<4x1024xf32>
    %cst_5 = arith.constant 0.000000e+00 : f32
    %14 = vector.broadcast %cst_5 : f32 to vector<4x1024xf32>
    %15 = arith.maximumf %13, %14 : vector<4x1024xf32>
    %cst_6 = arith.constant 9.99999974E-6 : f32
    %16 = vector.broadcast %cst_6 : f32 to vector<1x1024xf32>
    %17 = arith.addf %11, %16 : vector<1x1024xf32>
    %18 = math.rsqrt %17 : vector<1x1024xf32>
    %19 = vector.broadcast %18 : vector<1x1024xf32> to vector<4x1024xf32>
    %20 = arith.mulf %15, %19 : vector<4x1024xf32>
    %21 = arith.truncf %20 : vector<4x1024xf32> to vector<4x1024xbf16>
    %c0_7 = arith.constant 0 : index
    %c0_8 = arith.constant 0 : index
    %22 = vector.load %arg2[%c0_7, %c0_8] : memref<1024x512xbf16, #tpu.memory_space<vmem>>, vector<1024x512xbf16>
    %cst_9 = arith.constant dense<0.000000e+00> : vector<4x512xf32>
    %23 = tpu.matmul %21, %22, %cst_9 {dimension_numbers = #tpu.dot_dimension_numbers<[1], [0], [0], [1], [0, 0, 1, 1], [], []>} : vector<4x1024xbf16>, vector<1024x512xbf16>, vector<4x512xf32> -> vector<4x512xf32>
    %c0_10 = arith.constant 0 : index
    %c0_11 = arith.constant 0 : index
    %24 = vector.load %arg3[%c0_10, %c0_11] : memref<1x512xf32, #tpu.memory_space<vmem>>, vector<1x512xf32>
    %25 = vector.broadcast %24 : vector<1x512xf32> to vector<4x512xf32>
    %26 = arith.addf %23, %25 : vector<4x512xf32>
    %cst_12 = arith.constant dense<0.000000e+00> : vector<512xf32>
    %27 = vector.multi_reduction <add>, %26, %cst_12 [0] : vector<4x512xf32> to vector<512xf32>
    %28 = vector.shape_cast %27 : vector<512xf32> to vector<1x512xf32>
    %cst_13 = arith.constant 4.000000e+00 : f32
    %29 = vector.broadcast %cst_13 : f32 to vector<1x512xf32>
    %30 = arith.divf %28, %29 : vector<1x512xf32>
    %31 = vector.broadcast %30 : vector<1x512xf32> to vector<4x512xf32>
    %32 = arith.subf %26, %31 : vector<4x512xf32>
    %33 = arith.mulf %32, %32 : vector<4x512xf32>
    %cst_14 = arith.constant dense<0.000000e+00> : vector<512xf32>
    %34 = vector.multi_reduction <add>, %33, %cst_14 [0] : vector<4x512xf32> to vector<512xf32>
    %35 = vector.shape_cast %34 : vector<512xf32> to vector<1x512xf32>
    %cst_15 = arith.constant 4.000000e+00 : f32
    %36 = vector.broadcast %cst_15 : f32 to vector<1x512xf32>
    %37 = arith.divf %35, %36 : vector<1x512xf32>
    %38 = vector.broadcast %30 : vector<1x512xf32> to vector<4x512xf32>
    %39 = arith.subf %26, %38 : vector<4x512xf32>
    %cst_16 = arith.constant 9.99999974E-6 : f32
    %40 = vector.broadcast %cst_16 : f32 to vector<1x512xf32>
    %41 = arith.addf %37, %40 : vector<1x512xf32>
    %42 = math.rsqrt %41 : vector<1x512xf32>
    %43 = vector.broadcast %42 : vector<1x512xf32> to vector<4x512xf32>
    %44 = arith.mulf %39, %43 : vector<4x512xf32>
    %cst_17 = arith.constant 0.000000e+00 : f32
    %45 = vector.broadcast %cst_17 : f32 to vector<4x512xf32>
    %46 = arith.maximumf %44, %45 : vector<4x512xf32>
    %47 = arith.truncf %46 : vector<4x512xf32> to vector<4x512xbf16>
    %c0_18 = arith.constant 0 : index
    %c0_19 = arith.constant 0 : index
    %48 = vector.load %arg4[%c0_18, %c0_19] : memref<512x256xbf16, #tpu.memory_space<vmem>>, vector<512x256xbf16>
    %cst_20 = arith.constant dense<0.000000e+00> : vector<4x256xf32>
    %49 = tpu.matmul %47, %48, %cst_20 {dimension_numbers = #tpu.dot_dimension_numbers<[1], [0], [0], [1], [0, 0, 1, 1], [], []>} : vector<4x512xbf16>, vector<512x256xbf16>, vector<4x256xf32> -> vector<4x256xf32>
    %c0_21 = arith.constant 0 : index
    %c0_22 = arith.constant 0 : index
    %50 = vector.load %arg5[%c0_21, %c0_22] : memref<1x256xf32, #tpu.memory_space<vmem>>, vector<1x256xf32>
    %51 = vector.broadcast %50 : vector<1x256xf32> to vector<4x256xf32>
    %52 = arith.addf %49, %51 : vector<4x256xf32>
    %cst_23 = arith.constant dense<0.000000e+00> : vector<256xf32>
    %53 = vector.multi_reduction <add>, %52, %cst_23 [0] : vector<4x256xf32> to vector<256xf32>
    %54 = vector.shape_cast %53 : vector<256xf32> to vector<1x256xf32>
    %cst_24 = arith.constant 4.000000e+00 : f32
    %55 = vector.broadcast %cst_24 : f32 to vector<1x256xf32>
    %56 = arith.divf %54, %55 : vector<1x256xf32>
    %57 = vector.broadcast %56 : vector<1x256xf32> to vector<4x256xf32>
    %58 = arith.subf %52, %57 : vector<4x256xf32>
    %59 = arith.mulf %58, %58 : vector<4x256xf32>
    %cst_25 = arith.constant dense<0.000000e+00> : vector<256xf32>
    %60 = vector.multi_reduction <add>, %59, %cst_25 [0] : vector<4x256xf32> to vector<256xf32>
    %61 = vector.shape_cast %60 : vector<256xf32> to vector<1x256xf32>
    %cst_26 = arith.constant 4.000000e+00 : f32
    %62 = vector.broadcast %cst_26 : f32 to vector<1x256xf32>
    %63 = arith.divf %61, %62 : vector<1x256xf32>
    %64 = vector.broadcast %56 : vector<1x256xf32> to vector<4x256xf32>
    %65 = arith.subf %52, %64 : vector<4x256xf32>
    %cst_27 = arith.constant 9.99999974E-6 : f32
    %66 = vector.broadcast %cst_27 : f32 to vector<1x256xf32>
    %67 = arith.addf %63, %66 : vector<1x256xf32>
    %68 = math.rsqrt %67 : vector<1x256xf32>
    %69 = vector.broadcast %68 : vector<1x256xf32> to vector<4x256xf32>
    %70 = arith.mulf %65, %69 : vector<4x256xf32>
    %cst_28 = arith.constant 0.000000e+00 : f32
    %71 = vector.broadcast %cst_28 : f32 to vector<4x256xf32>
    %72 = arith.maximumf %70, %71 : vector<4x256xf32>
    %73 = arith.truncf %72 : vector<4x256xf32> to vector<4x256xbf16>
    %c0_29 = arith.constant 0 : index
    %c0_30 = arith.constant 0 : index
    %74 = vector.load %arg6[%c0_29, %c0_30] : memref<256x128xbf16, #tpu.memory_space<vmem>>, vector<256x128xbf16>
    %cst_31 = arith.constant dense<0.000000e+00> : vector<4x128xf32>
    %75 = tpu.matmul %73, %74, %cst_31 {dimension_numbers = #tpu.dot_dimension_numbers<[1], [0], [0], [1], [0, 0, 1, 1], [], []>} : vector<4x256xbf16>, vector<256x128xbf16>, vector<4x128xf32> -> vector<4x128xf32>
    %c0_32 = arith.constant 0 : index
    %c0_33 = arith.constant 0 : index
    %76 = vector.load %arg7[%c0_32, %c0_33] : memref<1x128xf32, #tpu.memory_space<vmem>>, vector<1x128xf32>
    %77 = vector.broadcast %76 : vector<1x128xf32> to vector<4x128xf32>
    %78 = arith.addf %75, %77 : vector<4x128xf32>
    %c0_34 = arith.constant 0 : index
    %c0_35 = arith.constant 0 : index
    %79 = vector.load %arg8[%c0_34, %c0_35] : memref<4x128xf32, #tpu.memory_space<vmem>>, vector<4x128xf32>
    tpu.vector_store %arg8[%c0_34, %c0_35], %78 {strides = array<i32>} : memref<4x128xf32, #tpu.memory_space<vmem>>, vector<4x128xf32>,
    return
  }
}

</mosaic_0001>

<llo_original>
// kernel: stnkd_forward.4
$region0: #{stnkd_forward.4}
  #allocation0 [shape = 'u32[]', space=smem, size = 0x4, offset = 0x4, fixed_abs, tag = 'smem constant byte address 0x4 - core index']
  #allocation1 [shape = 'u32[72,128]{1,0:T(1,128)}', space=vmem, size = 0x9000, scoped, tag = 'internal scratch']
  %s0 = inlined_call_operand.hbm [shape: f32[4,8,512], index: 0, kind: input, shape index: {}]
  %s1 = inlined_call_operand.vmem [shape: bf16[8,64], index: 1, kind: input, shape index: {}]
  %s2 = inlined_call_operand.hbm [shape: f32[1,64], index: 2, kind: input, shape index: {}]
  %s3 = inlined_call_operand.vmem [shape: f32[4,2,64], index: 3, kind: output, shape index: {}]
  %s4 = sld [smem:[#allocation0]]
  $region57: #{stnkd_forward.4} parent=0
    _
  %s6 = ssub.s32 1, %s4
  %s7 = scalar_select 0, %s6, %s4
  $region1: #{stnkd_forward.4} parent=0
    #allocation2 [shape = 'u8[16384]{0}', space=vmem, size = 0x4000, scoped, tag = 'input window, operand 0']
    #allocation3 [shape = 's32[2]{0}', space=sflag, size = 0x8, scoped, tag = 'scoped memory for stnkd_forward.4']
    #allocation4 [shape = 'u8[512]{0}', space=vmem, size = 0x400, scoped, tag = 'input window, operand 2, single buffered']
    #allocation5 [shape = 's32[1]{0}', space=sflag, size = 0x4, scoped, tag = 'scoped memory for stnkd_forward.4']
    %8 = vsyncpa [#allocation3], 0
    %s9 = scalar_lea.sflag [#allocation3], 1
    %10 = vsyncpa %s9, 0
    %11 = vsyncpa [#allocation5], 0
    loop: start=0, step=1, limit=10
    $region2: #{stnkd_forward.4} parent=1 // loop_pre_header
      _
    $region3: #{stnkd_forward.4} parent=1 // loop_header
      %s13 = sphi 0, %s17
      %p14 = scmp.ge.s32.totalorder %s13, 10
      %s20 = sphi 0, %s32
      %s21 = sphi 0, %s28
      %s22 = sphi 0, %s20
      %s23 = sphi 0, %s21
      %s24 = sphi 0, %s22
      %s25 = sphi 0, %s23
      %s37 = sphi 0, %s39
      %s40 = sphi 0, %s37
      %s41 = sphi 0, %s40
      %s57 = sphi 0, %s41
      %s61 = sphi 0, %s61
      %s63 = sphi 0, %s61
      %s64 = sphi 0, %s63
      %s78 = sphi 0, %s64
      %s82 = sphi 0, %s82
      %s84 = sphi 0, %s82
      %s85 = sphi 0, %s84
      %s99 = sphi 0, %s85
      %s105 = sphi 0, %s107
      %s108 = sphi 0, %s105
      %s109 = sphi 0, %s108
      %s125 = sphi 0, %s109
    $region4: #{stnkd_forward.4} parent=1 // loop_header_branch
      %16 = sbr.rel (%p14) target = $region8
    $region5: #{stnkd_forward.4} parent=1 // loop_body
      %s18 = ssub.s32 %s13, 1
      %s19 = ssub.s32 %s13, 2
      %s26 = sadd.s32 1, %s21
      %p27 = scmp.ge.s32.totalorder %s26, 2
      %s28 = scalar_select %p27, 0, %s26
      %s29 = sadd.s32 1, %s20
      %s30 = scalar_select %p27, %s29, %s20
      %p31 = scmp.ge.s32.totalorder %s30, 4
      %s32 = scalar_select %p31, 0, %s30
      %s33 = ssub.s32 %s20, %s32
      %s34 = ssub.s32 %s21, %s28
      %s35 = sor.u32 %s33, %s34
      %p36 = scmp.eq.s32.totalorder %s35, 0
      %s38 = sadd.s32 %s37, 1
      %s39 = scalar_select %p36, %s37, %s38
      %p42 = pneg %p36
      %p43 = scmp.eq.s32.totalorder %s13, 7
      %p44 = por %p42, %p43
      %p45 = scmp.ne.s32.totalorder %s37, %s40
      %p46 = scmp.eq.s32.totalorder %s13, 0
      %p47 = por %p45, %p46
      %p48 = scmp.ne.s32.totalorder %s37, %s40
      %p49 = scmp.eq.s32.totalorder %s18, 7
      %p50 = por %p48, %p49
      %p51 = scmp.ne.s32.totalorder %s40, %s41
      %p52 = scmp.eq.s32.totalorder %s18, 0
      %p53 = por %p51, %p52
      %p54 = scmp.ne.s32.totalorder %s40, %s41
      %p55 = scmp.eq.s32.totalorder %s19, 7
      %p56 = por %p54, %p55
      %p58 = scmp.ne.s32.totalorder %s41, %s57
      %p59 = scmp.eq.s32.totalorder %s19, 0
      %p60 = por %p58, %p59
      %s62 = sadd.s32 %s61, 1
      %p65 = scmp.eq.s32.totalorder %s13, 7
      %p66 = scmp.ne.s32.totalorder %s61, %s63
      %p67 = scmp.eq.s32.totalorder %s13, 0
      %p68 = por %p66, %p67
      %p69 = scmp.ne.s32.totalorder %s61, %s63
      %p70 = scmp.eq.s32.totalorder %s18, 7
      %p71 = por %p69, %p70
      %p72 = scmp.ne.s32.totalorder %s63, %s64
      %p73 = scmp.eq.s32.totalorder %s18, 0
      %p74 = por %p72, %p73
      %p75 = scmp.ne.s32.totalorder %s63, %s64
      %p76 = scmp.eq.s32.totalorder %s19, 7
      %p77 = por %p75, %p76
      %p79 = scmp.ne.s32.totalorder %s64, %s78
      %p80 = scmp.eq.s32.totalorder %s19, 0
      %p81 = por %p79, %p80
      %s83 = sadd.s32 %s82, 1
      %p86 = scmp.eq.s32.totalorder %s13, 7
      %p87 = scmp.ne.s32.totalorder %s82, %s84
      %p88 = scmp.eq.s32.totalorder %s13, 0
      %p89 = por %p87, %p88
      %p90 = scmp.ne.s32.totalorder %s82, %s84
      %p91 = scmp.eq.s32.totalorder %s18, 7
      %p92 = por %p90, %p91
      %p93 = scmp.ne.s32.totalorder %s84, %s85
      %p94 = scmp.eq.s32.totalorder %s18, 0
      %p95 = por %p93, %p94
      %p96 = scmp.ne.s32.totalorder %s84, %s85
      %p97 = scmp.eq.s32.totalorder %s19, 7
      %p98 = por %p96, %p97
      %p100 = scmp.ne.s32.totalorder %s85, %s99
      %p101 = scmp.eq.s32.totalorder %s19, 0
      %p102 = por %p100, %p101
      %s103 = ssub.s32 %s20, %s32
      %p104 = scmp.eq.s32.totalorder %s103, 0
      %s106 = sadd.s32 %s105, 1
      %s107 = scalar_select %p104, %s105, %s106
      %p110 = pneg %p104
      %p111 = scmp.eq.s32.totalorder %s13, 7
      %p112 = por %p110, %p111
      %p113 = scmp.ne.s32.totalorder %s105, %s108
      %p114 = scmp.eq.s32.totalorder %s13, 0
      %p115 = por %p113, %p114
      %p116 = scmp.ne.s32.totalorder %s105, %s108
      %p117 = scmp.eq.s32.totalorder %s18, 7
      %p118 = por %p116, %p117
      %p119 = scmp.ne.s32.totalorder %s108, %s109
      %p120 = scmp.eq.s32.totalorder %s18, 0
      %p121 = por %p119, %p120
      %p122 = scmp.ne.s32.totalorder %s108, %s109
      %p123 = scmp.eq.s32.totalorder %s19, 7
      %p124 = por %p122, %p123
      %p126 = scmp.ne.s32.totalorder %s109, %s125
      %p127 = scmp.eq.s32.totalorder %s19, 0
      %p128 = por %p126, %p127
      %p129 = scmp.le.s32.totalorder 1, %s13
      %p130 = scmp.lt.s32.totalorder %s13, 9
      %p131 = pnand %p129, %p130
      %p132 = pneg %p131
      // Predicated region
      $region9: #{stnkd_forward.4} parent=5 // pred_check
        _
      $region10: #{stnkd_forward.4} parent=5 // pred_check_branch
        %134 = sbr.rel (%p131) target = $region12
      $region11: #{stnkd_forward.4} parent=5 // pred_region
        %s135 = ssub.s32 %s13, 1
        // Predicated region
        $region13: #{stnkd_forward.4} parent=11 // pred_check
          %p136 = pneg %p74
        $region14: #{stnkd_forward.4} parent=11 // pred_check_branch
          %138 = sbr.rel (%p136) target = $region16
        $region15: #{stnkd_forward.4} parent=11 // pred_region
          _
        $region16: #{stnkd_forward.4} parent=11 // pred_fallthru
          _
        // Predicated region
        $region17: #{stnkd_forward.4} parent=11 // pred_check
          %p139 = pneg %p95
        $region18: #{stnkd_forward.4} parent=11 // pred_check_branch
          %141 = sbr.rel (%p139) target = $region20
        $region19: #{stnkd_forward.4} parent=11 // pred_region
          %143 = vsyncadd [#allocation5], 0
          %s145 = sshll.u32 %s2, 4
          %s146 = int_to_ptr.hbm [resolvable:$true] %s145
          %s147 = sshll.u32 [#allocation4], 4
          %s148 = int_to_ptr.vmem [resolvable:$true] %s147
          %150 = dma.hbm_to_vmem [thread:$0]  %s146, 16, %s148, [#allocation5]
        $region20: #{stnkd_forward.4} parent=11 // pred_fallthru
          _
      $region12: #{stnkd_forward.4} parent=5 // pred_fallthru
        _
      %p151 = scmp.lt.s32.totalorder %s13, 8
      // Predicated region
      $region21: #{stnkd_forward.4} parent=5 // pred_check
        %p152 = pneg %p151
      $region22: #{stnkd_forward.4} parent=5 // pred_check_branch
        %154 = sbr.rel (%p152) target = $region24
      $region23: #{stnkd_forward.4} parent=5 // pred_region
        // Predicated region
        $region25: #{stnkd_forward.4} parent=23 // pred_check
          %p155 = pneg %p47
        $region26: #{stnkd_forward.4} parent=23 // pred_check_branch
          %157 = sbr.rel (%p155) target = $region28
        $region27: #{stnkd_forward.4} parent=23 // pred_region
          %s158 = sand.u32 %s37, 1
          %s159 = scalar_lea.sflag [#allocation3], %s158
          %s160 = sand.u32 %s37, 1
          %s161 = smul.addr %s160, 16
          %s162 = scalar_lea.vmem [#allocation2], %s161
          %s163 = smul.u32 2, %s21
          %165 = vsyncadd %s159, 0
          %s166 = smul.addr %s20, 4
          %s167 = sadd.s32 %s163, %s166
          %s168 = smul.addr %s167, 8
          %s169 = scalar_lea.hbm %s0, %s168
          %s171 = sshll.u32 %s169, 4
          %s172 = int_to_ptr.hbm [resolvable:$true] %s171
          %s173 = sshll.u32 %s162, 4
          %s174 = int_to_ptr.vmem [resolvable:$true] %s173
          %176 = dma.hbm_to_vmem [thread:$0]  %s172, 256, %s174, %s159
        $region28: #{stnkd_forward.4} parent=23 // pred_fallthru
          _
      $region24: #{stnkd_forward.4} parent=5 // pred_fallthru
        _
      %p177 = scmp.le.s32.totalorder 1, %s13
      %p178 = scmp.lt.s32.totalorder %s13, 9
      %p179 = pnand %p177, %p178
      %p180 = pneg %p179
      // Predicated region
      $region29: #{stnkd_forward.4} parent=5 // pred_check
        _
      $region30: #{stnkd_forward.4} parent=5 // pred_check_branch
        %182 = sbr.rel (%p179) target = $region32
      $region31: #{stnkd_forward.4} parent=5 // pred_region
        %s183 = ssub.s32 %s13, 1
        %s184 = sand.u32 %s40, 1
        %s185 = scalar_lea.sflag [#allocation3], %s184
        %s186 = sand.u32 %s40, 1
        %s187 = smul.addr %s186, 16
        %s188 = scalar_lea.vmem [#allocation2], %s187
        // Predicated region
        $region33: #{stnkd_forward.4} parent=31 // pred_check
          %p189 = pneg %p53
        $region34: #{stnkd_forward.4} parent=31 // pred_check_branch
          %191 = sbr.rel (%p189) target = $region36
        $region35: #{stnkd_forward.4} parent=31 // pred_region
          %193 = dma.done %s185, 256
        $region36: #{stnkd_forward.4} parent=31 // pred_fallthru
          _
        // Predicated region
        $region37: #{stnkd_forward.4} parent=31 // pred_check
          %p194 = pneg %p95
        $region38: #{stnkd_forward.4} parent=31 // pred_check_branch
          %196 = sbr.rel (%p194) target = $region40
        $region39: #{stnkd_forward.4} parent=31 // pred_region
          %198 = dma.done [#allocation5], 16
        $region40: #{stnkd_forward.4} parent=31 // pred_fallthru
          _
        %s199 = sand.u32 %s40, 1
        %s200 = scalar_lea.sflag [#allocation3], %s199
        %s201 = sand.u32 %s40, 1
        %s202 = smul.addr %s201, 16
        %s203 = scalar_lea.vmem [#allocation2], %s202
        %p204 = pneg %p53
        %p205 = pneg %p50
        %p206 = pneg %p74
        %p207 = pneg %p71
        %p208 = pneg %p95
        %p209 = pneg %p92
        %p210 = pneg %p121
        %p211 = pneg %p118
        %p212 = scmp.lt.s32.totalorder %s22, 3
        %s213 = scalar_select %p212, %s22, 3
        %s214 = smul.addr %s213, 2
        %s215 = scalar_lea.vmem %s3, %s214
        %s216 = smul.u32 2, %s23
        %p217 = scmp.lt.s32.totalorder %s22, 3
        %s218 = scalar_select %p217, %s22, 3
        %s219 = smul.addr %s218, 2
        %s220 = scalar_lea.vmem %s3, %s219
        %v222 = vld [vmem:[%s188] sm:$0xff]
        %v223 = vld [vmem:[%s188 + $0x8] sm:$0xff]
        %v224 = vpack.c.bf16 %v222, %v222
        %v225 = vpack.c.bf16 %v223, %v223
        %v226 = vld [vmem:[%s1] sm:$0xf]
        %v227 = vld [vmem:[#allocation4] sm:$0x1]
        %v229 = vperm.slane %v227, 0
        %231 = vxpose.binary.xlu0.c.b16.start [1/16] %v225, %v224, 128
        %232 = vxpose.binary.xlu0.c.b16.cont [2/16] 0, 0, 128
        %233 = vxpose.binary.xlu0.c.b16.cont [3/16] 0, 0, 128
        %234 = vxpose.binary.xlu0.c.b16.cont [4/16] 0, 0, 128
        %235 = vxpose.binary.xlu0.c.b16.cont [5/16] 0, 0, 128
        %236 = vxpose.binary.xlu0.c.b16.cont [6/16] 0, 0, 128
        %237 = vxpose.binary.xlu0.c.b16.cont [7/16] 0, 0, 128
        %238 = vxpose.binary.xlu0.c.b16.end [8/16] 0, 0, 128
        %v239 = vpop.trf.xlu0
        %v240 = vpop.trf.xlu0
        %v241 = vpop.trf.xlu0
        %v242 = vpop.trf.xlu0
        %v243 = vpop.trf.xlu0
        %v244 = vpop.trf.xlu0
        %v245 = vpop.trf.xlu0
        %v246 = vpop.trf.xlu0
        %v247 = vpop.trf.xlu0
        %v248 = vpop.trf.xlu0
        %v249 = vpop.trf.xlu0
        %v250 = vpop.trf.xlu0
        %v251 = vpop.trf.xlu0
        %v252 = vpop.trf.xlu0
        %v253 = vpop.trf.xlu0
        %v254 = vpop.trf.xlu0
        %vm255 = vcmask 64512
        %v257 = vsel %vm255, %v239, 0
        %v260 = vsel %vm255, %v241, 0
        %v263 = vsel %vm255, %v243, 0
        %v266 = vsel %vm255, %v245, 0
        %v269 = vsel %vm255, %v247, 0
        %v272 = vsel %vm255, %v249, 0
        %v275 = vsel %vm255, %v251, 0
        %v278 = vsel %vm255, %v253, 0
        %v281 = vsel %vm255, %v240, 0
        %v284 = vsel %vm255, %v242, 0
        %v287 = vsel %vm255, %v244, 0
        %v290 = vsel %vm255, %v246, 0
        %v293 = vsel %vm255, %v248, 0
        %v296 = vsel %vm255, %v250, 0
        %v299 = vsel %vm255, %v252, 0
        %v302 = vsel %vm255, %v254, 0
        %vm304 = vcmask 1043456
        %v306 = vsel %vm304, %v226, 0
        %308 = vmatpush.bf16.msra.mxu0 0
        %309 = vmatpush.bf16.msra.mxu0 0
        %310 = vmatpush.bf16.msra.mxu0 0
        %311 = vmatpush.bf16.msra.mxu0 0
        %312 = vmatpush.bf16.msra.mxu0 0
        %313 = vmatpush.bf16.msra.mxu0 0
        %314 = vmatpush.bf16.msra.mxu0 0
        %315 = vmatpush.bf16.msra.mxu0 %v306
        %316 = vmatmul.bf16.gmra.mxu0 %v257
        %v317 = vpop.f32.mrf.mxu0
        %v318 = vadd.f32 %v229, %v317
        %v319 = vpop.f32.mrf.mxu0
        %v320 = vadd.f32 %v229, %v319
        %321 = vmatmul.bf16.gmra.mxu0 %v260
        %v322 = vpop.f32.mrf.mxu0
        %v323 = vadd.f32 %v229, %v322
        %v324 = vpop.f32.mrf.mxu0
        %v325 = vadd.f32 %v229, %v324
        %326 = vmatmul.bf16.gmra.mxu0 %v263
        %v327 = vpop.f32.mrf.mxu0
        %v328 = vadd.f32 %v229, %v327
        %v329 = vpop.f32.mrf.mxu0
        %v330 = vadd.f32 %v229, %v329
        %331 = vmatmul.bf16.gmra.mxu0 %v266
        %v332 = vpop.f32.mrf.mxu0
        %v333 = vadd.f32 %v229, %v332
        %v334 = vpop.f32.mrf.mxu0
        %v335 = vadd.f32 %v229, %v334
        %336 = vmatmul.bf16.gmra.mxu0 %v269
        %v337 = vpop.f32.mrf.mxu0
        %v338 = vadd.f32 %v229, %v337
        %v339 = vpop.f32.mrf.mxu0
        %v340 = vadd.f32 %v229, %v339
        %341 = vmatmul.bf16.gmra.mxu0 %v272
        %v342 = vpop.f32.mrf.mxu0
        %v343 = vadd.f32 %v229, %v342
        %v344 = vpop.f32.mrf.mxu0
        %v345 = vadd.f32 %v229, %v344
        %346 = vmatmul.bf16.gmra.mxu0 %v275
        %v347 = vpop.f32.mrf.mxu0
        %v348 = vadd.f32 %v229, %v347
        %v349 = vpop.f32.mrf.mxu0
        %v350 = vadd.f32 %v229, %v349
        %351 = vmatmul.bf16.gmra.mxu0 %v278
        %v352 = vpop.f32.mrf.mxu0
        %v353 = vadd.f32 %v229, %v352
        %v354 = vpop.f32.mrf.mxu0
        %v355 = vadd.f32 %v229, %v354
        %356 = vmatmul.bf16.gmra.mxu0 %v281
        %v357 = vpop.f32.mrf.mxu0
        %v358 = vadd.f32 %v229, %v357
        %v359 = vpop.f32.mrf.mxu0
        %v360 = vadd.f32 %v229, %v359
        %361 = vmatmul.bf16.gmra.mxu0 %v284
        %v362 = vpop.f32.mrf.mxu0
        %v363 = vadd.f32 %v229, %v362
        %v364 = vpop.f32.mrf.mxu0
        %v365 = vadd.f32 %v229, %v364
        %366 = vmatmul.bf16.gmra.mxu0 %v287
        %v367 = vpop.f32.mrf.mxu0
        %v368 = vadd.f32 %v229, %v367
        %v369 = vpop.f32.mrf.mxu0
        %v370 = vadd.f32 %v229, %v369
        %371 = vmatmul.bf16.gmra.mxu0 %v290
        %v372 = vpop.f32.mrf.mxu0
        %v373 = vadd.f32 %v229, %v372
        %v374 = vpop.f32.mrf.mxu0
        %v375 = vadd.f32 %v229, %v374
        %376 = vmatmul.bf16.gmra.mxu0 %v293
        %v377 = vpop.f32.mrf.mxu0
        %v378 = vadd.f32 %v229, %v377
        %v379 = vpop.f32.mrf.mxu0
        %v380 = vadd.f32 %v229, %v379
        %381 = vmatmul.bf16.gmra.mxu0 %v296
        %v382 = vpop.f32.mrf.mxu0
        %v383 = vadd.f32 %v229, %v382
        %v384 = vpop.f32.mrf.mxu0
        %v385 = vadd.f32 %v229, %v384
        %386 = vmatmul.bf16.gmra.mxu0 %v299
        %v387 = vpop.f32.mrf.mxu0
        %v388 = vadd.f32 %v229, %v387
        %v389 = vpop.f32.mrf.mxu0
        %v390 = vadd.f32 %v229, %v389
        %391 = vmatmul.bf16.gmra.mxu0 %v302
        %v392 = vpop.f32.mrf.mxu0
        %v393 = vadd.f32 %v229, %v392
        %v394 = vpop.f32.mrf.mxu0
        %v395 = vadd.f32 %v229, %v394
        %396 = vdwg.mxu0
        %p397 = scmp.eq.s32.totalorder %s23, 0
        // Predicated region
        $region41: #{stnkd_forward.4} parent=31 // pred_check
          %p398 = pneg %p397
        $region42: #{stnkd_forward.4} parent=31 // pred_check_branch
          %400 = sbr.rel (%p398) target = $region44
        $region43: #{stnkd_forward.4} parent=31 // pred_region
          %vm401 = vcmask 517120
          %402 = vst.msk [vmem:[%s220] sm:$0x3] %vm401, 0.0
        $region44: #{stnkd_forward.4} parent=31 // pred_fallthru
          _
        %vm403 = vcmask 523264
        %v404 = vsel %vm403, %v318, 0.0
        %v405 = vsel %vm403, %v320, 0.0
        %v406 = vadd.f32 %v404, %v405
        %v407 = vsel %vm403, %v323, 0.0
        %v408 = vadd.f32 %v406, %v407
        %v409 = vsel %vm403, %v325, 0.0
        %v410 = vadd.f32 %v408, %v409
        %v411 = vsel %vm403, %v328, 0.0
        %v412 = vadd.f32 %v410, %v411
        %v413 = vsel %vm403, %v330, 0.0
        %v414 = vadd.f32 %v412, %v413
        %v415 = vsel %vm403, %v333, 0.0
        %v416 = vadd.f32 %v414, %v415
        %v417 = vsel %vm403, %v335, 0.0
        %v418 = vadd.f32 %v416, %v417
        %v419 = vsel %vm403, %v338, 0.0
        %v420 = vadd.f32 %v418, %v419
        %v421 = vsel %vm403, %v340, 0.0
        %v422 = vadd.f32 %v420, %v421
        %v423 = vsel %vm403, %v343, 0.0
        %v424 = vadd.f32 %v422, %v423
        %v425 = vsel %vm403, %v345, 0.0
        %v426 = vadd.f32 %v424, %v425
        %v427 = vsel %vm403, %v348, 0.0
        %v428 = vadd.f32 %v426, %v427
        %v429 = vsel %vm403, %v350, 0.0
        %v430 = vadd.f32 %v428, %v429
        %v431 = vsel %vm403, %v353, 0.0
        %v432 = vadd.f32 %v430, %v431
        %v433 = vsel %vm403, %v355, 0.0
        %v434 = vadd.f32 %v432, %v433
        %v435 = vsel %vm403, %v358, 0.0
        %v436 = vadd.f32 %v434, %v435
        %v437 = vsel %vm403, %v360, 0.0
        %v438 = vadd.f32 %v436, %v437
        %v439 = vsel %vm403, %v363, 0.0
        %v440 = vadd.f32 %v438, %v439
        %v441 = vsel %vm403, %v365, 0.0
        %v442 = vadd.f32 %v440, %v441
        %v443 = vsel %vm403, %v368, 0.0
        %v444 = vadd.f32 %v442, %v443
        %v445 = vsel %vm403, %v370, 0.0
        %v446 = vadd.f32 %v444, %v445
        %v447 = vsel %vm403, %v373, 0.0
        %v448 = vadd.f32 %v446, %v447
        %v449 = vsel %vm403, %v375, 0.0
        %v450 = vadd.f32 %v448, %v449
        %v451 = vsel %vm403, %v378, 0.0
        %v452 = vadd.f32 %v450, %v451
        %v453 = vsel %vm403, %v380, 0.0
        %v454 = vadd.f32 %v452, %v453
        %v455 = vsel %vm403, %v383, 0.0
        %v456 = vadd.f32 %v454, %v455
        %v457 = vsel %vm403, %v385, 0.0
        %v458 = vadd.f32 %v456, %v457
        %v459 = vsel %vm403, %v388, 0.0
        %v460 = vadd.f32 %v458, %v459
        %v461 = vsel %vm403, %v390, 0.0
        %v462 = vadd.f32 %v460, %v461
        %v463 = vsel %vm403, %v393, 0.0
        %v464 = vadd.f32 %v462, %v463
        %v465 = vsel %vm403, %v395, 0.0
        %v466 = vadd.f32 %v464, %v465
        %v467 = vrot.slane %v466, 4
        %v468 = vadd.f32 %v466, %v467
        %v469 = vrot.slane %v468, 2
        %v470 = vadd.f32 %v468, %v469
        %v471 = vrot.slane %v470, 1
        %v472 = vadd.f32 %v470, %v471
        %v473 = vmul.f32 %v318, %v318
        %v474 = vmul.f32 %v320, %v320
        %v475 = vmul.f32 %v323, %v323
        %v476 = vmul.f32 %v325, %v325
        %v477 = vmul.f32 %v328, %v328
        %v478 = vmul.f32 %v330, %v330
        %v479 = vmul.f32 %v333, %v333
        %v480 = vmul.f32 %v335, %v335
        %v481 = vmul.f32 %v338, %v338
        %v482 = vmul.f32 %v340, %v340
        %v483 = vmul.f32 %v343, %v343
        %v484 = vmul.f32 %v345, %v345
        %v485 = vmul.f32 %v348, %v348
        %v486 = vmul.f32 %v350, %v350
        %v487 = vmul.f32 %v353, %v353
        %v488 = vmul.f32 %v355, %v355
        %v489 = vmul.f32 %v358, %v358
        %v490 = vmul.f32 %v360, %v360
        %v491 = vmul.f32 %v363, %v363
        %v492 = vmul.f32 %v365, %v365
        %v493 = vmul.f32 %v368, %v368
        %v494 = vmul.f32 %v370, %v370
        %v495 = vmul.f32 %v373, %v373
        %v496 = vmul.f32 %v375, %v375
        %v497 = vmul.f32 %v378, %v378
        %v498 = vmul.f32 %v380, %v380
        %v499 = vmul.f32 %v383, %v383
        %v500 = vmul.f32 %v385, %v385
        %v501 = vmul.f32 %v388, %v388
        %v502 = vmul.f32 %v390, %v390
        %v503 = vmul.f32 %v393, %v393
        %v504 = vmul.f32 %v395, %v395
        %v505 = vsel %vm403, %v473, 0.0
        %v506 = vsel %vm403, %v474, 0.0
        %v507 = vadd.f32 %v505, %v506
        %v508 = vsel %vm403, %v475, 0.0
        %v509 = vadd.f32 %v507, %v508
        %v510 = vsel %vm403, %v476, 0.0
        %v511 = vadd.f32 %v509, %v510
        %v512 = vsel %vm403, %v477, 0.0
        %v513 = vadd.f32 %v511, %v512
        %v514 = vsel %vm403, %v478, 0.0
        %v515 = vadd.f32 %v513, %v514
        %v516 = vsel %vm403, %v479, 0.0
        %v517 = vadd.f32 %v515, %v516
        %v518 = vsel %vm403, %v480, 0.0
        %v519 = vadd.f32 %v517, %v518
        %v520 = vsel %vm403, %v481, 0.0
        %v521 = vadd.f32 %v519, %v520
        %v522 = vsel %vm403, %v482, 0.0
        %v523 = vadd.f32 %v521, %v522
        %v524 = vsel %vm403, %v483, 0.0
        %v525 = vadd.f32 %v523, %v524
        %v526 = vsel %vm403, %v484, 0.0
        %v527 = vadd.f32 %v525, %v526
        %v528 = vsel %vm403, %v485, 0.0
        %v529 = vadd.f32 %v527, %v528
        %v530 = vsel %vm403, %v486, 0.0
        %v531 = vadd.f32 %v529, %v530
        %v532 = vsel %vm403, %v487, 0.0
        %v533 = vadd.f32 %v531, %v532
        %v534 = vsel %vm403, %v488, 0.0
        %v535 = vadd.f32 %v533, %v534
        %v536 = vsel %vm403, %v489, 0.0
        %v537 = vadd.f32 %v535, %v536
        %v538 = vsel %vm403, %v490, 0.0
        %v539 = vadd.f32 %v537, %v538
        %v540 = vsel %vm403, %v491, 0.0
        %v541 = vadd.f32 %v539, %v540
        %v542 = vsel %vm403, %v492, 0.0
        %v543 = vadd.f32 %v541, %v542
        %v544 = vsel %vm403, %v493, 0.0
        %v545 = vadd.f32 %v543, %v544
        %v546 = vsel %vm403, %v494, 0.0
        %v547 = vadd.f32 %v545, %v546
        %v548 = vsel %vm403, %v495, 0.0
        %v549 = vadd.f32 %v547, %v548
        %v550 = vsel %vm403, %v496, 0.0
        %v551 = vadd.f32 %v549, %v550
        %v552 = vsel %vm403, %v497, 0.0
        %v553 = vadd.f32 %v551, %v552
        %v554 = vsel %vm403, %v498, 0.0
        %v555 = vadd.f32 %v553, %v554
        %v556 = vsel %vm403, %v499, 0.0
        %v557 = vadd.f32 %v555, %v556
        %v558 = vsel %vm403, %v500, 0.0
        %v559 = vadd.f32 %v557, %v558
        %v560 = vsel %vm403, %v501, 0.0
        %v561 = vadd.f32 %v559, %v560
        %v562 = vsel %vm403, %v502, 0.0
        %v563 = vadd.f32 %v561, %v562
        %v564 = vsel %vm403, %v503, 0.0
        %v565 = vadd.f32 %v563, %v564
        %v566 = vsel %vm403, %v504, 0.0
        %v567 = vadd.f32 %v565, %v566
        %v568 = vrot.slane %v567, 4
        %v569 = vadd.f32 %v567, %v568
        %v570 = vrot.slane %v569, 2
        %v571 = vadd.f32 %v569, %v570
        %v572 = vrot.slane %v571, 1
        %v573 = vadd.f32 %v571, %v572
        %v574 = vld [vmem:[%s220] sm:$0x3]
        %vm575 = vcmask 1040384
        %v576 = vsel %vm575, %v472, %v573
        %v577 = vadd.f32 %v574, %v576
        %vm578 = vcmask 517120
        %579 = vst.msk [vmem:[%s220] sm:$0x3] %vm578, %v577
        %p580 = scmp.lt.s32.totalorder %s22, 3
        %s581 = scalar_select %p580, %s22, 3
        %s582 = smul.addr %s581, 2
        %s583 = scalar_lea.vmem %s3, %s582
        // Predicated region
        $region45: #{stnkd_forward.4} parent=31 // pred_check
          %p584 = pneg %p118
        $region46: #{stnkd_forward.4} parent=31 // pred_check_branch
          %586 = sbr.rel (%p584) target = $region48
        $region47: #{stnkd_forward.4} parent=31 // pred_region
          _
        $region48: #{stnkd_forward.4} parent=31 // pred_fallthru
          _
      $region32: #{stnkd_forward.4} parent=5 // pred_fallthru
        _
      %p587 = scmp.le.s32.totalorder 2, %s13
      // Predicated region
      $region49: #{stnkd_forward.4} parent=5 // pred_check
        %p588 = pneg %p587
      $region50: #{stnkd_forward.4} parent=5 // pred_check_branch
        %590 = sbr.rel (%p588) target = $region52
      $region51: #{stnkd_forward.4} parent=5 // pred_region
        %s591 = ssub.s32 %s13, 2
        // Predicated region
        $region53: #{stnkd_forward.4} parent=51 // pred_check
          %p592 = pneg %p124
        $region54: #{stnkd_forward.4} parent=51 // pred_check_branch
          %594 = sbr.rel (%p592) target = $region56
        $region55: #{stnkd_forward.4} parent=51 // pred_region
          %p595 = scmp.lt.s32.totalorder %s24, 3
          %s596 = scalar_select %p595, %s24, 3
          %s597 = smul.addr %s596, 2
          %s598 = scalar_lea.vmem %s3, %s597
        $region56: #{stnkd_forward.4} parent=51 // pred_fallthru
          _
      $region52: #{stnkd_forward.4} parent=5 // pred_fallthru
        _
    $region6: #{stnkd_forward.4} parent=1 // loop_footer
      %s17 = sadd.s32 1, %s13
    $region7: #{stnkd_forward.4} parent=1 // loop_footer_branch
      %12 = sbr.rel target = $region3
    $region8: #{stnkd_forward.4} parent=1 // loop_exit
      _
    %599 = vsyncpa [#allocation3], 1
    %s600 = scalar_lea.sflag [#allocation3], 1
    %601 = vsyncpa %s600, 1
    %602 = vsyncpa [#allocation5], 1

// kernel: stnkd_forward.5
$region0: #{stnkd_forward.5}
  #allocation0 [shape = 'u32[]', space=smem, size = 0x4, offset = 0x4, fixed_abs, tag = 'smem constant byte address 0x4 - core index']
  #allocation1 [shape = 'u32[72,128]{1,0:T(1,128)}', space=vmem, size = 0x9000, scoped, tag = 'internal scratch']
  %s0 = inlined_call_operand.hbm [shape: f32[4,8,512], index: 0, kind: input, shape index: {}]
  %s1 = inlined_call_operand.vmem [shape: bf16[8,64], index: 1, kind: input, shape index: {}]
  %s2 = inlined_call_operand.hbm [shape: f32[1,64], index: 2, kind: input, shape index: {}]
  %s3 = inlined_call_operand.vmem [shape: f32[2,64], index: 3, kind: input, shape index: {}]
  %s4 = inlined_call_operand.vmem [shape: bf16[64,128], index: 4, kind: input, shape index: {}]
  %s5 = inlined_call_operand.hbm [shape: f32[1,128], index: 5, kind: input, shape index: {}]
  %s6 = inlined_call_operand.vmem [shape: f32[4,2,128], index: 6, kind: output, shape index: {}]
  %s7 = sld [smem:[#allocation0]]
  $region73: #{stnkd_forward.5} parent=0
    _
  %s9 = ssub.s32 1, %s7
  %s10 = scalar_select 0, %s9, %s7
  $region1: #{stnkd_forward.5} parent=0
    #allocation2 [shape = 'u8[16384]{0}', space=vmem, size = 0x4000, scoped, tag = 'input window, operand 0']
    #allocation3 [shape = 's32[2]{0}', space=sflag, size = 0x8, scoped, tag = 'scoped memory for stnkd_forward.5']
    #allocation4 [shape = 'u8[512]{0}', space=vmem, size = 0x400, scoped, tag = 'input window, operand 2, single buffered']
    #allocation5 [shape = 's32[1]{0}', space=sflag, size = 0x4, scoped, tag = 'scoped memory for stnkd_forward.5']
    #allocation6 [shape = 'u8[512]{0}', space=vmem, size = 0x400, scoped, tag = 'input window, operand 5, single buffered']
    %11 = vsyncpa [#allocation3], 0
    %s12 = scalar_lea.sflag [#allocation3], 1
    %13 = vsyncpa %s12, 0
    %14 = vsyncpa [#allocation5], 0
    loop: start=0, step=1, limit=10
    $region2: #{stnkd_forward.5} parent=1 // loop_pre_header
      _
    $region3: #{stnkd_forward.5} parent=1 // loop_header
      %s16 = sphi 0, %s20
      %p17 = scmp.ge.s32.totalorder %s16, 10
      %s23 = sphi 0, %s35
      %s24 = sphi 0, %s31
      %s25 = sphi 0, %s23
      %s26 = sphi 0, %s24
      %s27 = sphi 0, %s25
      %s28 = sphi 0, %s26
      %s40 = sphi 0, %s42
      %s43 = sphi 0, %s40
      %s44 = sphi 0, %s43
      %s60 = sphi 0, %s44
      %s64 = sphi 0, %s64
      %s66 = sphi 0, %s64
      %s67 = sphi 0, %s66
      %s81 = sphi 0, %s67
      %s85 = sphi 0, %s85
      %s87 = sphi 0, %s85
      %s88 = sphi 0, %s87
      %s102 = sphi 0, %s88
      %s106 = sphi 0, %s106
      %s108 = sphi 0, %s106
      %s109 = sphi 0, %s108
      %s123 = sphi 0, %s109
      %s127 = sphi 0, %s127
      %s129 = sphi 0, %s127
      %s130 = sphi 0, %s129
      %s144 = sphi 0, %s130
      %s148 = sphi 0, %s148
      %s150 = sphi 0, %s148
      %s151 = sphi 0, %s150
      %s165 = sphi 0, %s151
      %s171 = sphi 0, %s173
      %s174 = sphi 0, %s171
      %s175 = sphi 0, %s174
      %s191 = sphi 0, %s175
    $region4: #{stnkd_forward.5} parent=1 // loop_header_branch
      %19 = sbr.rel (%p17) target = $region8
    $region5: #{stnkd_forward.5} parent=1 // loop_body
      %s21 = ssub.s32 %s16, 1
      %s22 = ssub.s32 %s16, 2
      %s29 = sadd.s32 1, %s24
      %p30 = scmp.ge.s32.totalorder %s29, 2
      %s31 = scalar_select %p30, 0, %s29
      %s32 = sadd.s32 1, %s23
      %s33 = scalar_select %p30, %s32, %s23
      %p34 = scmp.ge.s32.totalorder %s33, 4
      %s35 = scalar_select %p34, 0, %s33
      %s36 = ssub.s32 %s23, %s35
      %s37 = ssub.s32 %s24, %s31
      %s38 = sor.u32 %s36, %s37
      %p39 = scmp.eq.s32.totalorder %s38, 0
      %s41 = sadd.s32 %s40, 1
      %s42 = scalar_select %p39, %s40, %s41
      %p45 = pneg %p39
      %p46 = scmp.eq.s32.totalorder %s16, 7
      %p47 = por %p45, %p46
      %p48 = scmp.ne.s32.totalorder %s40, %s43
      %p49 = scmp.eq.s32.totalorder %s16, 0
      %p50 = por %p48, %p49
      %p51 = scmp.ne.s32.totalorder %s40, %s43
      %p52 = scmp.eq.s32.totalorder %s21, 7
      %p53 = por %p51, %p52
      %p54 = scmp.ne.s32.totalorder %s43, %s44
      %p55 = scmp.eq.s32.totalorder %s21, 0
      %p56 = por %p54, %p55
      %p57 = scmp.ne.s32.totalorder %s43, %s44
      %p58 = scmp.eq.s32.totalorder %s22, 7
      %p59 = por %p57, %p58
      %p61 = scmp.ne.s32.totalorder %s44, %s60
      %p62 = scmp.eq.s32.totalorder %s22, 0
      %p63 = por %p61, %p62
      %s65 = sadd.s32 %s64, 1
      %p68 = scmp.eq.s32.totalorder %s16, 7
      %p69 = scmp.ne.s32.totalorder %s64, %s66
      %p70 = scmp.eq.s32.totalorder %s16, 0
      %p71 = por %p69, %p70
      %p72 = scmp.ne.s32.totalorder %s64, %s66
      %p73 = scmp.eq.s32.totalorder %s21, 7
      %p74 = por %p72, %p73
      %p75 = scmp.ne.s32.totalorder %s66, %s67
      %p76 = scmp.eq.s32.totalorder %s21, 0
      %p77 = por %p75, %p76
      %p78 = scmp.ne.s32.totalorder %s66, %s67
      %p79 = scmp.eq.s32.totalorder %s22, 7
      %p80 = por %p78, %p79
      %p82 = scmp.ne.s32.totalorder %s67, %s81
      %p83 = scmp.eq.s32.totalorder %s22, 0
      %p84 = por %p82, %p83
      %s86 = sadd.s32 %s85, 1
      %p89 = scmp.eq.s32.totalorder %s16, 7
      %p90 = scmp.ne.s32.totalorder %s85, %s87
      %p91 = scmp.eq.s32.totalorder %s16, 0
      %p92 = por %p90, %p91
      %p93 = scmp.ne.s32.totalorder %s85, %s87
      %p94 = scmp.eq.s32.totalorder %s21, 7
      %p95 = por %p93, %p94
      %p96 = scmp.ne.s32.totalorder %s87, %s88
      %p97 = scmp.eq.s32.totalorder %s21, 0
      %p98 = por %p96, %p97
      %p99 = scmp.ne.s32.totalorder %s87, %s88
      %p100 = scmp.eq.s32.totalorder %s22, 7
      %p101 = por %p99, %p100
      %p103 = scmp.ne.s32.totalorder %s88, %s102
      %p104 = scmp.eq.s32.totalorder %s22, 0
      %p105 = por %p103, %p104
      %s107 = sadd.s32 %s106, 1
      %p110 = scmp.eq.s32.totalorder %s16, 7
      %p111 = scmp.ne.s32.totalorder %s106, %s108
      %p112 = scmp.eq.s32.totalorder %s16, 0
      %p113 = por %p111, %p112
      %p114 = scmp.ne.s32.totalorder %s106, %s108
      %p115 = scmp.eq.s32.totalorder %s21, 7
      %p116 = por %p114, %p115
      %p117 = scmp.ne.s32.totalorder %s108, %s109
      %p118 = scmp.eq.s32.totalorder %s21, 0
      %p119 = por %p117, %p118
      %p120 = scmp.ne.s32.totalorder %s108, %s109
      %p121 = scmp.eq.s32.totalorder %s22, 7
      %p122 = por %p120, %p121
      %p124 = scmp.ne.s32.totalorder %s109, %s123
      %p125 = scmp.eq.s32.totalorder %s22, 0
      %p126 = por %p124, %p125
      %s128 = sadd.s32 %s127, 1
      %p131 = scmp.eq.s32.totalorder %s16, 7
      %p132 = scmp.ne.s32.totalorder %s127, %s129
      %p133 = scmp.eq.s32.totalorder %s16, 0
      %p134 = por %p132, %p133
      %p135 = scmp.ne.s32.totalorder %s127, %s129
      %p136 = scmp.eq.s32.totalorder %s21, 7
      %p137 = por %p135, %p136
      %p138 = scmp.ne.s32.totalorder %s129, %s130
      %p139 = scmp.eq.s32.totalorder %s21, 0
      %p140 = por %p138, %p139
      %p141 = scmp.ne.s32.totalorder %s129, %s130
      %p142 = scmp.eq.s32.totalorder %s22, 7
      %p143 = por %p141, %p142
      %p145 = scmp.ne.s32.totalorder %s130, %s144
      %p146 = scmp.eq.s32.totalorder %s22, 0
      %p147 = por %p145, %p146
      %s149 = sadd.s32 %s148, 1
      %p152 = scmp.eq.s32.totalorder %s16, 7
      %p153 = scmp.ne.s32.totalorder %s148, %s150
      %p154 = scmp.eq.s32.totalorder %s16, 0
      %p155 = por %p153, %p154
      %p156 = scmp.ne.s32.totalorder %s148, %s150
      %p157 = scmp.eq.s32.totalorder %s21, 7
      %p158 = por %p156, %p157
      %p159 = scmp.ne.s32.totalorder %s150, %s151
      %p160 = scmp.eq.s32.totalorder %s21, 0
      %p161 = por %p159, %p160
      %p162 = scmp.ne.s32.totalorder %s150, %s151
      %p163 = scmp.eq.s32.totalorder %s22, 7
      %p164 = por %p162, %p163
      %p166 = scmp.ne.s32.totalorder %s151, %s165
      %p167 = scmp.eq.s32.totalorder %s22, 0
      %p168 = por %p166, %p167
      %s169 = ssub.s32 %s23, %s35
      %p170 = scmp.eq.s32.totalorder %s169, 0
      %s172 = sadd.s32 %s171, 1
      %s173 = scalar_select %p170, %s171, %s172
      %p176 = pneg %p170
      %p177 = scmp.eq.s32.totalorder %s16, 7
      %p178 = por %p176, %p177
      %p179 = scmp.ne.s32.totalorder %s171, %s174
      %p180 = scmp.eq.s32.totalorder %s16, 0
      %p181 = por %p179, %p180
      %p182 = scmp.ne.s32.totalorder %s171, %s174
      %p183 = scmp.eq.s32.totalorder %s21, 7
      %p184 = por %p182, %p183
      %p185 = scmp.ne.s32.totalorder %s174, %s175
      %p186 = scmp.eq.s32.totalorder %s21, 0
      %p187 = por %p185, %p186
      %p188 = scmp.ne.s32.totalorder %s174, %s175
      %p189 = scmp.eq.s32.totalorder %s22, 7
      %p190 = por %p188, %p189
      %p192 = scmp.ne.s32.totalorder %s175, %s191
      %p193 = scmp.eq.s32.totalorder %s22, 0
      %p194 = por %p192, %p193
      %p195 = scmp.le.s32.totalorder 1, %s16
      %p196 = scmp.lt.s32.totalorder %s16, 9
      %p197 = pnand %p195, %p196
      %p198 = pneg %p197
      // Predicated region
      $region9: #{stnkd_forward.5} parent=5 // pred_check
        _
      $region10: #{stnkd_forward.5} parent=5 // pred_check_branch
        %200 = sbr.rel (%p197) target = $region12
      $region11: #{stnkd_forward.5} parent=5 // pred_region
        %s201 = ssub.s32 %s16, 1
        // Predicated region
        $region13: #{stnkd_forward.5} parent=11 // pred_check
          %p202 = pneg %p77
        $region14: #{stnkd_forward.5} parent=11 // pred_check_branch
          %204 = sbr.rel (%p202) target = $region16
        $region15: #{stnkd_forward.5} parent=11 // pred_region
          _
        $region16: #{stnkd_forward.5} parent=11 // pred_fallthru
          _
        // Predicated region
        $region17: #{stnkd_forward.5} parent=11 // pred_check
          %p205 = pneg %p98
        $region18: #{stnkd_forward.5} parent=11 // pred_check_branch
          %207 = sbr.rel (%p205) target = $region20
        $region19: #{stnkd_forward.5} parent=11 // pred_region
          %209 = vsyncadd [#allocation5], 0
          %s211 = sshll.u32 %s2, 4
          %s212 = int_to_ptr.hbm [resolvable:$true] %s211
          %s213 = sshll.u32 [#allocation4], 4
          %s214 = int_to_ptr.vmem [resolvable:$true] %s213
          %216 = dma.hbm_to_vmem [thread:$0]  %s212, 16, %s214, [#allocation5]
        $region20: #{stnkd_forward.5} parent=11 // pred_fallthru
          _
        // Predicated region
        $region21: #{stnkd_forward.5} parent=11 // pred_check
          %p217 = pneg %p119
        $region22: #{stnkd_forward.5} parent=11 // pred_check_branch
          %219 = sbr.rel (%p217) target = $region24
        $region23: #{stnkd_forward.5} parent=11 // pred_region
          _
        $region24: #{stnkd_forward.5} parent=11 // pred_fallthru
          _
        // Predicated region
        $region25: #{stnkd_forward.5} parent=11 // pred_check
          %p220 = pneg %p140
        $region26: #{stnkd_forward.5} parent=11 // pred_check_branch
          %222 = sbr.rel (%p220) target = $region28
        $region27: #{stnkd_forward.5} parent=11 // pred_region
          _
        $region28: #{stnkd_forward.5} parent=11 // pred_fallthru
          _
        // Predicated region
        $region29: #{stnkd_forward.5} parent=11 // pred_check
          %p223 = pneg %p161
        $region30: #{stnkd_forward.5} parent=11 // pred_check_branch
          %225 = sbr.rel (%p223) target = $region32
        $region31: #{stnkd_forward.5} parent=11 // pred_region
          %227 = vsyncadd [#allocation5], 0
          %s229 = sshll.u32 %s5, 4
          %s230 = int_to_ptr.hbm [resolvable:$true] %s229
          %s231 = sshll.u32 [#allocation6], 4
          %s232 = int_to_ptr.vmem [resolvable:$true] %s231
          %234 = dma.hbm_to_vmem [thread:$0]  %s230, 16, %s232, [#allocation5]
        $region32: #{stnkd_forward.5} parent=11 // pred_fallthru
          _
      $region12: #{stnkd_forward.5} parent=5 // pred_fallthru
        _
      %p235 = scmp.lt.s32.totalorder %s16, 8
      // Predicated region
      $region33: #{stnkd_forward.5} parent=5 // pred_check
        %p236 = pneg %p235
      $region34: #{stnkd_forward.5} parent=5 // pred_check_branch
        %238 = sbr.rel (%p236) target = $region36
      $region35: #{stnkd_forward.5} parent=5 // pred_region
        // Predicated region
        $region37: #{stnkd_forward.5} parent=35 // pred_check
          %p239 = pneg %p50
        $region38: #{stnkd_forward.5} parent=35 // pred_check_branch
          %241 = sbr.rel (%p239) target = $region40
        $region39: #{stnkd_forward.5} parent=35 // pred_region
          %s242 = sand.u32 %s40, 1
          %s243 = scalar_lea.sflag [#allocation3], %s242
          %s244 = sand.u32 %s40, 1
          %s245 = smul.addr %s244, 16
          %s246 = scalar_lea.vmem [#allocation2], %s245
          %s247 = smul.u32 2, %s24
          %249 = vsyncadd %s243, 0
          %s250 = smul.addr %s23, 4
          %s251 = sadd.s32 %s247, %s250
          %s252 = smul.addr %s251, 8
          %s253 = scalar_lea.hbm %s0, %s252
          %s255 = sshll.u32 %s253, 4
          %s256 = int_to_ptr.hbm [resolvable:$true] %s255
          %s257 = sshll.u32 %s246, 4
          %s258 = int_to_ptr.vmem [resolvable:$true] %s257
          %260 = dma.hbm_to_vmem [thread:$0]  %s256, 256, %s258, %s243
        $region40: #{stnkd_forward.5} parent=35 // pred_fallthru
          _
      $region36: #{stnkd_forward.5} parent=5 // pred_fallthru
        _
      %p261 = scmp.le.s32.totalorder 1, %s16
      %p262 = scmp.lt.s32.totalorder %s16, 9
      %p263 = pnand %p261, %p262
      %p264 = pneg %p263
      // Predicated region
      $region41: #{stnkd_forward.5} parent=5 // pred_check
        _
      $region42: #{stnkd_forward.5} parent=5 // pred_check_branch
        %266 = sbr.rel (%p263) target = $region44
      $region43: #{stnkd_forward.5} parent=5 // pred_region
        %s267 = ssub.s32 %s16, 1
        %s268 = sand.u32 %s43, 1
        %s269 = scalar_lea.sflag [#allocation3], %s268
        %s270 = sand.u32 %s43, 1
        %s271 = smul.addr %s270, 16
        %s272 = scalar_lea.vmem [#allocation2], %s271
        // Predicated region
        $region45: #{stnkd_forward.5} parent=43 // pred_check
          %p273 = pneg %p56
        $region46: #{stnkd_forward.5} parent=43 // pred_check_branch
          %275 = sbr.rel (%p273) target = $region48
        $region47: #{stnkd_forward.5} parent=43 // pred_region
          %277 = dma.done %s269, 256
        $region48: #{stnkd_forward.5} parent=43 // pred_fallthru
          _
        // Predicated region
        $region49: #{stnkd_forward.5} parent=43 // pred_check
          %p278 = pneg %p98
        $region50: #{stnkd_forward.5} parent=43 // pred_check_branch
          %280 = sbr.rel (%p278) target = $region52
        $region51: #{stnkd_forward.5} parent=43 // pred_region
          %282 = dma.done [#allocation5], 16
        $region52: #{stnkd_forward.5} parent=43 // pred_fallthru
          _
        // Predicated region
        $region53: #{stnkd_forward.5} parent=43 // pred_check
          %p283 = pneg %p161
        $region54: #{stnkd_forward.5} parent=43 // pred_check_branch
          %285 = sbr.rel (%p283) target = $region56
        $region55: #{stnkd_forward.5} parent=43 // pred_region
          %287 = dma.done [#allocation5], 16
        $region56: #{stnkd_forward.5} parent=43 // pred_fallthru
          _
        %s288 = sand.u32 %s43, 1
        %s289 = scalar_lea.sflag [#allocation3], %s288
        %s290 = sand.u32 %s43, 1
        %s291 = smul.addr %s290, 16
        %s292 = scalar_lea.vmem [#allocation2], %s291
        %p293 = pneg %p56
        %p294 = pneg %p53
        %p295 = pneg %p77
        %p296 = pneg %p74
        %p297 = pneg %p98
        %p298 = pneg %p95
        %p299 = pneg %p119
        %p300 = pneg %p116
        %p301 = pneg %p140
        %p302 = pneg %p137
        %p303 = pneg %p161
        %p304 = pneg %p158
        %p305 = pneg %p187
        %p306 = pneg %p184
        %p307 = scmp.lt.s32.totalorder %s25, 3
        %s308 = scalar_select %p307, %s25, 3
        %s309 = smul.addr %s308, 2
        %s310 = scalar_lea.vmem %s6, %s309
        %s311 = smul.u32 2, %s26
        %p312 = scmp.lt.s32.totalorder %s25, 3
        %s313 = scalar_select %p312, %s25, 3
        %s314 = smul.addr %s313, 2
        %s315 = scalar_lea.vmem %s6, %s314
        %v317 = vld [vmem:[%s272] sm:$0xff]
        %v318 = vld [vmem:[%s272 + $0x8] sm:$0xff]
        %v319 = vpack.c.bf16 %v317, %v317
        %v320 = vpack.c.bf16 %v318, %v318
        %v321 = vld [vmem:[%s1] sm:$0xf]
        %v322 = vld [vmem:[#allocation4] sm:$0x1]
        %v324 = vperm.slane %v322, 0
        %326 = vxpose.binary.xlu0.c.b16.start [1/16] %v320, %v319, 128
        %327 = vxpose.binary.xlu0.c.b16.cont [2/16] 0, 0, 128
        %328 = vxpose.binary.xlu0.c.b16.cont [3/16] 0, 0, 128
        %329 = vxpose.binary.xlu0.c.b16.cont [4/16] 0, 0, 128
        %330 = vxpose.binary.xlu0.c.b16.cont [5/16] 0, 0, 128
        %331 = vxpose.binary.xlu0.c.b16.cont [6/16] 0, 0, 128
        %332 = vxpose.binary.xlu0.c.b16.cont [7/16] 0, 0, 128
        %333 = vxpose.binary.xlu0.c.b16.end [8/16] 0, 0, 128
        %v334 = vpop.trf.xlu0
        %v335 = vpop.trf.xlu0
        %v336 = vpop.trf.xlu0
        %v337 = vpop.trf.xlu0
        %v338 = vpop.trf.xlu0
        %v339 = vpop.trf.xlu0
        %v340 = vpop.trf.xlu0
        %v341 = vpop.trf.xlu0
        %v342 = vpop.trf.xlu0
        %v343 = vpop.trf.xlu0
        %v344 = vpop.trf.xlu0
        %v345 = vpop.trf.xlu0
        %v346 = vpop.trf.xlu0
        %v347 = vpop.trf.xlu0
        %v348 = vpop.trf.xlu0
        %v349 = vpop.trf.xlu0
        %vm350 = vcmask 64512
        %v352 = vsel %vm350, %v334, 0
        %v355 = vsel %vm350, %v336, 0
        %v358 = vsel %vm350, %v338, 0
        %v361 = vsel %vm350, %v340, 0
        %v364 = vsel %vm350, %v342, 0
        %v367 = vsel %vm350, %v344, 0
        %v370 = vsel %vm350, %v346, 0
        %v373 = vsel %vm350, %v348, 0
        %v376 = vsel %vm350, %v335, 0
        %v379 = vsel %vm350, %v337, 0
        %v382 = vsel %vm350, %v339, 0
        %v385 = vsel %vm350, %v341, 0
        %v388 = vsel %vm350, %v343, 0
        %v391 = vsel %vm350, %v345, 0
        %v394 = vsel %vm350, %v347, 0
        %v397 = vsel %vm350, %v349, 0
        %vm399 = vcmask 1043456
        %v401 = vsel %vm399, %v321, 0
        %403 = vmatpush.bf16.msra.mxu0 0
        %404 = vmatpush.bf16.msra.mxu0 0
        %405 = vmatpush.bf16.msra.mxu0 0
        %406 = vmatpush.bf16.msra.mxu0 0
        %407 = vmatpush.bf16.msra.mxu0 0
        %408 = vmatpush.bf16.msra.mxu0 0
        %409 = vmatpush.bf16.msra.mxu0 0
        %410 = vmatpush.bf16.msra.mxu0 %v401
        %411 = vmatmul.bf16.gmra.mxu0 %v352
        %v412 = vpop.f32.mrf.mxu0
        %v413 = vadd.f32 %v324, %v412
        %v414 = vpop.f32.mrf.mxu0
        %v415 = vadd.f32 %v324, %v414
        %416 = vmatmul.bf16.gmra.mxu0 %v355
        %v417 = vpop.f32.mrf.mxu0
        %v418 = vadd.f32 %v324, %v417
        %v419 = vpop.f32.mrf.mxu0
        %v420 = vadd.f32 %v324, %v419
        %421 = vmatmul.bf16.gmra.mxu0 %v358
        %v422 = vpop.f32.mrf.mxu0
        %v423 = vadd.f32 %v324, %v422
        %v424 = vpop.f32.mrf.mxu0
        %v425 = vadd.f32 %v324, %v424
        %426 = vmatmul.bf16.gmra.mxu0 %v361
        %v427 = vpop.f32.mrf.mxu0
        %v428 = vadd.f32 %v324, %v427
        %v429 = vpop.f32.mrf.mxu0
        %v430 = vadd.f32 %v324, %v429
        %431 = vmatmul.bf16.gmra.mxu0 %v364
        %v432 = vpop.f32.mrf.mxu0
        %v433 = vadd.f32 %v324, %v432
        %v434 = vpop.f32.mrf.mxu0
        %v435 = vadd.f32 %v324, %v434
        %436 = vmatmul.bf16.gmra.mxu0 %v367
        %v437 = vpop.f32.mrf.mxu0
        %v438 = vadd.f32 %v324, %v437
        %v439 = vpop.f32.mrf.mxu0
        %v440 = vadd.f32 %v324, %v439
        %441 = vmatmul.bf16.gmra.mxu0 %v370
        %v442 = vpop.f32.mrf.mxu0
        %v443 = vadd.f32 %v324, %v442
        %v444 = vpop.f32.mrf.mxu0
        %v445 = vadd.f32 %v324, %v444
        %446 = vmatmul.bf16.gmra.mxu0 %v373
        %v447 = vpop.f32.mrf.mxu0
        %v448 = vadd.f32 %v324, %v447
        %v449 = vpop.f32.mrf.mxu0
        %v450 = vadd.f32 %v324, %v449
        %451 = vmatmul.bf16.gmra.mxu0 %v376
        %v452 = vpop.f32.mrf.mxu0
        %v453 = vadd.f32 %v324, %v452
        %v454 = vpop.f32.mrf.mxu0
        %v455 = vadd.f32 %v324, %v454
        %456 = vmatmul.bf16.gmra.mxu0 %v379
        %v457 = vpop.f32.mrf.mxu0
        %v458 = vadd.f32 %v324, %v457
        %v459 = vpop.f32.mrf.mxu0
        %v460 = vadd.f32 %v324, %v459
        %461 = vmatmul.bf16.gmra.mxu0 %v382
        %v462 = vpop.f32.mrf.mxu0
        %v463 = vadd.f32 %v324, %v462
        %v464 = vpop.f32.mrf.mxu0
        %v465 = vadd.f32 %v324, %v464
        %466 = vmatmul.bf16.gmra.mxu0 %v385
        %v467 = vpop.f32.mrf.mxu0
        %v468 = vadd.f32 %v324, %v467
        %v469 = vpop.f32.mrf.mxu0
        %v470 = vadd.f32 %v324, %v469
        %471 = vmatmul.bf16.gmra.mxu0 %v388
        %v472 = vpop.f32.mrf.mxu0
        %v473 = vadd.f32 %v324, %v472
        %v474 = vpop.f32.mrf.mxu0
        %v475 = vadd.f32 %v324, %v474
        %476 = vmatmul.bf16.gmra.mxu0 %v391
        %v477 = vpop.f32.mrf.mxu0
        %v478 = vadd.f32 %v324, %v477
        %v479 = vpop.f32.mrf.mxu0
        %v480 = vadd.f32 %v324, %v479
        %481 = vmatmul.bf16.gmra.mxu0 %v394
        %v482 = vpop.f32.mrf.mxu0
        %v483 = vadd.f32 %v324, %v482
        %v484 = vpop.f32.mrf.mxu0
        %v485 = vadd.f32 %v324, %v484
        %486 = vmatmul.bf16.gmra.mxu0 %v397
        %v487 = vpop.f32.mrf.mxu0
        %v488 = vadd.f32 %v324, %v487
        %v489 = vpop.f32.mrf.mxu0
        %v490 = vadd.f32 %v324, %v489
        %491 = vdwg.mxu0
        %v492 = vld [vmem:[%s3] sm:$0x3]
        %v493 = vmul.f32 %v492, 0.00048828125
        %v494 = vmul.f32 %v493, %v493
        %v496 = vrot.slane %v494, 7
        %v498 = vsub.f32 %v493, %v496
        %v499 = vmax.f32 %v498, 0.0
        %v500 = vperm.slane %v493, 0
        %v501 = vsub.f32 %v413, %v500
        %v502 = vsub.f32 %v415, %v500
        %v503 = vsub.f32 %v418, %v500
        %v504 = vsub.f32 %v420, %v500
        %v505 = vsub.f32 %v423, %v500
        %v506 = vsub.f32 %v425, %v500
        %v507 = vsub.f32 %v428, %v500
        %v508 = vsub.f32 %v430, %v500
        %v509 = vsub.f32 %v433, %v500
        %v510 = vsub.f32 %v435, %v500
        %v511 = vsub.f32 %v438, %v500
        %v512 = vsub.f32 %v440, %v500
        %v513 = vsub.f32 %v443, %v500
        %v514 = vsub.f32 %v445, %v500
        %v515 = vsub.f32 %v448, %v500
        %v516 = vsub.f32 %v450, %v500
        %v517 = vsub.f32 %v453, %v500
        %v518 = vsub.f32 %v455, %v500
        %v519 = vsub.f32 %v458, %v500
        %v520 = vsub.f32 %v460, %v500
        %v521 = vsub.f32 %v463, %v500
        %v522 = vsub.f32 %v465, %v500
        %v523 = vsub.f32 %v468, %v500
        %v524 = vsub.f32 %v470, %v500
        %v525 = vsub.f32 %v473, %v500
        %v526 = vsub.f32 %v475, %v500
        %v527 = vsub.f32 %v478, %v500
        %v528 = vsub.f32 %v480, %v500
        %v529 = vsub.f32 %v483, %v500
        %v530 = vsub.f32 %v485, %v500
        %v531 = vsub.f32 %v488, %v500
        %v532 = vsub.f32 %v490, %v500
        %v533 = vadd.f32 %v499, 1e-05
        %v534 = vrsqrt.pop %v533
        %v535 = vmul.f32 %v534, %v533
        %v536 = vmul.f32 %v535, %v534
        %v537 = vmul.f32 0.5, %v536
        %v538 = vsub.f32 1.5, %v537
        %v539 = vmul.f32 %v534, %v538
        %vm540 = vweird.f32 %v533
        %vm541 = vweird.f32 %v534
        %vm542 = vmor %vm540, %vm541
        %v543 = vsel %vm542, %v534, %v539
        %v544 = vperm.slane %v543, 1
        %v545 = vmul.f32 %v501, %v544
        %v546 = vmul.f32 %v502, %v544
        %v547 = vmul.f32 %v503, %v544
        %v548 = vmul.f32 %v504, %v544
        %v549 = vmul.f32 %v505, %v544
        %v550 = vmul.f32 %v506, %v544
        %v551 = vmul.f32 %v507, %v544
        %v552 = vmul.f32 %v508, %v544
        %v553 = vmul.f32 %v509, %v544
        %v554 = vmul.f32 %v510, %v544
        %v555 = vmul.f32 %v511, %v544
        %v556 = vmul.f32 %v512, %v544
        %v557 = vmul.f32 %v513, %v544
        %v558 = vmul.f32 %v514, %v544
        %v559 = vmul.f32 %v515, %v544
        %v560 = vmul.f32 %v516, %v544
        %v561 = vmul.f32 %v517, %v544
        %v562 = vmul.f32 %v518, %v544
        %v563 = vmul.f32 %v519, %v544
        %v564 = vmul.f32 %v520, %v544
        %v565 = vmul.f32 %v521, %v544
        %v566 = vmul.f32 %v522, %v544
        %v567 = vmul.f32 %v523, %v544
        %v568 = vmul.f32 %v524, %v544
        %v569 = vmul.f32 %v525, %v544
        %v570 = vmul.f32 %v526, %v544
        %v571 = vmul.f32 %v527, %v544
        %v572 = vmul.f32 %v528, %v544
        %v573 = vmul.f32 %v529, %v544
        %v574 = vmul.f32 %v530, %v544
        %v575 = vmul.f32 %v531, %v544
        %v576 = vmul.f32 %v532, %v544
        %v577 = vmax.f32 %v545, 0.0
        %v578 = vmax.f32 %v546, 0.0
        %v579 = vmax.f32 %v547, 0.0
        %v580 = vmax.f32 %v548, 0.0
        %v581 = vmax.f32 %v549, 0.0
        %v582 = vmax.f32 %v550, 0.0
        %v583 = vmax.f32 %v551, 0.0
        %v584 = vmax.f32 %v552, 0.0
        %v585 = vmax.f32 %v553, 0.0
        %v586 = vmax.f32 %v554, 0.0
        %v587 = vmax.f32 %v555, 0.0
        %v588 = vmax.f32 %v556, 0.0
        %v589 = vmax.f32 %v557, 0.0
        %v590 = vmax.f32 %v558, 0.0
        %v591 = vmax.f32 %v559, 0.0
        %v592 = vmax.f32 %v560, 0.0
        %v593 = vmax.f32 %v561, 0.0
        %v594 = vmax.f32 %v562, 0.0
        %v595 = vmax.f32 %v563, 0.0
        %v596 = vmax.f32 %v564, 0.0
        %v597 = vmax.f32 %v565, 0.0
        %v598 = vmax.f32 %v566, 0.0
        %v599 = vmax.f32 %v567, 0.0
        %v600 = vmax.f32 %v568, 0.0
        %v601 = vmax.f32 %v569, 0.0
        %v602 = vmax.f32 %v570, 0.0
        %v603 = vmax.f32 %v571, 0.0
        %v604 = vmax.f32 %v572, 0.0
        %v605 = vmax.f32 %v573, 0.0
        %v606 = vmax.f32 %v574, 0.0
        %v607 = vmax.f32 %v575, 0.0
        %v608 = vmax.f32 %v576, 0.0
        %v609 = vpack.c.bf16 %v578, %v577
        %v610 = vpack.c.bf16 %v580, %v579
        %v611 = vpack.c.bf16 %v582, %v581
        %v612 = vpack.c.bf16 %v584, %v583
        %v613 = vpack.c.bf16 %v586, %v585
        %v614 = vpack.c.bf16 %v588, %v587
        %v615 = vpack.c.bf16 %v590, %v589
        %v616 = vpack.c.bf16 %v592, %v591
        %v617 = vpack.c.bf16 %v594, %v593
        %v618 = vpack.c.bf16 %v596, %v595
        %v619 = vpack.c.bf16 %v598, %v597
        %v620 = vpack.c.bf16 %v600, %v599
        %v621 = vpack.c.bf16 %v602, %v601
        %v622 = vpack.c.bf16 %v604, %v603
        %v623 = vpack.c.bf16 %v606, %v605
        %v624 = vpack.c.bf16 %v608, %v607
        %v625 = vld [vmem:[%s4] sm:$0xf]
        %v626 = vld [vmem:[%s4 + $0x4] sm:$0xf]
        %v627 = vld [vmem:[%s4 + $0x8] sm:$0xf]
        %v628 = vld [vmem:[%s4 + $0xc] sm:$0xf]
        %v629 = vld [vmem:[%s4 + $0x10] sm:$0xf]
        %v630 = vld [vmem:[%s4 + $0x14] sm:$0xf]
        %v631 = vld [vmem:[%s4 + $0x18] sm:$0xf]
        %v632 = vld [vmem:[%s4 + $0x1c] sm:$0xf]
        %v633 = vld [vmem:[#allocation6] sm:$0x1]
        %v635 = vperm.slane %v633, 0
        %v645 = vunpack.c.l.b16 %v625
        %v646 = vunpack.c.l.b16 %v626
        %v647 = vunpack.c.l.b16 %v627
        %v648 = vunpack.c.l.b16 %v628
        %v649 = vunpack.c.l.b16 %v629
        %v650 = vunpack.c.l.b16 %v630
        %v651 = vunpack.c.l.b16 %v631
        %v652 = vunpack.c.l.b16 %v632
        %v653 = vpack.c.b16 %v646, %v645
        %v654 = vpack.c.b16 %v648, %v647
        %v655 = vpack.c.b16 %v650, %v649
        %v656 = vpack.c.b16 %v652, %v651
        %vm661 = vcmask 523264
        %v663 = vsel %vm661, %v609, 0
        %v666 = vsel %vm661, %v610, 0
        %v669 = vsel %vm661, %v611, 0
        %v672 = vsel %vm661, %v612, 0
        %v675 = vsel %vm661, %v613, 0
        %v678 = vsel %vm661, %v614, 0
        %v681 = vsel %vm661, %v615, 0
        %v684 = vsel %vm661, %v616, 0
        %v687 = vsel %vm661, %v617, 0
        %v690 = vsel %vm661, %v618, 0
        %v693 = vsel %vm661, %v619, 0
        %v696 = vsel %vm661, %v620, 0
        %v699 = vsel %vm661, %v621, 0
        %v702 = vsel %vm661, %v622, 0
        %v705 = vsel %vm661, %v623, 0
        %v708 = vsel %vm661, %v624, 0
        %710 = vmatpush.bf16.msra.mxu0 0
        %711 = vmatpush.bf16.msra.mxu0 0
        %712 = vmatpush.bf16.msra.mxu0 0
        %713 = vmatpush.bf16.msra.mxu0 0
        %714 = vmatpush.bf16.msra.mxu0 %v656
        %715 = vmatpush.bf16.msra.mxu0 %v655
        %716 = vmatpush.bf16.msra.mxu0 %v654
        %717 = vmatpush.bf16.msra.mxu0 %v653
        %718 = vmatmul.bf16.gmra.mxu0 %v663
        %v719 = vpop.f32.mrf.mxu0
        %v720 = vadd.f32 %v635, %v719
        %v721 = vpop.f32.mrf.mxu0
        %v722 = vadd.f32 %v635, %v721
        %723 = vmatmul.bf16.gmra.mxu0 %v666
        %v724 = vpop.f32.mrf.mxu0
        %v725 = vadd.f32 %v635, %v724
        %v726 = vpop.f32.mrf.mxu0
        %v727 = vadd.f32 %v635, %v726
        %728 = vmatmul.bf16.gmra.mxu0 %v669
        %v729 = vpop.f32.mrf.mxu0
        %v730 = vadd.f32 %v635, %v729
        %v731 = vpop.f32.mrf.mxu0
        %v732 = vadd.f32 %v635, %v731
        %733 = vmatmul.bf16.gmra.mxu0 %v672
        %v734 = vpop.f32.mrf.mxu0
        %v735 = vadd.f32 %v635, %v734
        %v736 = vpop.f32.mrf.mxu0
        %v737 = vadd.f32 %v635, %v736
        %738 = vmatmul.bf16.gmra.mxu0 %v675
        %v739 = vpop.f32.mrf.mxu0
        %v740 = vadd.f32 %v635, %v739
        %v741 = vpop.f32.mrf.mxu0
        %v742 = vadd.f32 %v635, %v741
        %743 = vmatmul.bf16.gmra.mxu0 %v678
        %v744 = vpop.f32.mrf.mxu0
        %v745 = vadd.f32 %v635, %v744
        %v746 = vpop.f32.mrf.mxu0
        %v747 = vadd.f32 %v635, %v746
        %748 = vmatmul.bf16.gmra.mxu0 %v681
        %v749 = vpop.f32.mrf.mxu0
        %v750 = vadd.f32 %v635, %v749
        %v751 = vpop.f32.mrf.mxu0
        %v752 = vadd.f32 %v635, %v751
        %753 = vmatmul.bf16.gmra.mxu0 %v684
        %v754 = vpop.f32.mrf.mxu0
        %v755 = vadd.f32 %v635, %v754
        %v756 = vpop.f32.mrf.mxu0
        %v757 = vadd.f32 %v635, %v756
        %758 = vmatmul.bf16.gmra.mxu0 %v687
        %v759 = vpop.f32.mrf.mxu0
        %v760 = vadd.f32 %v635, %v759
        %v761 = vpop.f32.mrf.mxu0
        %v762 = vadd.f32 %v635, %v761
        %763 = vmatmul.bf16.gmra.mxu0 %v690
        %v764 = vpop.f32.mrf.mxu0
        %v765 = vadd.f32 %v635, %v764
        %v766 = vpop.f32.mrf.mxu0
        %v767 = vadd.f32 %v635, %v766
        %768 = vmatmul.bf16.gmra.mxu0 %v693
        %v769 = vpop.f32.mrf.mxu0
        %v770 = vadd.f32 %v635, %v769
        %v771 = vpop.f32.mrf.mxu0
        %v772 = vadd.f32 %v635, %v771
        %773 = vmatmul.bf16.gmra.mxu0 %v696
        %v774 = vpop.f32.mrf.mxu0
        %v775 = vadd.f32 %v635, %v774
        %v776 = vpop.f32.mrf.mxu0
        %v777 = vadd.f32 %v635, %v776
        %778 = vmatmul.bf16.gmra.mxu0 %v699
        %v779 = vpop.f32.mrf.mxu0
        %v780 = vadd.f32 %v635, %v779
        %v781 = vpop.f32.mrf.mxu0
        %v782 = vadd.f32 %v635, %v781
        %783 = vmatmul.bf16.gmra.mxu0 %v702
        %v784 = vpop.f32.mrf.mxu0
        %v785 = vadd.f32 %v635, %v784
        %v786 = vpop.f32.mrf.mxu0
        %v787 = vadd.f32 %v635, %v786
        %788 = vmatmul.bf16.gmra.mxu0 %v705
        %v789 = vpop.f32.mrf.mxu0
        %v790 = vadd.f32 %v635, %v789
        %v791 = vpop.f32.mrf.mxu0
        %v792 = vadd.f32 %v635, %v791
        %793 = vmatmul.bf16.gmra.mxu0 %v708
        %v794 = vpop.f32.mrf.mxu0
        %v795 = vadd.f32 %v635, %v794
        %v796 = vpop.f32.mrf.mxu0
        %v797 = vadd.f32 %v635, %v796
        %798 = vdwg.mxu0
        %p799 = scmp.eq.s32.totalorder %s26, 0
        // Predicated region
        $region57: #{stnkd_forward.5} parent=43 // pred_check
          %p800 = pneg %p799
        $region58: #{stnkd_forward.5} parent=43 // pred_check_branch
          %802 = sbr.rel (%p800) target = $region60
        $region59: #{stnkd_forward.5} parent=43 // pred_region
          %803 = vst [vmem:[%s315] sm:$0x3] 0.0
        $region60: #{stnkd_forward.5} parent=43 // pred_fallthru
          _
        %v804 = vadd.f32 %v720, %v722
        %v805 = vadd.f32 %v804, %v725
        %v806 = vadd.f32 %v805, %v727
        %v807 = vadd.f32 %v806, %v730
        %v808 = vadd.f32 %v807, %v732
        %v809 = vadd.f32 %v808, %v735
        %v810 = vadd.f32 %v809, %v737
        %v811 = vadd.f32 %v810, %v740
        %v812 = vadd.f32 %v811, %v742
        %v813 = vadd.f32 %v812, %v745
        %v814 = vadd.f32 %v813, %v747
        %v815 = vadd.f32 %v814, %v750
        %v816 = vadd.f32 %v815, %v752
        %v817 = vadd.f32 %v816, %v755
        %v818 = vadd.f32 %v817, %v757
        %v819 = vadd.f32 %v818, %v760
        %v820 = vadd.f32 %v819, %v762
        %v821 = vadd.f32 %v820, %v765
        %v822 = vadd.f32 %v821, %v767
        %v823 = vadd.f32 %v822, %v770
        %v824 = vadd.f32 %v823, %v772
        %v825 = vadd.f32 %v824, %v775
        %v826 = vadd.f32 %v825, %v777
        %v827 = vadd.f32 %v826, %v780
        %v828 = vadd.f32 %v827, %v782
        %v829 = vadd.f32 %v828, %v785
        %v830 = vadd.f32 %v829, %v787
        %v831 = vadd.f32 %v830, %v790
        %v832 = vadd.f32 %v831, %v792
        %v833 = vadd.f32 %v832, %v795
        %v834 = vadd.f32 %v833, %v797
        %v835 = vrot.slane %v834, 4
        %v836 = vadd.f32 %v834, %v835
        %v837 = vrot.slane %v836, 2
        %v838 = vadd.f32 %v836, %v837
        %v839 = vrot.slane %v838, 1
        %v840 = vadd.f32 %v838, %v839
        %v841 = vmul.f32 %v720, %v720
        %v842 = vmul.f32 %v722, %v722
        %v843 = vmul.f32 %v725, %v725
        %v844 = vmul.f32 %v727, %v727
        %v845 = vmul.f32 %v730, %v730
        %v846 = vmul.f32 %v732, %v732
        %v847 = vmul.f32 %v735, %v735
        %v848 = vmul.f32 %v737, %v737
        %v849 = vmul.f32 %v740, %v740
        %v850 = vmul.f32 %v742, %v742
        %v851 = vmul.f32 %v745, %v745
        %v852 = vmul.f32 %v747, %v747
        %v853 = vmul.f32 %v750, %v750
        %v854 = vmul.f32 %v752, %v752
        %v855 = vmul.f32 %v755, %v755
        %v856 = vmul.f32 %v757, %v757
        %v857 = vmul.f32 %v760, %v760
        %v858 = vmul.f32 %v762, %v762
        %v859 = vmul.f32 %v765, %v765
        %v860 = vmul.f32 %v767, %v767
        %v861 = vmul.f32 %v770, %v770
        %v862 = vmul.f32 %v772, %v772
        %v863 = vmul.f32 %v775, %v775
        %v864 = vmul.f32 %v777, %v777
        %v865 = vmul.f32 %v780, %v780
        %v866 = vmul.f32 %v782, %v782
        %v867 = vmul.f32 %v785, %v785
        %v868 = vmul.f32 %v787, %v787
        %v869 = vmul.f32 %v790, %v790
        %v870 = vmul.f32 %v792, %v792
        %v871 = vmul.f32 %v795, %v795
        %v872 = vmul.f32 %v797, %v797
        %v873 = vadd.f32 %v841, %v842
        %v874 = vadd.f32 %v873, %v843
        %v875 = vadd.f32 %v874, %v844
        %v876 = vadd.f32 %v875, %v845
        %v877 = vadd.f32 %v876, %v846
        %v878 = vadd.f32 %v877, %v847
        %v879 = vadd.f32 %v878, %v848
        %v880 = vadd.f32 %v879, %v849
        %v881 = vadd.f32 %v880, %v850
        %v882 = vadd.f32 %v881, %v851
        %v883 = vadd.f32 %v882, %v852
        %v884 = vadd.f32 %v883, %v853
        %v885 = vadd.f32 %v884, %v854
        %v886 = vadd.f32 %v885, %v855
        %v887 = vadd.f32 %v886, %v856
        %v888 = vadd.f32 %v887, %v857
        %v889 = vadd.f32 %v888, %v858
        %v890 = vadd.f32 %v889, %v859
        %v891 = vadd.f32 %v890, %v860
        %v892 = vadd.f32 %v891, %v861
        %v893 = vadd.f32 %v892, %v862
        %v894 = vadd.f32 %v893, %v863
        %v895 = vadd.f32 %v894, %v864
        %v896 = vadd.f32 %v895, %v865
        %v897 = vadd.f32 %v896, %v866
        %v898 = vadd.f32 %v897, %v867
        %v899 = vadd.f32 %v898, %v868
        %v900 = vadd.f32 %v899, %v869
        %v901 = vadd.f32 %v900, %v870
        %v902 = vadd.f32 %v901, %v871
        %v903 = vadd.f32 %v902, %v872
        %v904 = vrot.slane %v903, 4
        %v905 = vadd.f32 %v903, %v904
        %v906 = vrot.slane %v905, 2
        %v907 = vadd.f32 %v905, %v906
        %v908 = vrot.slane %v907, 1
        %v909 = vadd.f32 %v907, %v908
        %v910 = vld [vmem:[%s315] sm:$0x3]
        %vm911 = vcmask 1040384
        %v912 = vsel %vm911, %v840, %v909
        %v913 = vadd.f32 %v910, %v912
        %914 = vst [vmem:[%s315] sm:$0x3] %v913
        %p915 = scmp.lt.s32.totalorder %s25, 3
        %s916 = scalar_select %p915, %s25, 3
        %s917 = smul.addr %s916, 2
        %s918 = scalar_lea.vmem %s6, %s917
        // Predicated region
        $region61: #{stnkd_forward.5} parent=43 // pred_check
          %p919 = pneg %p184
        $region62: #{stnkd_forward.5} parent=43 // pred_check_branch
          %921 = sbr.rel (%p919) target = $region64
        $region63: #{stnkd_forward.5} parent=43 // pred_region
          _
        $region64: #{stnkd_forward.5} parent=43 // pred_fallthru
          _
      $region44: #{stnkd_forward.5} parent=5 // pred_fallthru
        _
      %p922 = scmp.le.s32.totalorder 2, %s16
      // Predicated region
      $region65: #{stnkd_forward.5} parent=5 // pred_check
        %p923 = pneg %p922
      $region66: #{stnkd_forward.5} parent=5 // pred_check_branch
        %925 = sbr.rel (%p923) target = $region68
      $region67: #{stnkd_forward.5} parent=5 // pred_region
        %s926 = ssub.s32 %s16, 2
        // Predicated region
        $region69: #{stnkd_forward.5} parent=67 // pred_check
          %p927 = pneg %p190
        $region70: #{stnkd_forward.5} parent=67 // pred_check_branch
          %929 = sbr.rel (%p927) target = $region72
        $region71: #{stnkd_forward.5} parent=67 // pred_region
          %p930 = scmp.lt.s32.totalorder %s27, 3
          %s931 = scalar_select %p930, %s27, 3
          %s932 = smul.addr %s931, 2
          %s933 = scalar_lea.vmem %s6, %s932
        $region72: #{stnkd_forward.5} parent=67 // pred_fallthru
          _
      $region68: #{stnkd_forward.5} parent=5 // pred_fallthru
        _
    $region6: #{stnkd_forward.5} parent=1 // loop_footer
      %s20 = sadd.s32 1, %s16
    $region7: #{stnkd_forward.5} parent=1 // loop_footer_branch
      %15 = sbr.rel target = $region3
    $region8: #{stnkd_forward.5} parent=1 // loop_exit
      _
    %934 = vsyncpa [#allocation3], 1
    %s935 = scalar_lea.sflag [#allocation3], 1
    %936 = vsyncpa %s935, 1
    %937 = vsyncpa [#allocation5], 1

// kernel: stnkd_forward.6
$region0: #{stnkd_forward.6}
  #allocation0 [shape = 'u32[]', space=smem, size = 0x4, offset = 0x4, fixed_abs, tag = 'smem constant byte address 0x4 - core index']
  #allocation1 [shape = 'u32[72,128]{1,0:T(1,128)}', space=vmem, size = 0x9000, scoped, tag = 'internal scratch']
  %s0 = inlined_call_operand.hbm [shape: f32[4,8,512], index: 0, kind: input, shape index: {}]
  %s1 = inlined_call_operand.vmem [shape: bf16[8,64], index: 1, kind: input, shape index: {}]
  %s2 = inlined_call_operand.hbm [shape: f32[1,64], index: 2, kind: input, shape index: {}]
  %s3 = inlined_call_operand.vmem [shape: f32[2,64], index: 3, kind: input, shape index: {}]
  %s4 = inlined_call_operand.vmem [shape: bf16[64,128], index: 4, kind: input, shape index: {}]
  %s5 = inlined_call_operand.hbm [shape: f32[1,128], index: 5, kind: input, shape index: {}]
  %s6 = inlined_call_operand.vmem [shape: f32[2,128], index: 6, kind: input, shape index: {}]
  %s7 = inlined_call_operand.vmem [shape: bf16[128,1024], index: 7, kind: input, shape index: {}]
  %s8 = inlined_call_operand.hbm [shape: f32[1,1024], index: 8, kind: input, shape index: {}]
  %s9 = inlined_call_operand.vmem [shape: f32[4,2,1024], index: 9, kind: output, shape index: {0}]
  %s10 = inlined_call_operand.vmem [shape: f32[4,1,1024], index: 10, kind: output, shape index: {1}]
  %11 = xla_tuple %s9, %s10
  %s12 = sld [smem:[#allocation0]]
  $region101: #{stnkd_forward.6} parent=0
    _
  %s14 = ssub.s32 1, %s12
  %s15 = scalar_select 0, %s14, %s12
  $region1: #{stnkd_forward.6} parent=0
    #allocation2 [shape = 'u8[16384]{0}', space=vmem, size = 0x4000, scoped, tag = 'input window, operand 0']
    #allocation3 [shape = 's32[2]{0}', space=sflag, size = 0x8, scoped, tag = 'scoped memory for stnkd_forward.6']
    #allocation4 [shape = 'u8[512]{0}', space=vmem, size = 0x400, scoped, tag = 'input window, operand 2, single buffered']
    #allocation5 [shape = 's32[1]{0}', space=sflag, size = 0x4, scoped, tag = 'scoped memory for stnkd_forward.6']
    #allocation6 [shape = 'u8[512]{0}', space=vmem, size = 0x400, scoped, tag = 'input window, operand 5, single buffered']
    #allocation7 [shape = 'u8[4096]{0}', space=vmem, size = 0x1000, scoped, tag = 'input window, operand 8, single buffered']
    #allocation8 [shape = 's32[1]{0}', space=sflag, size = 0x4, scoped, tag = 'scoped memory for stnkd_forward.6']
    %16 = vsyncpa [#allocation3], 0
    %s17 = scalar_lea.sflag [#allocation3], 1
    %18 = vsyncpa %s17, 0
    %19 = vsyncpa [#allocation5], 0
    %20 = vsyncpa [#allocation8], 0
    loop: start=0, step=1, limit=10
    $region2: #{stnkd_forward.6} parent=1 // loop_pre_header
      _
    $region3: #{stnkd_forward.6} parent=1 // loop_header
      %s22 = sphi 0, %s26
      %p23 = scmp.ge.s32.totalorder %s22, 10
      %s29 = sphi 0, %s41
      %s30 = sphi 0, %s37
      %s31 = sphi 0, %s29
      %s32 = sphi 0, %s30
      %s33 = sphi 0, %s31
      %s34 = sphi 0, %s32
      %s46 = sphi 0, %s48
      %s49 = sphi 0, %s46
      %s50 = sphi 0, %s49
      %s66 = sphi 0, %s50
      %s70 = sphi 0, %s70
      %s72 = sphi 0, %s70
      %s73 = sphi 0, %s72
      %s87 = sphi 0, %s73
      %s91 = sphi 0, %s91
      %s93 = sphi 0, %s91
      %s94 = sphi 0, %s93
      %s108 = sphi 0, %s94
      %s112 = sphi 0, %s112
      %s114 = sphi 0, %s112
      %s115 = sphi 0, %s114
      %s129 = sphi 0, %s115
      %s133 = sphi 0, %s133
      %s135 = sphi 0, %s133
      %s136 = sphi 0, %s135
      %s150 = sphi 0, %s136
      %s154 = sphi 0, %s154
      %s156 = sphi 0, %s154
      %s157 = sphi 0, %s156
      %s171 = sphi 0, %s157
      %s175 = sphi 0, %s175
      %s177 = sphi 0, %s175
      %s178 = sphi 0, %s177
      %s192 = sphi 0, %s178
      %s196 = sphi 0, %s196
      %s198 = sphi 0, %s196
      %s199 = sphi 0, %s198
      %s213 = sphi 0, %s199
      %s217 = sphi 0, %s217
      %s219 = sphi 0, %s217
      %s220 = sphi 0, %s219
      %s234 = sphi 0, %s220
      %s240 = sphi 0, %s242
      %s243 = sphi 0, %s240
      %s244 = sphi 0, %s243
      %s260 = sphi 0, %s244
      %s266 = sphi 0, %s268
      %s269 = sphi 0, %s266
      %s270 = sphi 0, %s269
      %s286 = sphi 0, %s270
    $region4: #{stnkd_forward.6} parent=1 // loop_header_branch
      %25 = sbr.rel (%p23) target = $region8
    $region5: #{stnkd_forward.6} parent=1 // loop_body
      %s27 = ssub.s32 %s22, 1
      %s28 = ssub.s32 %s22, 2
      %s35 = sadd.s32 1, %s30
      %p36 = scmp.ge.s32.totalorder %s35, 2
      %s37 = scalar_select %p36, 0, %s35
      %s38 = sadd.s32 1, %s29
      %s39 = scalar_select %p36, %s38, %s29
      %p40 = scmp.ge.s32.totalorder %s39, 4
      %s41 = scalar_select %p40, 0, %s39
      %s42 = ssub.s32 %s29, %s41
      %s43 = ssub.s32 %s30, %s37
      %s44 = sor.u32 %s42, %s43
      %p45 = scmp.eq.s32.totalorder %s44, 0
      %s47 = sadd.s32 %s46, 1
      %s48 = scalar_select %p45, %s46, %s47
      %p51 = pneg %p45
      %p52 = scmp.eq.s32.totalorder %s22, 7
      %p53 = por %p51, %p52
      %p54 = scmp.ne.s32.totalorder %s46, %s49
      %p55 = scmp.eq.s32.totalorder %s22, 0
      %p56 = por %p54, %p55
      %p57 = scmp.ne.s32.totalorder %s46, %s49
      %p58 = scmp.eq.s32.totalorder %s27, 7
      %p59 = por %p57, %p58
      %p60 = scmp.ne.s32.totalorder %s49, %s50
      %p61 = scmp.eq.s32.totalorder %s27, 0
      %p62 = por %p60, %p61
      %p63 = scmp.ne.s32.totalorder %s49, %s50
      %p64 = scmp.eq.s32.totalorder %s28, 7
      %p65 = por %p63, %p64
      %p67 = scmp.ne.s32.totalorder %s50, %s66
      %p68 = scmp.eq.s32.totalorder %s28, 0
      %p69 = por %p67, %p68
      %s71 = sadd.s32 %s70, 1
      %p74 = scmp.eq.s32.totalorder %s22, 7
      %p75 = scmp.ne.s32.totalorder %s70, %s72
      %p76 = scmp.eq.s32.totalorder %s22, 0
      %p77 = por %p75, %p76
      %p78 = scmp.ne.s32.totalorder %s70, %s72
      %p79 = scmp.eq.s32.totalorder %s27, 7
      %p80 = por %p78, %p79
      %p81 = scmp.ne.s32.totalorder %s72, %s73
      %p82 = scmp.eq.s32.totalorder %s27, 0
      %p83 = por %p81, %p82
      %p84 = scmp.ne.s32.totalorder %s72, %s73
      %p85 = scmp.eq.s32.totalorder %s28, 7
      %p86 = por %p84, %p85
      %p88 = scmp.ne.s32.totalorder %s73, %s87
      %p89 = scmp.eq.s32.totalorder %s28, 0
      %p90 = por %p88, %p89
      %s92 = sadd.s32 %s91, 1
      %p95 = scmp.eq.s32.totalorder %s22, 7
      %p96 = scmp.ne.s32.totalorder %s91, %s93
      %p97 = scmp.eq.s32.totalorder %s22, 0
      %p98 = por %p96, %p97
      %p99 = scmp.ne.s32.totalorder %s91, %s93
      %p100 = scmp.eq.s32.totalorder %s27, 7
      %p101 = por %p99, %p100
      %p102 = scmp.ne.s32.totalorder %s93, %s94
      %p103 = scmp.eq.s32.totalorder %s27, 0
      %p104 = por %p102, %p103
      %p105 = scmp.ne.s32.totalorder %s93, %s94
      %p106 = scmp.eq.s32.totalorder %s28, 7
      %p107 = por %p105, %p106
      %p109 = scmp.ne.s32.totalorder %s94, %s108
      %p110 = scmp.eq.s32.totalorder %s28, 0
      %p111 = por %p109, %p110
      %s113 = sadd.s32 %s112, 1
      %p116 = scmp.eq.s32.totalorder %s22, 7
      %p117 = scmp.ne.s32.totalorder %s112, %s114
      %p118 = scmp.eq.s32.totalorder %s22, 0
      %p119 = por %p117, %p118
      %p120 = scmp.ne.s32.totalorder %s112, %s114
      %p121 = scmp.eq.s32.totalorder %s27, 7
      %p122 = por %p120, %p121
      %p123 = scmp.ne.s32.totalorder %s114, %s115
      %p124 = scmp.eq.s32.totalorder %s27, 0
      %p125 = por %p123, %p124
      %p126 = scmp.ne.s32.totalorder %s114, %s115
      %p127 = scmp.eq.s32.totalorder %s28, 7
      %p128 = por %p126, %p127
      %p130 = scmp.ne.s32.totalorder %s115, %s129
      %p131 = scmp.eq.s32.totalorder %s28, 0
      %p132 = por %p130, %p131
      %s134 = sadd.s32 %s133, 1
      %p137 = scmp.eq.s32.totalorder %s22, 7
      %p138 = scmp.ne.s32.totalorder %s133, %s135
      %p139 = scmp.eq.s32.totalorder %s22, 0
      %p140 = por %p138, %p139
      %p141 = scmp.ne.s32.totalorder %s133, %s135
      %p142 = scmp.eq.s32.totalorder %s27, 7
      %p143 = por %p141, %p142
      %p144 = scmp.ne.s32.totalorder %s135, %s136
      %p145 = scmp.eq.s32.totalorder %s27, 0
      %p146 = por %p144, %p145
      %p147 = scmp.ne.s32.totalorder %s135, %s136
      %p148 = scmp.eq.s32.totalorder %s28, 7
      %p149 = por %p147, %p148
      %p151 = scmp.ne.s32.totalorder %s136, %s150
      %p152 = scmp.eq.s32.totalorder %s28, 0
      %p153 = por %p151, %p152
      %s155 = sadd.s32 %s154, 1
      %p158 = scmp.eq.s32.totalorder %s22, 7
      %p159 = scmp.ne.s32.totalorder %s154, %s156
      %p160 = scmp.eq.s32.totalorder %s22, 0
      %p161 = por %p159, %p160
      %p162 = scmp.ne.s32.totalorder %s154, %s156
      %p163 = scmp.eq.s32.totalorder %s27, 7
      %p164 = por %p162, %p163
      %p165 = scmp.ne.s32.totalorder %s156, %s157
      %p166 = scmp.eq.s32.totalorder %s27, 0
      %p167 = por %p165, %p166
      %p168 = scmp.ne.s32.totalorder %s156, %s157
      %p169 = scmp.eq.s32.totalorder %s28, 7
      %p170 = por %p168, %p169
      %p172 = scmp.ne.s32.totalorder %s157, %s171
      %p173 = scmp.eq.s32.totalorder %s28, 0
      %p174 = por %p172, %p173
      %s176 = sadd.s32 %s175, 1
      %p179 = scmp.eq.s32.totalorder %s22, 7
      %p180 = scmp.ne.s32.totalorder %s175, %s177
      %p181 = scmp.eq.s32.totalorder %s22, 0
      %p182 = por %p180, %p181
      %p183 = scmp.ne.s32.totalorder %s175, %s177
      %p184 = scmp.eq.s32.totalorder %s27, 7
      %p185 = por %p183, %p184
      %p186 = scmp.ne.s32.totalorder %s177, %s178
      %p187 = scmp.eq.s32.totalorder %s27, 0
      %p188 = por %p186, %p187
      %p189 = scmp.ne.s32.totalorder %s177, %s178
      %p190 = scmp.eq.s32.totalorder %s28, 7
      %p191 = por %p189, %p190
      %p193 = scmp.ne.s32.totalorder %s178, %s192
      %p194 = scmp.eq.s32.totalorder %s28, 0
      %p195 = por %p193, %p194
      %s197 = sadd.s32 %s196, 1
      %p200 = scmp.eq.s32.totalorder %s22, 7
      %p201 = scmp.ne.s32.totalorder %s196, %s198
      %p202 = scmp.eq.s32.totalorder %s22, 0
      %p203 = por %p201, %p202
      %p204 = scmp.ne.s32.totalorder %s196, %s198
      %p205 = scmp.eq.s32.totalorder %s27, 7
      %p206 = por %p204, %p205
      %p207 = scmp.ne.s32.totalorder %s198, %s199
      %p208 = scmp.eq.s32.totalorder %s27, 0
      %p209 = por %p207, %p208
      %p210 = scmp.ne.s32.totalorder %s198, %s199
      %p211 = scmp.eq.s32.totalorder %s28, 7
      %p212 = por %p210, %p211
      %p214 = scmp.ne.s32.totalorder %s199, %s213
      %p215 = scmp.eq.s32.totalorder %s28, 0
      %p216 = por %p214, %p215
      %s218 = sadd.s32 %s217, 1
      %p221 = scmp.eq.s32.totalorder %s22, 7
      %p222 = scmp.ne.s32.totalorder %s217, %s219
      %p223 = scmp.eq.s32.totalorder %s22, 0
      %p224 = por %p222, %p223
      %p225 = scmp.ne.s32.totalorder %s217, %s219
      %p226 = scmp.eq.s32.totalorder %s27, 7
      %p227 = por %p225, %p226
      %p228 = scmp.ne.s32.totalorder %s219, %s220
      %p229 = scmp.eq.s32.totalorder %s27, 0
      %p230 = por %p228, %p229
      %p231 = scmp.ne.s32.totalorder %s219, %s220
      %p232 = scmp.eq.s32.totalorder %s28, 7
      %p233 = por %p231, %p232
      %p235 = scmp.ne.s32.totalorder %s220, %s234
      %p236 = scmp.eq.s32.totalorder %s28, 0
      %p237 = por %p235, %p236
      %s238 = ssub.s32 %s29, %s41
      %p239 = scmp.eq.s32.totalorder %s238, 0
      %s241 = sadd.s32 %s240, 1
      %s242 = scalar_select %p239, %s240, %s241
      %p245 = pneg %p239
      %p246 = scmp.eq.s32.totalorder %s22, 7
      %p247 = por %p245, %p246
      %p248 = scmp.ne.s32.totalorder %s240, %s243
      %p249 = scmp.eq.s32.totalorder %s22, 0
      %p250 = por %p248, %p249
      %p251 = scmp.ne.s32.totalorder %s240, %s243
      %p252 = scmp.eq.s32.totalorder %s27, 7
      %p253 = por %p251, %p252
      %p254 = scmp.ne.s32.totalorder %s243, %s244
      %p255 = scmp.eq.s32.totalorder %s27, 0
      %p256 = por %p254, %p255
      %p257 = scmp.ne.s32.totalorder %s243, %s244
      %p258 = scmp.eq.s32.totalorder %s28, 7
      %p259 = por %p257, %p258
      %p261 = scmp.ne.s32.totalorder %s244, %s260
      %p262 = scmp.eq.s32.totalorder %s28, 0
      %p263 = por %p261, %p262
      %s264 = ssub.s32 %s29, %s41
      %p265 = scmp.eq.s32.totalorder %s264, 0
      %s267 = sadd.s32 %s266, 1
      %s268 = scalar_select %p265, %s266, %s267
      %p271 = pneg %p265
      %p272 = scmp.eq.s32.totalorder %s22, 7
      %p273 = por %p271, %p272
      %p274 = scmp.ne.s32.totalorder %s266, %s269
      %p275 = scmp.eq.s32.totalorder %s22, 0
      %p276 = por %p274, %p275
      %p277 = scmp.ne.s32.totalorder %s266, %s269
      %p278 = scmp.eq.s32.totalorder %s27, 7
      %p279 = por %p277, %p278
      %p280 = scmp.ne.s32.totalorder %s269, %s270
      %p281 = scmp.eq.s32.totalorder %s27, 0
      %p282 = por %p280, %p281
      %p283 = scmp.ne.s32.totalorder %s269, %s270
      %p284 = scmp.eq.s32.totalorder %s28, 7
      %p285 = por %p283, %p284
      %p287 = scmp.ne.s32.totalorder %s270, %s286
      %p288 = scmp.eq.s32.totalorder %s28, 0
      %p289 = por %p287, %p288
      %p290 = scmp.le.s32.totalorder 1, %s22
      %p291 = scmp.lt.s32.totalorder %s22, 9
      %p292 = pnand %p290, %p291
      %p293 = pneg %p292
      // Predicated region
      $region9: #{stnkd_forward.6} parent=5 // pred_check
        _
      $region10: #{stnkd_forward.6} parent=5 // pred_check_branch
        %295 = sbr.rel (%p292) target = $region12
      $region11: #{stnkd_forward.6} parent=5 // pred_region
        %s296 = ssub.s32 %s22, 1
        // Predicated region
        $region13: #{stnkd_forward.6} parent=11 // pred_check
          %p297 = pneg %p83
        $region14: #{stnkd_forward.6} parent=11 // pred_check_branch
          %299 = sbr.rel (%p297) target = $region16
        $region15: #{stnkd_forward.6} parent=11 // pred_region
          _
        $region16: #{stnkd_forward.6} parent=11 // pred_fallthru
          _
        // Predicated region
        $region17: #{stnkd_forward.6} parent=11 // pred_check
          %p300 = pneg %p104
        $region18: #{stnkd_forward.6} parent=11 // pred_check_branch
          %302 = sbr.rel (%p300) target = $region20
        $region19: #{stnkd_forward.6} parent=11 // pred_region
          %304 = vsyncadd [#allocation5], 0
          %s306 = sshll.u32 %s2, 4
          %s307 = int_to_ptr.hbm [resolvable:$true] %s306
          %s308 = sshll.u32 [#allocation4], 4
          %s309 = int_to_ptr.vmem [resolvable:$true] %s308
          %311 = dma.hbm_to_vmem [thread:$0]  %s307, 16, %s309, [#allocation5]
        $region20: #{stnkd_forward.6} parent=11 // pred_fallthru
          _
        // Predicated region
        $region21: #{stnkd_forward.6} parent=11 // pred_check
          %p312 = pneg %p125
        $region22: #{stnkd_forward.6} parent=11 // pred_check_branch
          %314 = sbr.rel (%p312) target = $region24
        $region23: #{stnkd_forward.6} parent=11 // pred_region
          _
        $region24: #{stnkd_forward.6} parent=11 // pred_fallthru
          _
        // Predicated region
        $region25: #{stnkd_forward.6} parent=11 // pred_check
          %p315 = pneg %p146
        $region26: #{stnkd_forward.6} parent=11 // pred_check_branch
          %317 = sbr.rel (%p315) target = $region28
        $region27: #{stnkd_forward.6} parent=11 // pred_region
          _
        $region28: #{stnkd_forward.6} parent=11 // pred_fallthru
          _
        // Predicated region
        $region29: #{stnkd_forward.6} parent=11 // pred_check
          %p318 = pneg %p167
        $region30: #{stnkd_forward.6} parent=11 // pred_check_branch
          %320 = sbr.rel (%p318) target = $region32
        $region31: #{stnkd_forward.6} parent=11 // pred_region
          %322 = vsyncadd [#allocation5], 0
          %s324 = sshll.u32 %s5, 4
          %s325 = int_to_ptr.hbm [resolvable:$true] %s324
          %s326 = sshll.u32 [#allocation6], 4
          %s327 = int_to_ptr.vmem [resolvable:$true] %s326
          %329 = dma.hbm_to_vmem [thread:$0]  %s325, 16, %s327, [#allocation5]
        $region32: #{stnkd_forward.6} parent=11 // pred_fallthru
          _
        // Predicated region
        $region33: #{stnkd_forward.6} parent=11 // pred_check
          %p330 = pneg %p188
        $region34: #{stnkd_forward.6} parent=11 // pred_check_branch
          %332 = sbr.rel (%p330) target = $region36
        $region35: #{stnkd_forward.6} parent=11 // pred_region
          _
        $region36: #{stnkd_forward.6} parent=11 // pred_fallthru
          _
        // Predicated region
        $region37: #{stnkd_forward.6} parent=11 // pred_check
          %p333 = pneg %p209
        $region38: #{stnkd_forward.6} parent=11 // pred_check_branch
          %335 = sbr.rel (%p333) target = $region40
        $region39: #{stnkd_forward.6} parent=11 // pred_region
          _
        $region40: #{stnkd_forward.6} parent=11 // pred_fallthru
          _
        // Predicated region
        $region41: #{stnkd_forward.6} parent=11 // pred_check
          %p336 = pneg %p230
        $region42: #{stnkd_forward.6} parent=11 // pred_check_branch
          %338 = sbr.rel (%p336) target = $region44
        $region43: #{stnkd_forward.6} parent=11 // pred_region
          %340 = vsyncadd [#allocation8], 0
          %s342 = sshll.u32 %s8, 4
          %s343 = int_to_ptr.hbm [resolvable:$true] %s342
          %s344 = sshll.u32 [#allocation7], 4
          %s345 = int_to_ptr.vmem [resolvable:$true] %s344
          %347 = dma.hbm_to_vmem [thread:$0]  %s343, 128, %s345, [#allocation8]
        $region44: #{stnkd_forward.6} parent=11 // pred_fallthru
          _
      $region12: #{stnkd_forward.6} parent=5 // pred_fallthru
        _
      %p348 = scmp.lt.s32.totalorder %s22, 8
      // Predicated region
      $region45: #{stnkd_forward.6} parent=5 // pred_check
        %p349 = pneg %p348
      $region46: #{stnkd_forward.6} parent=5 // pred_check_branch
        %351 = sbr.rel (%p349) target = $region48
      $region47: #{stnkd_forward.6} parent=5 // pred_region
        // Predicated region
        $region49: #{stnkd_forward.6} parent=47 // pred_check
          %p352 = pneg %p56
        $region50: #{stnkd_forward.6} parent=47 // pred_check_branch
          %354 = sbr.rel (%p352) target = $region52
        $region51: #{stnkd_forward.6} parent=47 // pred_region
          %s355 = sand.u32 %s46, 1
          %s356 = scalar_lea.sflag [#allocation3], %s355
          %s357 = sand.u32 %s46, 1
          %s358 = smul.addr %s357, 16
          %s359 = scalar_lea.vmem [#allocation2], %s358
          %s360 = smul.u32 2, %s30
          %362 = vsyncadd %s356, 0
          %s363 = smul.addr %s29, 4
          %s364 = sadd.s32 %s360, %s363
          %s365 = smul.addr %s364, 8
          %s366 = scalar_lea.hbm %s0, %s365
          %s368 = sshll.u32 %s366, 4
          %s369 = int_to_ptr.hbm [resolvable:$true] %s368
          %s370 = sshll.u32 %s359, 4
          %s371 = int_to_ptr.vmem [resolvable:$true] %s370
          %373 = dma.hbm_to_vmem [thread:$0]  %s369, 256, %s371, %s356
        $region52: #{stnkd_forward.6} parent=47 // pred_fallthru
          _
      $region48: #{stnkd_forward.6} parent=5 // pred_fallthru
        _
      %p374 = scmp.le.s32.totalorder 1, %s22
      %p375 = scmp.lt.s32.totalorder %s22, 9
      %p376 = pnand %p374, %p375
      %p377 = pneg %p376
      // Predicated region
      $region53: #{stnkd_forward.6} parent=5 // pred_check
        _
      $region54: #{stnkd_forward.6} parent=5 // pred_check_branch
        %379 = sbr.rel (%p376) target = $region56
      $region55: #{stnkd_forward.6} parent=5 // pred_region
        %s380 = ssub.s32 %s22, 1
        %s381 = sand.u32 %s49, 1
        %s382 = scalar_lea.sflag [#allocation3], %s381
        %s383 = sand.u32 %s49, 1
        %s384 = smul.addr %s383, 16
        %s385 = scalar_lea.vmem [#allocation2], %s384
        // Predicated region
        $region57: #{stnkd_forward.6} parent=55 // pred_check
          %p386 = pneg %p62
        $region58: #{stnkd_forward.6} parent=55 // pred_check_branch
          %388 = sbr.rel (%p386) target = $region60
        $region59: #{stnkd_forward.6} parent=55 // pred_region
          %390 = dma.done %s382, 256
        $region60: #{stnkd_forward.6} parent=55 // pred_fallthru
          _
        // Predicated region
        $region61: #{stnkd_forward.6} parent=55 // pred_check
          %p391 = pneg %p104
        $region62: #{stnkd_forward.6} parent=55 // pred_check_branch
          %393 = sbr.rel (%p391) target = $region64
        $region63: #{stnkd_forward.6} parent=55 // pred_region
          %395 = dma.done [#allocation5], 16
        $region64: #{stnkd_forward.6} parent=55 // pred_fallthru
          _
        // Predicated region
        $region65: #{stnkd_forward.6} parent=55 // pred_check
          %p396 = pneg %p167
        $region66: #{stnkd_forward.6} parent=55 // pred_check_branch
          %398 = sbr.rel (%p396) target = $region68
        $region67: #{stnkd_forward.6} parent=55 // pred_region
          %400 = dma.done [#allocation5], 16
        $region68: #{stnkd_forward.6} parent=55 // pred_fallthru
          _
        // Predicated region
        $region69: #{stnkd_forward.6} parent=55 // pred_check
          %p401 = pneg %p230
        $region70: #{stnkd_forward.6} parent=55 // pred_check_branch
          %403 = sbr.rel (%p401) target = $region72
        $region71: #{stnkd_forward.6} parent=55 // pred_region
          %405 = dma.done [#allocation8], 128
        $region72: #{stnkd_forward.6} parent=55 // pred_fallthru
          _
        %s406 = sand.u32 %s49, 1
        %s407 = scalar_lea.sflag [#allocation3], %s406
        %s408 = sand.u32 %s49, 1
        %s409 = smul.addr %s408, 16
        %s410 = scalar_lea.vmem [#allocation2], %s409
        %p411 = pneg %p62
        %p412 = pneg %p59
        %p413 = pneg %p83
        %p414 = pneg %p80
        %p415 = pneg %p104
        %p416 = pneg %p101
        %p417 = pneg %p125
        %p418 = pneg %p122
        %p419 = pneg %p146
        %p420 = pneg %p143
        %p421 = pneg %p167
        %p422 = pneg %p164
        %p423 = pneg %p188
        %p424 = pneg %p185
        %p425 = pneg %p209
        %p426 = pneg %p206
        %p427 = pneg %p230
        %p428 = pneg %p227
        %p429 = pneg %p256
        %p430 = pneg %p253
        %p431 = scmp.lt.s32.totalorder %s31, 3
        %s432 = scalar_select %p431, %s31, 3
        %s433 = smul.addr %s432, 8
        %s434 = smul.addr %s433, 2
        %s435 = scalar_lea.vmem %s9, %s434
        %p436 = pneg %p282
        %p437 = pneg %p279
        %p438 = scmp.lt.s32.totalorder %s31, 3
        %s439 = scalar_select %p438, %s31, 3
        %s440 = smul.addr %s439, 8
        %s441 = scalar_lea.vmem %s10, %s440
        %s442 = smul.u32 2, %s32
        %p443 = scmp.lt.s32.totalorder %s31, 3
        %s444 = scalar_select %p443, %s31, 3
        %s445 = smul.addr %s444, 8
        %s446 = smul.addr %s445, 2
        %s447 = scalar_lea.vmem %s9, %s446
        %p448 = scmp.lt.s32.totalorder %s31, 3
        %s449 = scalar_select %p448, %s31, 3
        %s450 = smul.addr %s449, 8
        %s451 = scalar_lea.vmem %s10, %s450
        %v453 = vld [vmem:[%s385] sm:$0xff]
        %v454 = vld [vmem:[%s385 + $0x8] sm:$0xff]
        %v455 = vpack.c.bf16 %v453, %v453
        %v456 = vpack.c.bf16 %v454, %v454
        %v457 = vld [vmem:[%s1] sm:$0xf]
        %v458 = vld [vmem:[#allocation4] sm:$0x1]
        %v460 = vperm.slane %v458, 0
        %462 = vxpose.binary.xlu0.c.b16.start [1/16] %v456, %v455, 128
        %463 = vxpose.binary.xlu0.c.b16.cont [2/16] 0, 0, 128
        %464 = vxpose.binary.xlu0.c.b16.cont [3/16] 0, 0, 128
        %465 = vxpose.binary.xlu0.c.b16.cont [4/16] 0, 0, 128
        %466 = vxpose.binary.xlu0.c.b16.cont [5/16] 0, 0, 128
        %467 = vxpose.binary.xlu0.c.b16.cont [6/16] 0, 0, 128
        %468 = vxpose.binary.xlu0.c.b16.cont [7/16] 0, 0, 128
        %469 = vxpose.binary.xlu0.c.b16.end [8/16] 0, 0, 128
        %v470 = vpop.trf.xlu0
        %v471 = vpop.trf.xlu0
        %v472 = vpop.trf.xlu0
        %v473 = vpop.trf.xlu0
        %v474 = vpop.trf.xlu0
        %v475 = vpop.trf.xlu0
        %v476 = vpop.trf.xlu0
        %v477 = vpop.trf.xlu0
        %v478 = vpop.trf.xlu0
        %v479 = vpop.trf.xlu0
        %v480 = vpop.trf.xlu0
        %v481 = vpop.trf.xlu0
        %v482 = vpop.trf.xlu0
        %v483 = vpop.trf.xlu0
        %v484 = vpop.trf.xlu0
        %v485 = vpop.trf.xlu0
        %vm486 = vcmask 64512
        %v488 = vsel %vm486, %v470, 0
        %v491 = vsel %vm486, %v472, 0
        %v494 = vsel %vm486, %v474, 0
        %v497 = vsel %vm486, %v476, 0
        %v500 = vsel %vm486, %v478, 0
        %v503 = vsel %vm486, %v480, 0
        %v506 = vsel %vm486, %v482, 0
        %v509 = vsel %vm486, %v484, 0
        %v512 = vsel %vm486, %v471, 0
        %v515 = vsel %vm486, %v473, 0
        %v518 = vsel %vm486, %v475, 0
        %v521 = vsel %vm486, %v477, 0
        %v524 = vsel %vm486, %v479, 0
        %v527 = vsel %vm486, %v481, 0
        %v530 = vsel %vm486, %v483, 0
        %v533 = vsel %vm486, %v485, 0
        %vm535 = vcmask 1043456
        %v537 = vsel %vm535, %v457, 0
        %539 = vmatpush.bf16.msra.mxu0 0
        %540 = vmatpush.bf16.msra.mxu0 0
        %541 = vmatpush.bf16.msra.mxu0 0
        %542 = vmatpush.bf16.msra.mxu0 0
        %543 = vmatpush.bf16.msra.mxu0 0
        %544 = vmatpush.bf16.msra.mxu0 0
        %545 = vmatpush.bf16.msra.mxu0 0
        %546 = vmatpush.bf16.msra.mxu0 %v537
        %547 = vmatmul.bf16.gmra.mxu0 %v488
        %v548 = vpop.f32.mrf.mxu0
        %v549 = vadd.f32 %v460, %v548
        %v550 = vpop.f32.mrf.mxu0
        %v551 = vadd.f32 %v460, %v550
        %552 = vmatmul.bf16.gmra.mxu0 %v491
        %v553 = vpop.f32.mrf.mxu0
        %v554 = vadd.f32 %v460, %v553
        %v555 = vpop.f32.mrf.mxu0
        %v556 = vadd.f32 %v460, %v555
        %557 = vmatmul.bf16.gmra.mxu0 %v494
        %v558 = vpop.f32.mrf.mxu0
        %v559 = vadd.f32 %v460, %v558
        %v560 = vpop.f32.mrf.mxu0
        %v561 = vadd.f32 %v460, %v560
        %562 = vmatmul.bf16.gmra.mxu0 %v497
        %v563 = vpop.f32.mrf.mxu0
        %v564 = vadd.f32 %v460, %v563
        %v565 = vpop.f32.mrf.mxu0
        %v566 = vadd.f32 %v460, %v565
        %567 = vmatmul.bf16.gmra.mxu0 %v500
        %v568 = vpop.f32.mrf.mxu0
        %v569 = vadd.f32 %v460, %v568
        %v570 = vpop.f32.mrf.mxu0
        %v571 = vadd.f32 %v460, %v570
        %572 = vmatmul.bf16.gmra.mxu0 %v503
        %v573 = vpop.f32.mrf.mxu0
        %v574 = vadd.f32 %v460, %v573
        %v575 = vpop.f32.mrf.mxu0
        %v576 = vadd.f32 %v460, %v575
        %577 = vmatmul.bf16.gmra.mxu0 %v506
        %v578 = vpop.f32.mrf.mxu0
        %v579 = vadd.f32 %v460, %v578
        %v580 = vpop.f32.mrf.mxu0
        %v581 = vadd.f32 %v460, %v580
        %582 = vmatmul.bf16.gmra.mxu0 %v509
        %v583 = vpop.f32.mrf.mxu0
        %v584 = vadd.f32 %v460, %v583
        %v585 = vpop.f32.mrf.mxu0
        %v586 = vadd.f32 %v460, %v585
        %587 = vmatmul.bf16.gmra.mxu0 %v512
        %v588 = vpop.f32.mrf.mxu0
        %v589 = vadd.f32 %v460, %v588
        %v590 = vpop.f32.mrf.mxu0
        %v591 = vadd.f32 %v460, %v590
        %592 = vmatmul.bf16.gmra.mxu0 %v515
        %v593 = vpop.f32.mrf.mxu0
        %v594 = vadd.f32 %v460, %v593
        %v595 = vpop.f32.mrf.mxu0
        %v596 = vadd.f32 %v460, %v595
        %597 = vmatmul.bf16.gmra.mxu0 %v518
        %v598 = vpop.f32.mrf.mxu0
        %v599 = vadd.f32 %v460, %v598
        %v600 = vpop.f32.mrf.mxu0
        %v601 = vadd.f32 %v460, %v600
        %602 = vmatmul.bf16.gmra.mxu0 %v521
        %v603 = vpop.f32.mrf.mxu0
        %v604 = vadd.f32 %v460, %v603
        %v605 = vpop.f32.mrf.mxu0
        %v606 = vadd.f32 %v460, %v605
        %607 = vmatmul.bf16.gmra.mxu0 %v524
        %v608 = vpop.f32.mrf.mxu0
        %v609 = vadd.f32 %v460, %v608
        %v610 = vpop.f32.mrf.mxu0
        %v611 = vadd.f32 %v460, %v610
        %612 = vmatmul.bf16.gmra.mxu0 %v527
        %v613 = vpop.f32.mrf.mxu0
        %v614 = vadd.f32 %v460, %v613
        %v615 = vpop.f32.mrf.mxu0
        %v616 = vadd.f32 %v460, %v615
        %617 = vmatmul.bf16.gmra.mxu0 %v530
        %v618 = vpop.f32.mrf.mxu0
        %v619 = vadd.f32 %v460, %v618
        %v620 = vpop.f32.mrf.mxu0
        %v621 = vadd.f32 %v460, %v620
        %622 = vmatmul.bf16.gmra.mxu0 %v533
        %v623 = vpop.f32.mrf.mxu0
        %v624 = vadd.f32 %v460, %v623
        %v625 = vpop.f32.mrf.mxu0
        %v626 = vadd.f32 %v460, %v625
        %627 = vdwg.mxu0
        %v628 = vld [vmem:[%s3] sm:$0x3]
        %v629 = vmul.f32 %v628, 0.00048828125
        %v630 = vmul.f32 %v629, %v629
        %v632 = vrot.slane %v630, 7
        %v634 = vsub.f32 %v629, %v632
        %v635 = vmax.f32 %v634, 0.0
        %v636 = vperm.slane %v629, 0
        %v637 = vsub.f32 %v549, %v636
        %v638 = vsub.f32 %v551, %v636
        %v639 = vsub.f32 %v554, %v636
        %v640 = vsub.f32 %v556, %v636
        %v641 = vsub.f32 %v559, %v636
        %v642 = vsub.f32 %v561, %v636
        %v643 = vsub.f32 %v564, %v636
        %v644 = vsub.f32 %v566, %v636
        %v645 = vsub.f32 %v569, %v636
        %v646 = vsub.f32 %v571, %v636
        %v647 = vsub.f32 %v574, %v636
        %v648 = vsub.f32 %v576, %v636
        %v649 = vsub.f32 %v579, %v636
        %v650 = vsub.f32 %v581, %v636
        %v651 = vsub.f32 %v584, %v636
        %v652 = vsub.f32 %v586, %v636
        %v653 = vsub.f32 %v589, %v636
        %v654 = vsub.f32 %v591, %v636
        %v655 = vsub.f32 %v594, %v636
        %v656 = vsub.f32 %v596, %v636
        %v657 = vsub.f32 %v599, %v636
        %v658 = vsub.f32 %v601, %v636
        %v659 = vsub.f32 %v604, %v636
        %v660 = vsub.f32 %v606, %v636
        %v661 = vsub.f32 %v609, %v636
        %v662 = vsub.f32 %v611, %v636
        %v663 = vsub.f32 %v614, %v636
        %v664 = vsub.f32 %v616, %v636
        %v665 = vsub.f32 %v619, %v636
        %v666 = vsub.f32 %v621, %v636
        %v667 = vsub.f32 %v624, %v636
        %v668 = vsub.f32 %v626, %v636
        %v669 = vadd.f32 %v635, 1e-05
        %v670 = vrsqrt.pop %v669
        %v671 = vmul.f32 %v670, %v669
        %v672 = vmul.f32 %v671, %v670
        %v673 = vmul.f32 0.5, %v672
        %v674 = vsub.f32 1.5, %v673
        %v675 = vmul.f32 %v670, %v674
        %vm676 = vweird.f32 %v669
        %vm677 = vweird.f32 %v670
        %vm678 = vmor %vm676, %vm677
        %v679 = vsel %vm678, %v670, %v675
        %v680 = vperm.slane %v679, 1
        %v681 = vmul.f32 %v637, %v680
        %v682 = vmul.f32 %v638, %v680
        %v683 = vmul.f32 %v639, %v680
        %v684 = vmul.f32 %v640, %v680
        %v685 = vmul.f32 %v641, %v680
        %v686 = vmul.f32 %v642, %v680
        %v687 = vmul.f32 %v643, %v680
        %v688 = vmul.f32 %v644, %v680
        %v689 = vmul.f32 %v645, %v680
        %v690 = vmul.f32 %v646, %v680
        %v691 = vmul.f32 %v647, %v680
        %v692 = vmul.f32 %v648, %v680
        %v693 = vmul.f32 %v649, %v680
        %v694 = vmul.f32 %v650, %v680
        %v695 = vmul.f32 %v651, %v680
        %v696 = vmul.f32 %v652, %v680
        %v697 = vmul.f32 %v653, %v680
        %v698 = vmul.f32 %v654, %v680
        %v699 = vmul.f32 %v655, %v680
        %v700 = vmul.f32 %v656, %v680
        %v701 = vmul.f32 %v657, %v680
        %v702 = vmul.f32 %v658, %v680
        %v703 = vmul.f32 %v659, %v680
        %v704 = vmul.f32 %v660, %v680
        %v705 = vmul.f32 %v661, %v680
        %v706 = vmul.f32 %v662, %v680
        %v707 = vmul.f32 %v663, %v680
        %v708 = vmul.f32 %v664, %v680
        %v709 = vmul.f32 %v665, %v680
        %v710 = vmul.f32 %v666, %v680
        %v711 = vmul.f32 %v667, %v680
        %v712 = vmul.f32 %v668, %v680
        %v713 = vmax.f32 %v681, 0.0
        %v714 = vmax.f32 %v682, 0.0
        %v715 = vmax.f32 %v683, 0.0
        %v716 = vmax.f32 %v684, 0.0
        %v717 = vmax.f32 %v685, 0.0
        %v718 = vmax.f32 %v686, 0.0
        %v719 = vmax.f32 %v687, 0.0
        %v720 = vmax.f32 %v688, 0.0
        %v721 = vmax.f32 %v689, 0.0
        %v722 = vmax.f32 %v690, 0.0
        %v723 = vmax.f32 %v691, 0.0
        %v724 = vmax.f32 %v692, 0.0
        %v725 = vmax.f32 %v693, 0.0
        %v726 = vmax.f32 %v694, 0.0
        %v727 = vmax.f32 %v695, 0.0
        %v728 = vmax.f32 %v696, 0.0
        %v729 = vmax.f32 %v697, 0.0
        %v730 = vmax.f32 %v698, 0.0
        %v731 = vmax.f32 %v699, 0.0
        %v732 = vmax.f32 %v700, 0.0
        %v733 = vmax.f32 %v701, 0.0
        %v734 = vmax.f32 %v702, 0.0
        %v735 = vmax.f32 %v703, 0.0
        %v736 = vmax.f32 %v704, 0.0
        %v737 = vmax.f32 %v705, 0.0
        %v738 = vmax.f32 %v706, 0.0
        %v739 = vmax.f32 %v707, 0.0
        %v740 = vmax.f32 %v708, 0.0
        %v741 = vmax.f32 %v709, 0.0
        %v742 = vmax.f32 %v710, 0.0
        %v743 = vmax.f32 %v711, 0.0
        %v744 = vmax.f32 %v712, 0.0
        %v745 = vpack.c.bf16 %v714, %v713
        %v746 = vpack.c.bf16 %v716, %v715
        %v747 = vpack.c.bf16 %v718, %v717
        %v748 = vpack.c.bf16 %v720, %v719
        %v749 = vpack.c.bf16 %v722, %v721
        %v750 = vpack.c.bf16 %v724, %v723
        %v751 = vpack.c.bf16 %v726, %v725
        %v752 = vpack.c.bf16 %v728, %v727
        %v753 = vpack.c.bf16 %v730, %v729
        %v754 = vpack.c.bf16 %v732, %v731
        %v755 = vpack.c.bf16 %v734, %v733
        %v756 = vpack.c.bf16 %v736, %v735
        %v757 = vpack.c.bf16 %v738, %v737
        %v758 = vpack.c.bf16 %v740, %v739
        %v759 = vpack.c.bf16 %v742, %v741
        %v760 = vpack.c.bf16 %v744, %v743
        %v761 = vld [vmem:[%s4] sm:$0xf]
        %v762 = vld [vmem:[%s4 + $0x4] sm:$0xf]
        %v763 = vld [vmem:[%s4 + $0x8] sm:$0xf]
        %v764 = vld [vmem:[%s4 + $0xc] sm:$0xf]
        %v765 = vld [vmem:[%s4 + $0x10] sm:$0xf]
        %v766 = vld [vmem:[%s4 + $0x14] sm:$0xf]
        %v767 = vld [vmem:[%s4 + $0x18] sm:$0xf]
        %v768 = vld [vmem:[%s4 + $0x1c] sm:$0xf]
        %v769 = vld [vmem:[#allocation6] sm:$0x1]
        %v771 = vperm.slane %v769, 0
        %v781 = vunpack.c.l.b16 %v761
        %v782 = vunpack.c.l.b16 %v762
        %v783 = vunpack.c.l.b16 %v763
        %v784 = vunpack.c.l.b16 %v764
        %v785 = vunpack.c.l.b16 %v765
        %v786 = vunpack.c.l.b16 %v766
        %v787 = vunpack.c.l.b16 %v767
        %v788 = vunpack.c.l.b16 %v768
        %v789 = vpack.c.b16 %v782, %v781
        %v790 = vpack.c.b16 %v784, %v783
        %v791 = vpack.c.b16 %v786, %v785
        %v792 = vpack.c.b16 %v788, %v787
        %vm797 = vcmask 523264
        %v799 = vsel %vm797, %v745, 0
        %v802 = vsel %vm797, %v746, 0
        %v805 = vsel %vm797, %v747, 0
        %v808 = vsel %vm797, %v748, 0
        %v811 = vsel %vm797, %v749, 0
        %v814 = vsel %vm797, %v750, 0
        %v817 = vsel %vm797, %v751, 0
        %v820 = vsel %vm797, %v752, 0
        %v823 = vsel %vm797, %v753, 0
        %v826 = vsel %vm797, %v754, 0
        %v829 = vsel %vm797, %v755, 0
        %v832 = vsel %vm797, %v756, 0
        %v835 = vsel %vm797, %v757, 0
        %v838 = vsel %vm797, %v758, 0
        %v841 = vsel %vm797, %v759, 0
        %v844 = vsel %vm797, %v760, 0
        %846 = vmatpush.bf16.msra.mxu0 0
        %847 = vmatpush.bf16.msra.mxu0 0
        %848 = vmatpush.bf16.msra.mxu0 0
        %849 = vmatpush.bf16.msra.mxu0 0
        %850 = vmatpush.bf16.msra.mxu0 %v792
        %851 = vmatpush.bf16.msra.mxu0 %v791
        %852 = vmatpush.bf16.msra.mxu0 %v790
        %853 = vmatpush.bf16.msra.mxu0 %v789
        %854 = vmatmul.bf16.gmra.mxu0 %v799
        %v855 = vpop.f32.mrf.mxu0
        %v856 = vadd.f32 %v771, %v855
        %v857 = vpop.f32.mrf.mxu0
        %v858 = vadd.f32 %v771, %v857
        %859 = vmatmul.bf16.gmra.mxu0 %v802
        %v860 = vpop.f32.mrf.mxu0
        %v861 = vadd.f32 %v771, %v860
        %v862 = vpop.f32.mrf.mxu0
        %v863 = vadd.f32 %v771, %v862
        %864 = vmatmul.bf16.gmra.mxu0 %v805
        %v865 = vpop.f32.mrf.mxu0
        %v866 = vadd.f32 %v771, %v865
        %v867 = vpop.f32.mrf.mxu0
        %v868 = vadd.f32 %v771, %v867
        %869 = vmatmul.bf16.gmra.mxu0 %v808
        %v870 = vpop.f32.mrf.mxu0
        %v871 = vadd.f32 %v771, %v870
        %v872 = vpop.f32.mrf.mxu0
        %v873 = vadd.f32 %v771, %v872
        %874 = vmatmul.bf16.gmra.mxu0 %v811
        %v875 = vpop.f32.mrf.mxu0
        %v876 = vadd.f32 %v771, %v875
        %v877 = vpop.f32.mrf.mxu0
        %v878 = vadd.f32 %v771, %v877
        %879 = vmatmul.bf16.gmra.mxu0 %v814
        %v880 = vpop.f32.mrf.mxu0
        %v881 = vadd.f32 %v771, %v880
        %v882 = vpop.f32.mrf.mxu0
        %v883 = vadd.f32 %v771, %v882
        %884 = vmatmul.bf16.gmra.mxu0 %v817
        %v885 = vpop.f32.mrf.mxu0
        %v886 = vadd.f32 %v771, %v885
        %v887 = vpop.f32.mrf.mxu0
        %v888 = vadd.f32 %v771, %v887
        %889 = vmatmul.bf16.gmra.mxu0 %v820
        %v890 = vpop.f32.mrf.mxu0
        %v891 = vadd.f32 %v771, %v890
        %v892 = vpop.f32.mrf.mxu0
        %v893 = vadd.f32 %v771, %v892
        %894 = vmatmul.bf16.gmra.mxu0 %v823
        %v895 = vpop.f32.mrf.mxu0
        %v896 = vadd.f32 %v771, %v895
        %v897 = vpop.f32.mrf.mxu0
        %v898 = vadd.f32 %v771, %v897
        %899 = vmatmul.bf16.gmra.mxu0 %v826
        %v900 = vpop.f32.mrf.mxu0
        %v901 = vadd.f32 %v771, %v900
        %v902 = vpop.f32.mrf.mxu0
        %v903 = vadd.f32 %v771, %v902
        %904 = vmatmul.bf16.gmra.mxu0 %v829
        %v905 = vpop.f32.mrf.mxu0
        %v906 = vadd.f32 %v771, %v905
        %v907 = vpop.f32.mrf.mxu0
        %v908 = vadd.f32 %v771, %v907
        %909 = vmatmul.bf16.gmra.mxu0 %v832
        %v910 = vpop.f32.mrf.mxu0
        %v911 = vadd.f32 %v771, %v910
        %v912 = vpop.f32.mrf.mxu0
        %v913 = vadd.f32 %v771, %v912
        %914 = vmatmul.bf16.gmra.mxu0 %v835
        %v915 = vpop.f32.mrf.mxu0
        %v916 = vadd.f32 %v771, %v915
        %v917 = vpop.f32.mrf.mxu0
        %v918 = vadd.f32 %v771, %v917
        %919 = vmatmul.bf16.gmra.mxu0 %v838
        %v920 = vpop.f32.mrf.mxu0
        %v921 = vadd.f32 %v771, %v920
        %v922 = vpop.f32.mrf.mxu0
        %v923 = vadd.f32 %v771, %v922
        %924 = vmatmul.bf16.gmra.mxu0 %v841
        %v925 = vpop.f32.mrf.mxu0
        %v926 = vadd.f32 %v771, %v925
        %v927 = vpop.f32.mrf.mxu0
        %v928 = vadd.f32 %v771, %v927
        %929 = vmatmul.bf16.gmra.mxu0 %v844
        %v930 = vpop.f32.mrf.mxu0
        %v931 = vadd.f32 %v771, %v930
        %v932 = vpop.f32.mrf.mxu0
        %v933 = vadd.f32 %v771, %v932
        %934 = vdwg.mxu0
        %v935 = vld [vmem:[%s6] sm:$0x3]
        %v936 = vmul.f32 %v935, 0.00048828125
        %v937 = vmul.f32 %v936, %v936
        %v939 = vrot.slane %v937, 7
        %v941 = vsub.f32 %v936, %v939
        %v942 = vmax.f32 %v941, 0.0
        %v943 = vperm.slane %v936, 0
        %v944 = vsub.f32 %v856, %v943
        %v945 = vsub.f32 %v858, %v943
        %v946 = vsub.f32 %v861, %v943
        %v947 = vsub.f32 %v863, %v943
        %v948 = vsub.f32 %v866, %v943
        %v949 = vsub.f32 %v868, %v943
        %v950 = vsub.f32 %v871, %v943
        %v951 = vsub.f32 %v873, %v943
        %v952 = vsub.f32 %v876, %v943
        %v953 = vsub.f32 %v878, %v943
        %v954 = vsub.f32 %v881, %v943
        %v955 = vsub.f32 %v883, %v943
        %v956 = vsub.f32 %v886, %v943
        %v957 = vsub.f32 %v888, %v943
        %v958 = vsub.f32 %v891, %v943
        %v959 = vsub.f32 %v893, %v943
        %v960 = vsub.f32 %v896, %v943
        %v961 = vsub.f32 %v898, %v943
        %v962 = vsub.f32 %v901, %v943
        %v963 = vsub.f32 %v903, %v943
        %v964 = vsub.f32 %v906, %v943
        %v965 = vsub.f32 %v908, %v943
        %v966 = vsub.f32 %v911, %v943
        %v967 = vsub.f32 %v913, %v943
        %v968 = vsub.f32 %v916, %v943
        %v969 = vsub.f32 %v918, %v943
        %v970 = vsub.f32 %v921, %v943
        %v971 = vsub.f32 %v923, %v943
        %v972 = vsub.f32 %v926, %v943
        %v973 = vsub.f32 %v928, %v943
        %v974 = vsub.f32 %v931, %v943
        %v975 = vsub.f32 %v933, %v943
        %v976 = vadd.f32 %v942, 1e-05
        %v977 = vrsqrt.pop %v976
        %v978 = vmul.f32 %v977, %v976
        %v979 = vmul.f32 %v978, %v977
        %v980 = vmul.f32 0.5, %v979
        %v981 = vsub.f32 1.5, %v980
        %v982 = vmul.f32 %v977, %v981
        %vm983 = vweird.f32 %v976
        %vm984 = vweird.f32 %v977
        %vm985 = vmor %vm983, %vm984
        %v986 = vsel %vm985, %v977, %v982
        %v987 = vperm.slane %v986, 1
        %v988 = vmul.f32 %v944, %v987
        %v989 = vmul.f32 %v945, %v987
        %v990 = vmul.f32 %v946, %v987
        %v991 = vmul.f32 %v947, %v987
        %v992 = vmul.f32 %v948, %v987
        %v993 = vmul.f32 %v949, %v987
        %v994 = vmul.f32 %v950, %v987
        %v995 = vmul.f32 %v951, %v987
        %v996 = vmul.f32 %v952, %v987
        %v997 = vmul.f32 %v953, %v987
        %v998 = vmul.f32 %v954, %v987
        %v999 = vmul.f32 %v955, %v987
        %v1000 = vmul.f32 %v956, %v987
        %v1001 = vmul.f32 %v957, %v987
        %v1002 = vmul.f32 %v958, %v987
        %v1003 = vmul.f32 %v959, %v987
        %v1004 = vmul.f32 %v960, %v987
        %v1005 = vmul.f32 %v961, %v987
        %v1006 = vmul.f32 %v962, %v987
        %v1007 = vmul.f32 %v963, %v987
        %v1008 = vmul.f32 %v964, %v987
        %v1009 = vmul.f32 %v965, %v987
        %v1010 = vmul.f32 %v966, %v987
        %v1011 = vmul.f32 %v967, %v987
        %v1012 = vmul.f32 %v968, %v987
        %v1013 = vmul.f32 %v969, %v987
        %v1014 = vmul.f32 %v970, %v987
        %v1015 = vmul.f32 %v971, %v987
        %v1016 = vmul.f32 %v972, %v987
        %v1017 = vmul.f32 %v973, %v987
        %v1018 = vmul.f32 %v974, %v987
        %v1019 = vmul.f32 %v975, %v987
        %v1020 = vmax.f32 %v988, 0.0
        %v1021 = vmax.f32 %v989, 0.0
        %v1022 = vmax.f32 %v990, 0.0
        %v1023 = vmax.f32 %v991, 0.0
        %v1024 = vmax.f32 %v992, 0.0
        %v1025 = vmax.f32 %v993, 0.0
        %v1026 = vmax.f32 %v994, 0.0
        %v1027 = vmax.f32 %v995, 0.0
        %v1028 = vmax.f32 %v996, 0.0
        %v1029 = vmax.f32 %v997, 0.0
        %v1030 = vmax.f32 %v998, 0.0
        %v1031 = vmax.f32 %v999, 0.0
        %v1032 = vmax.f32 %v1000, 0.0
        %v1033 = vmax.f32 %v1001, 0.0
        %v1034 = vmax.f32 %v1002, 0.0
        %v1035 = vmax.f32 %v1003, 0.0
        %v1036 = vmax.f32 %v1004, 0.0
        %v1037 = vmax.f32 %v1005, 0.0
        %v1038 = vmax.f32 %v1006, 0.0
        %v1039 = vmax.f32 %v1007, 0.0
        %v1040 = vmax.f32 %v1008, 0.0
        %v1041 = vmax.f32 %v1009, 0.0
        %v1042 = vmax.f32 %v1010, 0.0
        %v1043 = vmax.f32 %v1011, 0.0
        %v1044 = vmax.f32 %v1012, 0.0
        %v1045 = vmax.f32 %v1013, 0.0
        %v1046 = vmax.f32 %v1014, 0.0
        %v1047 = vmax.f32 %v1015, 0.0
        %v1048 = vmax.f32 %v1016, 0.0
        %v1049 = vmax.f32 %v1017, 0.0
        %v1050 = vmax.f32 %v1018, 0.0
        %v1051 = vmax.f32 %v1019, 0.0
        %v1052 = vpack.c.bf16 %v1021, %v1020
        %v1053 = vpack.c.bf16 %v1023, %v1022
        %v1054 = vpack.c.bf16 %v1025, %v1024
        %v1055 = vpack.c.bf16 %v1027, %v1026
        %v1056 = vpack.c.bf16 %v1029, %v1028
        %v1057 = vpack.c.bf16 %v1031, %v1030
        %v1058 = vpack.c.bf16 %v1033, %v1032
        %v1059 = vpack.c.bf16 %v1035, %v1034
        %v1060 = vpack.c.bf16 %v1037, %v1036
        %v1061 = vpack.c.bf16 %v1039, %v1038
        %v1062 = vpack.c.bf16 %v1041, %v1040
        %v1063 = vpack.c.bf16 %v1043, %v1042
        %v1064 = vpack.c.bf16 %v1045, %v1044
        %v1065 = vpack.c.bf16 %v1047, %v1046
        %v1066 = vpack.c.bf16 %v1049, %v1048
        %v1067 = vpack.c.bf16 %v1051, %v1050
        %v1068 = vld [vmem:[%s7] sm:$0xff]
        %v1069 = vld [vmem:[%s7 + $0x8] sm:$0xff]
        %v1070 = vld [vmem:[%s7 + $0x10] sm:$0xff]
        %v1071 = vld [vmem:[%s7 + $0x18] sm:$0xff]
        %v1072 = vld [vmem:[%s7 + $0x20] sm:$0xff]
        %v1073 = vld [vmem:[%s7 + $0x28] sm:$0xff]
        %v1074 = vld [vmem:[%s7 + $0x30] sm:$0xff]
        %v1075 = vld [vmem:[%s7 + $0x38] sm:$0xff]
        %v1076 = vld [vmem:[%s7 + $0x40] sm:$0xff]
        %v1077 = vld [vmem:[%s7 + $0x48] sm:$0xff]
        %v1078 = vld [vmem:[%s7 + $0x50] sm:$0xff]
        %v1079 = vld [vmem:[%s7 + $0x58] sm:$0xff]
        %v1080 = vld [vmem:[%s7 + $0x60] sm:$0xff]
        %v1081 = vld [vmem:[%s7 + $0x68] sm:$0xff]
        %v1082 = vld [vmem:[%s7 + $0x70] sm:$0xff]
        %v1083 = vld [vmem:[%s7 + $0x78] sm:$0xff]
        %v1084 = vld [vmem:[%s7 + $0x80] sm:$0xff]
        %v1085 = vld [vmem:[%s7 + $0x88] sm:$0xff]
        %v1086 = vld [vmem:[%s7 + $0x90] sm:$0xff]
        %v1087 = vld [vmem:[%s7 + $0x98] sm:$0xff]
        %v1088 = vld [vmem:[%s7 + $0xa0] sm:$0xff]
        %v1089 = vld [vmem:[%s7 + $0xa8] sm:$0xff]
        %v1090 = vld [vmem:[%s7 + $0xb0] sm:$0xff]
        %v1091 = vld [vmem:[%s7 + $0xb8] sm:$0xff]
        %v1092 = vld [vmem:[%s7 + $0xc0] sm:$0xff]
        %v1093 = vld [vmem:[%s7 + $0xc8] sm:$0xff]
        %v1094 = vld [vmem:[%s7 + $0xd0] sm:$0xff]
        %v1095 = vld [vmem:[%s7 + $0xd8] sm:$0xff]
        %v1096 = vld [vmem:[%s7 + $0xe0] sm:$0xff]
        %v1097 = vld [vmem:[%s7 + $0xe8] sm:$0xff]
        %v1098 = vld [vmem:[%s7 + $0xf0] sm:$0xff]
        %v1099 = vld [vmem:[%s7 + $0xf8] sm:$0xff]
        %v1100 = vld [vmem:[%s7 + $0x100] sm:$0xff]
        %v1101 = vld [vmem:[%s7 + $0x108] sm:$0xff]
        %v1102 = vld [vmem:[%s7 + $0x110] sm:$0xff]
        %v1103 = vld [vmem:[%s7 + $0x118] sm:$0xff]
        %v1104 = vld [vmem:[%s7 + $0x120] sm:$0xff]
        %v1105 = vld [vmem:[%s7 + $0x128] sm:$0xff]
        %v1106 = vld [vmem:[%s7 + $0x130] sm:$0xff]
        %v1107 = vld [vmem:[%s7 + $0x138] sm:$0xff]
        %v1108 = vld [vmem:[%s7 + $0x140] sm:$0xff]
        %v1109 = vld [vmem:[%s7 + $0x148] sm:$0xff]
        %v1110 = vld [vmem:[%s7 + $0x150] sm:$0xff]
        %v1111 = vld [vmem:[%s7 + $0x158] sm:$0xff]
        %v1112 = vld [vmem:[%s7 + $0x160] sm:$0xff]
        %v1113 = vld [vmem:[%s7 + $0x168] sm:$0xff]
        %v1114 = vld [vmem:[%s7 + $0x170] sm:$0xff]
        %v1115 = vld [vmem:[%s7 + $0x178] sm:$0xff]
        %v1116 = vld [vmem:[%s7 + $0x180] sm:$0xff]
        %v1117 = vld [vmem:[%s7 + $0x188] sm:$0xff]
        %v1118 = vld [vmem:[%s7 + $0x190] sm:$0xff]
        %v1119 = vld [vmem:[%s7 + $0x198] sm:$0xff]
        %v1120 = vld [vmem:[%s7 + $0x1a0] sm:$0xff]
        %v1121 = vld [vmem:[%s7 + $0x1a8] sm:$0xff]
        %v1122 = vld [vmem:[%s7 + $0x1b0] sm:$0xff]
        %v1123 = vld [vmem:[%s7 + $0x1b8] sm:$0xff]
        %v1124 = vld [vmem:[%s7 + $0x1c0] sm:$0xff]
        %v1125 = vld [vmem:[%s7 + $0x1c8] sm:$0xff]
        %v1126 = vld [vmem:[%s7 + $0x1d0] sm:$0xff]
        %v1127 = vld [vmem:[%s7 + $0x1d8] sm:$0xff]
        %v1128 = vld [vmem:[%s7 + $0x1e0] sm:$0xff]
        %v1129 = vld [vmem:[%s7 + $0x1e8] sm:$0xff]
        %v1130 = vld [vmem:[%s7 + $0x1f0] sm:$0xff]
        %v1131 = vld [vmem:[%s7 + $0x1f8] sm:$0xff]
        %v1132 = vld [vmem:[#allocation7] sm:$0xff]
        %v1134 = vperm.slane %v1132, 0
        %v1135 = vperm.slane %v1132, 1
        %v1136 = vperm.slane %v1132, 2
        %v1137 = vperm.slane %v1132, 3
        %v1138 = vperm.slane %v1132, 4
        %v1139 = vperm.slane %v1132, 5
        %v1140 = vperm.slane %v1132, 6
        %v1141 = vperm.slane %v1132, 7
        %v1214 = vunpack.c.l.b16 %v1068
        %v1215 = vunpack.c.h.b16 %v1068
        %v1216 = vunpack.c.l.b16 %v1069
        %v1217 = vunpack.c.h.b16 %v1069
        %v1218 = vunpack.c.l.b16 %v1070
        %v1219 = vunpack.c.h.b16 %v1070
        %v1220 = vunpack.c.l.b16 %v1071
        %v1221 = vunpack.c.h.b16 %v1071
        %v1222 = vunpack.c.l.b16 %v1072
        %v1223 = vunpack.c.h.b16 %v1072
        %v1224 = vunpack.c.l.b16 %v1073
        %v1225 = vunpack.c.h.b16 %v1073
        %v1226 = vunpack.c.l.b16 %v1074
        %v1227 = vunpack.c.h.b16 %v1074
        %v1228 = vunpack.c.l.b16 %v1075
        %v1229 = vunpack.c.h.b16 %v1075
        %v1230 = vunpack.c.l.b16 %v1076
        %v1231 = vunpack.c.h.b16 %v1076
        %v1232 = vunpack.c.l.b16 %v1077
        %v1233 = vunpack.c.h.b16 %v1077
        %v1234 = vunpack.c.l.b16 %v1078
        %v1235 = vunpack.c.h.b16 %v1078
        %v1236 = vunpack.c.l.b16 %v1079
        %v1237 = vunpack.c.h.b16 %v1079
        %v1238 = vunpack.c.l.b16 %v1080
        %v1239 = vunpack.c.h.b16 %v1080
        %v1240 = vunpack.c.l.b16 %v1081
        %v1241 = vunpack.c.h.b16 %v1081
        %v1242 = vunpack.c.l.b16 %v1082
        %v1243 = vunpack.c.h.b16 %v1082
        %v1244 = vunpack.c.l.b16 %v1083
        %v1245 = vunpack.c.h.b16 %v1083
        %v1246 = vunpack.c.l.b16 %v1084
        %v1247 = vunpack.c.h.b16 %v1084
        %v1248 = vunpack.c.l.b16 %v1085
        %v1249 = vunpack.c.h.b16 %v1085
        %v1250 = vunpack.c.l.b16 %v1086
        %v1251 = vunpack.c.h.b16 %v1086
        %v1252 = vunpack.c.l.b16 %v1087
        %v1253 = vunpack.c.h.b16 %v1087
        %v1254 = vunpack.c.l.b16 %v1088
        %v1255 = vunpack.c.h.b16 %v1088
        %v1256 = vunpack.c.l.b16 %v1089
        %v1257 = vunpack.c.h.b16 %v1089
        %v1258 = vunpack.c.l.b16 %v1090
        %v1259 = vunpack.c.h.b16 %v1090
        %v1260 = vunpack.c.l.b16 %v1091
        %v1261 = vunpack.c.h.b16 %v1091
        %v1262 = vunpack.c.l.b16 %v1092
        %v1263 = vunpack.c.h.b16 %v1092
        %v1264 = vunpack.c.l.b16 %v1093
        %v1265 = vunpack.c.h.b16 %v1093
        %v1266 = vunpack.c.l.b16 %v1094
        %v1267 = vunpack.c.h.b16 %v1094
        %v1268 = vunpack.c.l.b16 %v1095
        %v1269 = vunpack.c.h.b16 %v1095
        %v1270 = vunpack.c.l.b16 %v1096
        %v1271 = vunpack.c.h.b16 %v1096
        %v1272 = vunpack.c.l.b16 %v1097
        %v1273 = vunpack.c.h.b16 %v1097
        %v1274 = vunpack.c.l.b16 %v1098
        %v1275 = vunpack.c.h.b16 %v1098
        %v1276 = vunpack.c.l.b16 %v1099
        %v1277 = vunpack.c.h.b16 %v1099
        %v1278 = vunpack.c.l.b16 %v1100
        %v1279 = vunpack.c.h.b16 %v1100
        %v1280 = vunpack.c.l.b16 %v1101
        %v1281 = vunpack.c.h.b16 %v1101
        %v1282 = vunpack.c.l.b16 %v1102
        %v1283 = vunpack.c.h.b16 %v1102
        %v1284 = vunpack.c.l.b16 %v1103
        %v1285 = vunpack.c.h.b16 %v1103
        %v1286 = vunpack.c.l.b16 %v1104
        %v1287 = vunpack.c.h.b16 %v1104
        %v1288 = vunpack.c.l.b16 %v1105
        %v1289 = vunpack.c.h.b16 %v1105
        %v1290 = vunpack.c.l.b16 %v1106
        %v1291 = vunpack.c.h.b16 %v1106
        %v1292 = vunpack.c.l.b16 %v1107
        %v1293 = vunpack.c.h.b16 %v1107
        %v1294 = vunpack.c.l.b16 %v1108
        %v1295 = vunpack.c.h.b16 %v1108
        %v1296 = vunpack.c.l.b16 %v1109
        %v1297 = vunpack.c.h.b16 %v1109
        %v1298 = vunpack.c.l.b16 %v1110
        %v1299 = vunpack.c.h.b16 %v1110
        %v1300 = vunpack.c.l.b16 %v1111
        %v1301 = vunpack.c.h.b16 %v1111
        %v1302 = vunpack.c.l.b16 %v1112
        %v1303 = vunpack.c.h.b16 %v1112
        %v1304 = vunpack.c.l.b16 %v1113
        %v1305 = vunpack.c.h.b16 %v1113
        %v1306 = vunpack.c.l.b16 %v1114
        %v1307 = vunpack.c.h.b16 %v1114
        %v1308 = vunpack.c.l.b16 %v1115
        %v1309 = vunpack.c.h.b16 %v1115
        %v1310 = vunpack.c.l.b16 %v1116
        %v1311 = vunpack.c.h.b16 %v1116
        %v1312 = vunpack.c.l.b16 %v1117
        %v1313 = vunpack.c.h.b16 %v1117
        %v1314 = vunpack.c.l.b16 %v1118
        %v1315 = vunpack.c.h.b16 %v1118
        %v1316 = vunpack.c.l.b16 %v1119
        %v1317 = vunpack.c.h.b16 %v1119
        %v1318 = vunpack.c.l.b16 %v1120
        %v1319 = vunpack.c.h.b16 %v1120
        %v1320 = vunpack.c.l.b16 %v1121
        %v1321 = vunpack.c.h.b16 %v1121
        %v1322 = vunpack.c.l.b16 %v1122
        %v1323 = vunpack.c.h.b16 %v1122
        %v1324 = vunpack.c.l.b16 %v1123
        %v1325 = vunpack.c.h.b16 %v1123
        %v1326 = vunpack.c.l.b16 %v1124
        %v1327 = vunpack.c.h.b16 %v1124
        %v1328 = vunpack.c.l.b16 %v1125
        %v1329 = vunpack.c.h.b16 %v1125
        %v1330 = vunpack.c.l.b16 %v1126
        %v1331 = vunpack.c.h.b16 %v1126
        %v1332 = vunpack.c.l.b16 %v1127
        %v1333 = vunpack.c.h.b16 %v1127
        %v1334 = vunpack.c.l.b16 %v1128
        %v1335 = vunpack.c.h.b16 %v1128
        %v1336 = vunpack.c.l.b16 %v1129
        %v1337 = vunpack.c.h.b16 %v1129
        %v1338 = vunpack.c.l.b16 %v1130
        %v1339 = vunpack.c.h.b16 %v1130
        %v1340 = vunpack.c.l.b16 %v1131
        %v1341 = vunpack.c.h.b16 %v1131
        %v1342 = vpack.c.b16 %v1222, %v1214
        %v1343 = vpack.c.b16 %v1223, %v1215
        %v1344 = vpack.c.b16 %v1224, %v1216
        %v1345 = vpack.c.b16 %v1225, %v1217
        %v1346 = vpack.c.b16 %v1226, %v1218
        %v1347 = vpack.c.b16 %v1227, %v1219
        %v1348 = vpack.c.b16 %v1228, %v1220
        %v1349 = vpack.c.b16 %v1229, %v1221
        %v1350 = vpack.c.b16 %v1238, %v1230
        %v1351 = vpack.c.b16 %v1239, %v1231
        %v1352 = vpack.c.b16 %v1240, %v1232
        %v1353 = vpack.c.b16 %v1241, %v1233
        %v1354 = vpack.c.b16 %v1242, %v1234
        %v1355 = vpack.c.b16 %v1243, %v1235
        %v1356 = vpack.c.b16 %v1244, %v1236
        %v1357 = vpack.c.b16 %v1245, %v1237
        %v1358 = vpack.c.b16 %v1254, %v1246
        %v1359 = vpack.c.b16 %v1255, %v1247
        %v1360 = vpack.c.b16 %v1256, %v1248
        %v1361 = vpack.c.b16 %v1257, %v1249
        %v1362 = vpack.c.b16 %v1258, %v1250
        %v1363 = vpack.c.b16 %v1259, %v1251
        %v1364 = vpack.c.b16 %v1260, %v1252
        %v1365 = vpack.c.b16 %v1261, %v1253
        %v1366 = vpack.c.b16 %v1270, %v1262
        %v1367 = vpack.c.b16 %v1271, %v1263
        %v1368 = vpack.c.b16 %v1272, %v1264
        %v1369 = vpack.c.b16 %v1273, %v1265
        %v1370 = vpack.c.b16 %v1274, %v1266
        %v1371 = vpack.c.b16 %v1275, %v1267
        %v1372 = vpack.c.b16 %v1276, %v1268
        %v1373 = vpack.c.b16 %v1277, %v1269
        %v1374 = vpack.c.b16 %v1286, %v1278
        %v1375 = vpack.c.b16 %v1287, %v1279
        %v1376 = vpack.c.b16 %v1288, %v1280
        %v1377 = vpack.c.b16 %v1289, %v1281
        %v1378 = vpack.c.b16 %v1290, %v1282
        %v1379 = vpack.c.b16 %v1291, %v1283
        %v1380 = vpack.c.b16 %v1292, %v1284
        %v1381 = vpack.c.b16 %v1293, %v1285
        %v1382 = vpack.c.b16 %v1302, %v1294
        %v1383 = vpack.c.b16 %v1303, %v1295
        %v1384 = vpack.c.b16 %v1304, %v1296
        %v1385 = vpack.c.b16 %v1305, %v1297
        %v1386 = vpack.c.b16 %v1306, %v1298
        %v1387 = vpack.c.b16 %v1307, %v1299
        %v1388 = vpack.c.b16 %v1308, %v1300
        %v1389 = vpack.c.b16 %v1309, %v1301
        %v1390 = vpack.c.b16 %v1318, %v1310
        %v1391 = vpack.c.b16 %v1319, %v1311
        %v1392 = vpack.c.b16 %v1320, %v1312
        %v1393 = vpack.c.b16 %v1321, %v1313
        %v1394 = vpack.c.b16 %v1322, %v1314
        %v1395 = vpack.c.b16 %v1323, %v1315
        %v1396 = vpack.c.b16 %v1324, %v1316
        %v1397 = vpack.c.b16 %v1325, %v1317
        %v1398 = vpack.c.b16 %v1334, %v1326
        %v1399 = vpack.c.b16 %v1335, %v1327
        %v1400 = vpack.c.b16 %v1336, %v1328
        %v1401 = vpack.c.b16 %v1337, %v1329
        %v1402 = vpack.c.b16 %v1338, %v1330
        %v1403 = vpack.c.b16 %v1339, %v1331
        %v1404 = vpack.c.b16 %v1340, %v1332
        %v1405 = vpack.c.b16 %v1341, %v1333
        %1470 = vmatpush.bf16.msra.mxu0 %v1398
        %1471 = vmatpush.bf16.msra.mxu0 %v1390
        %1472 = vmatpush.bf16.msra.mxu0 %v1382
        %1473 = vmatpush.bf16.msra.mxu0 %v1374
        %1474 = vmatpush.bf16.msra.mxu0 %v1366
        %1475 = vmatpush.bf16.msra.mxu0 %v1358
        %1476 = vmatpush.bf16.msra.mxu0 %v1350
        %1477 = vmatpush.bf16.msra.mxu0 %v1342
        %1478 = vmatmul.bf16.gmra.mxu0 %v1052
        %v1479 = vpop.f32.mrf.mxu0
        %v1480 = vadd.f32 %v1134, %v1479
        %v1481 = vpop.f32.mrf.mxu0
        %v1482 = vadd.f32 %v1134, %v1481
        %1483 = vmatmul.bf16.gmra.mxu0 %v1053
        %v1484 = vpop.f32.mrf.mxu0
        %v1485 = vadd.f32 %v1134, %v1484
        %v1486 = vpop.f32.mrf.mxu0
        %v1487 = vadd.f32 %v1134, %v1486
        %1488 = vmatmul.bf16.gmra.mxu0 %v1054
        %v1489 = vpop.f32.mrf.mxu0
        %v1490 = vadd.f32 %v1134, %v1489
        %v1491 = vpop.f32.mrf.mxu0
        %v1492 = vadd.f32 %v1134, %v1491
        %1493 = vmatmul.bf16.gmra.mxu0 %v1055
        %v1494 = vpop.f32.mrf.mxu0
        %v1495 = vadd.f32 %v1134, %v1494
        %v1496 = vpop.f32.mrf.mxu0
        %v1497 = vadd.f32 %v1134, %v1496
        %1498 = vmatmul.bf16.gmra.mxu0 %v1056
        %v1499 = vpop.f32.mrf.mxu0
        %v1500 = vadd.f32 %v1134, %v1499
        %v1501 = vpop.f32.mrf.mxu0
        %v1502 = vadd.f32 %v1134, %v1501
        %1503 = vmatmul.bf16.gmra.mxu0 %v1057
        %v1504 = vpop.f32.mrf.mxu0
        %v1505 = vadd.f32 %v1134, %v1504
        %v1506 = vpop.f32.mrf.mxu0
        %v1507 = vadd.f32 %v1134, %v1506
        %1508 = vmatmul.bf16.gmra.mxu0 %v1058
        %v1509 = vpop.f32.mrf.mxu0
        %v1510 = vadd.f32 %v1134, %v1509
        %v1511 = vpop.f32.mrf.mxu0
        %v1512 = vadd.f32 %v1134, %v1511
        %1513 = vmatmul.bf16.gmra.mxu0 %v1059
        %v1514 = vpop.f32.mrf.mxu0
        %v1515 = vadd.f32 %v1134, %v1514
        %v1516 = vpop.f32.mrf.mxu0
        %v1517 = vadd.f32 %v1134, %v1516
        %1518 = vmatmul.bf16.gmra.mxu0 %v1060
        %v1519 = vpop.f32.mrf.mxu0
        %v1520 = vadd.f32 %v1134, %v1519
        %v1521 = vpop.f32.mrf.mxu0
        %v1522 = vadd.f32 %v1134, %v1521
        %1523 = vmatmul.bf16.gmra.mxu0 %v1061
        %v1524 = vpop.f32.mrf.mxu0
        %v1525 = vadd.f32 %v1134, %v1524
        %v1526 = vpop.f32.mrf.mxu0
        %v1527 = vadd.f32 %v1134, %v1526
        %1528 = vmatmul.bf16.gmra.mxu0 %v1062
        %v1529 = vpop.f32.mrf.mxu0
        %v1530 = vadd.f32 %v1134, %v1529
        %v1531 = vpop.f32.mrf.mxu0
        %v1532 = vadd.f32 %v1134, %v1531
        %1533 = vmatmul.bf16.gmra.mxu0 %v1063
        %v1534 = vpop.f32.mrf.mxu0
        %v1535 = vadd.f32 %v1134, %v1534
        %v1536 = vpop.f32.mrf.mxu0
        %v1537 = vadd.f32 %v1134, %v1536
        %1538 = vmatmul.bf16.gmra.mxu0 %v1064
        %v1539 = vpop.f32.mrf.mxu0
        %v1540 = vadd.f32 %v1134, %v1539
        %v1541 = vpop.f32.mrf.mxu0
        %v1542 = vadd.f32 %v1134, %v1541
        %1543 = vmatmul.bf16.gmra.mxu0 %v1065
        %v1544 = vpop.f32.mrf.mxu0
        %v1545 = vadd.f32 %v1134, %v1544
        %v1546 = vpop.f32.mrf.mxu0
        %v1547 = vadd.f32 %v1134, %v1546
        %1548 = vmatmul.bf16.gmra.mxu0 %v1066
        %v1549 = vpop.f32.mrf.mxu0
        %v1550 = vadd.f32 %v1134, %v1549
        %v1551 = vpop.f32.mrf.mxu0
        %v1552 = vadd.f32 %v1134, %v1551
        %1553 = vmatmul.bf16.gmra.mxu0 %v1067
        %v1554 = vpop.f32.mrf.mxu0
        %v1555 = vadd.f32 %v1134, %v1554
        %v1556 = vpop.f32.mrf.mxu0
        %v1557 = vadd.f32 %v1134, %v1556
        %1558 = vdwg.mxu0
        %1559 = vmatpush.bf16.msra.mxu0 %v1399
        %1560 = vmatpush.bf16.msra.mxu0 %v1391
        %1561 = vmatpush.bf16.msra.mxu0 %v1383
        %1562 = vmatpush.bf16.msra.mxu0 %v1375
        %1563 = vmatpush.bf16.msra.mxu0 %v1367
        %1564 = vmatpush.bf16.msra.mxu0 %v1359
        %1565 = vmatpush.bf16.msra.mxu0 %v1351
        %1566 = vmatpush.bf16.msra.mxu0 %v1343
        %1567 = vmatmul.bf16.gmra.mxu0 %v1052
        %v1568 = vpop.f32.mrf.mxu0
        %v1569 = vadd.f32 %v1135, %v1568
        %v1570 = vpop.f32.mrf.mxu0
        %v1571 = vadd.f32 %v1135, %v1570
        %1572 = vmatmul.bf16.gmra.mxu0 %v1053
        %v1573 = vpop.f32.mrf.mxu0
        %v1574 = vadd.f32 %v1135, %v1573
        %v1575 = vpop.f32.mrf.mxu0
        %v1576 = vadd.f32 %v1135, %v1575
        %1577 = vmatmul.bf16.gmra.mxu0 %v1054
        %v1578 = vpop.f32.mrf.mxu0
        %v1579 = vadd.f32 %v1135, %v1578
        %v1580 = vpop.f32.mrf.mxu0
        %v1581 = vadd.f32 %v1135, %v1580
        %1582 = vmatmul.bf16.gmra.mxu0 %v1055
        %v1583 = vpop.f32.mrf.mxu0
        %v1584 = vadd.f32 %v1135, %v1583
        %v1585 = vpop.f32.mrf.mxu0
        %v1586 = vadd.f32 %v1135, %v1585
        %1587 = vmatmul.bf16.gmra.mxu0 %v1056
        %v1588 = vpop.f32.mrf.mxu0
        %v1589 = vadd.f32 %v1135, %v1588
        %v1590 = vpop.f32.mrf.mxu0
        %v1591 = vadd.f32 %v1135, %v1590
        %1592 = vmatmul.bf16.gmra.mxu0 %v1057
        %v1593 = vpop.f32.mrf.mxu0
        %v1594 = vadd.f32 %v1135, %v1593
        %v1595 = vpop.f32.mrf.mxu0
        %v1596 = vadd.f32 %v1135, %v1595
        %1597 = vmatmul.bf16.gmra.mxu0 %v1058
        %v1598 = vpop.f32.mrf.mxu0
        %v1599 = vadd.f32 %v1135, %v1598
        %v1600 = vpop.f32.mrf.mxu0
        %v1601 = vadd.f32 %v1135, %v1600
        %1602 = vmatmul.bf16.gmra.mxu0 %v1059
        %v1603 = vpop.f32.mrf.mxu0
        %v1604 = vadd.f32 %v1135, %v1603
        %v1605 = vpop.f32.mrf.mxu0
        %v1606 = vadd.f32 %v1135, %v1605
        %1607 = vmatmul.bf16.gmra.mxu0 %v1060
        %v1608 = vpop.f32.mrf.mxu0
        %v1609 = vadd.f32 %v1135, %v1608
        %v1610 = vpop.f32.mrf.mxu0
        %v1611 = vadd.f32 %v1135, %v1610
        %1612 = vmatmul.bf16.gmra.mxu0 %v1061
        %v1613 = vpop.f32.mrf.mxu0
        %v1614 = vadd.f32 %v1135, %v1613
        %v1615 = vpop.f32.mrf.mxu0
        %v1616 = vadd.f32 %v1135, %v1615
        %1617 = vmatmul.bf16.gmra.mxu0 %v1062
        %v1618 = vpop.f32.mrf.mxu0
        %v1619 = vadd.f32 %v1135, %v1618
        %v1620 = vpop.f32.mrf.mxu0
        %v1621 = vadd.f32 %v1135, %v1620
        %1622 = vmatmul.bf16.gmra.mxu0 %v1063
        %v1623 = vpop.f32.mrf.mxu0
        %v1624 = vadd.f32 %v1135, %v1623
        %v1625 = vpop.f32.mrf.mxu0
        %v1626 = vadd.f32 %v1135, %v1625
        %1627 = vmatmul.bf16.gmra.mxu0 %v1064
        %v1628 = vpop.f32.mrf.mxu0
        %v1629 = vadd.f32 %v1135, %v1628
        %v1630 = vpop.f32.mrf.mxu0
        %v1631 = vadd.f32 %v1135, %v1630
        %1632 = vmatmul.bf16.gmra.mxu0 %v1065
        %v1633 = vpop.f32.mrf.mxu0
        %v1634 = vadd.f32 %v1135, %v1633
        %v1635 = vpop.f32.mrf.mxu0
        %v1636 = vadd.f32 %v1135, %v1635
        %1637 = vmatmul.bf16.gmra.mxu0 %v1066
        %v1638 = vpop.f32.mrf.mxu0
        %v1639 = vadd.f32 %v1135, %v1638
        %v1640 = vpop.f32.mrf.mxu0
        %v1641 = vadd.f32 %v1135, %v1640
        %1642 = vmatmul.bf16.gmra.mxu0 %v1067
        %v1643 = vpop.f32.mrf.mxu0
        %v1644 = vadd.f32 %v1135, %v1643
        %v1645 = vpop.f32.mrf.mxu0
        %v1646 = vadd.f32 %v1135, %v1645
        %1647 = vdwg.mxu0
        %1648 = vmatpush.bf16.msra.mxu0 %v1400
        %1649 = vmatpush.bf16.msra.mxu0 %v1392
        %1650 = vmatpush.bf16.msra.mxu0 %v1384
        %1651 = vmatpush.bf16.msra.mxu0 %v1376
        %1652 = vmatpush.bf16.msra.mxu0 %v1368
        %1653 = vmatpush.bf16.msra.mxu0 %v1360
        %1654 = vmatpush.bf16.msra.mxu0 %v1352
        %1655 = vmatpush.bf16.msra.mxu0 %v1344
        %1656 = vmatmul.bf16.gmra.mxu0 %v1052
        %v1657 = vpop.f32.mrf.mxu0
        %v1658 = vadd.f32 %v1136, %v1657
        %v1659 = vpop.f32.mrf.mxu0
        %v1660 = vadd.f32 %v1136, %v1659
        %1661 = vmatmul.bf16.gmra.mxu0 %v1053
        %v1662 = vpop.f32.mrf.mxu0
        %v1663 = vadd.f32 %v1136, %v1662
        %v1664 = vpop.f32.mrf.mxu0
        %v1665 = vadd.f32 %v1136, %v1664
        %1666 = vmatmul.bf16.gmra.mxu0 %v1054
        %v1667 = vpop.f32.mrf.mxu0
        %v1668 = vadd.f32 %v1136, %v1667
        %v1669 = vpop.f32.mrf.mxu0
        %v1670 = vadd.f32 %v1136, %v1669
        %1671 = vmatmul.bf16.gmra.mxu0 %v1055
        %v1672 = vpop.f32.mrf.mxu0
        %v1673 = vadd.f32 %v1136, %v1672
        %v1674 = vpop.f32.mrf.mxu0
        %v1675 = vadd.f32 %v1136, %v1674
        %1676 = vmatmul.bf16.gmra.mxu0 %v1056
        %v1677 = vpop.f32.mrf.mxu0
        %v1678 = vadd.f32 %v1136, %v1677
        %v1679 = vpop.f32.mrf.mxu0
        %v1680 = vadd.f32 %v1136, %v1679
        %1681 = vmatmul.bf16.gmra.mxu0 %v1057
        %v1682 = vpop.f32.mrf.mxu0
        %v1683 = vadd.f32 %v1136, %v1682
        %v1684 = vpop.f32.mrf.mxu0
        %v1685 = vadd.f32 %v1136, %v1684
        %1686 = vmatmul.bf16.gmra.mxu0 %v1058
        %v1687 = vpop.f32.mrf.mxu0
        %v1688 = vadd.f32 %v1136, %v1687
        %v1689 = vpop.f32.mrf.mxu0
        %v1690 = vadd.f32 %v1136, %v1689
        %1691 = vmatmul.bf16.gmra.mxu0 %v1059
        %v1692 = vpop.f32.mrf.mxu0
        %v1693 = vadd.f32 %v1136, %v1692
        %v1694 = vpop.f32.mrf.mxu0
        %v1695 = vadd.f32 %v1136, %v1694
        %1696 = vmatmul.bf16.gmra.mxu0 %v1060
        %v1697 = vpop.f32.mrf.mxu0
        %v1698 = vadd.f32 %v1136, %v1697
        %v1699 = vpop.f32.mrf.mxu0
        %v1700 = vadd.f32 %v1136, %v1699
        %1701 = vmatmul.bf16.gmra.mxu0 %v1061
        %v1702 = vpop.f32.mrf.mxu0
        %v1703 = vadd.f32 %v1136, %v1702
        %v1704 = vpop.f32.mrf.mxu0
        %v1705 = vadd.f32 %v1136, %v1704
        %1706 = vmatmul.bf16.gmra.mxu0 %v1062
        %v1707 = vpop.f32.mrf.mxu0
        %v1708 = vadd.f32 %v1136, %v1707
        %v1709 = vpop.f32.mrf.mxu0
        %v1710 = vadd.f32 %v1136, %v1709
        %1711 = vmatmul.bf16.gmra.mxu0 %v1063
        %v1712 = vpop.f32.mrf.mxu0
        %v1713 = vadd.f32 %v1136, %v1712
        %v1714 = vpop.f32.mrf.mxu0
        %v1715 = vadd.f32 %v1136, %v1714
        %1716 = vmatmul.bf16.gmra.mxu0 %v1064
        %v1717 = vpop.f32.mrf.mxu0
        %v1718 = vadd.f32 %v1136, %v1717
        %v1719 = vpop.f32.mrf.mxu0
        %v1720 = vadd.f32 %v1136, %v1719
        %1721 = vmatmul.bf16.gmra.mxu0 %v1065
        %v1722 = vpop.f32.mrf.mxu0
        %v1723 = vadd.f32 %v1136, %v1722
        %v1724 = vpop.f32.mrf.mxu0
        %v1725 = vadd.f32 %v1136, %v1724
        %1726 = vmatmul.bf16.gmra.mxu0 %v1066
        %v1727 = vpop.f32.mrf.mxu0
        %v1728 = vadd.f32 %v1136, %v1727
        %v1729 = vpop.f32.mrf.mxu0
        %v1730 = vadd.f32 %v1136, %v1729
        %1731 = vmatmul.bf16.gmra.mxu0 %v1067
        %v1732 = vpop.f32.mrf.mxu0
        %v1733 = vadd.f32 %v1136, %v1732
        %v1734 = vpop.f32.mrf.mxu0
        %v1735 = vadd.f32 %v1136, %v1734
        %1736 = vdwg.mxu0
        %1737 = vmatpush.bf16.msra.mxu0 %v1401
        %1738 = vmatpush.bf16.msra.mxu0 %v1393
        %1739 = vmatpush.bf16.msra.mxu0 %v1385
        %1740 = vmatpush.bf16.msra.mxu0 %v1377
        %1741 = vmatpush.bf16.msra.mxu0 %v1369
        %1742 = vmatpush.bf16.msra.mxu0 %v1361
        %1743 = vmatpush.bf16.msra.mxu0 %v1353
        %1744 = vmatpush.bf16.msra.mxu0 %v1345
        %1745 = vmatmul.bf16.gmra.mxu0 %v1052
        %v1746 = vpop.f32.mrf.mxu0
        %v1747 = vadd.f32 %v1137, %v1746
        %v1748 = vpop.f32.mrf.mxu0
        %v1749 = vadd.f32 %v1137, %v1748
        %1750 = vmatmul.bf16.gmra.mxu0 %v1053
        %v1751 = vpop.f32.mrf.mxu0
        %v1752 = vadd.f32 %v1137, %v1751
        %v1753 = vpop.f32.mrf.mxu0
        %v1754 = vadd.f32 %v1137, %v1753
        %1755 = vmatmul.bf16.gmra.mxu0 %v1054
        %v1756 = vpop.f32.mrf.mxu0
        %v1757 = vadd.f32 %v1137, %v1756
        %v1758 = vpop.f32.mrf.mxu0
        %v1759 = vadd.f32 %v1137, %v1758
        %1760 = vmatmul.bf16.gmra.mxu0 %v1055
        %v1761 = vpop.f32.mrf.mxu0
        %v1762 = vadd.f32 %v1137, %v1761
        %v1763 = vpop.f32.mrf.mxu0
        %v1764 = vadd.f32 %v1137, %v1763
        %1765 = vmatmul.bf16.gmra.mxu0 %v1056
        %v1766 = vpop.f32.mrf.mxu0
        %v1767 = vadd.f32 %v1137, %v1766
        %v1768 = vpop.f32.mrf.mxu0
        %v1769 = vadd.f32 %v1137, %v1768
        %1770 = vmatmul.bf16.gmra.mxu0 %v1057
        %v1771 = vpop.f32.mrf.mxu0
        %v1772 = vadd.f32 %v1137, %v1771
        %v1773 = vpop.f32.mrf.mxu0
        %v1774 = vadd.f32 %v1137, %v1773
        %1775 = vmatmul.bf16.gmra.mxu0 %v1058
        %v1776 = vpop.f32.mrf.mxu0
        %v1777 = vadd.f32 %v1137, %v1776
        %v1778 = vpop.f32.mrf.mxu0
        %v1779 = vadd.f32 %v1137, %v1778
        %1780 = vmatmul.bf16.gmra.mxu0 %v1059
        %v1781 = vpop.f32.mrf.mxu0
        %v1782 = vadd.f32 %v1137, %v1781
        %v1783 = vpop.f32.mrf.mxu0
        %v1784 = vadd.f32 %v1137, %v1783
        %1785 = vmatmul.bf16.gmra.mxu0 %v1060
        %v1786 = vpop.f32.mrf.mxu0
        %v1787 = vadd.f32 %v1137, %v1786
        %v1788 = vpop.f32.mrf.mxu0
        %v1789 = vadd.f32 %v1137, %v1788
        %1790 = vmatmul.bf16.gmra.mxu0 %v1061
        %v1791 = vpop.f32.mrf.mxu0
        %v1792 = vadd.f32 %v1137, %v1791
        %v1793 = vpop.f32.mrf.mxu0
        %v1794 = vadd.f32 %v1137, %v1793
        %1795 = vmatmul.bf16.gmra.mxu0 %v1062
        %v1796 = vpop.f32.mrf.mxu0
        %v1797 = vadd.f32 %v1137, %v1796
        %v1798 = vpop.f32.mrf.mxu0
        %v1799 = vadd.f32 %v1137, %v1798
        %1800 = vmatmul.bf16.gmra.mxu0 %v1063
        %v1801 = vpop.f32.mrf.mxu0
        %v1802 = vadd.f32 %v1137, %v1801
        %v1803 = vpop.f32.mrf.mxu0
        %v1804 = vadd.f32 %v1137, %v1803
        %1805 = vmatmul.bf16.gmra.mxu0 %v1064
        %v1806 = vpop.f32.mrf.mxu0
        %v1807 = vadd.f32 %v1137, %v1806
        %v1808 = vpop.f32.mrf.mxu0
        %v1809 = vadd.f32 %v1137, %v1808
        %1810 = vmatmul.bf16.gmra.mxu0 %v1065
        %v1811 = vpop.f32.mrf.mxu0
        %v1812 = vadd.f32 %v1137, %v1811
        %v1813 = vpop.f32.mrf.mxu0
        %v1814 = vadd.f32 %v1137, %v1813
        %1815 = vmatmul.bf16.gmra.mxu0 %v1066
        %v1816 = vpop.f32.mrf.mxu0
        %v1817 = vadd.f32 %v1137, %v1816
        %v1818 = vpop.f32.mrf.mxu0
        %v1819 = vadd.f32 %v1137, %v1818
        %1820 = vmatmul.bf16.gmra.mxu0 %v1067
        %v1821 = vpop.f32.mrf.mxu0
        %v1822 = vadd.f32 %v1137, %v1821
        %v1823 = vpop.f32.mrf.mxu0
        %v1824 = vadd.f32 %v1137, %v1823
        %1825 = vdwg.mxu0
        %1826 = vmatpush.bf16.msra.mxu0 %v1402
        %1827 = vmatpush.bf16.msra.mxu0 %v1394
        %1828 = vmatpush.bf16.msra.mxu0 %v1386
        %1829 = vmatpush.bf16.msra.mxu0 %v1378
        %1830 = vmatpush.bf16.msra.mxu0 %v1370
        %1831 = vmatpush.bf16.msra.mxu0 %v1362
        %1832 = vmatpush.bf16.msra.mxu0 %v1354
        %1833 = vmatpush.bf16.msra.mxu0 %v1346
        %1834 = vmatmul.bf16.gmra.mxu0 %v1052
        %v1835 = vpop.f32.mrf.mxu0
        %v1836 = vadd.f32 %v1138, %v1835
        %v1837 = vpop.f32.mrf.mxu0
        %v1838 = vadd.f32 %v1138, %v1837
        %1839 = vmatmul.bf16.gmra.mxu0 %v1053
        %v1840 = vpop.f32.mrf.mxu0
        %v1841 = vadd.f32 %v1138, %v1840
        %v1842 = vpop.f32.mrf.mxu0
        %v1843 = vadd.f32 %v1138, %v1842
        %1844 = vmatmul.bf16.gmra.mxu0 %v1054
        %v1845 = vpop.f32.mrf.mxu0
        %v1846 = vadd.f32 %v1138, %v1845
        %v1847 = vpop.f32.mrf.mxu0
        %v1848 = vadd.f32 %v1138, %v1847
        %1849 = vmatmul.bf16.gmra.mxu0 %v1055
        %v1850 = vpop.f32.mrf.mxu0
        %v1851 = vadd.f32 %v1138, %v1850
        %v1852 = vpop.f32.mrf.mxu0
        %v1853 = vadd.f32 %v1138, %v1852
        %1854 = vmatmul.bf16.gmra.mxu0 %v1056
        %v1855 = vpop.f32.mrf.mxu0
        %v1856 = vadd.f32 %v1138, %v1855
        %v1857 = vpop.f32.mrf.mxu0
        %v1858 = vadd.f32 %v1138, %v1857
        %1859 = vmatmul.bf16.gmra.mxu0 %v1057
        %v1860 = vpop.f32.mrf.mxu0
        %v1861 = vadd.f32 %v1138, %v1860
        %v1862 = vpop.f32.mrf.mxu0
        %v1863 = vadd.f32 %v1138, %v1862
        %1864 = vmatmul.bf16.gmra.mxu0 %v1058
        %v1865 = vpop.f32.mrf.mxu0
        %v1866 = vadd.f32 %v1138, %v1865
        %v1867 = vpop.f32.mrf.mxu0
        %v1868 = vadd.f32 %v1138, %v1867
        %1869 = vmatmul.bf16.gmra.mxu0 %v1059
        %v1870 = vpop.f32.mrf.mxu0
        %v1871 = vadd.f32 %v1138, %v1870
        %v1872 = vpop.f32.mrf.mxu0
        %v1873 = vadd.f32 %v1138, %v1872
        %1874 = vmatmul.bf16.gmra.mxu0 %v1060
        %v1875 = vpop.f32.mrf.mxu0
        %v1876 = vadd.f32 %v1138, %v1875
        %v1877 = vpop.f32.mrf.mxu0
        %v1878 = vadd.f32 %v1138, %v1877
        %1879 = vmatmul.bf16.gmra.mxu0 %v1061
        %v1880 = vpop.f32.mrf.mxu0
        %v1881 = vadd.f32 %v1138, %v1880
        %v1882 = vpop.f32.mrf.mxu0
        %v1883 = vadd.f32 %v1138, %v1882
        %1884 = vmatmul.bf16.gmra.mxu0 %v1062
        %v1885 = vpop.f32.mrf.mxu0
        %v1886 = vadd.f32 %v1138, %v1885
        %v1887 = vpop.f32.mrf.mxu0
        %v1888 = vadd.f32 %v1138, %v1887
        %1889 = vmatmul.bf16.gmra.mxu0 %v1063
        %v1890 = vpop.f32.mrf.mxu0
        %v1891 = vadd.f32 %v1138, %v1890
        %v1892 = vpop.f32.mrf.mxu0
        %v1893 = vadd.f32 %v1138, %v1892
        %1894 = vmatmul.bf16.gmra.mxu0 %v1064
        %v1895 = vpop.f32.mrf.mxu0
        %v1896 = vadd.f32 %v1138, %v1895
        %v1897 = vpop.f32.mrf.mxu0
        %v1898 = vadd.f32 %v1138, %v1897
        %1899 = vmatmul.bf16.gmra.mxu0 %v1065
        %v1900 = vpop.f32.mrf.mxu0
        %v1901 = vadd.f32 %v1138, %v1900
        %v1902 = vpop.f32.mrf.mxu0
        %v1903 = vadd.f32 %v1138, %v1902
        %1904 = vmatmul.bf16.gmra.mxu0 %v1066
        %v1905 = vpop.f32.mrf.mxu0
        %v1906 = vadd.f32 %v1138, %v1905
        %v1907 = vpop.f32.mrf.mxu0
        %v1908 = vadd.f32 %v1138, %v1907
        %1909 = vmatmul.bf16.gmra.mxu0 %v1067
        %v1910 = vpop.f32.mrf.mxu0
        %v1911 = vadd.f32 %v1138, %v1910
        %v1912 = vpop.f32.mrf.mxu0
        %v1913 = vadd.f32 %v1138, %v1912
        %1914 = vdwg.mxu0
        %1915 = vmatpush.bf16.msra.mxu0 %v1403
        %1916 = vmatpush.bf16.msra.mxu0 %v1395
        %1917 = vmatpush.bf16.msra.mxu0 %v1387
        %1918 = vmatpush.bf16.msra.mxu0 %v1379
        %1919 = vmatpush.bf16.msra.mxu0 %v1371
        %1920 = vmatpush.bf16.msra.mxu0 %v1363
        %1921 = vmatpush.bf16.msra.mxu0 %v1355
        %1922 = vmatpush.bf16.msra.mxu0 %v1347
        %1923 = vmatmul.bf16.gmra.mxu0 %v1052
        %v1924 = vpop.f32.mrf.mxu0
        %v1925 = vadd.f32 %v1139, %v1924
        %v1926 = vpop.f32.mrf.mxu0
        %v1927 = vadd.f32 %v1139, %v1926
        %1928 = vmatmul.bf16.gmra.mxu0 %v1053
        %v1929 = vpop.f32.mrf.mxu0
        %v1930 = vadd.f32 %v1139, %v1929
        %v1931 = vpop.f32.mrf.mxu0
        %v1932 = vadd.f32 %v1139, %v1931
        %1933 = vmatmul.bf16.gmra.mxu0 %v1054
        %v1934 = vpop.f32.mrf.mxu0
        %v1935 = vadd.f32 %v1139, %v1934
        %v1936 = vpop.f32.mrf.mxu0
        %v1937 = vadd.f32 %v1139, %v1936
        %1938 = vmatmul.bf16.gmra.mxu0 %v1055
        %v1939 = vpop.f32.mrf.mxu0
        %v1940 = vadd.f32 %v1139, %v1939
        %v1941 = vpop.f32.mrf.mxu0
        %v1942 = vadd.f32 %v1139, %v1941
        %1943 = vmatmul.bf16.gmra.mxu0 %v1056
        %v1944 = vpop.f32.mrf.mxu0
        %v1945 = vadd.f32 %v1139, %v1944
        %v1946 = vpop.f32.mrf.mxu0
        %v1947 = vadd.f32 %v1139, %v1946
        %1948 = vmatmul.bf16.gmra.mxu0 %v1057
        %v1949 = vpop.f32.mrf.mxu0
        %v1950 = vadd.f32 %v1139, %v1949
        %v1951 = vpop.f32.mrf.mxu0
        %v1952 = vadd.f32 %v1139, %v1951
        %1953 = vmatmul.bf16.gmra.mxu0 %v1058
        %v1954 = vpop.f32.mrf.mxu0
        %v1955 = vadd.f32 %v1139, %v1954
        %v1956 = vpop.f32.mrf.mxu0
        %v1957 = vadd.f32 %v1139, %v1956
        %1958 = vmatmul.bf16.gmra.mxu0 %v1059
        %v1959 = vpop.f32.mrf.mxu0
        %v1960 = vadd.f32 %v1139, %v1959
        %v1961 = vpop.f32.mrf.mxu0
        %v1962 = vadd.f32 %v1139, %v1961
        %1963 = vmatmul.bf16.gmra.mxu0 %v1060
        %v1964 = vpop.f32.mrf.mxu0
        %v1965 = vadd.f32 %v1139, %v1964
        %v1966 = vpop.f32.mrf.mxu0
        %v1967 = vadd.f32 %v1139, %v1966
        %1968 = vmatmul.bf16.gmra.mxu0 %v1061
        %v1969 = vpop.f32.mrf.mxu0
        %v1970 = vadd.f32 %v1139, %v1969
        %v1971 = vpop.f32.mrf.mxu0
        %v1972 = vadd.f32 %v1139, %v1971
        %1973 = vmatmul.bf16.gmra.mxu0 %v1062
        %v1974 = vpop.f32.mrf.mxu0
        %v1975 = vadd.f32 %v1139, %v1974
        %v1976 = vpop.f32.mrf.mxu0
        %v1977 = vadd.f32 %v1139, %v1976
        %1978 = vmatmul.bf16.gmra.mxu0 %v1063
        %v1979 = vpop.f32.mrf.mxu0
        %v1980 = vadd.f32 %v1139, %v1979
        %v1981 = vpop.f32.mrf.mxu0
        %v1982 = vadd.f32 %v1139, %v1981
        %1983 = vmatmul.bf16.gmra.mxu0 %v1064
        %v1984 = vpop.f32.mrf.mxu0
        %v1985 = vadd.f32 %v1139, %v1984
        %v1986 = vpop.f32.mrf.mxu0
        %v1987 = vadd.f32 %v1139, %v1986
        %1988 = vmatmul.bf16.gmra.mxu0 %v1065
        %v1989 = vpop.f32.mrf.mxu0
        %v1990 = vadd.f32 %v1139, %v1989
        %v1991 = vpop.f32.mrf.mxu0
        %v1992 = vadd.f32 %v1139, %v1991
        %1993 = vmatmul.bf16.gmra.mxu0 %v1066
        %v1994 = vpop.f32.mrf.mxu0
        %v1995 = vadd.f32 %v1139, %v1994
        %v1996 = vpop.f32.mrf.mxu0
        %v1997 = vadd.f32 %v1139, %v1996
        %1998 = vmatmul.bf16.gmra.mxu0 %v1067
        %v1999 = vpop.f32.mrf.mxu0
        %v2000 = vadd.f32 %v1139, %v1999
        %v2001 = vpop.f32.mrf.mxu0
        %v2002 = vadd.f32 %v1139, %v2001
        %2003 = vdwg.mxu0
        %2004 = vmatpush.bf16.msra.mxu0 %v1404
        %2005 = vmatpush.bf16.msra.mxu0 %v1396
        %2006 = vmatpush.bf16.msra.mxu0 %v1388
        %2007 = vmatpush.bf16.msra.mxu0 %v1380
        %2008 = vmatpush.bf16.msra.mxu0 %v1372
        %2009 = vmatpush.bf16.msra.mxu0 %v1364
        %2010 = vmatpush.bf16.msra.mxu0 %v1356
        %2011 = vmatpush.bf16.msra.mxu0 %v1348
        %2012 = vmatmul.bf16.gmra.mxu0 %v1052
        %v2013 = vpop.f32.mrf.mxu0
        %v2014 = vadd.f32 %v1140, %v2013
        %v2015 = vpop.f32.mrf.mxu0
        %v2016 = vadd.f32 %v1140, %v2015
        %2017 = vmatmul.bf16.gmra.mxu0 %v1053
        %v2018 = vpop.f32.mrf.mxu0
        %v2019 = vadd.f32 %v1140, %v2018
        %v2020 = vpop.f32.mrf.mxu0
        %v2021 = vadd.f32 %v1140, %v2020
        %2022 = vmatmul.bf16.gmra.mxu0 %v1054
        %v2023 = vpop.f32.mrf.mxu0
        %v2024 = vadd.f32 %v1140, %v2023
        %v2025 = vpop.f32.mrf.mxu0
        %v2026 = vadd.f32 %v1140, %v2025
        %2027 = vmatmul.bf16.gmra.mxu0 %v1055
        %v2028 = vpop.f32.mrf.mxu0
        %v2029 = vadd.f32 %v1140, %v2028
        %v2030 = vpop.f32.mrf.mxu0
        %v2031 = vadd.f32 %v1140, %v2030
        %2032 = vmatmul.bf16.gmra.mxu0 %v1056
        %v2033 = vpop.f32.mrf.mxu0
        %v2034 = vadd.f32 %v1140, %v2033
        %v2035 = vpop.f32.mrf.mxu0
        %v2036 = vadd.f32 %v1140, %v2035
        %2037 = vmatmul.bf16.gmra.mxu0 %v1057
        %v2038 = vpop.f32.mrf.mxu0
        %v2039 = vadd.f32 %v1140, %v2038
        %v2040 = vpop.f32.mrf.mxu0
        %v2041 = vadd.f32 %v1140, %v2040
        %2042 = vmatmul.bf16.gmra.mxu0 %v1058
        %v2043 = vpop.f32.mrf.mxu0
        %v2044 = vadd.f32 %v1140, %v2043
        %v2045 = vpop.f32.mrf.mxu0
        %v2046 = vadd.f32 %v1140, %v2045
        %2047 = vmatmul.bf16.gmra.mxu0 %v1059
        %v2048 = vpop.f32.mrf.mxu0
        %v2049 = vadd.f32 %v1140, %v2048
        %v2050 = vpop.f32.mrf.mxu0
        %v2051 = vadd.f32 %v1140, %v2050
        %2052 = vmatmul.bf16.gmra.mxu0 %v1060
        %v2053 = vpop.f32.mrf.mxu0
        %v2054 = vadd.f32 %v1140, %v2053
        %v2055 = vpop.f32.mrf.mxu0
        %v2056 = vadd.f32 %v1140, %v2055
        %2057 = vmatmul.bf16.gmra.mxu0 %v1061
        %v2058 = vpop.f32.mrf.mxu0
        %v2059 = vadd.f32 %v1140, %v2058
        %v2060 = vpop.f32.mrf.mxu0
        %v2061 = vadd.f32 %v1140, %v2060
        %2062 = vmatmul.bf16.gmra.mxu0 %v1062
        %v2063 = vpop.f32.mrf.mxu0
        %v2064 = vadd.f32 %v1140, %v2063
        %v2065 = vpop.f32.mrf.mxu0
        %v2066 = vadd.f32 %v1140, %v2065
        %2067 = vmatmul.bf16.gmra.mxu0 %v1063
        %v2068 = vpop.f32.mrf.mxu0
        %v2069 = vadd.f32 %v1140, %v2068
        %v2070 = vpop.f32.mrf.mxu0
        %v2071 = vadd.f32 %v1140, %v2070
        %2072 = vmatmul.bf16.gmra.mxu0 %v1064
        %v2073 = vpop.f32.mrf.mxu0
        %v2074 = vadd.f32 %v1140, %v2073
        %v2075 = vpop.f32.mrf.mxu0
        %v2076 = vadd.f32 %v1140, %v2075
        %2077 = vmatmul.bf16.gmra.mxu0 %v1065
        %v2078 = vpop.f32.mrf.mxu0
        %v2079 = vadd.f32 %v1140, %v2078
        %v2080 = vpop.f32.mrf.mxu0
        %v2081 = vadd.f32 %v1140, %v2080
        %2082 = vmatmul.bf16.gmra.mxu0 %v1066
        %v2083 = vpop.f32.mrf.mxu0
        %v2084 = vadd.f32 %v1140, %v2083
        %v2085 = vpop.f32.mrf.mxu0
        %v2086 = vadd.f32 %v1140, %v2085
        %2087 = vmatmul.bf16.gmra.mxu0 %v1067
        %v2088 = vpop.f32.mrf.mxu0
        %v2089 = vadd.f32 %v1140, %v2088
        %v2090 = vpop.f32.mrf.mxu0
        %v2091 = vadd.f32 %v1140, %v2090
        %2092 = vdwg.mxu0
        %2093 = vmatpush.bf16.msra.mxu0 %v1405
        %2094 = vmatpush.bf16.msra.mxu0 %v1397
        %2095 = vmatpush.bf16.msra.mxu0 %v1389
        %2096 = vmatpush.bf16.msra.mxu0 %v1381
        %2097 = vmatpush.bf16.msra.mxu0 %v1373
        %2098 = vmatpush.bf16.msra.mxu0 %v1365
        %2099 = vmatpush.bf16.msra.mxu0 %v1357
        %2100 = vmatpush.bf16.msra.mxu0 %v1349
        %2101 = vmatmul.bf16.gmra.mxu0 %v1052
        %v2102 = vpop.f32.mrf.mxu0
        %v2103 = vadd.f32 %v1141, %v2102
        %v2104 = vpop.f32.mrf.mxu0
        %v2105 = vadd.f32 %v1141, %v2104
        %2106 = vmatmul.bf16.gmra.mxu0 %v1053
        %v2107 = vpop.f32.mrf.mxu0
        %v2108 = vadd.f32 %v1141, %v2107
        %v2109 = vpop.f32.mrf.mxu0
        %v2110 = vadd.f32 %v1141, %v2109
        %2111 = vmatmul.bf16.gmra.mxu0 %v1054
        %v2112 = vpop.f32.mrf.mxu0
        %v2113 = vadd.f32 %v1141, %v2112
        %v2114 = vpop.f32.mrf.mxu0
        %v2115 = vadd.f32 %v1141, %v2114
        %2116 = vmatmul.bf16.gmra.mxu0 %v1055
        %v2117 = vpop.f32.mrf.mxu0
        %v2118 = vadd.f32 %v1141, %v2117
        %v2119 = vpop.f32.mrf.mxu0
        %v2120 = vadd.f32 %v1141, %v2119
        %2121 = vmatmul.bf16.gmra.mxu0 %v1056
        %v2122 = vpop.f32.mrf.mxu0
        %v2123 = vadd.f32 %v1141, %v2122
        %v2124 = vpop.f32.mrf.mxu0
        %v2125 = vadd.f32 %v1141, %v2124
        %2126 = vmatmul.bf16.gmra.mxu0 %v1057
        %v2127 = vpop.f32.mrf.mxu0
        %v2128 = vadd.f32 %v1141, %v2127
        %v2129 = vpop.f32.mrf.mxu0
        %v2130 = vadd.f32 %v1141, %v2129
        %2131 = vmatmul.bf16.gmra.mxu0 %v1058
        %v2132 = vpop.f32.mrf.mxu0
        %v2133 = vadd.f32 %v1141, %v2132
        %v2134 = vpop.f32.mrf.mxu0
        %v2135 = vadd.f32 %v1141, %v2134
        %2136 = vmatmul.bf16.gmra.mxu0 %v1059
        %v2137 = vpop.f32.mrf.mxu0
        %v2138 = vadd.f32 %v1141, %v2137
        %v2139 = vpop.f32.mrf.mxu0
        %v2140 = vadd.f32 %v1141, %v2139
        %2141 = vmatmul.bf16.gmra.mxu0 %v1060
        %v2142 = vpop.f32.mrf.mxu0
        %v2143 = vadd.f32 %v1141, %v2142
        %v2144 = vpop.f32.mrf.mxu0
        %v2145 = vadd.f32 %v1141, %v2144
        %2146 = vmatmul.bf16.gmra.mxu0 %v1061
        %v2147 = vpop.f32.mrf.mxu0
        %v2148 = vadd.f32 %v1141, %v2147
        %v2149 = vpop.f32.mrf.mxu0
        %v2150 = vadd.f32 %v1141, %v2149
        %2151 = vmatmul.bf16.gmra.mxu0 %v1062
        %v2152 = vpop.f32.mrf.mxu0
        %v2153 = vadd.f32 %v1141, %v2152
        %v2154 = vpop.f32.mrf.mxu0
        %v2155 = vadd.f32 %v1141, %v2154
        %2156 = vmatmul.bf16.gmra.mxu0 %v1063
        %v2157 = vpop.f32.mrf.mxu0
        %v2158 = vadd.f32 %v1141, %v2157
        %v2159 = vpop.f32.mrf.mxu0
        %v2160 = vadd.f32 %v1141, %v2159
        %2161 = vmatmul.bf16.gmra.mxu0 %v1064
        %v2162 = vpop.f32.mrf.mxu0
        %v2163 = vadd.f32 %v1141, %v2162
        %v2164 = vpop.f32.mrf.mxu0
        %v2165 = vadd.f32 %v1141, %v2164
        %2166 = vmatmul.bf16.gmra.mxu0 %v1065
        %v2167 = vpop.f32.mrf.mxu0
        %v2168 = vadd.f32 %v1141, %v2167
        %v2169 = vpop.f32.mrf.mxu0
        %v2170 = vadd.f32 %v1141, %v2169
        %2171 = vmatmul.bf16.gmra.mxu0 %v1066
        %v2172 = vpop.f32.mrf.mxu0
        %v2173 = vadd.f32 %v1141, %v2172
        %v2174 = vpop.f32.mrf.mxu0
        %v2175 = vadd.f32 %v1141, %v2174
        %2176 = vmatmul.bf16.gmra.mxu0 %v1067
        %v2177 = vpop.f32.mrf.mxu0
        %v2178 = vadd.f32 %v1141, %v2177
        %v2179 = vpop.f32.mrf.mxu0
        %v2180 = vadd.f32 %v1141, %v2179
        %2181 = vdwg.mxu0
        %p2182 = scmp.eq.s32.totalorder %s32, 0
        // Predicated region
        $region73: #{stnkd_forward.6} parent=55 // pred_check
          %p2183 = pneg %p2182
        $region74: #{stnkd_forward.6} parent=55 // pred_check_branch
          %2185 = sbr.rel (%p2183) target = $region76
        $region75: #{stnkd_forward.6} parent=55 // pred_region
          %2186 = vst [vmem:[%s447] sm:$0xff] 0.0
          %2187 = vst [vmem:[%s447 + $0x8] sm:$0xff] 0.0
        $region76: #{stnkd_forward.6} parent=55 // pred_fallthru
          _
        %v2188 = vadd.f32 %v1480, %v1482
        %v2189 = vadd.f32 %v2188, %v1485
        %v2190 = vadd.f32 %v2189, %v1487
        %v2191 = vadd.f32 %v2190, %v1490
        %v2192 = vadd.f32 %v2191, %v1492
        %v2193 = vadd.f32 %v2192, %v1495
        %v2194 = vadd.f32 %v2193, %v1497
        %v2195 = vadd.f32 %v2194, %v1500
        %v2196 = vadd.f32 %v2195, %v1502
        %v2197 = vadd.f32 %v2196, %v1505
        %v2198 = vadd.f32 %v2197, %v1507
        %v2199 = vadd.f32 %v2198, %v1510
        %v2200 = vadd.f32 %v2199, %v1512
        %v2201 = vadd.f32 %v2200, %v1515
        %v2202 = vadd.f32 %v2201, %v1517
        %v2203 = vadd.f32 %v2202, %v1520
        %v2204 = vadd.f32 %v2203, %v1522
        %v2205 = vadd.f32 %v2204, %v1525
        %v2206 = vadd.f32 %v2205, %v1527
        %v2207 = vadd.f32 %v2206, %v1530
        %v2208 = vadd.f32 %v2207, %v1532
        %v2209 = vadd.f32 %v2208, %v1535
        %v2210 = vadd.f32 %v2209, %v1537
        %v2211 = vadd.f32 %v2210, %v1540
        %v2212 = vadd.f32 %v2211, %v1542
        %v2213 = vadd.f32 %v2212, %v1545
        %v2214 = vadd.f32 %v2213, %v1547
        %v2215 = vadd.f32 %v2214, %v1550
        %v2216 = vadd.f32 %v2215, %v1552
        %v2217 = vadd.f32 %v2216, %v1555
        %v2218 = vadd.f32 %v2217, %v1557
        %v2219 = vrot.slane %v2218, 4
        %v2220 = vadd.f32 %v2218, %v2219
        %v2221 = vrot.slane %v2220, 2
        %v2222 = vadd.f32 %v2220, %v2221
        %v2223 = vrot.slane %v2222, 1
        %v2224 = vadd.f32 %v2222, %v2223
        %v2225 = vadd.f32 %v1569, %v1571
        %v2226 = vadd.f32 %v2225, %v1574
        %v2227 = vadd.f32 %v2226, %v1576
        %v2228 = vadd.f32 %v2227, %v1579
        %v2229 = vadd.f32 %v2228, %v1581
        %v2230 = vadd.f32 %v2229, %v1584
        %v2231 = vadd.f32 %v2230, %v1586
        %v2232 = vadd.f32 %v2231, %v1589
        %v2233 = vadd.f32 %v2232, %v1591
        %v2234 = vadd.f32 %v2233, %v1594
        %v2235 = vadd.f32 %v2234, %v1596
        %v2236 = vadd.f32 %v2235, %v1599
        %v2237 = vadd.f32 %v2236, %v1601
        %v2238 = vadd.f32 %v2237, %v1604
        %v2239 = vadd.f32 %v2238, %v1606
        %v2240 = vadd.f32 %v2239, %v1609
        %v2241 = vadd.f32 %v2240, %v1611
        %v2242 = vadd.f32 %v2241, %v1614
        %v2243 = vadd.f32 %v2242, %v1616
        %v2244 = vadd.f32 %v2243, %v1619
        %v2245 = vadd.f32 %v2244, %v1621
        %v2246 = vadd.f32 %v2245, %v1624
        %v2247 = vadd.f32 %v2246, %v1626
        %v2248 = vadd.f32 %v2247, %v1629
        %v2249 = vadd.f32 %v2248, %v1631
        %v2250 = vadd.f32 %v2249, %v1634
        %v2251 = vadd.f32 %v2250, %v1636
        %v2252 = vadd.f32 %v2251, %v1639
        %v2253 = vadd.f32 %v2252, %v1641
        %v2254 = vadd.f32 %v2253, %v1644
        %v2255 = vadd.f32 %v2254, %v1646
        %v2256 = vrot.slane %v2255, 4
        %v2257 = vadd.f32 %v2255, %v2256
        %v2258 = vrot.slane %v2257, 2
        %v2259 = vadd.f32 %v2257, %v2258
        %v2260 = vrot.slane %v2259, 1
        %v2261 = vadd.f32 %v2259, %v2260
        %v2262 = vadd.f32 %v1658, %v1660
        %v2263 = vadd.f32 %v2262, %v1663
        %v2264 = vadd.f32 %v2263, %v1665
        %v2265 = vadd.f32 %v2264, %v1668
        %v2266 = vadd.f32 %v2265, %v1670
        %v2267 = vadd.f32 %v2266, %v1673
        %v2268 = vadd.f32 %v2267, %v1675
        %v2269 = vadd.f32 %v2268, %v1678
        %v2270 = vadd.f32 %v2269, %v1680
        %v2271 = vadd.f32 %v2270, %v1683
        %v2272 = vadd.f32 %v2271, %v1685
        %v2273 = vadd.f32 %v2272, %v1688
        %v2274 = vadd.f32 %v2273, %v1690
        %v2275 = vadd.f32 %v2274, %v1693
        %v2276 = vadd.f32 %v2275, %v1695
        %v2277 = vadd.f32 %v2276, %v1698
        %v2278 = vadd.f32 %v2277, %v1700
        %v2279 = vadd.f32 %v2278, %v1703
        %v2280 = vadd.f32 %v2279, %v1705
        %v2281 = vadd.f32 %v2280, %v1708
        %v2282 = vadd.f32 %v2281, %v1710
        %v2283 = vadd.f32 %v2282, %v1713
        %v2284 = vadd.f32 %v2283, %v1715
        %v2285 = vadd.f32 %v2284, %v1718
        %v2286 = vadd.f32 %v2285, %v1720
        %v2287 = vadd.f32 %v2286, %v1723
        %v2288 = vadd.f32 %v2287, %v1725
        %v2289 = vadd.f32 %v2288, %v1728
        %v2290 = vadd.f32 %v2289, %v1730
        %v2291 = vadd.f32 %v2290, %v1733
        %v2292 = vadd.f32 %v2291, %v1735
        %v2293 = vrot.slane %v2292, 4
        %v2294 = vadd.f32 %v2292, %v2293
        %v2295 = vrot.slane %v2294, 2
        %v2296 = vadd.f32 %v2294, %v2295
        %v2297 = vrot.slane %v2296, 1
        %v2298 = vadd.f32 %v2296, %v2297
        %v2299 = vadd.f32 %v1747, %v1749
        %v2300 = vadd.f32 %v2299, %v1752
        %v2301 = vadd.f32 %v2300, %v1754
        %v2302 = vadd.f32 %v2301, %v1757
        %v2303 = vadd.f32 %v2302, %v1759
        %v2304 = vadd.f32 %v2303, %v1762
        %v2305 = vadd.f32 %v2304, %v1764
        %v2306 = vadd.f32 %v2305, %v1767
        %v2307 = vadd.f32 %v2306, %v1769
        %v2308 = vadd.f32 %v2307, %v1772
        %v2309 = vadd.f32 %v2308, %v1774
        %v2310 = vadd.f32 %v2309, %v1777
        %v2311 = vadd.f32 %v2310, %v1779
        %v2312 = vadd.f32 %v2311, %v1782
        %v2313 = vadd.f32 %v2312, %v1784
        %v2314 = vadd.f32 %v2313, %v1787
        %v2315 = vadd.f32 %v2314, %v1789
        %v2316 = vadd.f32 %v2315, %v1792
        %v2317 = vadd.f32 %v2316, %v1794
        %v2318 = vadd.f32 %v2317, %v1797
        %v2319 = vadd.f32 %v2318, %v1799
        %v2320 = vadd.f32 %v2319, %v1802
        %v2321 = vadd.f32 %v2320, %v1804
        %v2322 = vadd.f32 %v2321, %v1807
        %v2323 = vadd.f32 %v2322, %v1809
        %v2324 = vadd.f32 %v2323, %v1812
        %v2325 = vadd.f32 %v2324, %v1814
        %v2326 = vadd.f32 %v2325, %v1817
        %v2327 = vadd.f32 %v2326, %v1819
        %v2328 = vadd.f32 %v2327, %v1822
        %v2329 = vadd.f32 %v2328, %v1824
        %v2330 = vrot.slane %v2329, 4
        %v2331 = vadd.f32 %v2329, %v2330
        %v2332 = vrot.slane %v2331, 2
        %v2333 = vadd.f32 %v2331, %v2332
        %v2334 = vrot.slane %v2333, 1
        %v2335 = vadd.f32 %v2333, %v2334
        %v2336 = vadd.f32 %v1836, %v1838
        %v2337 = vadd.f32 %v2336, %v1841
        %v2338 = vadd.f32 %v2337, %v1843
        %v2339 = vadd.f32 %v2338, %v1846
        %v2340 = vadd.f32 %v2339, %v1848
        %v2341 = vadd.f32 %v2340, %v1851
        %v2342 = vadd.f32 %v2341, %v1853
        %v2343 = vadd.f32 %v2342, %v1856
        %v2344 = vadd.f32 %v2343, %v1858
        %v2345 = vadd.f32 %v2344, %v1861
        %v2346 = vadd.f32 %v2345, %v1863
        %v2347 = vadd.f32 %v2346, %v1866
        %v2348 = vadd.f32 %v2347, %v1868
        %v2349 = vadd.f32 %v2348, %v1871
        %v2350 = vadd.f32 %v2349, %v1873
        %v2351 = vadd.f32 %v2350, %v1876
        %v2352 = vadd.f32 %v2351, %v1878
        %v2353 = vadd.f32 %v2352, %v1881
        %v2354 = vadd.f32 %v2353, %v1883
        %v2355 = vadd.f32 %v2354, %v1886
        %v2356 = vadd.f32 %v2355, %v1888
        %v2357 = vadd.f32 %v2356, %v1891
        %v2358 = vadd.f32 %v2357, %v1893
        %v2359 = vadd.f32 %v2358, %v1896
        %v2360 = vadd.f32 %v2359, %v1898
        %v2361 = vadd.f32 %v2360, %v1901
        %v2362 = vadd.f32 %v2361, %v1903
        %v2363 = vadd.f32 %v2362, %v1906
        %v2364 = vadd.f32 %v2363, %v1908
        %v2365 = vadd.f32 %v2364, %v1911
        %v2366 = vadd.f32 %v2365, %v1913
        %v2367 = vrot.slane %v2366, 4
        %v2368 = vadd.f32 %v2366, %v2367
        %v2369 = vrot.slane %v2368, 2
        %v2370 = vadd.f32 %v2368, %v2369
        %v2371 = vrot.slane %v2370, 1
        %v2372 = vadd.f32 %v2370, %v2371
        %v2373 = vadd.f32 %v1925, %v1927
        %v2374 = vadd.f32 %v2373, %v1930
        %v2375 = vadd.f32 %v2374, %v1932
        %v2376 = vadd.f32 %v2375, %v1935
        %v2377 = vadd.f32 %v2376, %v1937
        %v2378 = vadd.f32 %v2377, %v1940
        %v2379 = vadd.f32 %v2378, %v1942
        %v2380 = vadd.f32 %v2379, %v1945
        %v2381 = vadd.f32 %v2380, %v1947
        %v2382 = vadd.f32 %v2381, %v1950
        %v2383 = vadd.f32 %v2382, %v1952
        %v2384 = vadd.f32 %v2383, %v1955
        %v2385 = vadd.f32 %v2384, %v1957
        %v2386 = vadd.f32 %v2385, %v1960
        %v2387 = vadd.f32 %v2386, %v1962
        %v2388 = vadd.f32 %v2387, %v1965
        %v2389 = vadd.f32 %v2388, %v1967
        %v2390 = vadd.f32 %v2389, %v1970
        %v2391 = vadd.f32 %v2390, %v1972
        %v2392 = vadd.f32 %v2391, %v1975
        %v2393 = vadd.f32 %v2392, %v1977
        %v2394 = vadd.f32 %v2393, %v1980
        %v2395 = vadd.f32 %v2394, %v1982
        %v2396 = vadd.f32 %v2395, %v1985
        %v2397 = vadd.f32 %v2396, %v1987
        %v2398 = vadd.f32 %v2397, %v1990
        %v2399 = vadd.f32 %v2398, %v1992
        %v2400 = vadd.f32 %v2399, %v1995
        %v2401 = vadd.f32 %v2400, %v1997
        %v2402 = vadd.f32 %v2401, %v2000
        %v2403 = vadd.f32 %v2402, %v2002
        %v2404 = vrot.slane %v2403, 4
        %v2405 = vadd.f32 %v2403, %v2404
        %v2406 = vrot.slane %v2405, 2
        %v2407 = vadd.f32 %v2405, %v2406
        %v2408 = vrot.slane %v2407, 1
        %v2409 = vadd.f32 %v2407, %v2408
        %v2410 = vadd.f32 %v2014, %v2016
        %v2411 = vadd.f32 %v2410, %v2019
        %v2412 = vadd.f32 %v2411, %v2021
        %v2413 = vadd.f32 %v2412, %v2024
        %v2414 = vadd.f32 %v2413, %v2026
        %v2415 = vadd.f32 %v2414, %v2029
        %v2416 = vadd.f32 %v2415, %v2031
        %v2417 = vadd.f32 %v2416, %v2034
        %v2418 = vadd.f32 %v2417, %v2036
        %v2419 = vadd.f32 %v2418, %v2039
        %v2420 = vadd.f32 %v2419, %v2041
        %v2421 = vadd.f32 %v2420, %v2044
        %v2422 = vadd.f32 %v2421, %v2046
        %v2423 = vadd.f32 %v2422, %v2049
        %v2424 = vadd.f32 %v2423, %v2051
        %v2425 = vadd.f32 %v2424, %v2054
        %v2426 = vadd.f32 %v2425, %v2056
        %v2427 = vadd.f32 %v2426, %v2059
        %v2428 = vadd.f32 %v2427, %v2061
        %v2429 = vadd.f32 %v2428, %v2064
        %v2430 = vadd.f32 %v2429, %v2066
        %v2431 = vadd.f32 %v2430, %v2069
        %v2432 = vadd.f32 %v2431, %v2071
        %v2433 = vadd.f32 %v2432, %v2074
        %v2434 = vadd.f32 %v2433, %v2076
        %v2435 = vadd.f32 %v2434, %v2079
        %v2436 = vadd.f32 %v2435, %v2081
        %v2437 = vadd.f32 %v2436, %v2084
        %v2438 = vadd.f32 %v2437, %v2086
        %v2439 = vadd.f32 %v2438, %v2089
        %v2440 = vadd.f32 %v2439, %v2091
        %v2441 = vrot.slane %v2440, 4
        %v2442 = vadd.f32 %v2440, %v2441
        %v2443 = vrot.slane %v2442, 2
        %v2444 = vadd.f32 %v2442, %v2443
        %v2445 = vrot.slane %v2444, 1
        %v2446 = vadd.f32 %v2444, %v2445
        %v2447 = vadd.f32 %v2103, %v2105
        %v2448 = vadd.f32 %v2447, %v2108
        %v2449 = vadd.f32 %v2448, %v2110
        %v2450 = vadd.f32 %v2449, %v2113
        %v2451 = vadd.f32 %v2450, %v2115
        %v2452 = vadd.f32 %v2451, %v2118
        %v2453 = vadd.f32 %v2452, %v2120
        %v2454 = vadd.f32 %v2453, %v2123
        %v2455 = vadd.f32 %v2454, %v2125
        %v2456 = vadd.f32 %v2455, %v2128
        %v2457 = vadd.f32 %v2456, %v2130
        %v2458 = vadd.f32 %v2457, %v2133
        %v2459 = vadd.f32 %v2458, %v2135
        %v2460 = vadd.f32 %v2459, %v2138
        %v2461 = vadd.f32 %v2460, %v2140
        %v2462 = vadd.f32 %v2461, %v2143
        %v2463 = vadd.f32 %v2462, %v2145
        %v2464 = vadd.f32 %v2463, %v2148
        %v2465 = vadd.f32 %v2464, %v2150
        %v2466 = vadd.f32 %v2465, %v2153
        %v2467 = vadd.f32 %v2466, %v2155
        %v2468 = vadd.f32 %v2467, %v2158
        %v2469 = vadd.f32 %v2468, %v2160
        %v2470 = vadd.f32 %v2469, %v2163
        %v2471 = vadd.f32 %v2470, %v2165
        %v2472 = vadd.f32 %v2471, %v2168
        %v2473 = vadd.f32 %v2472, %v2170
        %v2474 = vadd.f32 %v2473, %v2173
        %v2475 = vadd.f32 %v2474, %v2175
        %v2476 = vadd.f32 %v2475, %v2178
        %v2477 = vadd.f32 %v2476, %v2180
        %v2478 = vrot.slane %v2477, 4
        %v2479 = vadd.f32 %v2477, %v2478
        %v2480 = vrot.slane %v2479, 2
        %v2481 = vadd.f32 %v2479, %v2480
        %v2482 = vrot.slane %v2481, 1
        %v2483 = vadd.f32 %v2481, %v2482
        %v2484 = vmul.f32 %v1480, %v1480
        %v2485 = vmul.f32 %v1569, %v1569
        %v2486 = vmul.f32 %v1658, %v1658
        %v2487 = vmul.f32 %v1747, %v1747
        %v2488 = vmul.f32 %v1836, %v1836
        %v2489 = vmul.f32 %v1925, %v1925
        %v2490 = vmul.f32 %v2014, %v2014
        %v2491 = vmul.f32 %v2103, %v2103
        %v2492 = vmul.f32 %v1482, %v1482
        %v2493 = vmul.f32 %v1571, %v1571
        %v2494 = vmul.f32 %v1660, %v1660
        %v2495 = vmul.f32 %v1749, %v1749
        %v2496 = vmul.f32 %v1838, %v1838
        %v2497 = vmul.f32 %v1927, %v1927
        %v2498 = vmul.f32 %v2016, %v2016
        %v2499 = vmul.f32 %v2105, %v2105
        %v2500 = vmul.f32 %v1485, %v1485
        %v2501 = vmul.f32 %v1574, %v1574
        %v2502 = vmul.f32 %v1663, %v1663
        %v2503 = vmul.f32 %v1752, %v1752
        %v2504 = vmul.f32 %v1841, %v1841
        %v2505 = vmul.f32 %v1930, %v1930
        %v2506 = vmul.f32 %v2019, %v2019
        %v2507 = vmul.f32 %v2108, %v2108
        %v2508 = vmul.f32 %v1487, %v1487
        %v2509 = vmul.f32 %v1576, %v1576
        %v2510 = vmul.f32 %v1665, %v1665
        %v2511 = vmul.f32 %v1754, %v1754
        %v2512 = vmul.f32 %v1843, %v1843
        %v2513 = vmul.f32 %v1932, %v1932
        %v2514 = vmul.f32 %v2021, %v2021
        %v2515 = vmul.f32 %v2110, %v2110
        %v2516 = vmul.f32 %v1490, %v1490
        %v2517 = vmul.f32 %v1579, %v1579
        %v2518 = vmul.f32 %v1668, %v1668
        %v2519 = vmul.f32 %v1757, %v1757
        %v2520 = vmul.f32 %v1846, %v1846
        %v2521 = vmul.f32 %v1935, %v1935
        %v2522 = vmul.f32 %v2024, %v2024
        %v2523 = vmul.f32 %v2113, %v2113
        %v2524 = vmul.f32 %v1492, %v1492
        %v2525 = vmul.f32 %v1581, %v1581
        %v2526 = vmul.f32 %v1670, %v1670
        %v2527 = vmul.f32 %v1759, %v1759
        %v2528 = vmul.f32 %v1848, %v1848
        %v2529 = vmul.f32 %v1937, %v1937
        %v2530 = vmul.f32 %v2026, %v2026
        %v2531 = vmul.f32 %v2115, %v2115
        %v2532 = vmul.f32 %v1495, %v1495
        %v2533 = vmul.f32 %v1584, %v1584
        %v2534 = vmul.f32 %v1673, %v1673
        %v2535 = vmul.f32 %v1762, %v1762
        %v2536 = vmul.f32 %v1851, %v1851
        %v2537 = vmul.f32 %v1940, %v1940
        %v2538 = vmul.f32 %v2029, %v2029
        %v2539 = vmul.f32 %v2118, %v2118
        %v2540 = vmul.f32 %v1497, %v1497
        %v2541 = vmul.f32 %v1586, %v1586
        %v2542 = vmul.f32 %v1675, %v1675
        %v2543 = vmul.f32 %v1764, %v1764
        %v2544 = vmul.f32 %v1853, %v1853
        %v2545 = vmul.f32 %v1942, %v1942
        %v2546 = vmul.f32 %v2031, %v2031
        %v2547 = vmul.f32 %v2120, %v2120
        %v2548 = vmul.f32 %v1500, %v1500
        %v2549 = vmul.f32 %v1589, %v1589
        %v2550 = vmul.f32 %v1678, %v1678
        %v2551 = vmul.f32 %v1767, %v1767
        %v2552 = vmul.f32 %v1856, %v1856
        %v2553 = vmul.f32 %v1945, %v1945
        %v2554 = vmul.f32 %v2034, %v2034
        %v2555 = vmul.f32 %v2123, %v2123
        %v2556 = vmul.f32 %v1502, %v1502
        %v2557 = vmul.f32 %v1591, %v1591
        %v2558 = vmul.f32 %v1680, %v1680
        %v2559 = vmul.f32 %v1769, %v1769
        %v2560 = vmul.f32 %v1858, %v1858
        %v2561 = vmul.f32 %v1947, %v1947
        %v2562 = vmul.f32 %v2036, %v2036
        %v2563 = vmul.f32 %v2125, %v2125
        %v2564 = vmul.f32 %v1505, %v1505
        %v2565 = vmul.f32 %v1594, %v1594
        %v2566 = vmul.f32 %v1683, %v1683
        %v2567 = vmul.f32 %v1772, %v1772
        %v2568 = vmul.f32 %v1861, %v1861
        %v2569 = vmul.f32 %v1950, %v1950
        %v2570 = vmul.f32 %v2039, %v2039
        %v2571 = vmul.f32 %v2128, %v2128
        %v2572 = vmul.f32 %v1507, %v1507
        %v2573 = vmul.f32 %v1596, %v1596
        %v2574 = vmul.f32 %v1685, %v1685
        %v2575 = vmul.f32 %v1774, %v1774
        %v2576 = vmul.f32 %v1863, %v1863
        %v2577 = vmul.f32 %v1952, %v1952
        %v2578 = vmul.f32 %v2041, %v2041
        %v2579 = vmul.f32 %v2130, %v2130
        %v2580 = vmul.f32 %v1510, %v1510
        %v2581 = vmul.f32 %v1599, %v1599
        %v2582 = vmul.f32 %v1688, %v1688
        %v2583 = vmul.f32 %v1777, %v1777
        %v2584 = vmul.f32 %v1866, %v1866
        %v2585 = vmul.f32 %v1955, %v1955
        %v2586 = vmul.f32 %v2044, %v2044
        %v2587 = vmul.f32 %v2133, %v2133
        %v2588 = vmul.f32 %v1512, %v1512
        %v2589 = vmul.f32 %v1601, %v1601
        %v2590 = vmul.f32 %v1690, %v1690
        %v2591 = vmul.f32 %v1779, %v1779
        %v2592 = vmul.f32 %v1868, %v1868
        %v2593 = vmul.f32 %v1957, %v1957
        %v2594 = vmul.f32 %v2046, %v2046
        %v2595 = vmul.f32 %v2135, %v2135
        %v2596 = vmul.f32 %v1515, %v1515
        %v2597 = vmul.f32 %v1604, %v1604
        %v2598 = vmul.f32 %v1693, %v1693
        %v2599 = vmul.f32 %v1782, %v1782
        %v2600 = vmul.f32 %v1871, %v1871
        %v2601 = vmul.f32 %v1960, %v1960
        %v2602 = vmul.f32 %v2049, %v2049
        %v2603 = vmul.f32 %v2138, %v2138
        %v2604 = vmul.f32 %v1517, %v1517
        %v2605 = vmul.f32 %v1606, %v1606
        %v2606 = vmul.f32 %v1695, %v1695
        %v2607 = vmul.f32 %v1784, %v1784
        %v2608 = vmul.f32 %v1873, %v1873
        %v2609 = vmul.f32 %v1962, %v1962
        %v2610 = vmul.f32 %v2051, %v2051
        %v2611 = vmul.f32 %v2140, %v2140
        %v2612 = vmul.f32 %v1520, %v1520
        %v2613 = vmul.f32 %v1609, %v1609
        %v2614 = vmul.f32 %v1698, %v1698
        %v2615 = vmul.f32 %v1787, %v1787
        %v2616 = vmul.f32 %v1876, %v1876
        %v2617 = vmul.f32 %v1965, %v1965
        %v2618 = vmul.f32 %v2054, %v2054
        %v2619 = vmul.f32 %v2143, %v2143
        %v2620 = vmul.f32 %v1522, %v1522
        %v2621 = vmul.f32 %v1611, %v1611
        %v2622 = vmul.f32 %v1700, %v1700
        %v2623 = vmul.f32 %v1789, %v1789
        %v2624 = vmul.f32 %v1878, %v1878
        %v2625 = vmul.f32 %v1967, %v1967
        %v2626 = vmul.f32 %v2056, %v2056
        %v2627 = vmul.f32 %v2145, %v2145
        %v2628 = vmul.f32 %v1525, %v1525
        %v2629 = vmul.f32 %v1614, %v1614
        %v2630 = vmul.f32 %v1703, %v1703
        %v2631 = vmul.f32 %v1792, %v1792
        %v2632 = vmul.f32 %v1881, %v1881
        %v2633 = vmul.f32 %v1970, %v1970
        %v2634 = vmul.f32 %v2059, %v2059
        %v2635 = vmul.f32 %v2148, %v2148
        %v2636 = vmul.f32 %v1527, %v1527
        %v2637 = vmul.f32 %v1616, %v1616
        %v2638 = vmul.f32 %v1705, %v1705
        %v2639 = vmul.f32 %v1794, %v1794
        %v2640 = vmul.f32 %v1883, %v1883
        %v2641 = vmul.f32 %v1972, %v1972
        %v2642 = vmul.f32 %v2061, %v2061
        %v2643 = vmul.f32 %v2150, %v2150
        %v2644 = vmul.f32 %v1530, %v1530
        %v2645 = vmul.f32 %v1619, %v1619
        %v2646 = vmul.f32 %v1708, %v1708
        %v2647 = vmul.f32 %v1797, %v1797
        %v2648 = vmul.f32 %v1886, %v1886
        %v2649 = vmul.f32 %v1975, %v1975
        %v2650 = vmul.f32 %v2064, %v2064
        %v2651 = vmul.f32 %v2153, %v2153
        %v2652 = vmul.f32 %v1532, %v1532
        %v2653 = vmul.f32 %v1621, %v1621
        %v2654 = vmul.f32 %v1710, %v1710
        %v2655 = vmul.f32 %v1799, %v1799
        %v2656 = vmul.f32 %v1888, %v1888
        %v2657 = vmul.f32 %v1977, %v1977
        %v2658 = vmul.f32 %v2066, %v2066
        %v2659 = vmul.f32 %v2155, %v2155
        %v2660 = vmul.f32 %v1535, %v1535
        %v2661 = vmul.f32 %v1624, %v1624
        %v2662 = vmul.f32 %v1713, %v1713
        %v2663 = vmul.f32 %v1802, %v1802
        %v2664 = vmul.f32 %v1891, %v1891
        %v2665 = vmul.f32 %v1980, %v1980
        %v2666 = vmul.f32 %v2069, %v2069
        %v2667 = vmul.f32 %v2158, %v2158
        %v2668 = vmul.f32 %v1537, %v1537
        %v2669 = vmul.f32 %v1626, %v1626
        %v2670 = vmul.f32 %v1715, %v1715
        %v2671 = vmul.f32 %v1804, %v1804
        %v2672 = vmul.f32 %v1893, %v1893
        %v2673 = vmul.f32 %v1982, %v1982
        %v2674 = vmul.f32 %v2071, %v2071
        %v2675 = vmul.f32 %v2160, %v2160
        %v2676 = vmul.f32 %v1540, %v1540
        %v2677 = vmul.f32 %v1629, %v1629
        %v2678 = vmul.f32 %v1718, %v1718
        %v2679 = vmul.f32 %v1807, %v1807
        %v2680 = vmul.f32 %v1896, %v1896
        %v2681 = vmul.f32 %v1985, %v1985
        %v2682 = vmul.f32 %v2074, %v2074
        %v2683 = vmul.f32 %v2163, %v2163
        %v2684 = vmul.f32 %v1542, %v1542
        %v2685 = vmul.f32 %v1631, %v1631
        %v2686 = vmul.f32 %v1720, %v1720
        %v2687 = vmul.f32 %v1809, %v1809
        %v2688 = vmul.f32 %v1898, %v1898
        %v2689 = vmul.f32 %v1987, %v1987
        %v2690 = vmul.f32 %v2076, %v2076
        %v2691 = vmul.f32 %v2165, %v2165
        %v2692 = vmul.f32 %v1545, %v1545
        %v2693 = vmul.f32 %v1634, %v1634
        %v2694 = vmul.f32 %v1723, %v1723
        %v2695 = vmul.f32 %v1812, %v1812
        %v2696 = vmul.f32 %v1901, %v1901
        %v2697 = vmul.f32 %v1990, %v1990
        %v2698 = vmul.f32 %v2079, %v2079
        %v2699 = vmul.f32 %v2168, %v2168
        %v2700 = vmul.f32 %v1547, %v1547
        %v2701 = vmul.f32 %v1636, %v1636
        %v2702 = vmul.f32 %v1725, %v1725
        %v2703 = vmul.f32 %v1814, %v1814
        %v2704 = vmul.f32 %v1903, %v1903
        %v2705 = vmul.f32 %v1992, %v1992
        %v2706 = vmul.f32 %v2081, %v2081
        %v2707 = vmul.f32 %v2170, %v2170
        %v2708 = vmul.f32 %v1550, %v1550
        %v2709 = vmul.f32 %v1639, %v1639
        %v2710 = vmul.f32 %v1728, %v1728
        %v2711 = vmul.f32 %v1817, %v1817
        %v2712 = vmul.f32 %v1906, %v1906
        %v2713 = vmul.f32 %v1995, %v1995
        %v2714 = vmul.f32 %v2084, %v2084
        %v2715 = vmul.f32 %v2173, %v2173
        %v2716 = vmul.f32 %v1552, %v1552
        %v2717 = vmul.f32 %v1641, %v1641
        %v2718 = vmul.f32 %v1730, %v1730
        %v2719 = vmul.f32 %v1819, %v1819
        %v2720 = vmul.f32 %v1908, %v1908
        %v2721 = vmul.f32 %v1997, %v1997
        %v2722 = vmul.f32 %v2086, %v2086
        %v2723 = vmul.f32 %v2175, %v2175
        %v2724 = vmul.f32 %v1555, %v1555
        %v2725 = vmul.f32 %v1644, %v1644
        %v2726 = vmul.f32 %v1733, %v1733
        %v2727 = vmul.f32 %v1822, %v1822
        %v2728 = vmul.f32 %v1911, %v1911
        %v2729 = vmul.f32 %v2000, %v2000
        %v2730 = vmul.f32 %v2089, %v2089
        %v2731 = vmul.f32 %v2178, %v2178
        %v2732 = vmul.f32 %v1557, %v1557
        %v2733 = vmul.f32 %v1646, %v1646
        %v2734 = vmul.f32 %v1735, %v1735
        %v2735 = vmul.f32 %v1824, %v1824
        %v2736 = vmul.f32 %v1913, %v1913
        %v2737 = vmul.f32 %v2002, %v2002
        %v2738 = vmul.f32 %v2091, %v2091
        %v2739 = vmul.f32 %v2180, %v2180
        %v2740 = vadd.f32 %v2484, %v2492
        %v2741 = vadd.f32 %v2740, %v2500
        %v2742 = vadd.f32 %v2741, %v2508
        %v2743 = vadd.f32 %v2742, %v2516
        %v2744 = vadd.f32 %v2743, %v2524
        %v2745 = vadd.f32 %v2744, %v2532
        %v2746 = vadd.f32 %v2745, %v2540
        %v2747 = vadd.f32 %v2746, %v2548
        %v2748 = vadd.f32 %v2747, %v2556
        %v2749 = vadd.f32 %v2748, %v2564
        %v2750 = vadd.f32 %v2749, %v2572
        %v2751 = vadd.f32 %v2750, %v2580
        %v2752 = vadd.f32 %v2751, %v2588
        %v2753 = vadd.f32 %v2752, %v2596
        %v2754 = vadd.f32 %v2753, %v2604
        %v2755 = vadd.f32 %v2754, %v2612
        %v2756 = vadd.f32 %v2755, %v2620
        %v2757 = vadd.f32 %v2756, %v2628
        %v2758 = vadd.f32 %v2757, %v2636
        %v2759 = vadd.f32 %v2758, %v2644
        %v2760 = vadd.f32 %v2759, %v2652
        %v2761 = vadd.f32 %v2760, %v2660
        %v2762 = vadd.f32 %v2761, %v2668
        %v2763 = vadd.f32 %v2762, %v2676
        %v2764 = vadd.f32 %v2763, %v2684
        %v2765 = vadd.f32 %v2764, %v2692
        %v2766 = vadd.f32 %v2765, %v2700
        %v2767 = vadd.f32 %v2766, %v2708
        %v2768 = vadd.f32 %v2767, %v2716
        %v2769 = vadd.f32 %v2768, %v2724
        %v2770 = vadd.f32 %v2769, %v2732
        %v2771 = vrot.slane %v2770, 4
        %v2772 = vadd.f32 %v2770, %v2771
        %v2773 = vrot.slane %v2772, 2
        %v2774 = vadd.f32 %v2772, %v2773
        %v2775 = vrot.slane %v2774, 1
        %v2776 = vadd.f32 %v2774, %v2775
        %v2777 = vadd.f32 %v2485, %v2493
        %v2778 = vadd.f32 %v2777, %v2501
        %v2779 = vadd.f32 %v2778, %v2509
        %v2780 = vadd.f32 %v2779, %v2517
        %v2781 = vadd.f32 %v2780, %v2525
        %v2782 = vadd.f32 %v2781, %v2533
        %v2783 = vadd.f32 %v2782, %v2541
        %v2784 = vadd.f32 %v2783, %v2549
        %v2785 = vadd.f32 %v2784, %v2557
        %v2786 = vadd.f32 %v2785, %v2565
        %v2787 = vadd.f32 %v2786, %v2573
        %v2788 = vadd.f32 %v2787, %v2581
        %v2789 = vadd.f32 %v2788, %v2589
        %v2790 = vadd.f32 %v2789, %v2597
        %v2791 = vadd.f32 %v2790, %v2605
        %v2792 = vadd.f32 %v2791, %v2613
        %v2793 = vadd.f32 %v2792, %v2621
        %v2794 = vadd.f32 %v2793, %v2629
        %v2795 = vadd.f32 %v2794, %v2637
        %v2796 = vadd.f32 %v2795, %v2645
        %v2797 = vadd.f32 %v2796, %v2653
        %v2798 = vadd.f32 %v2797, %v2661
        %v2799 = vadd.f32 %v2798, %v2669
        %v2800 = vadd.f32 %v2799, %v2677
        %v2801 = vadd.f32 %v2800, %v2685
        %v2802 = vadd.f32 %v2801, %v2693
        %v2803 = vadd.f32 %v2802, %v2701
        %v2804 = vadd.f32 %v2803, %v2709
        %v2805 = vadd.f32 %v2804, %v2717
        %v2806 = vadd.f32 %v2805, %v2725
        %v2807 = vadd.f32 %v2806, %v2733
        %v2808 = vrot.slane %v2807, 4
        %v2809 = vadd.f32 %v2807, %v2808
        %v2810 = vrot.slane %v2809, 2
        %v2811 = vadd.f32 %v2809, %v2810
        %v2812 = vrot.slane %v2811, 1
        %v2813 = vadd.f32 %v2811, %v2812
        %v2814 = vadd.f32 %v2486, %v2494
        %v2815 = vadd.f32 %v2814, %v2502
        %v2816 = vadd.f32 %v2815, %v2510
        %v2817 = vadd.f32 %v2816, %v2518
        %v2818 = vadd.f32 %v2817, %v2526
        %v2819 = vadd.f32 %v2818, %v2534
        %v2820 = vadd.f32 %v2819, %v2542
        %v2821 = vadd.f32 %v2820, %v2550
        %v2822 = vadd.f32 %v2821, %v2558
        %v2823 = vadd.f32 %v2822, %v2566
        %v2824 = vadd.f32 %v2823, %v2574
        %v2825 = vadd.f32 %v2824, %v2582
        %v2826 = vadd.f32 %v2825, %v2590
        %v2827 = vadd.f32 %v2826, %v2598
        %v2828 = vadd.f32 %v2827, %v2606
        %v2829 = vadd.f32 %v2828, %v2614
        %v2830 = vadd.f32 %v2829, %v2622
        %v2831 = vadd.f32 %v2830, %v2630
        %v2832 = vadd.f32 %v2831, %v2638
        %v2833 = vadd.f32 %v2832, %v2646
        %v2834 = vadd.f32 %v2833, %v2654
        %v2835 = vadd.f32 %v2834, %v2662
        %v2836 = vadd.f32 %v2835, %v2670
        %v2837 = vadd.f32 %v2836, %v2678
        %v2838 = vadd.f32 %v2837, %v2686
        %v2839 = vadd.f32 %v2838, %v2694
        %v2840 = vadd.f32 %v2839, %v2702
        %v2841 = vadd.f32 %v2840, %v2710
        %v2842 = vadd.f32 %v2841, %v2718
        %v2843 = vadd.f32 %v2842, %v2726
        %v2844 = vadd.f32 %v2843, %v2734
        %v2845 = vrot.slane %v2844, 4
        %v2846 = vadd.f32 %v2844, %v2845
        %v2847 = vrot.slane %v2846, 2
        %v2848 = vadd.f32 %v2846, %v2847
        %v2849 = vrot.slane %v2848, 1
        %v2850 = vadd.f32 %v2848, %v2849
        %v2851 = vadd.f32 %v2487, %v2495
        %v2852 = vadd.f32 %v2851, %v2503
        %v2853 = vadd.f32 %v2852, %v2511
        %v2854 = vadd.f32 %v2853, %v2519
        %v2855 = vadd.f32 %v2854, %v2527
        %v2856 = vadd.f32 %v2855, %v2535
        %v2857 = vadd.f32 %v2856, %v2543
        %v2858 = vadd.f32 %v2857, %v2551
        %v2859 = vadd.f32 %v2858, %v2559
        %v2860 = vadd.f32 %v2859, %v2567
        %v2861 = vadd.f32 %v2860, %v2575
        %v2862 = vadd.f32 %v2861, %v2583
        %v2863 = vadd.f32 %v2862, %v2591
        %v2864 = vadd.f32 %v2863, %v2599
        %v2865 = vadd.f32 %v2864, %v2607
        %v2866 = vadd.f32 %v2865, %v2615
        %v2867 = vadd.f32 %v2866, %v2623
        %v2868 = vadd.f32 %v2867, %v2631
        %v2869 = vadd.f32 %v2868, %v2639
        %v2870 = vadd.f32 %v2869, %v2647
        %v2871 = vadd.f32 %v2870, %v2655
        %v2872 = vadd.f32 %v2871, %v2663
        %v2873 = vadd.f32 %v2872, %v2671
        %v2874 = vadd.f32 %v2873, %v2679
        %v2875 = vadd.f32 %v2874, %v2687
        %v2876 = vadd.f32 %v2875, %v2695
        %v2877 = vadd.f32 %v2876, %v2703
        %v2878 = vadd.f32 %v2877, %v2711
        %v2879 = vadd.f32 %v2878, %v2719
        %v2880 = vadd.f32 %v2879, %v2727
        %v2881 = vadd.f32 %v2880, %v2735
        %v2882 = vrot.slane %v2881, 4
        %v2883 = vadd.f32 %v2881, %v2882
        %v2884 = vrot.slane %v2883, 2
        %v2885 = vadd.f32 %v2883, %v2884
        %v2886 = vrot.slane %v2885, 1
        %v2887 = vadd.f32 %v2885, %v2886
        %v2888 = vadd.f32 %v2488, %v2496
        %v2889 = vadd.f32 %v2888, %v2504
        %v2890 = vadd.f32 %v2889, %v2512
        %v2891 = vadd.f32 %v2890, %v2520
        %v2892 = vadd.f32 %v2891, %v2528
        %v2893 = vadd.f32 %v2892, %v2536
        %v2894 = vadd.f32 %v2893, %v2544
        %v2895 = vadd.f32 %v2894, %v2552
        %v2896 = vadd.f32 %v2895, %v2560
        %v2897 = vadd.f32 %v2896, %v2568
        %v2898 = vadd.f32 %v2897, %v2576
        %v2899 = vadd.f32 %v2898, %v2584
        %v2900 = vadd.f32 %v2899, %v2592
        %v2901 = vadd.f32 %v2900, %v2600
        %v2902 = vadd.f32 %v2901, %v2608
        %v2903 = vadd.f32 %v2902, %v2616
        %v2904 = vadd.f32 %v2903, %v2624
        %v2905 = vadd.f32 %v2904, %v2632
        %v2906 = vadd.f32 %v2905, %v2640
        %v2907 = vadd.f32 %v2906, %v2648
        %v2908 = vadd.f32 %v2907, %v2656
        %v2909 = vadd.f32 %v2908, %v2664
        %v2910 = vadd.f32 %v2909, %v2672
        %v2911 = vadd.f32 %v2910, %v2680
        %v2912 = vadd.f32 %v2911, %v2688
        %v2913 = vadd.f32 %v2912, %v2696
        %v2914 = vadd.f32 %v2913, %v2704
        %v2915 = vadd.f32 %v2914, %v2712
        %v2916 = vadd.f32 %v2915, %v2720
        %v2917 = vadd.f32 %v2916, %v2728
        %v2918 = vadd.f32 %v2917, %v2736
        %v2919 = vrot.slane %v2918, 4
        %v2920 = vadd.f32 %v2918, %v2919
        %v2921 = vrot.slane %v2920, 2
        %v2922 = vadd.f32 %v2920, %v2921
        %v2923 = vrot.slane %v2922, 1
        %v2924 = vadd.f32 %v2922, %v2923
        %v2925 = vadd.f32 %v2489, %v2497
        %v2926 = vadd.f32 %v2925, %v2505
        %v2927 = vadd.f32 %v2926, %v2513
        %v2928 = vadd.f32 %v2927, %v2521
        %v2929 = vadd.f32 %v2928, %v2529
        %v2930 = vadd.f32 %v2929, %v2537
        %v2931 = vadd.f32 %v2930, %v2545
        %v2932 = vadd.f32 %v2931, %v2553
        %v2933 = vadd.f32 %v2932, %v2561
        %v2934 = vadd.f32 %v2933, %v2569
        %v2935 = vadd.f32 %v2934, %v2577
        %v2936 = vadd.f32 %v2935, %v2585
        %v2937 = vadd.f32 %v2936, %v2593
        %v2938 = vadd.f32 %v2937, %v2601
        %v2939 = vadd.f32 %v2938, %v2609
        %v2940 = vadd.f32 %v2939, %v2617
        %v2941 = vadd.f32 %v2940, %v2625
        %v2942 = vadd.f32 %v2941, %v2633
        %v2943 = vadd.f32 %v2942, %v2641
        %v2944 = vadd.f32 %v2943, %v2649
        %v2945 = vadd.f32 %v2944, %v2657
        %v2946 = vadd.f32 %v2945, %v2665
        %v2947 = vadd.f32 %v2946, %v2673
        %v2948 = vadd.f32 %v2947, %v2681
        %v2949 = vadd.f32 %v2948, %v2689
        %v2950 = vadd.f32 %v2949, %v2697
        %v2951 = vadd.f32 %v2950, %v2705
        %v2952 = vadd.f32 %v2951, %v2713
        %v2953 = vadd.f32 %v2952, %v2721
        %v2954 = vadd.f32 %v2953, %v2729
        %v2955 = vadd.f32 %v2954, %v2737
        %v2956 = vrot.slane %v2955, 4
        %v2957 = vadd.f32 %v2955, %v2956
        %v2958 = vrot.slane %v2957, 2
        %v2959 = vadd.f32 %v2957, %v2958
        %v2960 = vrot.slane %v2959, 1
        %v2961 = vadd.f32 %v2959, %v2960
        %v2962 = vadd.f32 %v2490, %v2498
        %v2963 = vadd.f32 %v2962, %v2506
        %v2964 = vadd.f32 %v2963, %v2514
        %v2965 = vadd.f32 %v2964, %v2522
        %v2966 = vadd.f32 %v2965, %v2530
        %v2967 = vadd.f32 %v2966, %v2538
        %v2968 = vadd.f32 %v2967, %v2546
        %v2969 = vadd.f32 %v2968, %v2554
        %v2970 = vadd.f32 %v2969, %v2562
        %v2971 = vadd.f32 %v2970, %v2570
        %v2972 = vadd.f32 %v2971, %v2578
        %v2973 = vadd.f32 %v2972, %v2586
        %v2974 = vadd.f32 %v2973, %v2594
        %v2975 = vadd.f32 %v2974, %v2602
        %v2976 = vadd.f32 %v2975, %v2610
        %v2977 = vadd.f32 %v2976, %v2618
        %v2978 = vadd.f32 %v2977, %v2626
        %v2979 = vadd.f32 %v2978, %v2634
        %v2980 = vadd.f32 %v2979, %v2642
        %v2981 = vadd.f32 %v2980, %v2650
        %v2982 = vadd.f32 %v2981, %v2658
        %v2983 = vadd.f32 %v2982, %v2666
        %v2984 = vadd.f32 %v2983, %v2674
        %v2985 = vadd.f32 %v2984, %v2682
        %v2986 = vadd.f32 %v2985, %v2690
        %v2987 = vadd.f32 %v2986, %v2698
        %v2988 = vadd.f32 %v2987, %v2706
        %v2989 = vadd.f32 %v2988, %v2714
        %v2990 = vadd.f32 %v2989, %v2722
        %v2991 = vadd.f32 %v2990, %v2730
        %v2992 = vadd.f32 %v2991, %v2738
        %v2993 = vrot.slane %v2992, 4
        %v2994 = vadd.f32 %v2992, %v2993
        %v2995 = vrot.slane %v2994, 2
        %v2996 = vadd.f32 %v2994, %v2995
        %v2997 = vrot.slane %v2996, 1
        %v2998 = vadd.f32 %v2996, %v2997
        %v2999 = vadd.f32 %v2491, %v2499
        %v3000 = vadd.f32 %v2999, %v2507
        %v3001 = vadd.f32 %v3000, %v2515
        %v3002 = vadd.f32 %v3001, %v2523
        %v3003 = vadd.f32 %v3002, %v2531
        %v3004 = vadd.f32 %v3003, %v2539
        %v3005 = vadd.f32 %v3004, %v2547
        %v3006 = vadd.f32 %v3005, %v2555
        %v3007 = vadd.f32 %v3006, %v2563
        %v3008 = vadd.f32 %v3007, %v2571
        %v3009 = vadd.f32 %v3008, %v2579
        %v3010 = vadd.f32 %v3009, %v2587
        %v3011 = vadd.f32 %v3010, %v2595
        %v3012 = vadd.f32 %v3011, %v2603
        %v3013 = vadd.f32 %v3012, %v2611
        %v3014 = vadd.f32 %v3013, %v2619
        %v3015 = vadd.f32 %v3014, %v2627
        %v3016 = vadd.f32 %v3015, %v2635
        %v3017 = vadd.f32 %v3016, %v2643
        %v3018 = vadd.f32 %v3017, %v2651
        %v3019 = vadd.f32 %v3018, %v2659
        %v3020 = vadd.f32 %v3019, %v2667
        %v3021 = vadd.f32 %v3020, %v2675
        %v3022 = vadd.f32 %v3021, %v2683
        %v3023 = vadd.f32 %v3022, %v2691
        %v3024 = vadd.f32 %v3023, %v2699
        %v3025 = vadd.f32 %v3024, %v2707
        %v3026 = vadd.f32 %v3025, %v2715
        %v3027 = vadd.f32 %v3026, %v2723
        %v3028 = vadd.f32 %v3027, %v2731
        %v3029 = vadd.f32 %v3028, %v2739
        %v3030 = vrot.slane %v3029, 4
        %v3031 = vadd.f32 %v3029, %v3030
        %v3032 = vrot.slane %v3031, 2
        %v3033 = vadd.f32 %v3031, %v3032
        %v3034 = vrot.slane %v3033, 1
        %v3035 = vadd.f32 %v3033, %v3034
        %v3036 = vld [vmem:[%s447] sm:$0xff]
        %v3037 = vld [vmem:[%s447 + $0x8] sm:$0xff]
        %vm3038 = vcmask 1040384
        %v3039 = vsel %vm3038, %v2224, %v2776
        %v3040 = vsel %vm3038, %v2261, %v2813
        %v3041 = vsel %vm3038, %v2298, %v2850
        %v3042 = vsel %vm3038, %v2335, %v2887
        %v3043 = vsel %vm3038, %v2372, %v2924
        %v3044 = vsel %vm3038, %v2409, %v2961
        %v3045 = vsel %vm3038, %v2446, %v2998
        %v3046 = vsel %vm3038, %v2483, %v3035
        %v3055 = vrot.slane %v3040, 6
        %v3056 = vrot.slane %v3041, 4
        %v3057 = vrot.slane %v3042, 2
        %v3058 = vrot.slane %v3044, 6
        %v3059 = vrot.slane %v3045, 4
        %v3060 = vrot.slane %v3046, 2
        %vm3061 = vcmask 1041408
        %v3062 = vsel %vm3061, %v3039, %v3055
        %vm3063 = vcmask 1045508
        %v3064 = vsel %vm3063, %v3056, %v3057
        %v3065 = vsel %vm535, %v3062, %v3064
        %v3066 = vsel %vm3061, %v3043, %v3058
        %v3067 = vsel %vm3063, %v3059, %v3060
        %v3068 = vsel %vm535, %v3066, %v3067
        %v3071 = vadd.f32 %v3036, %v3065
        %v3072 = vadd.f32 %v3037, %v3068
        %3073 = vst [vmem:[%s447] sm:$0xff] %v3071
        %3074 = vst [vmem:[%s447 + $0x8] sm:$0xff] %v3072
        // Predicated region
        $region77: #{stnkd_forward.6} parent=55 // pred_check
          %p3075 = pneg %p2182
        $region78: #{stnkd_forward.6} parent=55 // pred_check_branch
          %3077 = sbr.rel (%p3075) target = $region80
        $region79: #{stnkd_forward.6} parent=55 // pred_region
          %3078 = vst [vmem:[%s451] sm:$0xff] -inf
        $region80: #{stnkd_forward.6} parent=55 // pred_fallthru
          _
        %v3079 = vld [vmem:[%s451] sm:$0xff]
        %v3080 = vmax.f32 %v1480, %v1482
        %v3081 = vmax.f32 %v3080, %v1485
        %v3082 = vmax.f32 %v3081, %v1487
        %v3083 = vmax.f32 %v3082, %v1490
        %v3084 = vmax.f32 %v3083, %v1492
        %v3085 = vmax.f32 %v3084, %v1495
        %v3086 = vmax.f32 %v3085, %v1497
        %v3087 = vmax.f32 %v3086, %v1500
        %v3088 = vmax.f32 %v3087, %v1502
        %v3089 = vmax.f32 %v3088, %v1505
        %v3090 = vmax.f32 %v3089, %v1507
        %v3091 = vmax.f32 %v3090, %v1510
        %v3092 = vmax.f32 %v3091, %v1512
        %v3093 = vmax.f32 %v3092, %v1515
        %v3094 = vmax.f32 %v3093, %v1517
        %v3095 = vmax.f32 %v3094, %v1520
        %v3096 = vmax.f32 %v3095, %v1522
        %v3097 = vmax.f32 %v3096, %v1525
        %v3098 = vmax.f32 %v3097, %v1527
        %v3099 = vmax.f32 %v3098, %v1530
        %v3100 = vmax.f32 %v3099, %v1532
        %v3101 = vmax.f32 %v3100, %v1535
        %v3102 = vmax.f32 %v3101, %v1537
        %v3103 = vmax.f32 %v3102, %v1540
        %v3104 = vmax.f32 %v3103, %v1542
        %v3105 = vmax.f32 %v3104, %v1545
        %v3106 = vmax.f32 %v3105, %v1547
        %v3107 = vmax.f32 %v3106, %v1550
        %v3108 = vmax.f32 %v3107, %v1552
        %v3109 = vmax.f32 %v3108, %v1555
        %v3110 = vmax.f32 %v3109, %v1557
        %v3111 = vrot.slane %v3110, 4
        %v3112 = vmax.f32 %v3110, %v3111
        %v3113 = vrot.slane %v3112, 2
        %v3114 = vmax.f32 %v3112, %v3113
        %v3115 = vrot.slane %v3114, 1
        %v3116 = vmax.f32 %v3114, %v3115
        %v3117 = vmax.f32 %v1569, %v1571
        %v3118 = vmax.f32 %v3117, %v1574
        %v3119 = vmax.f32 %v3118, %v1576
        %v3120 = vmax.f32 %v3119, %v1579
        %v3121 = vmax.f32 %v3120, %v1581
        %v3122 = vmax.f32 %v3121, %v1584
        %v3123 = vmax.f32 %v3122, %v1586
        %v3124 = vmax.f32 %v3123, %v1589
        %v3125 = vmax.f32 %v3124, %v1591
        %v3126 = vmax.f32 %v3125, %v1594
        %v3127 = vmax.f32 %v3126, %v1596
        %v3128 = vmax.f32 %v3127, %v1599
        %v3129 = vmax.f32 %v3128, %v1601
        %v3130 = vmax.f32 %v3129, %v1604
        %v3131 = vmax.f32 %v3130, %v1606
        %v3132 = vmax.f32 %v3131, %v1609
        %v3133 = vmax.f32 %v3132, %v1611
        %v3134 = vmax.f32 %v3133, %v1614
        %v3135 = vmax.f32 %v3134, %v1616
        %v3136 = vmax.f32 %v3135, %v1619
        %v3137 = vmax.f32 %v3136, %v1621
        %v3138 = vmax.f32 %v3137, %v1624
        %v3139 = vmax.f32 %v3138, %v1626
        %v3140 = vmax.f32 %v3139, %v1629
        %v3141 = vmax.f32 %v3140, %v1631
        %v3142 = vmax.f32 %v3141, %v1634
        %v3143 = vmax.f32 %v3142, %v1636
        %v3144 = vmax.f32 %v3143, %v1639
        %v3145 = vmax.f32 %v3144, %v1641
        %v3146 = vmax.f32 %v3145, %v1644
        %v3147 = vmax.f32 %v3146, %v1646
        %v3148 = vrot.slane %v3147, 4
        %v3149 = vmax.f32 %v3147, %v3148
        %v3150 = vrot.slane %v3149, 2
        %v3151 = vmax.f32 %v3149, %v3150
        %v3152 = vrot.slane %v3151, 1
        %v3153 = vmax.f32 %v3151, %v3152
        %v3154 = vmax.f32 %v1658, %v1660
        %v3155 = vmax.f32 %v3154, %v1663
        %v3156 = vmax.f32 %v3155, %v1665
        %v3157 = vmax.f32 %v3156, %v1668
        %v3158 = vmax.f32 %v3157, %v1670
        %v3159 = vmax.f32 %v3158, %v1673
        %v3160 = vmax.f32 %v3159, %v1675
        %v3161 = vmax.f32 %v3160, %v1678
        %v3162 = vmax.f32 %v3161, %v1680
        %v3163 = vmax.f32 %v3162, %v1683
        %v3164 = vmax.f32 %v3163, %v1685
        %v3165 = vmax.f32 %v3164, %v1688
        %v3166 = vmax.f32 %v3165, %v1690
        %v3167 = vmax.f32 %v3166, %v1693
        %v3168 = vmax.f32 %v3167, %v1695
        %v3169 = vmax.f32 %v3168, %v1698
        %v3170 = vmax.f32 %v3169, %v1700
        %v3171 = vmax.f32 %v3170, %v1703
        %v3172 = vmax.f32 %v3171, %v1705
        %v3173 = vmax.f32 %v3172, %v1708
        %v3174 = vmax.f32 %v3173, %v1710
        %v3175 = vmax.f32 %v3174, %v1713
        %v3176 = vmax.f32 %v3175, %v1715
        %v3177 = vmax.f32 %v3176, %v1718
        %v3178 = vmax.f32 %v3177, %v1720
        %v3179 = vmax.f32 %v3178, %v1723
        %v3180 = vmax.f32 %v3179, %v1725
        %v3181 = vmax.f32 %v3180, %v1728
        %v3182 = vmax.f32 %v3181, %v1730
        %v3183 = vmax.f32 %v3182, %v1733
        %v3184 = vmax.f32 %v3183, %v1735
        %v3185 = vrot.slane %v3184, 4
        %v3186 = vmax.f32 %v3184, %v3185
        %v3187 = vrot.slane %v3186, 2
        %v3188 = vmax.f32 %v3186, %v3187
        %v3189 = vrot.slane %v3188, 1
        %v3190 = vmax.f32 %v3188, %v3189
        %v3191 = vmax.f32 %v1747, %v1749
        %v3192 = vmax.f32 %v3191, %v1752
        %v3193 = vmax.f32 %v3192, %v1754
        %v3194 = vmax.f32 %v3193, %v1757
        %v3195 = vmax.f32 %v3194, %v1759
        %v3196 = vmax.f32 %v3195, %v1762
        %v3197 = vmax.f32 %v3196, %v1764
        %v3198 = vmax.f32 %v3197, %v1767
        %v3199 = vmax.f32 %v3198, %v1769
        %v3200 = vmax.f32 %v3199, %v1772
        %v3201 = vmax.f32 %v3200, %v1774
        %v3202 = vmax.f32 %v3201, %v1777
        %v3203 = vmax.f32 %v3202, %v1779
        %v3204 = vmax.f32 %v3203, %v1782
        %v3205 = vmax.f32 %v3204, %v1784
        %v3206 = vmax.f32 %v3205, %v1787
        %v3207 = vmax.f32 %v3206, %v1789
        %v3208 = vmax.f32 %v3207, %v1792
        %v3209 = vmax.f32 %v3208, %v1794
        %v3210 = vmax.f32 %v3209, %v1797
        %v3211 = vmax.f32 %v3210, %v1799
        %v3212 = vmax.f32 %v3211, %v1802
        %v3213 = vmax.f32 %v3212, %v1804
        %v3214 = vmax.f32 %v3213, %v1807
        %v3215 = vmax.f32 %v3214, %v1809
        %v3216 = vmax.f32 %v3215, %v1812
        %v3217 = vmax.f32 %v3216, %v1814
        %v3218 = vmax.f32 %v3217, %v1817
        %v3219 = vmax.f32 %v3218, %v1819
        %v3220 = vmax.f32 %v3219, %v1822
        %v3221 = vmax.f32 %v3220, %v1824
        %v3222 = vrot.slane %v3221, 4
        %v3223 = vmax.f32 %v3221, %v3222
        %v3224 = vrot.slane %v3223, 2
        %v3225 = vmax.f32 %v3223, %v3224
        %v3226 = vrot.slane %v3225, 1
        %v3227 = vmax.f32 %v3225, %v3226
        %v3228 = vmax.f32 %v1836, %v1838
        %v3229 = vmax.f32 %v3228, %v1841
        %v3230 = vmax.f32 %v3229, %v1843
        %v3231 = vmax.f32 %v3230, %v1846
        %v3232 = vmax.f32 %v3231, %v1848
        %v3233 = vmax.f32 %v3232, %v1851
        %v3234 = vmax.f32 %v3233, %v1853
        %v3235 = vmax.f32 %v3234, %v1856
        %v3236 = vmax.f32 %v3235, %v1858
        %v3237 = vmax.f32 %v3236, %v1861
        %v3238 = vmax.f32 %v3237, %v1863
        %v3239 = vmax.f32 %v3238, %v1866
        %v3240 = vmax.f32 %v3239, %v1868
        %v3241 = vmax.f32 %v3240, %v1871
        %v3242 = vmax.f32 %v3241, %v1873
        %v3243 = vmax.f32 %v3242, %v1876
        %v3244 = vmax.f32 %v3243, %v1878
        %v3245 = vmax.f32 %v3244, %v1881
        %v3246 = vmax.f32 %v3245, %v1883
        %v3247 = vmax.f32 %v3246, %v1886
        %v3248 = vmax.f32 %v3247, %v1888
        %v3249 = vmax.f32 %v3248, %v1891
        %v3250 = vmax.f32 %v3249, %v1893
        %v3251 = vmax.f32 %v3250, %v1896
        %v3252 = vmax.f32 %v3251, %v1898
        %v3253 = vmax.f32 %v3252, %v1901
        %v3254 = vmax.f32 %v3253, %v1903
        %v3255 = vmax.f32 %v3254, %v1906
        %v3256 = vmax.f32 %v3255, %v1908
        %v3257 = vmax.f32 %v3256, %v1911
        %v3258 = vmax.f32 %v3257, %v1913
        %v3259 = vrot.slane %v3258, 4
        %v3260 = vmax.f32 %v3258, %v3259
        %v3261 = vrot.slane %v3260, 2
        %v3262 = vmax.f32 %v3260, %v3261
        %v3263 = vrot.slane %v3262, 1
        %v3264 = vmax.f32 %v3262, %v3263
        %v3265 = vmax.f32 %v1925, %v1927
        %v3266 = vmax.f32 %v3265, %v1930
        %v3267 = vmax.f32 %v3266, %v1932
        %v3268 = vmax.f32 %v3267, %v1935
        %v3269 = vmax.f32 %v3268, %v1937
        %v3270 = vmax.f32 %v3269, %v1940
        %v3271 = vmax.f32 %v3270, %v1942
        %v3272 = vmax.f32 %v3271, %v1945
        %v3273 = vmax.f32 %v3272, %v1947
        %v3274 = vmax.f32 %v3273, %v1950
        %v3275 = vmax.f32 %v3274, %v1952
        %v3276 = vmax.f32 %v3275, %v1955
        %v3277 = vmax.f32 %v3276, %v1957
        %v3278 = vmax.f32 %v3277, %v1960
        %v3279 = vmax.f32 %v3278, %v1962
        %v3280 = vmax.f32 %v3279, %v1965
        %v3281 = vmax.f32 %v3280, %v1967
        %v3282 = vmax.f32 %v3281, %v1970
        %v3283 = vmax.f32 %v3282, %v1972
        %v3284 = vmax.f32 %v3283, %v1975
        %v3285 = vmax.f32 %v3284, %v1977
        %v3286 = vmax.f32 %v3285, %v1980
        %v3287 = vmax.f32 %v3286, %v1982
        %v3288 = vmax.f32 %v3287, %v1985
        %v3289 = vmax.f32 %v3288, %v1987
        %v3290 = vmax.f32 %v3289, %v1990
        %v3291 = vmax.f32 %v3290, %v1992
        %v3292 = vmax.f32 %v3291, %v1995
        %v3293 = vmax.f32 %v3292, %v1997
        %v3294 = vmax.f32 %v3293, %v2000
        %v3295 = vmax.f32 %v3294, %v2002
        %v3296 = vrot.slane %v3295, 4
        %v3297 = vmax.f32 %v3295, %v3296
        %v3298 = vrot.slane %v3297, 2
        %v3299 = vmax.f32 %v3297, %v3298
        %v3300 = vrot.slane %v3299, 1
        %v3301 = vmax.f32 %v3299, %v3300
        %v3302 = vmax.f32 %v2014, %v2016
        %v3303 = vmax.f32 %v3302, %v2019
        %v3304 = vmax.f32 %v3303, %v2021
        %v3305 = vmax.f32 %v3304, %v2024
        %v3306 = vmax.f32 %v3305, %v2026
        %v3307 = vmax.f32 %v3306, %v2029
        %v3308 = vmax.f32 %v3307, %v2031
        %v3309 = vmax.f32 %v3308, %v2034
        %v3310 = vmax.f32 %v3309, %v2036
        %v3311 = vmax.f32 %v3310, %v2039
        %v3312 = vmax.f32 %v3311, %v2041
        %v3313 = vmax.f32 %v3312, %v2044
        %v3314 = vmax.f32 %v3313, %v2046
        %v3315 = vmax.f32 %v3314, %v2049
        %v3316 = vmax.f32 %v3315, %v2051
        %v3317 = vmax.f32 %v3316, %v2054
        %v3318 = vmax.f32 %v3317, %v2056
        %v3319 = vmax.f32 %v3318, %v2059
        %v3320 = vmax.f32 %v3319, %v2061
        %v3321 = vmax.f32 %v3320, %v2064
        %v3322 = vmax.f32 %v3321, %v2066
        %v3323 = vmax.f32 %v3322, %v2069
        %v3324 = vmax.f32 %v3323, %v2071
        %v3325 = vmax.f32 %v3324, %v2074
        %v3326 = vmax.f32 %v3325, %v2076
        %v3327 = vmax.f32 %v3326, %v2079
        %v3328 = vmax.f32 %v3327, %v2081
        %v3329 = vmax.f32 %v3328, %v2084
        %v3330 = vmax.f32 %v3329, %v2086
        %v3331 = vmax.f32 %v3330, %v2089
        %v3332 = vmax.f32 %v3331, %v2091
        %v3333 = vrot.slane %v3332, 4
        %v3334 = vmax.f32 %v3332, %v3333
        %v3335 = vrot.slane %v3334, 2
        %v3336 = vmax.f32 %v3334, %v3335
        %v3337 = vrot.slane %v3336, 1
        %v3338 = vmax.f32 %v3336, %v3337
        %v3339 = vmax.f32 %v2103, %v2105
        %v3340 = vmax.f32 %v3339, %v2108
        %v3341 = vmax.f32 %v3340, %v2110
        %v3342 = vmax.f32 %v3341, %v2113
        %v3343 = vmax.f32 %v3342, %v2115
        %v3344 = vmax.f32 %v3343, %v2118
        %v3345 = vmax.f32 %v3344, %v2120
        %v3346 = vmax.f32 %v3345, %v2123
        %v3347 = vmax.f32 %v3346, %v2125
        %v3348 = vmax.f32 %v3347, %v2128
        %v3349 = vmax.f32 %v3348, %v2130
        %v3350 = vmax.f32 %v3349, %v2133
        %v3351 = vmax.f32 %v3350, %v2135
        %v3352 = vmax.f32 %v3351, %v2138
        %v3353 = vmax.f32 %v3352, %v2140
        %v3354 = vmax.f32 %v3353, %v2143
        %v3355 = vmax.f32 %v3354, %v2145
        %v3356 = vmax.f32 %v3355, %v2148
        %v3357 = vmax.f32 %v3356, %v2150
        %v3358 = vmax.f32 %v3357, %v2153
        %v3359 = vmax.f32 %v3358, %v2155
        %v3360 = vmax.f32 %v3359, %v2158
        %v3361 = vmax.f32 %v3360, %v2160
        %v3362 = vmax.f32 %v3361, %v2163
        %v3363 = vmax.f32 %v3362, %v2165
        %v3364 = vmax.f32 %v3363, %v2168
        %v3365 = vmax.f32 %v3364, %v2170
        %v3366 = vmax.f32 %v3365, %v2173
        %v3367 = vmax.f32 %v3366, %v2175
        %v3368 = vmax.f32 %v3367, %v2178
        %v3369 = vmax.f32 %v3368, %v2180
        %v3370 = vrot.slane %v3369, 4
        %v3371 = vmax.f32 %v3369, %v3370
        %v3372 = vrot.slane %v3371, 2
        %v3373 = vmax.f32 %v3371, %v3372
        %v3374 = vrot.slane %v3373, 1
        %v3375 = vmax.f32 %v3373, %v3374
        %v3384 = vrot.slane %v3153, 7
        %v3385 = vrot.slane %v3190, 6
        %v3386 = vrot.slane %v3227, 5
        %v3387 = vrot.slane %v3264, 4
        %v3388 = vrot.slane %v3301, 3
        %v3389 = vrot.slane %v3338, 2
        %v3390 = vrot.slane %v3375, 1
        %v3391 = vsel %vm3038, %v3116, %v3384
        %vm3392 = vcmask 1042434
        %v3393 = vsel %vm3392, %v3385, %v3386
        %v3394 = vsel %vm3061, %v3391, %v3393
        %vm3395 = vcmask 1044484
        %v3396 = vsel %vm3395, %v3387, %v3388
        %vm3397 = vcmask 1046534
        %v3398 = vsel %vm3397, %v3389, %v3390
        %v3399 = vsel %vm3063, %v3396, %v3398
        %v3400 = vsel %vm535, %v3394, %v3399
        %v3402 = vmax.f32 %v3079, %v3400
        %3403 = vst [vmem:[%s451] sm:$0xff] %v3402
        %p3404 = scmp.lt.s32.totalorder %s31, 3
        %s3405 = scalar_select %p3404, %s31, 3
        %s3406 = smul.addr %s3405, 8
        %s3407 = smul.addr %s3406, 2
        %s3408 = scalar_lea.vmem %s9, %s3407
        %p3409 = scmp.lt.s32.totalorder %s31, 3
        %s3410 = scalar_select %p3409, %s31, 3
        %s3411 = smul.addr %s3410, 8
        %s3412 = scalar_lea.vmem %s10, %s3411
        // Predicated region
        $region81: #{stnkd_forward.6} parent=55 // pred_check
          %p3413 = pneg %p253
        $region82: #{stnkd_forward.6} parent=55 // pred_check_branch
          %3415 = sbr.rel (%p3413) target = $region84
        $region83: #{stnkd_forward.6} parent=55 // pred_region
          _
        $region84: #{stnkd_forward.6} parent=55 // pred_fallthru
          _
        // Predicated region
        $region85: #{stnkd_forward.6} parent=55 // pred_check
          %p3416 = pneg %p279
        $region86: #{stnkd_forward.6} parent=55 // pred_check_branch
          %3418 = sbr.rel (%p3416) target = $region88
        $region87: #{stnkd_forward.6} parent=55 // pred_region
          _
        $region88: #{stnkd_forward.6} parent=55 // pred_fallthru
          _
      $region56: #{stnkd_forward.6} parent=5 // pred_fallthru
        _
      %p3419 = scmp.le.s32.totalorder 2, %s22
      // Predicated region
      $region89: #{stnkd_forward.6} parent=5 // pred_check
        %p3420 = pneg %p3419
      $region90: #{stnkd_forward.6} parent=5 // pred_check_branch
        %3422 = sbr.rel (%p3420) target = $region92
      $region91: #{stnkd_forward.6} parent=5 // pred_region
        %s3423 = ssub.s32 %s22, 2
        // Predicated region
        $region93: #{stnkd_forward.6} parent=91 // pred_check
          %p3424 = pneg %p259
        $region94: #{stnkd_forward.6} parent=91 // pred_check_branch
          %3426 = sbr.rel (%p3424) target = $region96
        $region95: #{stnkd_forward.6} parent=91 // pred_region
          %p3427 = scmp.lt.s32.totalorder %s33, 3
          %s3428 = scalar_select %p3427, %s33, 3
          %s3429 = smul.addr %s3428, 8
          %s3430 = smul.addr %s3429, 2
          %s3431 = scalar_lea.vmem %s9, %s3430
        $region96: #{stnkd_forward.6} parent=91 // pred_fallthru
          _
        // Predicated region
        $region97: #{stnkd_forward.6} parent=91 // pred_check
          %p3432 = pneg %p285
        $region98: #{stnkd_forward.6} parent=91 // pred_check_branch
          %3434 = sbr.rel (%p3432) target = $region100
        $region99: #{stnkd_forward.6} parent=91 // pred_region
          %p3435 = scmp.lt.s32.totalorder %s33, 3
          %s3436 = scalar_select %p3435, %s33, 3
          %s3437 = smul.addr %s3436, 8
          %s3438 = scalar_lea.vmem %s10, %s3437
        $region100: #{stnkd_forward.6} parent=91 // pred_fallthru
          _
      $region92: #{stnkd_forward.6} parent=5 // pred_fallthru
        _
    $region6: #{stnkd_forward.6} parent=1 // loop_footer
      %s26 = sadd.s32 1, %s22
    $region7: #{stnkd_forward.6} parent=1 // loop_footer_branch
      %21 = sbr.rel target = $region3
    $region8: #{stnkd_forward.6} parent=1 // loop_exit
      _
    %3439 = vsyncpa [#allocation3], 1
    %s3440 = scalar_lea.sflag [#allocation3], 1
    %3441 = vsyncpa %s3440, 1
    %3442 = vsyncpa [#allocation5], 1
    %3443 = vsyncpa [#allocation8], 1

// kernel: stnkd_forward.7
$region0: #{stnkd_forward.7}
  #allocation0 [shape = 'u32[]', space=smem, size = 0x4, offset = 0x4, fixed_abs, tag = 'smem constant byte address 0x4 - core index']
  #allocation1 [shape = 'u32[72,128]{1,0:T(1,128)}', space=vmem, size = 0x9000, scoped, tag = 'internal scratch']
  %s0 = inlined_call_operand.vmem [shape: f32[4,1024], index: 0, kind: input, shape index: {}]
  %s1 = inlined_call_operand.vmem [shape: f32[2,1024], index: 1, kind: input, shape index: {}]
  %s2 = inlined_call_operand.vmem [shape: bf16[1024,512], index: 2, kind: input, shape index: {}]
  %s3 = inlined_call_operand.vmem [shape: f32[1,512], index: 3, kind: input, shape index: {}]
  %s4 = inlined_call_operand.vmem [shape: bf16[512,256], index: 4, kind: input, shape index: {}]
  %s5 = inlined_call_operand.vmem [shape: f32[1,256], index: 5, kind: input, shape index: {}]
  %s6 = inlined_call_operand.vmem [shape: bf16[256,128], index: 6, kind: input, shape index: {}]
  %s7 = inlined_call_operand.vmem [shape: f32[1,128], index: 7, kind: input, shape index: {}]
  %s8 = inlined_call_operand.vmem [shape: f32[4,128], index: 8, kind: output, shape index: {}]
  %s9 = sld [smem:[#allocation0]]
  $region42: #{stnkd_forward.7} parent=0
    _
  %s11 = ssub.s32 1, %s9
  %s12 = scalar_select 0, %s11, %s9
  // Predicated region
  $region2: #{stnkd_forward.7} parent=0 // pred_check
    _
  $region3: #{stnkd_forward.7} parent=0 // pred_check_branch
    %14 = sbr.rel (0) target = $region5
  $region4: #{stnkd_forward.7} parent=0 // pred_region
    _
  $region5: #{stnkd_forward.7} parent=0 // pred_fallthru
    _
  // Predicated region
  $region6: #{stnkd_forward.7} parent=0 // pred_check
    _
  $region7: #{stnkd_forward.7} parent=0 // pred_check_branch
    %16 = sbr.rel (0) target = $region9
  $region8: #{stnkd_forward.7} parent=0 // pred_region
    _
  $region9: #{stnkd_forward.7} parent=0 // pred_fallthru
    _
  // Predicated region
  $region10: #{stnkd_forward.7} parent=0 // pred_check
    _
  $region11: #{stnkd_forward.7} parent=0 // pred_check_branch
    %18 = sbr.rel (0) target = $region13
  $region12: #{stnkd_forward.7} parent=0 // pred_region
    _
  $region13: #{stnkd_forward.7} parent=0 // pred_fallthru
    _
  // Predicated region
  $region14: #{stnkd_forward.7} parent=0 // pred_check
    _
  $region15: #{stnkd_forward.7} parent=0 // pred_check_branch
    %20 = sbr.rel (0) target = $region17
  $region16: #{stnkd_forward.7} parent=0 // pred_region
    _
  $region17: #{stnkd_forward.7} parent=0 // pred_fallthru
    _
  // Predicated region
  $region18: #{stnkd_forward.7} parent=0 // pred_check
    _
  $region19: #{stnkd_forward.7} parent=0 // pred_check_branch
    %22 = sbr.rel (0) target = $region21
  $region20: #{stnkd_forward.7} parent=0 // pred_region
    _
  $region21: #{stnkd_forward.7} parent=0 // pred_fallthru
    _
  // Predicated region
  $region22: #{stnkd_forward.7} parent=0 // pred_check
    _
  $region23: #{stnkd_forward.7} parent=0 // pred_check_branch
    %24 = sbr.rel (0) target = $region25
  $region24: #{stnkd_forward.7} parent=0 // pred_region
    _
  $region25: #{stnkd_forward.7} parent=0 // pred_fallthru
    _
  // Predicated region
  $region26: #{stnkd_forward.7} parent=0 // pred_check
    _
  $region27: #{stnkd_forward.7} parent=0 // pred_check_branch
    %26 = sbr.rel (0) target = $region29
  $region28: #{stnkd_forward.7} parent=0 // pred_region
    _
  $region29: #{stnkd_forward.7} parent=0 // pred_fallthru
    _
  // Predicated region
  $region30: #{stnkd_forward.7} parent=0 // pred_check
    _
  $region31: #{stnkd_forward.7} parent=0 // pred_check_branch
    %28 = sbr.rel (0) target = $region33
  $region32: #{stnkd_forward.7} parent=0 // pred_region
    _
  $region33: #{stnkd_forward.7} parent=0 // pred_fallthru
    _
  %v29 = vld [vmem:[%s0] sm:$0xff]
  %v30 = vld [vmem:[%s0 + $0x8] sm:$0xff]
  %v31 = vld [vmem:[%s0 + $0x10] sm:$0xff]
  %v32 = vld [vmem:[%s0 + $0x18] sm:$0xff]
  %v33 = vld [vmem:[%s1] sm:$0xff]
  %v34 = vld [vmem:[%s1 + $0x8] sm:$0xff]
  %v35 = vmul.f32 %v33, 0.00048828125
  %v36 = vmul.f32 %v34, 0.00048828125
  %v37 = vmul.f32 %v35, %v35
  %v38 = vmul.f32 %v36, %v36
  %v41 = vrot.slane %v37, 7
  %v42 = vrot.slane %v38, 7
  %v45 = vsub.f32 %v35, %v41
  %v46 = vsub.f32 %v36, %v42
  %v47 = vmax.f32 %v45, 0.0
  %v48 = vmax.f32 %v46, 0.0
  %v51 = vperm.slane %v35, 0
  %v52 = vperm.slane %v35, 2
  %v53 = vperm.slane %v35, 4
  %v54 = vperm.slane %v35, 6
  %v55 = vperm.slane %v36, 0
  %v56 = vperm.slane %v36, 2
  %v57 = vperm.slane %v36, 4
  %v58 = vperm.slane %v36, 6
  %v67 = vperm.slane %v51, 0
  %v68 = vperm.slane %v52, 0
  %v69 = vperm.slane %v53, 0
  %v70 = vperm.slane %v54, 0
  %v71 = vperm.slane %v55, 0
  %v72 = vperm.slane %v56, 0
  %v73 = vperm.slane %v57, 0
  %v74 = vperm.slane %v58, 0
  %v83 = vrot.slane %v68, 4
  %v84 = vrot.slane %v70, 4
  %v85 = vrot.slane %v72, 4
  %v86 = vrot.slane %v74, 4
  %vm87 = vcmask 1043456
  %v88 = vsel %vm87, %v67, %v83
  %v89 = vsel %vm87, %v69, %v84
  %v90 = vsel %vm87, %v71, %v85
  %v91 = vsel %vm87, %v73, %v86
  %v96 = vsub.f32 %v29, %v88
  %v97 = vsub.f32 %v30, %v89
  %v98 = vsub.f32 %v31, %v90
  %v99 = vsub.f32 %v32, %v91
  %v100 = vmax.f32 %v96, 0.0
  %v101 = vmax.f32 %v97, 0.0
  %v102 = vmax.f32 %v98, 0.0
  %v103 = vmax.f32 %v99, 0.0
  %v104 = vadd.f32 %v47, 1e-05
  %v105 = vadd.f32 %v48, 1e-05
  %v106 = vrsqrt.pop %v104
  %v107 = vmul.f32 %v106, %v104
  %v108 = vmul.f32 %v107, %v106
  %v109 = vmul.f32 0.5, %v108
  %v110 = vsub.f32 1.5, %v109
  %v111 = vmul.f32 %v106, %v110
  %vm112 = vweird.f32 %v104
  %vm113 = vweird.f32 %v106
  %vm114 = vmor %vm112, %vm113
  %v115 = vsel %vm114, %v106, %v111
  %v116 = vrsqrt.pop %v105
  %v117 = vmul.f32 %v116, %v105
  %v118 = vmul.f32 %v117, %v116
  %v119 = vmul.f32 0.5, %v118
  %v120 = vsub.f32 1.5, %v119
  %v121 = vmul.f32 %v116, %v120
  %vm122 = vweird.f32 %v105
  %vm123 = vweird.f32 %v116
  %vm124 = vmor %vm122, %vm123
  %v125 = vsel %vm124, %v116, %v121
  %v128 = vperm.slane %v115, 1
  %v129 = vperm.slane %v115, 3
  %v130 = vperm.slane %v115, 5
  %v131 = vperm.slane %v115, 7
  %v132 = vperm.slane %v125, 1
  %v133 = vperm.slane %v125, 3
  %v134 = vperm.slane %v125, 5
  %v135 = vperm.slane %v125, 7
  %v144 = vperm.slane %v128, 1
  %v145 = vperm.slane %v129, 1
  %v146 = vperm.slane %v130, 1
  %v147 = vperm.slane %v131, 1
  %v148 = vperm.slane %v132, 1
  %v149 = vperm.slane %v133, 1
  %v150 = vperm.slane %v134, 1
  %v151 = vperm.slane %v135, 1
  %v160 = vrot.slane %v145, 4
  %v161 = vrot.slane %v147, 4
  %v162 = vrot.slane %v149, 4
  %v163 = vrot.slane %v151, 4
  %v164 = vsel %vm87, %v144, %v160
  %v165 = vsel %vm87, %v146, %v161
  %v166 = vsel %vm87, %v148, %v162
  %v167 = vsel %vm87, %v150, %v163
  %v172 = vmul.f32 %v100, %v164
  %v173 = vmul.f32 %v101, %v165
  %v174 = vmul.f32 %v102, %v166
  %v175 = vmul.f32 %v103, %v167
  %180 = vst [vmem:[#allocation1] ss:$2 sm:$0xff] %v172
  %s181 = scalar_lea.vmem [#allocation1], 16
  %182 = vst [vmem:[%s181] ss:$2 sm:$0xff] %v173
  %s183 = scalar_lea.vmem [#allocation1], 32
  %184 = vst [vmem:[%s183] ss:$2 sm:$0xff] %v174
  %s185 = scalar_lea.vmem [#allocation1], 48
  %186 = vst [vmem:[%s185] ss:$2 sm:$0xff] %v175
  %v187 = vld.sshfl [vmem:[#allocation1] sm:$0xff pattern:$0x75316420]
  %v188 = vld.sshfl [vmem:[#allocation1 + $0x8] sm:$0xff pattern:$0x75316420]
  %v189 = vld.sshfl [vmem:[#allocation1 + $0x10] sm:$0xff pattern:$0x75316420]
  %v190 = vld.sshfl [vmem:[#allocation1 + $0x18] sm:$0xff pattern:$0x75316420]
  %v191 = vld.sshfl [vmem:[#allocation1 + $0x20] sm:$0xff pattern:$0x75316420]
  %v192 = vld.sshfl [vmem:[#allocation1 + $0x28] sm:$0xff pattern:$0x75316420]
  %v193 = vld.sshfl [vmem:[#allocation1 + $0x30] sm:$0xff pattern:$0x75316420]
  %v194 = vld.sshfl [vmem:[#allocation1 + $0x38] sm:$0xff pattern:$0x75316420]
  %v203 = vpack.c.bf16 %v187, %v187
  %v204 = vpack.c.bf16 %v188, %v188
  %v205 = vpack.c.bf16 %v189, %v189
  %v206 = vpack.c.bf16 %v190, %v190
  %v207 = vpack.c.bf16 %v191, %v191
  %v208 = vpack.c.bf16 %v192, %v192
  %v209 = vpack.c.bf16 %v193, %v193
  %v210 = vpack.c.bf16 %v194, %v194
  %v211 = vld [vmem:[%s2] sm:$0xff]
  %v212 = vld [vmem:[%s2 + $0x8] sm:$0xff]
  %v213 = vld [vmem:[%s2 + $0x10] sm:$0xff]
  %v214 = vld [vmem:[%s2 + $0x18] sm:$0xff]
  %v215 = vld [vmem:[%s2 + $0x20] sm:$0xff]
  %v216 = vld [vmem:[%s2 + $0x28] sm:$0xff]
  %v217 = vld [vmem:[%s2 + $0x30] sm:$0xff]
  %v218 = vld [vmem:[%s2 + $0x38] sm:$0xff]
  %v219 = vld [vmem:[%s2 + $0x40] sm:$0xff]
  %v220 = vld [vmem:[%s2 + $0x48] sm:$0xff]
  %v221 = vld [vmem:[%s2 + $0x50] sm:$0xff]
  %v222 = vld [vmem:[%s2 + $0x58] sm:$0xff]
  %v223 = vld [vmem:[%s2 + $0x60] sm:$0xff]
  %v224 = vld [vmem:[%s2 + $0x68] sm:$0xff]
  %v225 = vld [vmem:[%s2 + $0x70] sm:$0xff]
  %v226 = vld [vmem:[%s2 + $0x78] sm:$0xff]
  %v227 = vld [vmem:[%s2 + $0x80] sm:$0xff]
  %v228 = vld [vmem:[%s2 + $0x88] sm:$0xff]
  %v229 = vld [vmem:[%s2 + $0x90] sm:$0xff]
  %v230 = vld [vmem:[%s2 + $0x98] sm:$0xff]
  %v231 = vld [vmem:[%s2 + $0xa0] sm:$0xff]
  %v232 = vld [vmem:[%s2 + $0xa8] sm:$0xff]
  %v233 = vld [vmem:[%s2 + $0xb0] sm:$0xff]
  %v234 = vld [vmem:[%s2 + $0xb8] sm:$0xff]
  %v235 = vld [vmem:[%s2 + $0xc0] sm:$0xff]
  %v236 = vld [vmem:[%s2 + $0xc8] sm:$0xff]
  %v237 = vld [vmem:[%s2 + $0xd0] sm:$0xff]
  %v238 = vld [vmem:[%s2 + $0xd8] sm:$0xff]
  %v239 = vld [vmem:[%s2 + $0xe0] sm:$0xff]
  %v240 = vld [vmem:[%s2 + $0xe8] sm:$0xff]
  %v241 = vld [vmem:[%s2 + $0xf0] sm:$0xff]
  %v242 = vld [vmem:[%s2 + $0xf8] sm:$0xff]
  %v243 = vld [vmem:[%s2 + $0x100] sm:$0xff]
  %v244 = vld [vmem:[%s2 + $0x108] sm:$0xff]
  %v245 = vld [vmem:[%s2 + $0x110] sm:$0xff]
  %v246 = vld [vmem:[%s2 + $0x118] sm:$0xff]
  %v247 = vld [vmem:[%s2 + $0x120] sm:$0xff]
  %v248 = vld [vmem:[%s2 + $0x128] sm:$0xff]
  %v249 = vld [vmem:[%s2 + $0x130] sm:$0xff]
  %v250 = vld [vmem:[%s2 + $0x138] sm:$0xff]
  %v251 = vld [vmem:[%s2 + $0x140] sm:$0xff]
  %v252 = vld [vmem:[%s2 + $0x148] sm:$0xff]
  %v253 = vld [vmem:[%s2 + $0x150] sm:$0xff]
  %v254 = vld [vmem:[%s2 + $0x158] sm:$0xff]
  %v255 = vld [vmem:[%s2 + $0x160] sm:$0xff]
  %v256 = vld [vmem:[%s2 + $0x168] sm:$0xff]
  %v257 = vld [vmem:[%s2 + $0x170] sm:$0xff]
  %v258 = vld [vmem:[%s2 + $0x178] sm:$0xff]
  %v259 = vld [vmem:[%s2 + $0x180] sm:$0xff]
  %v260 = vld [vmem:[%s2 + $0x188] sm:$0xff]
  %v261 = vld [vmem:[%s2 + $0x190] sm:$0xff]
  %v262 = vld [vmem:[%s2 + $0x198] sm:$0xff]
  %v263 = vld [vmem:[%s2 + $0x1a0] sm:$0xff]
  %v264 = vld [vmem:[%s2 + $0x1a8] sm:$0xff]
  %v265 = vld [vmem:[%s2 + $0x1b0] sm:$0xff]
  %v266 = vld [vmem:[%s2 + $0x1b8] sm:$0xff]
  %v267 = vld [vmem:[%s2 + $0x1c0] sm:$0xff]
  %v268 = vld [vmem:[%s2 + $0x1c8] sm:$0xff]
  %v269 = vld [vmem:[%s2 + $0x1d0] sm:$0xff]
  %v270 = vld [vmem:[%s2 + $0x1d8] sm:$0xff]
  %v271 = vld [vmem:[%s2 + $0x1e0] sm:$0xff]
  %v272 = vld [vmem:[%s2 + $0x1e8] sm:$0xff]
  %v273 = vld [vmem:[%s2 + $0x1f0] sm:$0xff]
  %v274 = vld [vmem:[%s2 + $0x1f8] sm:$0xff]
  %v275 = vld [vmem:[%s2 + $0x200] sm:$0xff]
  %v276 = vld [vmem:[%s2 + $0x208] sm:$0xff]
  %v277 = vld [vmem:[%s2 + $0x210] sm:$0xff]
  %v278 = vld [vmem:[%s2 + $0x218] sm:$0xff]
  %v279 = vld [vmem:[%s2 + $0x220] sm:$0xff]
  %v280 = vld [vmem:[%s2 + $0x228] sm:$0xff]
  %v281 = vld [vmem:[%s2 + $0x230] sm:$0xff]
  %v282 = vld [vmem:[%s2 + $0x238] sm:$0xff]
  %v283 = vld [vmem:[%s2 + $0x240] sm:$0xff]
  %v284 = vld [vmem:[%s2 + $0x248] sm:$0xff]
  %v285 = vld [vmem:[%s2 + $0x250] sm:$0xff]
  %v286 = vld [vmem:[%s2 + $0x258] sm:$0xff]
  %v287 = vld [vmem:[%s2 + $0x260] sm:$0xff]
  %v288 = vld [vmem:[%s2 + $0x268] sm:$0xff]
  %v289 = vld [vmem:[%s2 + $0x270] sm:$0xff]
  %v290 = vld [vmem:[%s2 + $0x278] sm:$0xff]
  %v291 = vld [vmem:[%s2 + $0x280] sm:$0xff]
  %v292 = vld [vmem:[%s2 + $0x288] sm:$0xff]
  %v293 = vld [vmem:[%s2 + $0x290] sm:$0xff]
  %v294 = vld [vmem:[%s2 + $0x298] sm:$0xff]
  %v295 = vld [vmem:[%s2 + $0x2a0] sm:$0xff]
  %v296 = vld [vmem:[%s2 + $0x2a8] sm:$0xff]
  %v297 = vld [vmem:[%s2 + $0x2b0] sm:$0xff]
  %v298 = vld [vmem:[%s2 + $0x2b8] sm:$0xff]
  %v299 = vld [vmem:[%s2 + $0x2c0] sm:$0xff]
  %v300 = vld [vmem:[%s2 + $0x2c8] sm:$0xff]
  %v301 = vld [vmem:[%s2 + $0x2d0] sm:$0xff]
  %v302 = vld [vmem:[%s2 + $0x2d8] sm:$0xff]
  %v303 = vld [vmem:[%s2 + $0x2e0] sm:$0xff]
  %v304 = vld [vmem:[%s2 + $0x2e8] sm:$0xff]
  %v305 = vld [vmem:[%s2 + $0x2f0] sm:$0xff]
  %v306 = vld [vmem:[%s2 + $0x2f8] sm:$0xff]
  %v307 = vld [vmem:[%s2 + $0x300] sm:$0xff]
  %v308 = vld [vmem:[%s2 + $0x308] sm:$0xff]
  %v309 = vld [vmem:[%s2 + $0x310] sm:$0xff]
  %v310 = vld [vmem:[%s2 + $0x318] sm:$0xff]
  %v311 = vld [vmem:[%s2 + $0x320] sm:$0xff]
  %v312 = vld [vmem:[%s2 + $0x328] sm:$0xff]
  %v313 = vld [vmem:[%s2 + $0x330] sm:$0xff]
  %v314 = vld [vmem:[%s2 + $0x338] sm:$0xff]
  %v315 = vld [vmem:[%s2 + $0x340] sm:$0xff]
  %v316 = vld [vmem:[%s2 + $0x348] sm:$0xff]
  %v317 = vld [vmem:[%s2 + $0x350] sm:$0xff]
  %v318 = vld [vmem:[%s2 + $0x358] sm:$0xff]
  %v319 = vld [vmem:[%s2 + $0x360] sm:$0xff]
  %v320 = vld [vmem:[%s2 + $0x368] sm:$0xff]
  %v321 = vld [vmem:[%s2 + $0x370] sm:$0xff]
  %v322 = vld [vmem:[%s2 + $0x378] sm:$0xff]
  %v323 = vld [vmem:[%s2 + $0x380] sm:$0xff]
  %v324 = vld [vmem:[%s2 + $0x388] sm:$0xff]
  %v325 = vld [vmem:[%s2 + $0x390] sm:$0xff]
  %v326 = vld [vmem:[%s2 + $0x398] sm:$0xff]
  %v327 = vld [vmem:[%s2 + $0x3a0] sm:$0xff]
  %v328 = vld [vmem:[%s2 + $0x3a8] sm:$0xff]
  %v329 = vld [vmem:[%s2 + $0x3b0] sm:$0xff]
  %v330 = vld [vmem:[%s2 + $0x3b8] sm:$0xff]
  %v331 = vld [vmem:[%s2 + $0x3c0] sm:$0xff]
  %v332 = vld [vmem:[%s2 + $0x3c8] sm:$0xff]
  %v333 = vld [vmem:[%s2 + $0x3d0] sm:$0xff]
  %v334 = vld [vmem:[%s2 + $0x3d8] sm:$0xff]
  %v335 = vld [vmem:[%s2 + $0x3e0] sm:$0xff]
  %v336 = vld [vmem:[%s2 + $0x3e8] sm:$0xff]
  %v337 = vld [vmem:[%s2 + $0x3f0] sm:$0xff]
  %v338 = vld [vmem:[%s2 + $0x3f8] sm:$0xff]
  %v339 = vld [vmem:[%s2 + $0x400] sm:$0xff]
  %v340 = vld [vmem:[%s2 + $0x408] sm:$0xff]
  %v341 = vld [vmem:[%s2 + $0x410] sm:$0xff]
  %v342 = vld [vmem:[%s2 + $0x418] sm:$0xff]
  %v343 = vld [vmem:[%s2 + $0x420] sm:$0xff]
  %v344 = vld [vmem:[%s2 + $0x428] sm:$0xff]
  %v345 = vld [vmem:[%s2 + $0x430] sm:$0xff]
  %v346 = vld [vmem:[%s2 + $0x438] sm:$0xff]
  %v347 = vld [vmem:[%s2 + $0x440] sm:$0xff]
  %v348 = vld [vmem:[%s2 + $0x448] sm:$0xff]
  %v349 = vld [vmem:[%s2 + $0x450] sm:$0xff]
  %v350 = vld [vmem:[%s2 + $0x458] sm:$0xff]
  %v351 = vld [vmem:[%s2 + $0x460] sm:$0xff]
  %v352 = vld [vmem:[%s2 + $0x468] sm:$0xff]
  %v353 = vld [vmem:[%s2 + $0x470] sm:$0xff]
  %v354 = vld [vmem:[%s2 + $0x478] sm:$0xff]
  %v355 = vld [vmem:[%s2 + $0x480] sm:$0xff]
  %v356 = vld [vmem:[%s2 + $0x488] sm:$0xff]
  %v357 = vld [vmem:[%s2 + $0x490] sm:$0xff]
  %v358 = vld [vmem:[%s2 + $0x498] sm:$0xff]
  %v359 = vld [vmem:[%s2 + $0x4a0] sm:$0xff]
  %v360 = vld [vmem:[%s2 + $0x4a8] sm:$0xff]
  %v361 = vld [vmem:[%s2 + $0x4b0] sm:$0xff]
  %v362 = vld [vmem:[%s2 + $0x4b8] sm:$0xff]
  %v363 = vld [vmem:[%s2 + $0x4c0] sm:$0xff]
  %v364 = vld [vmem:[%s2 + $0x4c8] sm:$0xff]
  %v365 = vld [vmem:[%s2 + $0x4d0] sm:$0xff]
  %v366 = vld [vmem:[%s2 + $0x4d8] sm:$0xff]
  %v367 = vld [vmem:[%s2 + $0x4e0] sm:$0xff]
  %v368 = vld [vmem:[%s2 + $0x4e8] sm:$0xff]
  %v369 = vld [vmem:[%s2 + $0x4f0] sm:$0xff]
  %v370 = vld [vmem:[%s2 + $0x4f8] sm:$0xff]
  %v371 = vld [vmem:[%s2 + $0x500] sm:$0xff]
  %v372 = vld [vmem:[%s2 + $0x508] sm:$0xff]
  %v373 = vld [vmem:[%s2 + $0x510] sm:$0xff]
  %v374 = vld [vmem:[%s2 + $0x518] sm:$0xff]
  %v375 = vld [vmem:[%s2 + $0x520] sm:$0xff]
  %v376 = vld [vmem:[%s2 + $0x528] sm:$0xff]
  %v377 = vld [vmem:[%s2 + $0x530] sm:$0xff]
  %v378 = vld [vmem:[%s2 + $0x538] sm:$0xff]
  %v379 = vld [vmem:[%s2 + $0x540] sm:$0xff]
  %v380 = vld [vmem:[%s2 + $0x548] sm:$0xff]
  %v381 = vld [vmem:[%s2 + $0x550] sm:$0xff]
  %v382 = vld [vmem:[%s2 + $0x558] sm:$0xff]
  %v383 = vld [vmem:[%s2 + $0x560] sm:$0xff]
  %v384 = vld [vmem:[%s2 + $0x568] sm:$0xff]
  %v385 = vld [vmem:[%s2 + $0x570] sm:$0xff]
  %v386 = vld [vmem:[%s2 + $0x578] sm:$0xff]
  %v387 = vld [vmem:[%s2 + $0x580] sm:$0xff]
  %v388 = vld [vmem:[%s2 + $0x588] sm:$0xff]
  %v389 = vld [vmem:[%s2 + $0x590] sm:$0xff]
  %v390 = vld [vmem:[%s2 + $0x598] sm:$0xff]
  %v391 = vld [vmem:[%s2 + $0x5a0] sm:$0xff]
  %v392 = vld [vmem:[%s2 + $0x5a8] sm:$0xff]
  %v393 = vld [vmem:[%s2 + $0x5b0] sm:$0xff]
  %v394 = vld [vmem:[%s2 + $0x5b8] sm:$0xff]
  %v395 = vld [vmem:[%s2 + $0x5c0] sm:$0xff]
  %v396 = vld [vmem:[%s2 + $0x5c8] sm:$0xff]
  %v397 = vld [vmem:[%s2 + $0x5d0] sm:$0xff]
  %v398 = vld [vmem:[%s2 + $0x5d8] sm:$0xff]
  %v399 = vld [vmem:[%s2 + $0x5e0] sm:$0xff]
  %v400 = vld [vmem:[%s2 + $0x5e8] sm:$0xff]
  %v401 = vld [vmem:[%s2 + $0x5f0] sm:$0xff]
  %v402 = vld [vmem:[%s2 + $0x5f8] sm:$0xff]
  %v403 = vld [vmem:[%s2 + $0x600] sm:$0xff]
  %v404 = vld [vmem:[%s2 + $0x608] sm:$0xff]
  %v405 = vld [vmem:[%s2 + $0x610] sm:$0xff]
  %v406 = vld [vmem:[%s2 + $0x618] sm:$0xff]
  %v407 = vld [vmem:[%s2 + $0x620] sm:$0xff]
  %v408 = vld [vmem:[%s2 + $0x628] sm:$0xff]
  %v409 = vld [vmem:[%s2 + $0x630] sm:$0xff]
  %v410 = vld [vmem:[%s2 + $0x638] sm:$0xff]
  %v411 = vld [vmem:[%s2 + $0x640] sm:$0xff]
  %v412 = vld [vmem:[%s2 + $0x648] sm:$0xff]
  %v413 = vld [vmem:[%s2 + $0x650] sm:$0xff]
  %v414 = vld [vmem:[%s2 + $0x658] sm:$0xff]
  %v415 = vld [vmem:[%s2 + $0x660] sm:$0xff]
  %v416 = vld [vmem:[%s2 + $0x668] sm:$0xff]
  %v417 = vld [vmem:[%s2 + $0x670] sm:$0xff]
  %v418 = vld [vmem:[%s2 + $0x678] sm:$0xff]
  %v419 = vld [vmem:[%s2 + $0x680] sm:$0xff]
  %v420 = vld [vmem:[%s2 + $0x688] sm:$0xff]
  %v421 = vld [vmem:[%s2 + $0x690] sm:$0xff]
  %v422 = vld [vmem:[%s2 + $0x698] sm:$0xff]
  %v423 = vld [vmem:[%s2 + $0x6a0] sm:$0xff]
  %v424 = vld [vmem:[%s2 + $0x6a8] sm:$0xff]
  %v425 = vld [vmem:[%s2 + $0x6b0] sm:$0xff]
  %v426 = vld [vmem:[%s2 + $0x6b8] sm:$0xff]
  %v427 = vld [vmem:[%s2 + $0x6c0] sm:$0xff]
  %v428 = vld [vmem:[%s2 + $0x6c8] sm:$0xff]
  %v429 = vld [vmem:[%s2 + $0x6d0] sm:$0xff]
  %v430 = vld [vmem:[%s2 + $0x6d8] sm:$0xff]
  %v431 = vld [vmem:[%s2 + $0x6e0] sm:$0xff]
  %v432 = vld [vmem:[%s2 + $0x6e8] sm:$0xff]
  %v433 = vld [vmem:[%s2 + $0x6f0] sm:$0xff]
  %v434 = vld [vmem:[%s2 + $0x6f8] sm:$0xff]
  %v435 = vld [vmem:[%s2 + $0x700] sm:$0xff]
  %v436 = vld [vmem:[%s2 + $0x708] sm:$0xff]
  %v437 = vld [vmem:[%s2 + $0x710] sm:$0xff]
  %v438 = vld [vmem:[%s2 + $0x718] sm:$0xff]
  %v439 = vld [vmem:[%s2 + $0x720] sm:$0xff]
  %v440 = vld [vmem:[%s2 + $0x728] sm:$0xff]
  %v441 = vld [vmem:[%s2 + $0x730] sm:$0xff]
  %v442 = vld [vmem:[%s2 + $0x738] sm:$0xff]
  %v443 = vld [vmem:[%s2 + $0x740] sm:$0xff]
  %v444 = vld [vmem:[%s2 + $0x748] sm:$0xff]
  %v445 = vld [vmem:[%s2 + $0x750] sm:$0xff]
  %v446 = vld [vmem:[%s2 + $0x758] sm:$0xff]
  %v447 = vld [vmem:[%s2 + $0x760] sm:$0xff]
  %v448 = vld [vmem:[%s2 + $0x768] sm:$0xff]
  %v449 = vld [vmem:[%s2 + $0x770] sm:$0xff]
  %v450 = vld [vmem:[%s2 + $0x778] sm:$0xff]
  %v451 = vld [vmem:[%s2 + $0x780] sm:$0xff]
  %v452 = vld [vmem:[%s2 + $0x788] sm:$0xff]
  %v453 = vld [vmem:[%s2 + $0x790] sm:$0xff]
  %v454 = vld [vmem:[%s2 + $0x798] sm:$0xff]
  %v455 = vld [vmem:[%s2 + $0x7a0] sm:$0xff]
  %v456 = vld [vmem:[%s2 + $0x7a8] sm:$0xff]
  %v457 = vld [vmem:[%s2 + $0x7b0] sm:$0xff]
  %v458 = vld [vmem:[%s2 + $0x7b8] sm:$0xff]
  %v459 = vld [vmem:[%s2 + $0x7c0] sm:$0xff]
  %v460 = vld [vmem:[%s2 + $0x7c8] sm:$0xff]
  %v461 = vld [vmem:[%s2 + $0x7d0] sm:$0xff]
  %v462 = vld [vmem:[%s2 + $0x7d8] sm:$0xff]
  %v463 = vld [vmem:[%s2 + $0x7e0] sm:$0xff]
  %v464 = vld [vmem:[%s2 + $0x7e8] sm:$0xff]
  %v465 = vld [vmem:[%s2 + $0x7f0] sm:$0xff]
  %v466 = vld [vmem:[%s2 + $0x7f8] sm:$0xff]
  %v467 = vld [vmem:[%s3] sm:$0xf]
  %v469 = vperm.slane %v467, 0
  %v470 = vperm.slane %v467, 1
  %v471 = vperm.slane %v467, 2
  %v472 = vperm.slane %v467, 3
  %v733 = vunpack.c.l.b16 %v211
  %v734 = vunpack.c.h.b16 %v211
  %v735 = vunpack.c.l.b16 %v212
  %v736 = vunpack.c.h.b16 %v212
  %v737 = vunpack.c.l.b16 %v213
  %v738 = vunpack.c.h.b16 %v213
  %v739 = vunpack.c.l.b16 %v214
  %v740 = vunpack.c.h.b16 %v214
  %v741 = vunpack.c.l.b16 %v215
  %v742 = vunpack.c.h.b16 %v215
  %v743 = vunpack.c.l.b16 %v216
  %v744 = vunpack.c.h.b16 %v216
  %v745 = vunpack.c.l.b16 %v217
  %v746 = vunpack.c.h.b16 %v217
  %v747 = vunpack.c.l.b16 %v218
  %v748 = vunpack.c.h.b16 %v218
  %v749 = vunpack.c.l.b16 %v219
  %v750 = vunpack.c.h.b16 %v219
  %v751 = vunpack.c.l.b16 %v220
  %v752 = vunpack.c.h.b16 %v220
  %v753 = vunpack.c.l.b16 %v221
  %v754 = vunpack.c.h.b16 %v221
  %v755 = vunpack.c.l.b16 %v222
  %v756 = vunpack.c.h.b16 %v222
  %v757 = vunpack.c.l.b16 %v223
  %v758 = vunpack.c.h.b16 %v223
  %v759 = vunpack.c.l.b16 %v224
  %v760 = vunpack.c.h.b16 %v224
  %v761 = vunpack.c.l.b16 %v225
  %v762 = vunpack.c.h.b16 %v225
  %v763 = vunpack.c.l.b16 %v226
  %v764 = vunpack.c.h.b16 %v226
  %v765 = vunpack.c.l.b16 %v227
  %v766 = vunpack.c.h.b16 %v227
  %v767 = vunpack.c.l.b16 %v228
  %v768 = vunpack.c.h.b16 %v228
  %v769 = vunpack.c.l.b16 %v229
  %v770 = vunpack.c.h.b16 %v229
  %v771 = vunpack.c.l.b16 %v230
  %v772 = vunpack.c.h.b16 %v230
  %v773 = vunpack.c.l.b16 %v231
  %v774 = vunpack.c.h.b16 %v231
  %v775 = vunpack.c.l.b16 %v232
  %v776 = vunpack.c.h.b16 %v232
  %v777 = vunpack.c.l.b16 %v233
  %v778 = vunpack.c.h.b16 %v233
  %v779 = vunpack.c.l.b16 %v234
  %v780 = vunpack.c.h.b16 %v234
  %v781 = vunpack.c.l.b16 %v235
  %v782 = vunpack.c.h.b16 %v235
  %v783 = vunpack.c.l.b16 %v236
  %v784 = vunpack.c.h.b16 %v236
  %v785 = vunpack.c.l.b16 %v237
  %v786 = vunpack.c.h.b16 %v237
  %v787 = vunpack.c.l.b16 %v238
  %v788 = vunpack.c.h.b16 %v238
  %v789 = vunpack.c.l.b16 %v239
  %v790 = vunpack.c.h.b16 %v239
  %v791 = vunpack.c.l.b16 %v240
  %v792 = vunpack.c.h.b16 %v240
  %v793 = vunpack.c.l.b16 %v241
  %v794 = vunpack.c.h.b16 %v241
  %v795 = vunpack.c.l.b16 %v242
  %v796 = vunpack.c.h.b16 %v242
  %v797 = vunpack.c.l.b16 %v243
  %v798 = vunpack.c.h.b16 %v243
  %v799 = vunpack.c.l.b16 %v244
  %v800 = vunpack.c.h.b16 %v244
  %v801 = vunpack.c.l.b16 %v245
  %v802 = vunpack.c.h.b16 %v245
  %v803 = vunpack.c.l.b16 %v246
  %v804 = vunpack.c.h.b16 %v246
  %v805 = vunpack.c.l.b16 %v247
  %v806 = vunpack.c.h.b16 %v247
  %v807 = vunpack.c.l.b16 %v248
  %v808 = vunpack.c.h.b16 %v248
  %v809 = vunpack.c.l.b16 %v249
  %v810 = vunpack.c.h.b16 %v249
  %v811 = vunpack.c.l.b16 %v250
  %v812 = vunpack.c.h.b16 %v250
  %v813 = vunpack.c.l.b16 %v251
  %v814 = vunpack.c.h.b16 %v251
  %v815 = vunpack.c.l.b16 %v252
  %v816 = vunpack.c.h.b16 %v252
  %v817 = vunpack.c.l.b16 %v253
  %v818 = vunpack.c.h.b16 %v253
  %v819 = vunpack.c.l.b16 %v254
  %v820 = vunpack.c.h.b16 %v254
  %v821 = vunpack.c.l.b16 %v255
  %v822 = vunpack.c.h.b16 %v255
  %v823 = vunpack.c.l.b16 %v256
  %v824 = vunpack.c.h.b16 %v256
  %v825 = vunpack.c.l.b16 %v257
  %v826 = vunpack.c.h.b16 %v257
  %v827 = vunpack.c.l.b16 %v258
  %v828 = vunpack.c.h.b16 %v258
  %v829 = vunpack.c.l.b16 %v259
  %v830 = vunpack.c.h.b16 %v259
  %v831 = vunpack.c.l.b16 %v260
  %v832 = vunpack.c.h.b16 %v260
  %v833 = vunpack.c.l.b16 %v261
  %v834 = vunpack.c.h.b16 %v261
  %v835 = vunpack.c.l.b16 %v262
  %v836 = vunpack.c.h.b16 %v262
  %v837 = vunpack.c.l.b16 %v263
  %v838 = vunpack.c.h.b16 %v263
  %v839 = vunpack.c.l.b16 %v264
  %v840 = vunpack.c.h.b16 %v264
  %v841 = vunpack.c.l.b16 %v265
  %v842 = vunpack.c.h.b16 %v265
  %v843 = vunpack.c.l.b16 %v266
  %v844 = vunpack.c.h.b16 %v266
  %v845 = vunpack.c.l.b16 %v267
  %v846 = vunpack.c.h.b16 %v267
  %v847 = vunpack.c.l.b16 %v268
  %v848 = vunpack.c.h.b16 %v268
  %v849 = vunpack.c.l.b16 %v269
  %v850 = vunpack.c.h.b16 %v269
  %v851 = vunpack.c.l.b16 %v270
  %v852 = vunpack.c.h.b16 %v270
  %v853 = vunpack.c.l.b16 %v271
  %v854 = vunpack.c.h.b16 %v271
  %v855 = vunpack.c.l.b16 %v272
  %v856 = vunpack.c.h.b16 %v272
  %v857 = vunpack.c.l.b16 %v273
  %v858 = vunpack.c.h.b16 %v273
  %v859 = vunpack.c.l.b16 %v274
  %v860 = vunpack.c.h.b16 %v274
  %v861 = vunpack.c.l.b16 %v275
  %v862 = vunpack.c.h.b16 %v275
  %v863 = vunpack.c.l.b16 %v276
  %v864 = vunpack.c.h.b16 %v276
  %v865 = vunpack.c.l.b16 %v277
  %v866 = vunpack.c.h.b16 %v277
  %v867 = vunpack.c.l.b16 %v278
  %v868 = vunpack.c.h.b16 %v278
  %v869 = vunpack.c.l.b16 %v279
  %v870 = vunpack.c.h.b16 %v279
  %v871 = vunpack.c.l.b16 %v280
  %v872 = vunpack.c.h.b16 %v280
  %v873 = vunpack.c.l.b16 %v281
  %v874 = vunpack.c.h.b16 %v281
  %v875 = vunpack.c.l.b16 %v282
  %v876 = vunpack.c.h.b16 %v282
  %v877 = vunpack.c.l.b16 %v283
  %v878 = vunpack.c.h.b16 %v283
  %v879 = vunpack.c.l.b16 %v284
  %v880 = vunpack.c.h.b16 %v284
  %v881 = vunpack.c.l.b16 %v285
  %v882 = vunpack.c.h.b16 %v285
  %v883 = vunpack.c.l.b16 %v286
  %v884 = vunpack.c.h.b16 %v286
  %v885 = vunpack.c.l.b16 %v287
  %v886 = vunpack.c.h.b16 %v287
  %v887 = vunpack.c.l.b16 %v288
  %v888 = vunpack.c.h.b16 %v288
  %v889 = vunpack.c.l.b16 %v289
  %v890 = vunpack.c.h.b16 %v289
  %v891 = vunpack.c.l.b16 %v290
  %v892 = vunpack.c.h.b16 %v290
  %v893 = vunpack.c.l.b16 %v291
  %v894 = vunpack.c.h.b16 %v291
  %v895 = vunpack.c.l.b16 %v292
  %v896 = vunpack.c.h.b16 %v292
  %v897 = vunpack.c.l.b16 %v293
  %v898 = vunpack.c.h.b16 %v293
  %v899 = vunpack.c.l.b16 %v294
  %v900 = vunpack.c.h.b16 %v294
  %v901 = vunpack.c.l.b16 %v295
  %v902 = vunpack.c.h.b16 %v295
  %v903 = vunpack.c.l.b16 %v296
  %v904 = vunpack.c.h.b16 %v296
  %v905 = vunpack.c.l.b16 %v297
  %v906 = vunpack.c.h.b16 %v297
  %v907 = vunpack.c.l.b16 %v298
  %v908 = vunpack.c.h.b16 %v298
  %v909 = vunpack.c.l.b16 %v299
  %v910 = vunpack.c.h.b16 %v299
  %v911 = vunpack.c.l.b16 %v300
  %v912 = vunpack.c.h.b16 %v300
  %v913 = vunpack.c.l.b16 %v301
  %v914 = vunpack.c.h.b16 %v301
  %v915 = vunpack.c.l.b16 %v302
  %v916 = vunpack.c.h.b16 %v302
  %v917 = vunpack.c.l.b16 %v303
  %v918 = vunpack.c.h.b16 %v303
  %v919 = vunpack.c.l.b16 %v304
  %v920 = vunpack.c.h.b16 %v304
  %v921 = vunpack.c.l.b16 %v305
  %v922 = vunpack.c.h.b16 %v305
  %v923 = vunpack.c.l.b16 %v306
  %v924 = vunpack.c.h.b16 %v306
  %v925 = vunpack.c.l.b16 %v307
  %v926 = vunpack.c.h.b16 %v307
  %v927 = vunpack.c.l.b16 %v308
  %v928 = vunpack.c.h.b16 %v308
  %v929 = vunpack.c.l.b16 %v309
  %v930 = vunpack.c.h.b16 %v309
  %v931 = vunpack.c.l.b16 %v310
  %v932 = vunpack.c.h.b16 %v310
  %v933 = vunpack.c.l.b16 %v311
  %v934 = vunpack.c.h.b16 %v311
  %v935 = vunpack.c.l.b16 %v312
  %v936 = vunpack.c.h.b16 %v312
  %v937 = vunpack.c.l.b16 %v313
  %v938 = vunpack.c.h.b16 %v313
  %v939 = vunpack.c.l.b16 %v314
  %v940 = vunpack.c.h.b16 %v314
  %v941 = vunpack.c.l.b16 %v315
  %v942 = vunpack.c.h.b16 %v315
  %v943 = vunpack.c.l.b16 %v316
  %v944 = vunpack.c.h.b16 %v316
  %v945 = vunpack.c.l.b16 %v317
  %v946 = vunpack.c.h.b16 %v317
  %v947 = vunpack.c.l.b16 %v318
  %v948 = vunpack.c.h.b16 %v318
  %v949 = vunpack.c.l.b16 %v319
  %v950 = vunpack.c.h.b16 %v319
  %v951 = vunpack.c.l.b16 %v320
  %v952 = vunpack.c.h.b16 %v320
  %v953 = vunpack.c.l.b16 %v321
  %v954 = vunpack.c.h.b16 %v321
  %v955 = vunpack.c.l.b16 %v322
  %v956 = vunpack.c.h.b16 %v322
  %v957 = vunpack.c.l.b16 %v323
  %v958 = vunpack.c.h.b16 %v323
  %v959 = vunpack.c.l.b16 %v324
  %v960 = vunpack.c.h.b16 %v324
  %v961 = vunpack.c.l.b16 %v325
  %v962 = vunpack.c.h.b16 %v325
  %v963 = vunpack.c.l.b16 %v326
  %v964 = vunpack.c.h.b16 %v326
  %v965 = vunpack.c.l.b16 %v327
  %v966 = vunpack.c.h.b16 %v327
  %v967 = vunpack.c.l.b16 %v328
  %v968 = vunpack.c.h.b16 %v328
  %v969 = vunpack.c.l.b16 %v329
  %v970 = vunpack.c.h.b16 %v329
  %v971 = vunpack.c.l.b16 %v330
  %v972 = vunpack.c.h.b16 %v330
  %v973 = vunpack.c.l.b16 %v331
  %v974 = vunpack.c.h.b16 %v331
  %v975 = vunpack.c.l.b16 %v332
  %v976 = vunpack.c.h.b16 %v332
  %v977 = vunpack.c.l.b16 %v333
  %v978 = vunpack.c.h.b16 %v333
  %v979 = vunpack.c.l.b16 %v334
  %v980 = vunpack.c.h.b16 %v334
  %v981 = vunpack.c.l.b16 %v335
  %v982 = vunpack.c.h.b16 %v335
  %v983 = vunpack.c.l.b16 %v336
  %v984 = vunpack.c.h.b16 %v336
  %v985 = vunpack.c.l.b16 %v337
  %v986 = vunpack.c.h.b16 %v337
  %v987 = vunpack.c.l.b16 %v338
  %v988 = vunpack.c.h.b16 %v338
  %v989 = vunpack.c.l.b16 %v339
  %v990 = vunpack.c.h.b16 %v339
  %v991 = vunpack.c.l.b16 %v340
  %v992 = vunpack.c.h.b16 %v340
  %v993 = vunpack.c.l.b16 %v341
  %v994 = vunpack.c.h.b16 %v341
  %v995 = vunpack.c.l.b16 %v342
  %v996 = vunpack.c.h.b16 %v342
  %v997 = vunpack.c.l.b16 %v343
  %v998 = vunpack.c.h.b16 %v343
  %v999 = vunpack.c.l.b16 %v344
  %v1000 = vunpack.c.h.b16 %v344
  %v1001 = vunpack.c.l.b16 %v345
  %v1002 = vunpack.c.h.b16 %v345
  %v1003 = vunpack.c.l.b16 %v346
  %v1004 = vunpack.c.h.b16 %v346
  %v1005 = vunpack.c.l.b16 %v347
  %v1006 = vunpack.c.h.b16 %v347
  %v1007 = vunpack.c.l.b16 %v348
  %v1008 = vunpack.c.h.b16 %v348
  %v1009 = vunpack.c.l.b16 %v349
  %v1010 = vunpack.c.h.b16 %v349
  %v1011 = vunpack.c.l.b16 %v350
  %v1012 = vunpack.c.h.b16 %v350
  %v1013 = vunpack.c.l.b16 %v351
  %v1014 = vunpack.c.h.b16 %v351
  %v1015 = vunpack.c.l.b16 %v352
  %v1016 = vunpack.c.h.b16 %v352
  %v1017 = vunpack.c.l.b16 %v353
  %v1018 = vunpack.c.h.b16 %v353
  %v1019 = vunpack.c.l.b16 %v354
  %v1020 = vunpack.c.h.b16 %v354
  %v1021 = vunpack.c.l.b16 %v355
  %v1022 = vunpack.c.h.b16 %v355
  %v1023 = vunpack.c.l.b16 %v356
  %v1024 = vunpack.c.h.b16 %v356
  %v1025 = vunpack.c.l.b16 %v357
  %v1026 = vunpack.c.h.b16 %v357
  %v1027 = vunpack.c.l.b16 %v358
  %v1028 = vunpack.c.h.b16 %v358
  %v1029 = vunpack.c.l.b16 %v359
  %v1030 = vunpack.c.h.b16 %v359
  %v1031 = vunpack.c.l.b16 %v360
  %v1032 = vunpack.c.h.b16 %v360
  %v1033 = vunpack.c.l.b16 %v361
  %v1034 = vunpack.c.h.b16 %v361
  %v1035 = vunpack.c.l.b16 %v362
  %v1036 = vunpack.c.h.b16 %v362
  %v1037 = vunpack.c.l.b16 %v363
  %v1038 = vunpack.c.h.b16 %v363
  %v1039 = vunpack.c.l.b16 %v364
  %v1040 = vunpack.c.h.b16 %v364
  %v1041 = vunpack.c.l.b16 %v365
  %v1042 = vunpack.c.h.b16 %v365
  %v1043 = vunpack.c.l.b16 %v366
  %v1044 = vunpack.c.h.b16 %v366
  %v1045 = vunpack.c.l.b16 %v367
  %v1046 = vunpack.c.h.b16 %v367
  %v1047 = vunpack.c.l.b16 %v368
  %v1048 = vunpack.c.h.b16 %v368
  %v1049 = vunpack.c.l.b16 %v369
  %v1050 = vunpack.c.h.b16 %v369
  %v1051 = vunpack.c.l.b16 %v370
  %v1052 = vunpack.c.h.b16 %v370
  %v1053 = vunpack.c.l.b16 %v371
  %v1054 = vunpack.c.h.b16 %v371
  %v1055 = vunpack.c.l.b16 %v372
  %v1056 = vunpack.c.h.b16 %v372
  %v1057 = vunpack.c.l.b16 %v373
  %v1058 = vunpack.c.h.b16 %v373
  %v1059 = vunpack.c.l.b16 %v374
  %v1060 = vunpack.c.h.b16 %v374
  %v1061 = vunpack.c.l.b16 %v375
  %v1062 = vunpack.c.h.b16 %v375
  %v1063 = vunpack.c.l.b16 %v376
  %v1064 = vunpack.c.h.b16 %v376
  %v1065 = vunpack.c.l.b16 %v377
  %v1066 = vunpack.c.h.b16 %v377
  %v1067 = vunpack.c.l.b16 %v378
  %v1068 = vunpack.c.h.b16 %v378
  %v1069 = vunpack.c.l.b16 %v379
  %v1070 = vunpack.c.h.b16 %v379
  %v1071 = vunpack.c.l.b16 %v380
  %v1072 = vunpack.c.h.b16 %v380
  %v1073 = vunpack.c.l.b16 %v381
  %v1074 = vunpack.c.h.b16 %v381
  %v1075 = vunpack.c.l.b16 %v382
  %v1076 = vunpack.c.h.b16 %v382
  %v1077 = vunpack.c.l.b16 %v383
  %v1078 = vunpack.c.h.b16 %v383
  %v1079 = vunpack.c.l.b16 %v384
  %v1080 = vunpack.c.h.b16 %v384
  %v1081 = vunpack.c.l.b16 %v385
  %v1082 = vunpack.c.h.b16 %v385
  %v1083 = vunpack.c.l.b16 %v386
  %v1084 = vunpack.c.h.b16 %v386
  %v1085 = vunpack.c.l.b16 %v387
  %v1086 = vunpack.c.h.b16 %v387
  %v1087 = vunpack.c.l.b16 %v388
  %v1088 = vunpack.c.h.b16 %v388
  %v1089 = vunpack.c.l.b16 %v389
  %v1090 = vunpack.c.h.b16 %v389
  %v1091 = vunpack.c.l.b16 %v390
  %v1092 = vunpack.c.h.b16 %v390
  %v1093 = vunpack.c.l.b16 %v391
  %v1094 = vunpack.c.h.b16 %v391
  %v1095 = vunpack.c.l.b16 %v392
  %v1096 = vunpack.c.h.b16 %v392
  %v1097 = vunpack.c.l.b16 %v393
  %v1098 = vunpack.c.h.b16 %v393
  %v1099 = vunpack.c.l.b16 %v394
  %v1100 = vunpack.c.h.b16 %v394
  %v1101 = vunpack.c.l.b16 %v395
  %v1102 = vunpack.c.h.b16 %v395
  %v1103 = vunpack.c.l.b16 %v396
  %v1104 = vunpack.c.h.b16 %v396
  %v1105 = vunpack.c.l.b16 %v397
  %v1106 = vunpack.c.h.b16 %v397
  %v1107 = vunpack.c.l.b16 %v398
  %v1108 = vunpack.c.h.b16 %v398
  %v1109 = vunpack.c.l.b16 %v399
  %v1110 = vunpack.c.h.b16 %v399
  %v1111 = vunpack.c.l.b16 %v400
  %v1112 = vunpack.c.h.b16 %v400
  %v1113 = vunpack.c.l.b16 %v401
  %v1114 = vunpack.c.h.b16 %v401
  %v1115 = vunpack.c.l.b16 %v402
  %v1116 = vunpack.c.h.b16 %v402
  %v1117 = vunpack.c.l.b16 %v403
  %v1118 = vunpack.c.h.b16 %v403
  %v1119 = vunpack.c.l.b16 %v404
  %v1120 = vunpack.c.h.b16 %v404
  %v1121 = vunpack.c.l.b16 %v405
  %v1122 = vunpack.c.h.b16 %v405
  %v1123 = vunpack.c.l.b16 %v406
  %v1124 = vunpack.c.h.b16 %v406
  %v1125 = vunpack.c.l.b16 %v407
  %v1126 = vunpack.c.h.b16 %v407
  %v1127 = vunpack.c.l.b16 %v408
  %v1128 = vunpack.c.h.b16 %v408
  %v1129 = vunpack.c.l.b16 %v409
  %v1130 = vunpack.c.h.b16 %v409
  %v1131 = vunpack.c.l.b16 %v410
  %v1132 = vunpack.c.h.b16 %v410
  %v1133 = vunpack.c.l.b16 %v411
  %v1134 = vunpack.c.h.b16 %v411
  %v1135 = vunpack.c.l.b16 %v412
  %v1136 = vunpack.c.h.b16 %v412
  %v1137 = vunpack.c.l.b16 %v413
  %v1138 = vunpack.c.h.b16 %v413
  %v1139 = vunpack.c.l.b16 %v414
  %v1140 = vunpack.c.h.b16 %v414
  %v1141 = vunpack.c.l.b16 %v415
  %v1142 = vunpack.c.h.b16 %v415
  %v1143 = vunpack.c.l.b16 %v416
  %v1144 = vunpack.c.h.b16 %v416
  %v1145 = vunpack.c.l.b16 %v417
  %v1146 = vunpack.c.h.b16 %v417
  %v1147 = vunpack.c.l.b16 %v418
  %v1148 = vunpack.c.h.b16 %v418
  %v1149 = vunpack.c.l.b16 %v419
  %v1150 = vunpack.c.h.b16 %v419
  %v1151 = vunpack.c.l.b16 %v420
  %v1152 = vunpack.c.h.b16 %v420
  %v1153 = vunpack.c.l.b16 %v421
  %v1154 = vunpack.c.h.b16 %v421
  %v1155 = vunpack.c.l.b16 %v422
  %v1156 = vunpack.c.h.b16 %v422
  %v1157 = vunpack.c.l.b16 %v423
  %v1158 = vunpack.c.h.b16 %v423
  %v1159 = vunpack.c.l.b16 %v424
  %v1160 = vunpack.c.h.b16 %v424
  %v1161 = vunpack.c.l.b16 %v425
  %v1162 = vunpack.c.h.b16 %v425
  %v1163 = vunpack.c.l.b16 %v426
  %v1164 = vunpack.c.h.b16 %v426
  %v1165 = vunpack.c.l.b16 %v427
  %v1166 = vunpack.c.h.b16 %v427
  %v1167 = vunpack.c.l.b16 %v428
  %v1168 = vunpack.c.h.b16 %v428
  %v1169 = vunpack.c.l.b16 %v429
  %v1170 = vunpack.c.h.b16 %v429
  %v1171 = vunpack.c.l.b16 %v430
  %v1172 = vunpack.c.h.b16 %v430
  %v1173 = vunpack.c.l.b16 %v431
  %v1174 = vunpack.c.h.b16 %v431
  %v1175 = vunpack.c.l.b16 %v432
  %v1176 = vunpack.c.h.b16 %v432
  %v1177 = vunpack.c.l.b16 %v433
  %v1178 = vunpack.c.h.b16 %v433
  %v1179 = vunpack.c.l.b16 %v434
  %v1180 = vunpack.c.h.b16 %v434
  %v1181 = vunpack.c.l.b16 %v435
  %v1182 = vunpack.c.h.b16 %v435
  %v1183 = vunpack.c.l.b16 %v436
  %v1184 = vunpack.c.h.b16 %v436
  %v1185 = vunpack.c.l.b16 %v437
  %v1186 = vunpack.c.h.b16 %v437
  %v1187 = vunpack.c.l.b16 %v438
  %v1188 = vunpack.c.h.b16 %v438
  %v1189 = vunpack.c.l.b16 %v439
  %v1190 = vunpack.c.h.b16 %v439
  %v1191 = vunpack.c.l.b16 %v440
  %v1192 = vunpack.c.h.b16 %v440
  %v1193 = vunpack.c.l.b16 %v441
  %v1194 = vunpack.c.h.b16 %v441
  %v1195 = vunpack.c.l.b16 %v442
  %v1196 = vunpack.c.h.b16 %v442
  %v1197 = vunpack.c.l.b16 %v443
  %v1198 = vunpack.c.h.b16 %v443
  %v1199 = vunpack.c.l.b16 %v444
  %v1200 = vunpack.c.h.b16 %v444
  %v1201 = vunpack.c.l.b16 %v445
  %v1202 = vunpack.c.h.b16 %v445
  %v1203 = vunpack.c.l.b16 %v446
  %v1204 = vunpack.c.h.b16 %v446
  %v1205 = vunpack.c.l.b16 %v447
  %v1206 = vunpack.c.h.b16 %v447
  %v1207 = vunpack.c.l.b16 %v448
  %v1208 = vunpack.c.h.b16 %v448
  %v1209 = vunpack.c.l.b16 %v449
  %v1210 = vunpack.c.h.b16 %v449
  %v1211 = vunpack.c.l.b16 %v450
  %v1212 = vunpack.c.h.b16 %v450
  %v1213 = vunpack.c.l.b16 %v451
  %v1214 = vunpack.c.h.b16 %v451
  %v1215 = vunpack.c.l.b16 %v452
  %v1216 = vunpack.c.h.b16 %v452
  %v1217 = vunpack.c.l.b16 %v453
  %v1218 = vunpack.c.h.b16 %v453
  %v1219 = vunpack.c.l.b16 %v454
  %v1220 = vunpack.c.h.b16 %v454
  %v1221 = vunpack.c.l.b16 %v455
  %v1222 = vunpack.c.h.b16 %v455
  %v1223 = vunpack.c.l.b16 %v456
  %v1224 = vunpack.c.h.b16 %v456
  %v1225 = vunpack.c.l.b16 %v457
  %v1226 = vunpack.c.h.b16 %v457
  %v1227 = vunpack.c.l.b16 %v458
  %v1228 = vunpack.c.h.b16 %v458
  %v1229 = vunpack.c.l.b16 %v459
  %v1230 = vunpack.c.h.b16 %v459
  %v1231 = vunpack.c.l.b16 %v460
  %v1232 = vunpack.c.h.b16 %v460
  %v1233 = vunpack.c.l.b16 %v461
  %v1234 = vunpack.c.h.b16 %v461
  %v1235 = vunpack.c.l.b16 %v462
  %v1236 = vunpack.c.h.b16 %v462
  %v1237 = vunpack.c.l.b16 %v463
  %v1238 = vunpack.c.h.b16 %v463
  %v1239 = vunpack.c.l.b16 %v464
  %v1240 = vunpack.c.h.b16 %v464
  %v1241 = vunpack.c.l.b16 %v465
  %v1242 = vunpack.c.h.b16 %v465
  %v1243 = vunpack.c.l.b16 %v466
  %v1244 = vunpack.c.h.b16 %v466
  %v1245 = vpack.c.b16 %v737, %v733
  %v1246 = vpack.c.b16 %v738, %v734
  %v1247 = vpack.c.b16 %v739, %v735
  %v1248 = vpack.c.b16 %v740, %v736
  %v1249 = vpack.c.b16 %v745, %v741
  %v1250 = vpack.c.b16 %v746, %v742
  %v1251 = vpack.c.b16 %v747, %v743
  %v1252 = vpack.c.b16 %v748, %v744
  %v1253 = vpack.c.b16 %v753, %v749
  %v1254 = vpack.c.b16 %v754, %v750
  %v1255 = vpack.c.b16 %v755, %v751
  %v1256 = vpack.c.b16 %v756, %v752
  %v1257 = vpack.c.b16 %v761, %v757
  %v1258 = vpack.c.b16 %v762, %v758
  %v1259 = vpack.c.b16 %v763, %v759
  %v1260 = vpack.c.b16 %v764, %v760
  %v1261 = vpack.c.b16 %v769, %v765
  %v1262 = vpack.c.b16 %v770, %v766
  %v1263 = vpack.c.b16 %v771, %v767
  %v1264 = vpack.c.b16 %v772, %v768
  %v1265 = vpack.c.b16 %v777, %v773
  %v1266 = vpack.c.b16 %v778, %v774
  %v1267 = vpack.c.b16 %v779, %v775
  %v1268 = vpack.c.b16 %v780, %v776
  %v1269 = vpack.c.b16 %v785, %v781
  %v1270 = vpack.c.b16 %v786, %v782
  %v1271 = vpack.c.b16 %v787, %v783
  %v1272 = vpack.c.b16 %v788, %v784
  %v1273 = vpack.c.b16 %v793, %v789
  %v1274 = vpack.c.b16 %v794, %v790
  %v1275 = vpack.c.b16 %v795, %v791
  %v1276 = vpack.c.b16 %v796, %v792
  %v1277 = vpack.c.b16 %v801, %v797
  %v1278 = vpack.c.b16 %v802, %v798
  %v1279 = vpack.c.b16 %v803, %v799
  %v1280 = vpack.c.b16 %v804, %v800
  %v1281 = vpack.c.b16 %v809, %v805
  %v1282 = vpack.c.b16 %v810, %v806
  %v1283 = vpack.c.b16 %v811, %v807
  %v1284 = vpack.c.b16 %v812, %v808
  %v1285 = vpack.c.b16 %v817, %v813
  %v1286 = vpack.c.b16 %v818, %v814
  %v1287 = vpack.c.b16 %v819, %v815
  %v1288 = vpack.c.b16 %v820, %v816
  %v1289 = vpack.c.b16 %v825, %v821
  %v1290 = vpack.c.b16 %v826, %v822
  %v1291 = vpack.c.b16 %v827, %v823
  %v1292 = vpack.c.b16 %v828, %v824
  %v1293 = vpack.c.b16 %v833, %v829
  %v1294 = vpack.c.b16 %v834, %v830
  %v1295 = vpack.c.b16 %v835, %v831
  %v1296 = vpack.c.b16 %v836, %v832
  %v1297 = vpack.c.b16 %v841, %v837
  %v1298 = vpack.c.b16 %v842, %v838
  %v1299 = vpack.c.b16 %v843, %v839
  %v1300 = vpack.c.b16 %v844, %v840
  %v1301 = vpack.c.b16 %v849, %v845
  %v1302 = vpack.c.b16 %v850, %v846
  %v1303 = vpack.c.b16 %v851, %v847
  %v1304 = vpack.c.b16 %v852, %v848
  %v1305 = vpack.c.b16 %v857, %v853
  %v1306 = vpack.c.b16 %v858, %v854
  %v1307 = vpack.c.b16 %v859, %v855
  %v1308 = vpack.c.b16 %v860, %v856
  %v1309 = vpack.c.b16 %v865, %v861
  %v1310 = vpack.c.b16 %v866, %v862
  %v1311 = vpack.c.b16 %v867, %v863
  %v1312 = vpack.c.b16 %v868, %v864
  %v1313 = vpack.c.b16 %v873, %v869
  %v1314 = vpack.c.b16 %v874, %v870
  %v1315 = vpack.c.b16 %v875, %v871
  %v1316 = vpack.c.b16 %v876, %v872
  %v1317 = vpack.c.b16 %v881, %v877
  %v1318 = vpack.c.b16 %v882, %v878
  %v1319 = vpack.c.b16 %v883, %v879
  %v1320 = vpack.c.b16 %v884, %v880
  %v1321 = vpack.c.b16 %v889, %v885
  %v1322 = vpack.c.b16 %v890, %v886
  %v1323 = vpack.c.b16 %v891, %v887
  %v1324 = vpack.c.b16 %v892, %v888
  %v1325 = vpack.c.b16 %v897, %v893
  %v1326 = vpack.c.b16 %v898, %v894
  %v1327 = vpack.c.b16 %v899, %v895
  %v1328 = vpack.c.b16 %v900, %v896
  %v1329 = vpack.c.b16 %v905, %v901
  %v1330 = vpack.c.b16 %v906, %v902
  %v1331 = vpack.c.b16 %v907, %v903
  %v1332 = vpack.c.b16 %v908, %v904
  %v1333 = vpack.c.b16 %v913, %v909
  %v1334 = vpack.c.b16 %v914, %v910
  %v1335 = vpack.c.b16 %v915, %v911
  %v1336 = vpack.c.b16 %v916, %v912
  %v1337 = vpack.c.b16 %v921, %v917
  %v1338 = vpack.c.b16 %v922, %v918
  %v1339 = vpack.c.b16 %v923, %v919
  %v1340 = vpack.c.b16 %v924, %v920
  %v1341 = vpack.c.b16 %v929, %v925
  %v1342 = vpack.c.b16 %v930, %v926
  %v1343 = vpack.c.b16 %v931, %v927
  %v1344 = vpack.c.b16 %v932, %v928
  %v1345 = vpack.c.b16 %v937, %v933
  %v1346 = vpack.c.b16 %v938, %v934
  %v1347 = vpack.c.b16 %v939, %v935
  %v1348 = vpack.c.b16 %v940, %v936
  %v1349 = vpack.c.b16 %v945, %v941
  %v1350 = vpack.c.b16 %v946, %v942
  %v1351 = vpack.c.b16 %v947, %v943
  %v1352 = vpack.c.b16 %v948, %v944
  %v1353 = vpack.c.b16 %v953, %v949
  %v1354 = vpack.c.b16 %v954, %v950
  %v1355 = vpack.c.b16 %v955, %v951
  %v1356 = vpack.c.b16 %v956, %v952
  %v1357 = vpack.c.b16 %v961, %v957
  %v1358 = vpack.c.b16 %v962, %v958
  %v1359 = vpack.c.b16 %v963, %v959
  %v1360 = vpack.c.b16 %v964, %v960
  %v1361 = vpack.c.b16 %v969, %v965
  %v1362 = vpack.c.b16 %v970, %v966
  %v1363 = vpack.c.b16 %v971, %v967
  %v1364 = vpack.c.b16 %v972, %v968
  %v1365 = vpack.c.b16 %v977, %v973
  %v1366 = vpack.c.b16 %v978, %v974
  %v1367 = vpack.c.b16 %v979, %v975
  %v1368 = vpack.c.b16 %v980, %v976
  %v1369 = vpack.c.b16 %v985, %v981
  %v1370 = vpack.c.b16 %v986, %v982
  %v1371 = vpack.c.b16 %v987, %v983
  %v1372 = vpack.c.b16 %v988, %v984
  %v1373 = vpack.c.b16 %v993, %v989
  %v1374 = vpack.c.b16 %v994, %v990
  %v1375 = vpack.c.b16 %v995, %v991
  %v1376 = vpack.c.b16 %v996, %v992
  %v1377 = vpack.c.b16 %v1001, %v997
  %v1378 = vpack.c.b16 %v1002, %v998
  %v1379 = vpack.c.b16 %v1003, %v999
  %v1380 = vpack.c.b16 %v1004, %v1000
  %v1381 = vpack.c.b16 %v1009, %v1005
  %v1382 = vpack.c.b16 %v1010, %v1006
  %v1383 = vpack.c.b16 %v1011, %v1007
  %v1384 = vpack.c.b16 %v1012, %v1008
  %v1385 = vpack.c.b16 %v1017, %v1013
  %v1386 = vpack.c.b16 %v1018, %v1014
  %v1387 = vpack.c.b16 %v1019, %v1015
  %v1388 = vpack.c.b16 %v1020, %v1016
  %v1389 = vpack.c.b16 %v1025, %v1021
  %v1390 = vpack.c.b16 %v1026, %v1022
  %v1391 = vpack.c.b16 %v1027, %v1023
  %v1392 = vpack.c.b16 %v1028, %v1024
  %v1393 = vpack.c.b16 %v1033, %v1029
  %v1394 = vpack.c.b16 %v1034, %v1030
  %v1395 = vpack.c.b16 %v1035, %v1031
  %v1396 = vpack.c.b16 %v1036, %v1032
  %v1397 = vpack.c.b16 %v1041, %v1037
  %v1398 = vpack.c.b16 %v1042, %v1038
  %v1399 = vpack.c.b16 %v1043, %v1039
  %v1400 = vpack.c.b16 %v1044, %v1040
  %v1401 = vpack.c.b16 %v1049, %v1045
  %v1402 = vpack.c.b16 %v1050, %v1046
  %v1403 = vpack.c.b16 %v1051, %v1047
  %v1404 = vpack.c.b16 %v1052, %v1048
  %v1405 = vpack.c.b16 %v1057, %v1053
  %v1406 = vpack.c.b16 %v1058, %v1054
  %v1407 = vpack.c.b16 %v1059, %v1055
  %v1408 = vpack.c.b16 %v1060, %v1056
  %v1409 = vpack.c.b16 %v1065, %v1061
  %v1410 = vpack.c.b16 %v1066, %v1062
  %v1411 = vpack.c.b16 %v1067, %v1063
  %v1412 = vpack.c.b16 %v1068, %v1064
  %v1413 = vpack.c.b16 %v1073, %v1069
  %v1414 = vpack.c.b16 %v1074, %v1070
  %v1415 = vpack.c.b16 %v1075, %v1071
  %v1416 = vpack.c.b16 %v1076, %v1072
  %v1417 = vpack.c.b16 %v1081, %v1077
  %v1418 = vpack.c.b16 %v1082, %v1078
  %v1419 = vpack.c.b16 %v1083, %v1079
  %v1420 = vpack.c.b16 %v1084, %v1080
  %v1421 = vpack.c.b16 %v1089, %v1085
  %v1422 = vpack.c.b16 %v1090, %v1086
  %v1423 = vpack.c.b16 %v1091, %v1087
  %v1424 = vpack.c.b16 %v1092, %v1088
  %v1425 = vpack.c.b16 %v1097, %v1093
  %v1426 = vpack.c.b16 %v1098, %v1094
  %v1427 = vpack.c.b16 %v1099, %v1095
  %v1428 = vpack.c.b16 %v1100, %v1096
  %v1429 = vpack.c.b16 %v1105, %v1101
  %v1430 = vpack.c.b16 %v1106, %v1102
  %v1431 = vpack.c.b16 %v1107, %v1103
  %v1432 = vpack.c.b16 %v1108, %v1104
  %v1433 = vpack.c.b16 %v1113, %v1109
  %v1434 = vpack.c.b16 %v1114, %v1110
  %v1435 = vpack.c.b16 %v1115, %v1111
  %v1436 = vpack.c.b16 %v1116, %v1112
  %v1437 = vpack.c.b16 %v1121, %v1117
  %v1438 = vpack.c.b16 %v1122, %v1118
  %v1439 = vpack.c.b16 %v1123, %v1119
  %v1440 = vpack.c.b16 %v1124, %v1120
  %v1441 = vpack.c.b16 %v1129, %v1125
  %v1442 = vpack.c.b16 %v1130, %v1126
  %v1443 = vpack.c.b16 %v1131, %v1127
  %v1444 = vpack.c.b16 %v1132, %v1128
  %v1445 = vpack.c.b16 %v1137, %v1133
  %v1446 = vpack.c.b16 %v1138, %v1134
  %v1447 = vpack.c.b16 %v1139, %v1135
  %v1448 = vpack.c.b16 %v1140, %v1136
  %v1449 = vpack.c.b16 %v1145, %v1141
  %v1450 = vpack.c.b16 %v1146, %v1142
  %v1451 = vpack.c.b16 %v1147, %v1143
  %v1452 = vpack.c.b16 %v1148, %v1144
  %v1453 = vpack.c.b16 %v1153, %v1149
  %v1454 = vpack.c.b16 %v1154, %v1150
  %v1455 = vpack.c.b16 %v1155, %v1151
  %v1456 = vpack.c.b16 %v1156, %v1152
  %v1457 = vpack.c.b16 %v1161, %v1157
  %v1458 = vpack.c.b16 %v1162, %v1158
  %v1459 = vpack.c.b16 %v1163, %v1159
  %v1460 = vpack.c.b16 %v1164, %v1160
  %v1461 = vpack.c.b16 %v1169, %v1165
  %v1462 = vpack.c.b16 %v1170, %v1166
  %v1463 = vpack.c.b16 %v1171, %v1167
  %v1464 = vpack.c.b16 %v1172, %v1168
  %v1465 = vpack.c.b16 %v1177, %v1173
  %v1466 = vpack.c.b16 %v1178, %v1174
  %v1467 = vpack.c.b16 %v1179, %v1175
  %v1468 = vpack.c.b16 %v1180, %v1176
  %v1469 = vpack.c.b16 %v1185, %v1181
  %v1470 = vpack.c.b16 %v1186, %v1182
  %v1471 = vpack.c.b16 %v1187, %v1183
  %v1472 = vpack.c.b16 %v1188, %v1184
  %v1473 = vpack.c.b16 %v1193, %v1189
  %v1474 = vpack.c.b16 %v1194, %v1190
  %v1475 = vpack.c.b16 %v1195, %v1191
  %v1476 = vpack.c.b16 %v1196, %v1192
  %v1477 = vpack.c.b16 %v1201, %v1197
  %v1478 = vpack.c.b16 %v1202, %v1198
  %v1479 = vpack.c.b16 %v1203, %v1199
  %v1480 = vpack.c.b16 %v1204, %v1200
  %v1481 = vpack.c.b16 %v1209, %v1205
  %v1482 = vpack.c.b16 %v1210, %v1206
  %v1483 = vpack.c.b16 %v1211, %v1207
  %v1484 = vpack.c.b16 %v1212, %v1208
  %v1485 = vpack.c.b16 %v1217, %v1213
  %v1486 = vpack.c.b16 %v1218, %v1214
  %v1487 = vpack.c.b16 %v1219, %v1215
  %v1488 = vpack.c.b16 %v1220, %v1216
  %v1489 = vpack.c.b16 %v1225, %v1221
  %v1490 = vpack.c.b16 %v1226, %v1222
  %v1491 = vpack.c.b16 %v1227, %v1223
  %v1492 = vpack.c.b16 %v1228, %v1224
  %v1493 = vpack.c.b16 %v1233, %v1229
  %v1494 = vpack.c.b16 %v1234, %v1230
  %v1495 = vpack.c.b16 %v1235, %v1231
  %v1496 = vpack.c.b16 %v1236, %v1232
  %v1497 = vpack.c.b16 %v1241, %v1237
  %v1498 = vpack.c.b16 %v1242, %v1238
  %v1499 = vpack.c.b16 %v1243, %v1239
  %v1500 = vpack.c.b16 %v1244, %v1240
  %1757 = vmatpush.bf16.msra.mxu0 %v1273
  %1758 = vmatpush.bf16.msra.mxu0 %v1269
  %1759 = vmatpush.bf16.msra.mxu0 %v1265
  %1760 = vmatpush.bf16.msra.mxu0 %v1261
  %1761 = vmatpush.bf16.msra.mxu0 %v1257
  %1762 = vmatpush.bf16.msra.mxu0 %v1253
  %1763 = vmatpush.bf16.msra.mxu0 %v1249
  %1764 = vmatpush.bf16.msra.mxu0 %v1245
  %1765 = vmatmul.bf16.gmra.mxu0 %v203
  %v1766 = vpop.f32.mrf.mxu0
  %v1767 = vadd.f32 %v469, %v1766
  %v1768 = vpop.f32.mrf.mxu0
  %1769 = vdwg.mxu0
  %1770 = vmatpush.bf16.msra.mxu0 %v1305
  %1771 = vmatpush.bf16.msra.mxu0 %v1301
  %1772 = vmatpush.bf16.msra.mxu0 %v1297
  %1773 = vmatpush.bf16.msra.mxu0 %v1293
  %1774 = vmatpush.bf16.msra.mxu0 %v1289
  %1775 = vmatpush.bf16.msra.mxu0 %v1285
  %1776 = vmatpush.bf16.msra.mxu0 %v1281
  %1777 = vmatpush.bf16.msra.mxu0 %v1277
  %1778 = vmatmul.bf16.gmra.mxu0 %v204
  %v1779 = vpop.f32.mrf.mxu0
  %v1780 = vadd.f32 %v1767, %v1779
  %v1781 = vpop.f32.mrf.mxu0
  %1782 = vdwg.mxu0
  %1783 = vmatpush.bf16.msra.mxu0 %v1337
  %1784 = vmatpush.bf16.msra.mxu0 %v1333
  %1785 = vmatpush.bf16.msra.mxu0 %v1329
  %1786 = vmatpush.bf16.msra.mxu0 %v1325
  %1787 = vmatpush.bf16.msra.mxu0 %v1321
  %1788 = vmatpush.bf16.msra.mxu0 %v1317
  %1789 = vmatpush.bf16.msra.mxu0 %v1313
  %1790 = vmatpush.bf16.msra.mxu0 %v1309
  %1791 = vmatmul.bf16.gmra.mxu0 %v205
  %v1792 = vpop.f32.mrf.mxu0
  %v1793 = vadd.f32 %v1780, %v1792
  %v1794 = vpop.f32.mrf.mxu0
  %1795 = vdwg.mxu0
  %1796 = vmatpush.bf16.msra.mxu0 %v1369
  %1797 = vmatpush.bf16.msra.mxu0 %v1365
  %1798 = vmatpush.bf16.msra.mxu0 %v1361
  %1799 = vmatpush.bf16.msra.mxu0 %v1357
  %1800 = vmatpush.bf16.msra.mxu0 %v1353
  %1801 = vmatpush.bf16.msra.mxu0 %v1349
  %1802 = vmatpush.bf16.msra.mxu0 %v1345
  %1803 = vmatpush.bf16.msra.mxu0 %v1341
  %1804 = vmatmul.bf16.gmra.mxu0 %v206
  %v1805 = vpop.f32.mrf.mxu0
  %v1806 = vadd.f32 %v1793, %v1805
  %v1807 = vpop.f32.mrf.mxu0
  %1808 = vdwg.mxu0
  %1809 = vmatpush.bf16.msra.mxu0 %v1401
  %1810 = vmatpush.bf16.msra.mxu0 %v1397
  %1811 = vmatpush.bf16.msra.mxu0 %v1393
  %1812 = vmatpush.bf16.msra.mxu0 %v1389
  %1813 = vmatpush.bf16.msra.mxu0 %v1385
  %1814 = vmatpush.bf16.msra.mxu0 %v1381
  %1815 = vmatpush.bf16.msra.mxu0 %v1377
  %1816 = vmatpush.bf16.msra.mxu0 %v1373
  %1817 = vmatmul.bf16.gmra.mxu0 %v207
  %v1818 = vpop.f32.mrf.mxu0
  %v1819 = vadd.f32 %v1806, %v1818
  %v1820 = vpop.f32.mrf.mxu0
  %1821 = vdwg.mxu0
  %1822 = vmatpush.bf16.msra.mxu0 %v1433
  %1823 = vmatpush.bf16.msra.mxu0 %v1429
  %1824 = vmatpush.bf16.msra.mxu0 %v1425
  %1825 = vmatpush.bf16.msra.mxu0 %v1421
  %1826 = vmatpush.bf16.msra.mxu0 %v1417
  %1827 = vmatpush.bf16.msra.mxu0 %v1413
  %1828 = vmatpush.bf16.msra.mxu0 %v1409
  %1829 = vmatpush.bf16.msra.mxu0 %v1405
  %1830 = vmatmul.bf16.gmra.mxu0 %v208
  %v1831 = vpop.f32.mrf.mxu0
  %v1832 = vadd.f32 %v1819, %v1831
  %v1833 = vpop.f32.mrf.mxu0
  %1834 = vdwg.mxu0
  %1835 = vmatpush.bf16.msra.mxu0 %v1465
  %1836 = vmatpush.bf16.msra.mxu0 %v1461
  %1837 = vmatpush.bf16.msra.mxu0 %v1457
  %1838 = vmatpush.bf16.msra.mxu0 %v1453
  %1839 = vmatpush.bf16.msra.mxu0 %v1449
  %1840 = vmatpush.bf16.msra.mxu0 %v1445
  %1841 = vmatpush.bf16.msra.mxu0 %v1441
  %1842 = vmatpush.bf16.msra.mxu0 %v1437
  %1843 = vmatmul.bf16.gmra.mxu0 %v209
  %v1844 = vpop.f32.mrf.mxu0
  %v1845 = vadd.f32 %v1832, %v1844
  %v1846 = vpop.f32.mrf.mxu0
  %1847 = vdwg.mxu0
  %1848 = vmatpush.bf16.msra.mxu0 %v1497
  %1849 = vmatpush.bf16.msra.mxu0 %v1493
  %1850 = vmatpush.bf16.msra.mxu0 %v1489
  %1851 = vmatpush.bf16.msra.mxu0 %v1485
  %1852 = vmatpush.bf16.msra.mxu0 %v1481
  %1853 = vmatpush.bf16.msra.mxu0 %v1477
  %1854 = vmatpush.bf16.msra.mxu0 %v1473
  %1855 = vmatpush.bf16.msra.mxu0 %v1469
  %1856 = vmatmul.bf16.gmra.mxu0 %v210
  %v1857 = vpop.f32.mrf.mxu0
  %v1858 = vadd.f32 %v1845, %v1857
  %v1859 = vpop.f32.mrf.mxu0
  %1860 = vdwg.mxu0
  %1861 = vmatpush.bf16.msra.mxu0 %v1274
  %1862 = vmatpush.bf16.msra.mxu0 %v1270
  %1863 = vmatpush.bf16.msra.mxu0 %v1266
  %1864 = vmatpush.bf16.msra.mxu0 %v1262
  %1865 = vmatpush.bf16.msra.mxu0 %v1258
  %1866 = vmatpush.bf16.msra.mxu0 %v1254
  %1867 = vmatpush.bf16.msra.mxu0 %v1250
  %1868 = vmatpush.bf16.msra.mxu0 %v1246
  %1869 = vmatmul.bf16.gmra.mxu0 %v203
  %v1870 = vpop.f32.mrf.mxu0
  %v1871 = vadd.f32 %v470, %v1870
  %v1872 = vpop.f32.mrf.mxu0
  %1873 = vdwg.mxu0
  %1874 = vmatpush.bf16.msra.mxu0 %v1306
  %1875 = vmatpush.bf16.msra.mxu0 %v1302
  %1876 = vmatpush.bf16.msra.mxu0 %v1298
  %1877 = vmatpush.bf16.msra.mxu0 %v1294
  %1878 = vmatpush.bf16.msra.mxu0 %v1290
  %1879 = vmatpush.bf16.msra.mxu0 %v1286
  %1880 = vmatpush.bf16.msra.mxu0 %v1282
  %1881 = vmatpush.bf16.msra.mxu0 %v1278
  %1882 = vmatmul.bf16.gmra.mxu0 %v204
  %v1883 = vpop.f32.mrf.mxu0
  %v1884 = vadd.f32 %v1871, %v1883
  %v1885 = vpop.f32.mrf.mxu0
  %1886 = vdwg.mxu0
  %1887 = vmatpush.bf16.msra.mxu0 %v1338
  %1888 = vmatpush.bf16.msra.mxu0 %v1334
  %1889 = vmatpush.bf16.msra.mxu0 %v1330
  %1890 = vmatpush.bf16.msra.mxu0 %v1326
  %1891 = vmatpush.bf16.msra.mxu0 %v1322
  %1892 = vmatpush.bf16.msra.mxu0 %v1318
  %1893 = vmatpush.bf16.msra.mxu0 %v1314
  %1894 = vmatpush.bf16.msra.mxu0 %v1310
  %1895 = vmatmul.bf16.gmra.mxu0 %v205
  %v1896 = vpop.f32.mrf.mxu0
  %v1897 = vadd.f32 %v1884, %v1896
  %v1898 = vpop.f32.mrf.mxu0
  %1899 = vdwg.mxu0
  %1900 = vmatpush.bf16.msra.mxu0 %v1370
  %1901 = vmatpush.bf16.msra.mxu0 %v1366
  %1902 = vmatpush.bf16.msra.mxu0 %v1362
  %1903 = vmatpush.bf16.msra.mxu0 %v1358
  %1904 = vmatpush.bf16.msra.mxu0 %v1354
  %1905 = vmatpush.bf16.msra.mxu0 %v1350
  %1906 = vmatpush.bf16.msra.mxu0 %v1346
  %1907 = vmatpush.bf16.msra.mxu0 %v1342
  %1908 = vmatmul.bf16.gmra.mxu0 %v206
  %v1909 = vpop.f32.mrf.mxu0
  %v1910 = vadd.f32 %v1897, %v1909
  %v1911 = vpop.f32.mrf.mxu0
  %1912 = vdwg.mxu0
  %1913 = vmatpush.bf16.msra.mxu0 %v1402
  %1914 = vmatpush.bf16.msra.mxu0 %v1398
  %1915 = vmatpush.bf16.msra.mxu0 %v1394
  %1916 = vmatpush.bf16.msra.mxu0 %v1390
  %1917 = vmatpush.bf16.msra.mxu0 %v1386
  %1918 = vmatpush.bf16.msra.mxu0 %v1382
  %1919 = vmatpush.bf16.msra.mxu0 %v1378
  %1920 = vmatpush.bf16.msra.mxu0 %v1374
  %1921 = vmatmul.bf16.gmra.mxu0 %v207
  %v1922 = vpop.f32.mrf.mxu0
  %v1923 = vadd.f32 %v1910, %v1922
  %v1924 = vpop.f32.mrf.mxu0
  %1925 = vdwg.mxu0
  %1926 = vmatpush.bf16.msra.mxu0 %v1434
  %1927 = vmatpush.bf16.msra.mxu0 %v1430
  %1928 = vmatpush.bf16.msra.mxu0 %v1426
  %1929 = vmatpush.bf16.msra.mxu0 %v1422
  %1930 = vmatpush.bf16.msra.mxu0 %v1418
  %1931 = vmatpush.bf16.msra.mxu0 %v1414
  %1932 = vmatpush.bf16.msra.mxu0 %v1410
  %1933 = vmatpush.bf16.msra.mxu0 %v1406
  %1934 = vmatmul.bf16.gmra.mxu0 %v208
  %v1935 = vpop.f32.mrf.mxu0
  %v1936 = vadd.f32 %v1923, %v1935
  %v1937 = vpop.f32.mrf.mxu0
  %1938 = vdwg.mxu0
  %1939 = vmatpush.bf16.msra.mxu0 %v1466
  %1940 = vmatpush.bf16.msra.mxu0 %v1462
  %1941 = vmatpush.bf16.msra.mxu0 %v1458
  %1942 = vmatpush.bf16.msra.mxu0 %v1454
  %1943 = vmatpush.bf16.msra.mxu0 %v1450
  %1944 = vmatpush.bf16.msra.mxu0 %v1446
  %1945 = vmatpush.bf16.msra.mxu0 %v1442
  %1946 = vmatpush.bf16.msra.mxu0 %v1438
  %1947 = vmatmul.bf16.gmra.mxu0 %v209
  %v1948 = vpop.f32.mrf.mxu0
  %v1949 = vadd.f32 %v1936, %v1948
  %v1950 = vpop.f32.mrf.mxu0
  %1951 = vdwg.mxu0
  %1952 = vmatpush.bf16.msra.mxu0 %v1498
  %1953 = vmatpush.bf16.msra.mxu0 %v1494
  %1954 = vmatpush.bf16.msra.mxu0 %v1490
  %1955 = vmatpush.bf16.msra.mxu0 %v1486
  %1956 = vmatpush.bf16.msra.mxu0 %v1482
  %1957 = vmatpush.bf16.msra.mxu0 %v1478
  %1958 = vmatpush.bf16.msra.mxu0 %v1474
  %1959 = vmatpush.bf16.msra.mxu0 %v1470
  %1960 = vmatmul.bf16.gmra.mxu0 %v210
  %v1961 = vpop.f32.mrf.mxu0
  %v1962 = vadd.f32 %v1949, %v1961
  %v1963 = vpop.f32.mrf.mxu0
  %1964 = vdwg.mxu0
  %1965 = vmatpush.bf16.msra.mxu0 %v1275
  %1966 = vmatpush.bf16.msra.mxu0 %v1271
  %1967 = vmatpush.bf16.msra.mxu0 %v1267
  %1968 = vmatpush.bf16.msra.mxu0 %v1263
  %1969 = vmatpush.bf16.msra.mxu0 %v1259
  %1970 = vmatpush.bf16.msra.mxu0 %v1255
  %1971 = vmatpush.bf16.msra.mxu0 %v1251
  %1972 = vmatpush.bf16.msra.mxu0 %v1247
  %1973 = vmatmul.bf16.gmra.mxu0 %v203
  %v1974 = vpop.f32.mrf.mxu0
  %v1975 = vadd.f32 %v471, %v1974
  %v1976 = vpop.f32.mrf.mxu0
  %1977 = vdwg.mxu0
  %1978 = vmatpush.bf16.msra.mxu0 %v1307
  %1979 = vmatpush.bf16.msra.mxu0 %v1303
  %1980 = vmatpush.bf16.msra.mxu0 %v1299
  %1981 = vmatpush.bf16.msra.mxu0 %v1295
  %1982 = vmatpush.bf16.msra.mxu0 %v1291
  %1983 = vmatpush.bf16.msra.mxu0 %v1287
  %1984 = vmatpush.bf16.msra.mxu0 %v1283
  %1985 = vmatpush.bf16.msra.mxu0 %v1279
  %1986 = vmatmul.bf16.gmra.mxu0 %v204
  %v1987 = vpop.f32.mrf.mxu0
  %v1988 = vadd.f32 %v1975, %v1987
  %v1989 = vpop.f32.mrf.mxu0
  %1990 = vdwg.mxu0
  %1991 = vmatpush.bf16.msra.mxu0 %v1339
  %1992 = vmatpush.bf16.msra.mxu0 %v1335
  %1993 = vmatpush.bf16.msra.mxu0 %v1331
  %1994 = vmatpush.bf16.msra.mxu0 %v1327
  %1995 = vmatpush.bf16.msra.mxu0 %v1323
  %1996 = vmatpush.bf16.msra.mxu0 %v1319
  %1997 = vmatpush.bf16.msra.mxu0 %v1315
  %1998 = vmatpush.bf16.msra.mxu0 %v1311
  %1999 = vmatmul.bf16.gmra.mxu0 %v205
  %v2000 = vpop.f32.mrf.mxu0
  %v2001 = vadd.f32 %v1988, %v2000
  %v2002 = vpop.f32.mrf.mxu0
  %2003 = vdwg.mxu0
  %2004 = vmatpush.bf16.msra.mxu0 %v1371
  %2005 = vmatpush.bf16.msra.mxu0 %v1367
  %2006 = vmatpush.bf16.msra.mxu0 %v1363
  %2007 = vmatpush.bf16.msra.mxu0 %v1359
  %2008 = vmatpush.bf16.msra.mxu0 %v1355
  %2009 = vmatpush.bf16.msra.mxu0 %v1351
  %2010 = vmatpush.bf16.msra.mxu0 %v1347
  %2011 = vmatpush.bf16.msra.mxu0 %v1343
  %2012 = vmatmul.bf16.gmra.mxu0 %v206
  %v2013 = vpop.f32.mrf.mxu0
  %v2014 = vadd.f32 %v2001, %v2013
  %v2015 = vpop.f32.mrf.mxu0
  %2016 = vdwg.mxu0
  %2017 = vmatpush.bf16.msra.mxu0 %v1403
  %2018 = vmatpush.bf16.msra.mxu0 %v1399
  %2019 = vmatpush.bf16.msra.mxu0 %v1395
  %2020 = vmatpush.bf16.msra.mxu0 %v1391
  %2021 = vmatpush.bf16.msra.mxu0 %v1387
  %2022 = vmatpush.bf16.msra.mxu0 %v1383
  %2023 = vmatpush.bf16.msra.mxu0 %v1379
  %2024 = vmatpush.bf16.msra.mxu0 %v1375
  %2025 = vmatmul.bf16.gmra.mxu0 %v207
  %v2026 = vpop.f32.mrf.mxu0
  %v2027 = vadd.f32 %v2014, %v2026
  %v2028 = vpop.f32.mrf.mxu0
  %2029 = vdwg.mxu0
  %2030 = vmatpush.bf16.msra.mxu0 %v1435
  %2031 = vmatpush.bf16.msra.mxu0 %v1431
  %2032 = vmatpush.bf16.msra.mxu0 %v1427
  %2033 = vmatpush.bf16.msra.mxu0 %v1423
  %2034 = vmatpush.bf16.msra.mxu0 %v1419
  %2035 = vmatpush.bf16.msra.mxu0 %v1415
  %2036 = vmatpush.bf16.msra.mxu0 %v1411
  %2037 = vmatpush.bf16.msra.mxu0 %v1407
  %2038 = vmatmul.bf16.gmra.mxu0 %v208
  %v2039 = vpop.f32.mrf.mxu0
  %v2040 = vadd.f32 %v2027, %v2039
  %v2041 = vpop.f32.mrf.mxu0
  %2042 = vdwg.mxu0
  %2043 = vmatpush.bf16.msra.mxu0 %v1467
  %2044 = vmatpush.bf16.msra.mxu0 %v1463
  %2045 = vmatpush.bf16.msra.mxu0 %v1459
  %2046 = vmatpush.bf16.msra.mxu0 %v1455
  %2047 = vmatpush.bf16.msra.mxu0 %v1451
  %2048 = vmatpush.bf16.msra.mxu0 %v1447
  %2049 = vmatpush.bf16.msra.mxu0 %v1443
  %2050 = vmatpush.bf16.msra.mxu0 %v1439
  %2051 = vmatmul.bf16.gmra.mxu0 %v209
  %v2052 = vpop.f32.mrf.mxu0
  %v2053 = vadd.f32 %v2040, %v2052
  %v2054 = vpop.f32.mrf.mxu0
  %2055 = vdwg.mxu0
  %2056 = vmatpush.bf16.msra.mxu0 %v1499
  %2057 = vmatpush.bf16.msra.mxu0 %v1495
  %2058 = vmatpush.bf16.msra.mxu0 %v1491
  %2059 = vmatpush.bf16.msra.mxu0 %v1487
  %2060 = vmatpush.bf16.msra.mxu0 %v1483
  %2061 = vmatpush.bf16.msra.mxu0 %v1479
  %2062 = vmatpush.bf16.msra.mxu0 %v1475
  %2063 = vmatpush.bf16.msra.mxu0 %v1471
  %2064 = vmatmul.bf16.gmra.mxu0 %v210
  %v2065 = vpop.f32.mrf.mxu0
  %v2066 = vadd.f32 %v2053, %v2065
  %v2067 = vpop.f32.mrf.mxu0
  %2068 = vdwg.mxu0
  %2069 = vmatpush.bf16.msra.mxu0 %v1276
  %2070 = vmatpush.bf16.msra.mxu0 %v1272
  %2071 = vmatpush.bf16.msra.mxu0 %v1268
  %2072 = vmatpush.bf16.msra.mxu0 %v1264
  %2073 = vmatpush.bf16.msra.mxu0 %v1260
  %2074 = vmatpush.bf16.msra.mxu0 %v1256
  %2075 = vmatpush.bf16.msra.mxu0 %v1252
  %2076 = vmatpush.bf16.msra.mxu0 %v1248
  %2077 = vmatmul.bf16.gmra.mxu0 %v203
  %v2078 = vpop.f32.mrf.mxu0
  %v2079 = vadd.f32 %v472, %v2078
  %v2080 = vpop.f32.mrf.mxu0
  %2081 = vdwg.mxu0
  %2082 = vmatpush.bf16.msra.mxu0 %v1308
  %2083 = vmatpush.bf16.msra.mxu0 %v1304
  %2084 = vmatpush.bf16.msra.mxu0 %v1300
  %2085 = vmatpush.bf16.msra.mxu0 %v1296
  %2086 = vmatpush.bf16.msra.mxu0 %v1292
  %2087 = vmatpush.bf16.msra.mxu0 %v1288
  %2088 = vmatpush.bf16.msra.mxu0 %v1284
  %2089 = vmatpush.bf16.msra.mxu0 %v1280
  %2090 = vmatmul.bf16.gmra.mxu0 %v204
  %v2091 = vpop.f32.mrf.mxu0
  %v2092 = vadd.f32 %v2079, %v2091
  %v2093 = vpop.f32.mrf.mxu0
  %2094 = vdwg.mxu0
  %2095 = vmatpush.bf16.msra.mxu0 %v1340
  %2096 = vmatpush.bf16.msra.mxu0 %v1336
  %2097 = vmatpush.bf16.msra.mxu0 %v1332
  %2098 = vmatpush.bf16.msra.mxu0 %v1328
  %2099 = vmatpush.bf16.msra.mxu0 %v1324
  %2100 = vmatpush.bf16.msra.mxu0 %v1320
  %2101 = vmatpush.bf16.msra.mxu0 %v1316
  %2102 = vmatpush.bf16.msra.mxu0 %v1312
  %2103 = vmatmul.bf16.gmra.mxu0 %v205
  %v2104 = vpop.f32.mrf.mxu0
  %v2105 = vadd.f32 %v2092, %v2104
  %v2106 = vpop.f32.mrf.mxu0
  %2107 = vdwg.mxu0
  %2108 = vmatpush.bf16.msra.mxu0 %v1372
  %2109 = vmatpush.bf16.msra.mxu0 %v1368
  %2110 = vmatpush.bf16.msra.mxu0 %v1364
  %2111 = vmatpush.bf16.msra.mxu0 %v1360
  %2112 = vmatpush.bf16.msra.mxu0 %v1356
  %2113 = vmatpush.bf16.msra.mxu0 %v1352
  %2114 = vmatpush.bf16.msra.mxu0 %v1348
  %2115 = vmatpush.bf16.msra.mxu0 %v1344
  %2116 = vmatmul.bf16.gmra.mxu0 %v206
  %v2117 = vpop.f32.mrf.mxu0
  %v2118 = vadd.f32 %v2105, %v2117
  %v2119 = vpop.f32.mrf.mxu0
  %2120 = vdwg.mxu0
  %2121 = vmatpush.bf16.msra.mxu0 %v1404
  %2122 = vmatpush.bf16.msra.mxu0 %v1400
  %2123 = vmatpush.bf16.msra.mxu0 %v1396
  %2124 = vmatpush.bf16.msra.mxu0 %v1392
  %2125 = vmatpush.bf16.msra.mxu0 %v1388
  %2126 = vmatpush.bf16.msra.mxu0 %v1384
  %2127 = vmatpush.bf16.msra.mxu0 %v1380
  %2128 = vmatpush.bf16.msra.mxu0 %v1376
  %2129 = vmatmul.bf16.gmra.mxu0 %v207
  %v2130 = vpop.f32.mrf.mxu0
  %v2131 = vadd.f32 %v2118, %v2130
  %v2132 = vpop.f32.mrf.mxu0
  %2133 = vdwg.mxu0
  %2134 = vmatpush.bf16.msra.mxu0 %v1436
  %2135 = vmatpush.bf16.msra.mxu0 %v1432
  %2136 = vmatpush.bf16.msra.mxu0 %v1428
  %2137 = vmatpush.bf16.msra.mxu0 %v1424
  %2138 = vmatpush.bf16.msra.mxu0 %v1420
  %2139 = vmatpush.bf16.msra.mxu0 %v1416
  %2140 = vmatpush.bf16.msra.mxu0 %v1412
  %2141 = vmatpush.bf16.msra.mxu0 %v1408
  %2142 = vmatmul.bf16.gmra.mxu0 %v208
  %v2143 = vpop.f32.mrf.mxu0
  %v2144 = vadd.f32 %v2131, %v2143
  %v2145 = vpop.f32.mrf.mxu0
  %2146 = vdwg.mxu0
  %2147 = vmatpush.bf16.msra.mxu0 %v1468
  %2148 = vmatpush.bf16.msra.mxu0 %v1464
  %2149 = vmatpush.bf16.msra.mxu0 %v1460
  %2150 = vmatpush.bf16.msra.mxu0 %v1456
  %2151 = vmatpush.bf16.msra.mxu0 %v1452
  %2152 = vmatpush.bf16.msra.mxu0 %v1448
  %2153 = vmatpush.bf16.msra.mxu0 %v1444
  %2154 = vmatpush.bf16.msra.mxu0 %v1440
  %2155 = vmatmul.bf16.gmra.mxu0 %v209
  %v2156 = vpop.f32.mrf.mxu0
  %v2157 = vadd.f32 %v2144, %v2156
  %v2158 = vpop.f32.mrf.mxu0
  %2159 = vdwg.mxu0
  %2160 = vmatpush.bf16.msra.mxu0 %v1500
  %2161 = vmatpush.bf16.msra.mxu0 %v1496
  %2162 = vmatpush.bf16.msra.mxu0 %v1492
  %2163 = vmatpush.bf16.msra.mxu0 %v1488
  %2164 = vmatpush.bf16.msra.mxu0 %v1484
  %2165 = vmatpush.bf16.msra.mxu0 %v1480
  %2166 = vmatpush.bf16.msra.mxu0 %v1476
  %2167 = vmatpush.bf16.msra.mxu0 %v1472
  %2168 = vmatmul.bf16.gmra.mxu0 %v210
  %v2169 = vpop.f32.mrf.mxu0
  %v2170 = vadd.f32 %v2157, %v2169
  %v2171 = vpop.f32.mrf.mxu0
  %2172 = vdwg.mxu0
  %v2173 = vsel %vm87, %v1858, 0.0
  %v2174 = vrot.slane %v2173, 4
  %v2175 = vadd.f32 %v2173, %v2174
  %v2176 = vrot.slane %v2175, 2
  %v2177 = vadd.f32 %v2175, %v2176
  %v2178 = vrot.slane %v2177, 1
  %v2179 = vadd.f32 %v2177, %v2178
  %v2180 = vsel %vm87, %v1962, 0.0
  %v2181 = vrot.slane %v2180, 4
  %v2182 = vadd.f32 %v2180, %v2181
  %v2183 = vrot.slane %v2182, 2
  %v2184 = vadd.f32 %v2182, %v2183
  %v2185 = vrot.slane %v2184, 1
  %v2186 = vadd.f32 %v2184, %v2185
  %v2187 = vsel %vm87, %v2066, 0.0
  %v2188 = vrot.slane %v2187, 4
  %v2189 = vadd.f32 %v2187, %v2188
  %v2190 = vrot.slane %v2189, 2
  %v2191 = vadd.f32 %v2189, %v2190
  %v2192 = vrot.slane %v2191, 1
  %v2193 = vadd.f32 %v2191, %v2192
  %v2194 = vsel %vm87, %v2170, 0.0
  %v2195 = vrot.slane %v2194, 4
  %v2196 = vadd.f32 %v2194, %v2195
  %v2197 = vrot.slane %v2196, 2
  %v2198 = vadd.f32 %v2196, %v2197
  %v2199 = vrot.slane %v2198, 1
  %v2200 = vadd.f32 %v2198, %v2199
  %v2201 = vrcp.pop 4.0
  %v2202 = vmul.f32 4.0, %v2201
  %v2203 = vsub.f32 1.0, %v2202
  %v2204 = vmul.f32 %v2201, %v2203
  %v2205 = vadd.f32 %v2201, %v2204
  %vm2206 = vweird.f32 %v2201
  %v2207 = vsel %vm2206, %v2201, %v2205
  %v2208 = vmul.f32 %v2179, %v2207
  %v2209 = vmul.f32 %v2186, %v2207
  %v2210 = vmul.f32 %v2193, %v2207
  %v2211 = vmul.f32 %v2200, %v2207
  %v2212 = vsub.f32 %v1858, %v2208
  %v2213 = vsub.f32 %v1962, %v2209
  %v2214 = vsub.f32 %v2066, %v2210
  %v2215 = vsub.f32 %v2170, %v2211
  %v2216 = vmul.f32 %v2212, %v2212
  %v2217 = vmul.f32 %v2213, %v2213
  %v2218 = vmul.f32 %v2214, %v2214
  %v2219 = vmul.f32 %v2215, %v2215
  %v2220 = vsel %vm87, %v2216, 0.0
  %v2221 = vrot.slane %v2220, 4
  %v2222 = vadd.f32 %v2220, %v2221
  %v2223 = vrot.slane %v2222, 2
  %v2224 = vadd.f32 %v2222, %v2223
  %v2225 = vrot.slane %v2224, 1
  %v2226 = vadd.f32 %v2224, %v2225
  %v2227 = vsel %vm87, %v2217, 0.0
  %v2228 = vrot.slane %v2227, 4
  %v2229 = vadd.f32 %v2227, %v2228
  %v2230 = vrot.slane %v2229, 2
  %v2231 = vadd.f32 %v2229, %v2230
  %v2232 = vrot.slane %v2231, 1
  %v2233 = vadd.f32 %v2231, %v2232
  %v2234 = vsel %vm87, %v2218, 0.0
  %v2235 = vrot.slane %v2234, 4
  %v2236 = vadd.f32 %v2234, %v2235
  %v2237 = vrot.slane %v2236, 2
  %v2238 = vadd.f32 %v2236, %v2237
  %v2239 = vrot.slane %v2238, 1
  %v2240 = vadd.f32 %v2238, %v2239
  %v2241 = vsel %vm87, %v2219, 0.0
  %v2242 = vrot.slane %v2241, 4
  %v2243 = vadd.f32 %v2241, %v2242
  %v2244 = vrot.slane %v2243, 2
  %v2245 = vadd.f32 %v2243, %v2244
  %v2246 = vrot.slane %v2245, 1
  %v2247 = vadd.f32 %v2245, %v2246
  %v2248 = vmul.f32 %v2226, %v2207
  %v2249 = vmul.f32 %v2233, %v2207
  %v2250 = vmul.f32 %v2240, %v2207
  %v2251 = vmul.f32 %v2247, %v2207
  %v2252 = vadd.f32 %v2248, 1e-05
  %v2253 = vadd.f32 %v2249, 1e-05
  %v2254 = vadd.f32 %v2250, 1e-05
  %v2255 = vadd.f32 %v2251, 1e-05
  %v2256 = vrsqrt.pop %v2252
  %v2257 = vmul.f32 %v2256, %v2252
  %v2258 = vmul.f32 %v2257, %v2256
  %v2259 = vmul.f32 0.5, %v2258
  %v2260 = vsub.f32 1.5, %v2259
  %v2261 = vmul.f32 %v2256, %v2260
  %vm2262 = vweird.f32 %v2252
  %vm2263 = vweird.f32 %v2256
  %vm2264 = vmor %vm2262, %vm2263
  %v2265 = vsel %vm2264, %v2256, %v2261
  %v2266 = vrsqrt.pop %v2253
  %v2267 = vmul.f32 %v2266, %v2253
  %v2268 = vmul.f32 %v2267, %v2266
  %v2269 = vmul.f32 0.5, %v2268
  %v2270 = vsub.f32 1.5, %v2269
  %v2271 = vmul.f32 %v2266, %v2270
  %vm2272 = vweird.f32 %v2253
  %vm2273 = vweird.f32 %v2266
  %vm2274 = vmor %vm2272, %vm2273
  %v2275 = vsel %vm2274, %v2266, %v2271
  %v2276 = vrsqrt.pop %v2254
  %v2277 = vmul.f32 %v2276, %v2254
  %v2278 = vmul.f32 %v2277, %v2276
  %v2279 = vmul.f32 0.5, %v2278
  %v2280 = vsub.f32 1.5, %v2279
  %v2281 = vmul.f32 %v2276, %v2280
  %vm2282 = vweird.f32 %v2254
  %vm2283 = vweird.f32 %v2276
  %vm2284 = vmor %vm2282, %vm2283
  %v2285 = vsel %vm2284, %v2276, %v2281
  %v2286 = vrsqrt.pop %v2255
  %v2287 = vmul.f32 %v2286, %v2255
  %v2288 = vmul.f32 %v2287, %v2286
  %v2289 = vmul.f32 0.5, %v2288
  %v2290 = vsub.f32 1.5, %v2289
  %v2291 = vmul.f32 %v2286, %v2290
  %vm2292 = vweird.f32 %v2255
  %vm2293 = vweird.f32 %v2286
  %vm2294 = vmor %vm2292, %vm2293
  %v2295 = vsel %vm2294, %v2286, %v2291
  %v2296 = vmul.f32 %v2212, %v2265
  %v2297 = vmul.f32 %v2213, %v2275
  %v2298 = vmul.f32 %v2214, %v2285
  %v2299 = vmul.f32 %v2215, %v2295
  %v2300 = vmax.f32 %v2296, 0.0
  %v2301 = vmax.f32 %v2297, 0.0
  %v2302 = vmax.f32 %v2298, 0.0
  %v2303 = vmax.f32 %v2299, 0.0
  %v2304 = vpack.c.bf16 %v2300, %v2300
  %v2305 = vpack.c.bf16 %v2301, %v2301
  %v2306 = vpack.c.bf16 %v2302, %v2302
  %v2307 = vpack.c.bf16 %v2303, %v2303
  %v2308 = vld [vmem:[%s4] sm:$0xff]
  %v2309 = vld [vmem:[%s4 + $0x8] sm:$0xff]
  %v2310 = vld [vmem:[%s4 + $0x10] sm:$0xff]
  %v2311 = vld [vmem:[%s4 + $0x18] sm:$0xff]
  %v2312 = vld [vmem:[%s4 + $0x20] sm:$0xff]
  %v2313 = vld [vmem:[%s4 + $0x28] sm:$0xff]
  %v2314 = vld [vmem:[%s4 + $0x30] sm:$0xff]
  %v2315 = vld [vmem:[%s4 + $0x38] sm:$0xff]
  %v2316 = vld [vmem:[%s4 + $0x40] sm:$0xff]
  %v2317 = vld [vmem:[%s4 + $0x48] sm:$0xff]
  %v2318 = vld [vmem:[%s4 + $0x50] sm:$0xff]
  %v2319 = vld [vmem:[%s4 + $0x58] sm:$0xff]
  %v2320 = vld [vmem:[%s4 + $0x60] sm:$0xff]
  %v2321 = vld [vmem:[%s4 + $0x68] sm:$0xff]
  %v2322 = vld [vmem:[%s4 + $0x70] sm:$0xff]
  %v2323 = vld [vmem:[%s4 + $0x78] sm:$0xff]
  %v2324 = vld [vmem:[%s4 + $0x80] sm:$0xff]
  %v2325 = vld [vmem:[%s4 + $0x88] sm:$0xff]
  %v2326 = vld [vmem:[%s4 + $0x90] sm:$0xff]
  %v2327 = vld [vmem:[%s4 + $0x98] sm:$0xff]
  %v2328 = vld [vmem:[%s4 + $0xa0] sm:$0xff]
  %v2329 = vld [vmem:[%s4 + $0xa8] sm:$0xff]
  %v2330 = vld [vmem:[%s4 + $0xb0] sm:$0xff]
  %v2331 = vld [vmem:[%s4 + $0xb8] sm:$0xff]
  %v2332 = vld [vmem:[%s4 + $0xc0] sm:$0xff]
  %v2333 = vld [vmem:[%s4 + $0xc8] sm:$0xff]
  %v2334 = vld [vmem:[%s4 + $0xd0] sm:$0xff]
  %v2335 = vld [vmem:[%s4 + $0xd8] sm:$0xff]
  %v2336 = vld [vmem:[%s4 + $0xe0] sm:$0xff]
  %v2337 = vld [vmem:[%s4 + $0xe8] sm:$0xff]
  %v2338 = vld [vmem:[%s4 + $0xf0] sm:$0xff]
  %v2339 = vld [vmem:[%s4 + $0xf8] sm:$0xff]
  %v2340 = vld [vmem:[%s4 + $0x100] sm:$0xff]
  %v2341 = vld [vmem:[%s4 + $0x108] sm:$0xff]
  %v2342 = vld [vmem:[%s4 + $0x110] sm:$0xff]
  %v2343 = vld [vmem:[%s4 + $0x118] sm:$0xff]
  %v2344 = vld [vmem:[%s4 + $0x120] sm:$0xff]
  %v2345 = vld [vmem:[%s4 + $0x128] sm:$0xff]
  %v2346 = vld [vmem:[%s4 + $0x130] sm:$0xff]
  %v2347 = vld [vmem:[%s4 + $0x138] sm:$0xff]
  %v2348 = vld [vmem:[%s4 + $0x140] sm:$0xff]
  %v2349 = vld [vmem:[%s4 + $0x148] sm:$0xff]
  %v2350 = vld [vmem:[%s4 + $0x150] sm:$0xff]
  %v2351 = vld [vmem:[%s4 + $0x158] sm:$0xff]
  %v2352 = vld [vmem:[%s4 + $0x160] sm:$0xff]
  %v2353 = vld [vmem:[%s4 + $0x168] sm:$0xff]
  %v2354 = vld [vmem:[%s4 + $0x170] sm:$0xff]
  %v2355 = vld [vmem:[%s4 + $0x178] sm:$0xff]
  %v2356 = vld [vmem:[%s4 + $0x180] sm:$0xff]
  %v2357 = vld [vmem:[%s4 + $0x188] sm:$0xff]
  %v2358 = vld [vmem:[%s4 + $0x190] sm:$0xff]
  %v2359 = vld [vmem:[%s4 + $0x198] sm:$0xff]
  %v2360 = vld [vmem:[%s4 + $0x1a0] sm:$0xff]
  %v2361 = vld [vmem:[%s4 + $0x1a8] sm:$0xff]
  %v2362 = vld [vmem:[%s4 + $0x1b0] sm:$0xff]
  %v2363 = vld [vmem:[%s4 + $0x1b8] sm:$0xff]
  %v2364 = vld [vmem:[%s4 + $0x1c0] sm:$0xff]
  %v2365 = vld [vmem:[%s4 + $0x1c8] sm:$0xff]
  %v2366 = vld [vmem:[%s4 + $0x1d0] sm:$0xff]
  %v2367 = vld [vmem:[%s4 + $0x1d8] sm:$0xff]
  %v2368 = vld [vmem:[%s4 + $0x1e0] sm:$0xff]
  %v2369 = vld [vmem:[%s4 + $0x1e8] sm:$0xff]
  %v2370 = vld [vmem:[%s4 + $0x1f0] sm:$0xff]
  %v2371 = vld [vmem:[%s4 + $0x1f8] sm:$0xff]
  %v2372 = vld [vmem:[%s5] sm:$0x3]
  %v2374 = vperm.slane %v2372, 0
  %v2375 = vperm.slane %v2372, 1
  %v2442 = vunpack.c.l.b16 %v2308
  %v2443 = vunpack.c.h.b16 %v2308
  %v2444 = vunpack.c.l.b16 %v2309
  %v2445 = vunpack.c.h.b16 %v2309
  %v2446 = vunpack.c.l.b16 %v2310
  %v2447 = vunpack.c.h.b16 %v2310
  %v2448 = vunpack.c.l.b16 %v2311
  %v2449 = vunpack.c.h.b16 %v2311
  %v2450 = vunpack.c.l.b16 %v2312
  %v2451 = vunpack.c.h.b16 %v2312
  %v2452 = vunpack.c.l.b16 %v2313
  %v2453 = vunpack.c.h.b16 %v2313
  %v2454 = vunpack.c.l.b16 %v2314
  %v2455 = vunpack.c.h.b16 %v2314
  %v2456 = vunpack.c.l.b16 %v2315
  %v2457 = vunpack.c.h.b16 %v2315
  %v2458 = vunpack.c.l.b16 %v2316
  %v2459 = vunpack.c.h.b16 %v2316
  %v2460 = vunpack.c.l.b16 %v2317
  %v2461 = vunpack.c.h.b16 %v2317
  %v2462 = vunpack.c.l.b16 %v2318
  %v2463 = vunpack.c.h.b16 %v2318
  %v2464 = vunpack.c.l.b16 %v2319
  %v2465 = vunpack.c.h.b16 %v2319
  %v2466 = vunpack.c.l.b16 %v2320
  %v2467 = vunpack.c.h.b16 %v2320
  %v2468 = vunpack.c.l.b16 %v2321
  %v2469 = vunpack.c.h.b16 %v2321
  %v2470 = vunpack.c.l.b16 %v2322
  %v2471 = vunpack.c.h.b16 %v2322
  %v2472 = vunpack.c.l.b16 %v2323
  %v2473 = vunpack.c.h.b16 %v2323
  %v2474 = vunpack.c.l.b16 %v2324
  %v2475 = vunpack.c.h.b16 %v2324
  %v2476 = vunpack.c.l.b16 %v2325
  %v2477 = vunpack.c.h.b16 %v2325
  %v2478 = vunpack.c.l.b16 %v2326
  %v2479 = vunpack.c.h.b16 %v2326
  %v2480 = vunpack.c.l.b16 %v2327
  %v2481 = vunpack.c.h.b16 %v2327
  %v2482 = vunpack.c.l.b16 %v2328
  %v2483 = vunpack.c.h.b16 %v2328
  %v2484 = vunpack.c.l.b16 %v2329
  %v2485 = vunpack.c.h.b16 %v2329
  %v2486 = vunpack.c.l.b16 %v2330
  %v2487 = vunpack.c.h.b16 %v2330
  %v2488 = vunpack.c.l.b16 %v2331
  %v2489 = vunpack.c.h.b16 %v2331
  %v2490 = vunpack.c.l.b16 %v2332
  %v2491 = vunpack.c.h.b16 %v2332
  %v2492 = vunpack.c.l.b16 %v2333
  %v2493 = vunpack.c.h.b16 %v2333
  %v2494 = vunpack.c.l.b16 %v2334
  %v2495 = vunpack.c.h.b16 %v2334
  %v2496 = vunpack.c.l.b16 %v2335
  %v2497 = vunpack.c.h.b16 %v2335
  %v2498 = vunpack.c.l.b16 %v2336
  %v2499 = vunpack.c.h.b16 %v2336
  %v2500 = vunpack.c.l.b16 %v2337
  %v2501 = vunpack.c.h.b16 %v2337
  %v2502 = vunpack.c.l.b16 %v2338
  %v2503 = vunpack.c.h.b16 %v2338
  %v2504 = vunpack.c.l.b16 %v2339
  %v2505 = vunpack.c.h.b16 %v2339
  %v2506 = vunpack.c.l.b16 %v2340
  %v2507 = vunpack.c.h.b16 %v2340
  %v2508 = vunpack.c.l.b16 %v2341
  %v2509 = vunpack.c.h.b16 %v2341
  %v2510 = vunpack.c.l.b16 %v2342
  %v2511 = vunpack.c.h.b16 %v2342
  %v2512 = vunpack.c.l.b16 %v2343
  %v2513 = vunpack.c.h.b16 %v2343
  %v2514 = vunpack.c.l.b16 %v2344
  %v2515 = vunpack.c.h.b16 %v2344
  %v2516 = vunpack.c.l.b16 %v2345
  %v2517 = vunpack.c.h.b16 %v2345
  %v2518 = vunpack.c.l.b16 %v2346
  %v2519 = vunpack.c.h.b16 %v2346
  %v2520 = vunpack.c.l.b16 %v2347
  %v2521 = vunpack.c.h.b16 %v2347
  %v2522 = vunpack.c.l.b16 %v2348
  %v2523 = vunpack.c.h.b16 %v2348
  %v2524 = vunpack.c.l.b16 %v2349
  %v2525 = vunpack.c.h.b16 %v2349
  %v2526 = vunpack.c.l.b16 %v2350
  %v2527 = vunpack.c.h.b16 %v2350
  %v2528 = vunpack.c.l.b16 %v2351
  %v2529 = vunpack.c.h.b16 %v2351
  %v2530 = vunpack.c.l.b16 %v2352
  %v2531 = vunpack.c.h.b16 %v2352
  %v2532 = vunpack.c.l.b16 %v2353
  %v2533 = vunpack.c.h.b16 %v2353
  %v2534 = vunpack.c.l.b16 %v2354
  %v2535 = vunpack.c.h.b16 %v2354
  %v2536 = vunpack.c.l.b16 %v2355
  %v2537 = vunpack.c.h.b16 %v2355
  %v2538 = vunpack.c.l.b16 %v2356
  %v2539 = vunpack.c.h.b16 %v2356
  %v2540 = vunpack.c.l.b16 %v2357
  %v2541 = vunpack.c.h.b16 %v2357
  %v2542 = vunpack.c.l.b16 %v2358
  %v2543 = vunpack.c.h.b16 %v2358
  %v2544 = vunpack.c.l.b16 %v2359
  %v2545 = vunpack.c.h.b16 %v2359
  %v2546 = vunpack.c.l.b16 %v2360
  %v2547 = vunpack.c.h.b16 %v2360
  %v2548 = vunpack.c.l.b16 %v2361
  %v2549 = vunpack.c.h.b16 %v2361
  %v2550 = vunpack.c.l.b16 %v2362
  %v2551 = vunpack.c.h.b16 %v2362
  %v2552 = vunpack.c.l.b16 %v2363
  %v2553 = vunpack.c.h.b16 %v2363
  %v2554 = vunpack.c.l.b16 %v2364
  %v2555 = vunpack.c.h.b16 %v2364
  %v2556 = vunpack.c.l.b16 %v2365
  %v2557 = vunpack.c.h.b16 %v2365
  %v2558 = vunpack.c.l.b16 %v2366
  %v2559 = vunpack.c.h.b16 %v2366
  %v2560 = vunpack.c.l.b16 %v2367
  %v2561 = vunpack.c.h.b16 %v2367
  %v2562 = vunpack.c.l.b16 %v2368
  %v2563 = vunpack.c.h.b16 %v2368
  %v2564 = vunpack.c.l.b16 %v2369
  %v2565 = vunpack.c.h.b16 %v2369
  %v2566 = vunpack.c.l.b16 %v2370
  %v2567 = vunpack.c.h.b16 %v2370
  %v2568 = vunpack.c.l.b16 %v2371
  %v2569 = vunpack.c.h.b16 %v2371
  %v2570 = vpack.c.b16 %v2444, %v2442
  %v2571 = vpack.c.b16 %v2445, %v2443
  %v2572 = vpack.c.b16 %v2448, %v2446
  %v2573 = vpack.c.b16 %v2449, %v2447
  %v2574 = vpack.c.b16 %v2452, %v2450
  %v2575 = vpack.c.b16 %v2453, %v2451
  %v2576 = vpack.c.b16 %v2456, %v2454
  %v2577 = vpack.c.b16 %v2457, %v2455
  %v2578 = vpack.c.b16 %v2460, %v2458
  %v2579 = vpack.c.b16 %v2461, %v2459
  %v2580 = vpack.c.b16 %v2464, %v2462
  %v2581 = vpack.c.b16 %v2465, %v2463
  %v2582 = vpack.c.b16 %v2468, %v2466
  %v2583 = vpack.c.b16 %v2469, %v2467
  %v2584 = vpack.c.b16 %v2472, %v2470
  %v2585 = vpack.c.b16 %v2473, %v2471
  %v2586 = vpack.c.b16 %v2476, %v2474
  %v2587 = vpack.c.b16 %v2477, %v2475
  %v2588 = vpack.c.b16 %v2480, %v2478
  %v2589 = vpack.c.b16 %v2481, %v2479
  %v2590 = vpack.c.b16 %v2484, %v2482
  %v2591 = vpack.c.b16 %v2485, %v2483
  %v2592 = vpack.c.b16 %v2488, %v2486
  %v2593 = vpack.c.b16 %v2489, %v2487
  %v2594 = vpack.c.b16 %v2492, %v2490
  %v2595 = vpack.c.b16 %v2493, %v2491
  %v2596 = vpack.c.b16 %v2496, %v2494
  %v2597 = vpack.c.b16 %v2497, %v2495
  %v2598 = vpack.c.b16 %v2500, %v2498
  %v2599 = vpack.c.b16 %v2501, %v2499
  %v2600 = vpack.c.b16 %v2504, %v2502
  %v2601 = vpack.c.b16 %v2505, %v2503
  %v2602 = vpack.c.b16 %v2508, %v2506
  %v2603 = vpack.c.b16 %v2509, %v2507
  %v2604 = vpack.c.b16 %v2512, %v2510
  %v2605 = vpack.c.b16 %v2513, %v2511
  %v2606 = vpack.c.b16 %v2516, %v2514
  %v2607 = vpack.c.b16 %v2517, %v2515
  %v2608 = vpack.c.b16 %v2520, %v2518
  %v2609 = vpack.c.b16 %v2521, %v2519
  %v2610 = vpack.c.b16 %v2524, %v2522
  %v2611 = vpack.c.b16 %v2525, %v2523
  %v2612 = vpack.c.b16 %v2528, %v2526
  %v2613 = vpack.c.b16 %v2529, %v2527
  %v2614 = vpack.c.b16 %v2532, %v2530
  %v2615 = vpack.c.b16 %v2533, %v2531
  %v2616 = vpack.c.b16 %v2536, %v2534
  %v2617 = vpack.c.b16 %v2537, %v2535
  %v2618 = vpack.c.b16 %v2540, %v2538
  %v2619 = vpack.c.b16 %v2541, %v2539
  %v2620 = vpack.c.b16 %v2544, %v2542
  %v2621 = vpack.c.b16 %v2545, %v2543
  %v2622 = vpack.c.b16 %v2548, %v2546
  %v2623 = vpack.c.b16 %v2549, %v2547
  %v2624 = vpack.c.b16 %v2552, %v2550
  %v2625 = vpack.c.b16 %v2553, %v2551
  %v2626 = vpack.c.b16 %v2556, %v2554
  %v2627 = vpack.c.b16 %v2557, %v2555
  %v2628 = vpack.c.b16 %v2560, %v2558
  %v2629 = vpack.c.b16 %v2561, %v2559
  %v2630 = vpack.c.b16 %v2564, %v2562
  %v2631 = vpack.c.b16 %v2565, %v2563
  %v2632 = vpack.c.b16 %v2568, %v2566
  %v2633 = vpack.c.b16 %v2569, %v2567
  %2698 = vmatpush.bf16.msra.mxu0 %v2584
  %2699 = vmatpush.bf16.msra.mxu0 %v2582
  %2700 = vmatpush.bf16.msra.mxu0 %v2580
  %2701 = vmatpush.bf16.msra.mxu0 %v2578
  %2702 = vmatpush.bf16.msra.mxu0 %v2576
  %2703 = vmatpush.bf16.msra.mxu0 %v2574
  %2704 = vmatpush.bf16.msra.mxu0 %v2572
  %2705 = vmatpush.bf16.msra.mxu0 %v2570
  %2706 = vmatmul.bf16.gmra.mxu0 %v2304
  %v2707 = vpop.f32.mrf.mxu0
  %v2708 = vadd.f32 %v2374, %v2707
  %v2709 = vpop.f32.mrf.mxu0
  %2710 = vdwg.mxu0
  %2711 = vmatpush.bf16.msra.mxu0 %v2600
  %2712 = vmatpush.bf16.msra.mxu0 %v2598
  %2713 = vmatpush.bf16.msra.mxu0 %v2596
  %2714 = vmatpush.bf16.msra.mxu0 %v2594
  %2715 = vmatpush.bf16.msra.mxu0 %v2592
  %2716 = vmatpush.bf16.msra.mxu0 %v2590
  %2717 = vmatpush.bf16.msra.mxu0 %v2588
  %2718 = vmatpush.bf16.msra.mxu0 %v2586
  %2719 = vmatmul.bf16.gmra.mxu0 %v2305
  %v2720 = vpop.f32.mrf.mxu0
  %v2721 = vadd.f32 %v2708, %v2720
  %v2722 = vpop.f32.mrf.mxu0
  %2723 = vdwg.mxu0
  %2724 = vmatpush.bf16.msra.mxu0 %v2616
  %2725 = vmatpush.bf16.msra.mxu0 %v2614
  %2726 = vmatpush.bf16.msra.mxu0 %v2612
  %2727 = vmatpush.bf16.msra.mxu0 %v2610
  %2728 = vmatpush.bf16.msra.mxu0 %v2608
  %2729 = vmatpush.bf16.msra.mxu0 %v2606
  %2730 = vmatpush.bf16.msra.mxu0 %v2604
  %2731 = vmatpush.bf16.msra.mxu0 %v2602
  %2732 = vmatmul.bf16.gmra.mxu0 %v2306
  %v2733 = vpop.f32.mrf.mxu0
  %v2734 = vadd.f32 %v2721, %v2733
  %v2735 = vpop.f32.mrf.mxu0
  %2736 = vdwg.mxu0
  %2737 = vmatpush.bf16.msra.mxu0 %v2632
  %2738 = vmatpush.bf16.msra.mxu0 %v2630
  %2739 = vmatpush.bf16.msra.mxu0 %v2628
  %2740 = vmatpush.bf16.msra.mxu0 %v2626
  %2741 = vmatpush.bf16.msra.mxu0 %v2624
  %2742 = vmatpush.bf16.msra.mxu0 %v2622
  %2743 = vmatpush.bf16.msra.mxu0 %v2620
  %2744 = vmatpush.bf16.msra.mxu0 %v2618
  %2745 = vmatmul.bf16.gmra.mxu0 %v2307
  %v2746 = vpop.f32.mrf.mxu0
  %v2747 = vadd.f32 %v2734, %v2746
  %v2748 = vpop.f32.mrf.mxu0
  %2749 = vdwg.mxu0
  %2750 = vmatpush.bf16.msra.mxu0 %v2585
  %2751 = vmatpush.bf16.msra.mxu0 %v2583
  %2752 = vmatpush.bf16.msra.mxu0 %v2581
  %2753 = vmatpush.bf16.msra.mxu0 %v2579
  %2754 = vmatpush.bf16.msra.mxu0 %v2577
  %2755 = vmatpush.bf16.msra.mxu0 %v2575
  %2756 = vmatpush.bf16.msra.mxu0 %v2573
  %2757 = vmatpush.bf16.msra.mxu0 %v2571
  %2758 = vmatmul.bf16.gmra.mxu0 %v2304
  %v2759 = vpop.f32.mrf.mxu0
  %v2760 = vadd.f32 %v2375, %v2759
  %v2761 = vpop.f32.mrf.mxu0
  %2762 = vdwg.mxu0
  %2763 = vmatpush.bf16.msra.mxu0 %v2601
  %2764 = vmatpush.bf16.msra.mxu0 %v2599
  %2765 = vmatpush.bf16.msra.mxu0 %v2597
  %2766 = vmatpush.bf16.msra.mxu0 %v2595
  %2767 = vmatpush.bf16.msra.mxu0 %v2593
  %2768 = vmatpush.bf16.msra.mxu0 %v2591
  %2769 = vmatpush.bf16.msra.mxu0 %v2589
  %2770 = vmatpush.bf16.msra.mxu0 %v2587
  %2771 = vmatmul.bf16.gmra.mxu0 %v2305
  %v2772 = vpop.f32.mrf.mxu0
  %v2773 = vadd.f32 %v2760, %v2772
  %v2774 = vpop.f32.mrf.mxu0
  %2775 = vdwg.mxu0
  %2776 = vmatpush.bf16.msra.mxu0 %v2617
  %2777 = vmatpush.bf16.msra.mxu0 %v2615
  %2778 = vmatpush.bf16.msra.mxu0 %v2613
  %2779 = vmatpush.bf16.msra.mxu0 %v2611
  %2780 = vmatpush.bf16.msra.mxu0 %v2609
  %2781 = vmatpush.bf16.msra.mxu0 %v2607
  %2782 = vmatpush.bf16.msra.mxu0 %v2605
  %2783 = vmatpush.bf16.msra.mxu0 %v2603
  %2784 = vmatmul.bf16.gmra.mxu0 %v2306
  %v2785 = vpop.f32.mrf.mxu0
  %v2786 = vadd.f32 %v2773, %v2785
  %v2787 = vpop.f32.mrf.mxu0
  %2788 = vdwg.mxu0
  %2789 = vmatpush.bf16.msra.mxu0 %v2633
  %2790 = vmatpush.bf16.msra.mxu0 %v2631
  %2791 = vmatpush.bf16.msra.mxu0 %v2629
  %2792 = vmatpush.bf16.msra.mxu0 %v2627
  %2793 = vmatpush.bf16.msra.mxu0 %v2625
  %2794 = vmatpush.bf16.msra.mxu0 %v2623
  %2795 = vmatpush.bf16.msra.mxu0 %v2621
  %2796 = vmatpush.bf16.msra.mxu0 %v2619
  %2797 = vmatmul.bf16.gmra.mxu0 %v2307
  %v2798 = vpop.f32.mrf.mxu0
  %v2799 = vadd.f32 %v2786, %v2798
  %v2800 = vpop.f32.mrf.mxu0
  %2801 = vdwg.mxu0
  %v2802 = vsel %vm87, %v2747, 0.0
  %v2803 = vrot.slane %v2802, 4
  %v2804 = vadd.f32 %v2802, %v2803
  %v2805 = vrot.slane %v2804, 2
  %v2806 = vadd.f32 %v2804, %v2805
  %v2807 = vrot.slane %v2806, 1
  %v2808 = vadd.f32 %v2806, %v2807
  %v2809 = vsel %vm87, %v2799, 0.0
  %v2810 = vrot.slane %v2809, 4
  %v2811 = vadd.f32 %v2809, %v2810
  %v2812 = vrot.slane %v2811, 2
  %v2813 = vadd.f32 %v2811, %v2812
  %v2814 = vrot.slane %v2813, 1
  %v2815 = vadd.f32 %v2813, %v2814
  %v2816 = vmul.f32 %v2808, %v2207
  %v2817 = vmul.f32 %v2815, %v2207
  %v2818 = vsub.f32 %v2747, %v2816
  %v2819 = vsub.f32 %v2799, %v2817
  %v2820 = vmul.f32 %v2818, %v2818
  %v2821 = vmul.f32 %v2819, %v2819
  %v2822 = vsel %vm87, %v2820, 0.0
  %v2823 = vrot.slane %v2822, 4
  %v2824 = vadd.f32 %v2822, %v2823
  %v2825 = vrot.slane %v2824, 2
  %v2826 = vadd.f32 %v2824, %v2825
  %v2827 = vrot.slane %v2826, 1
  %v2828 = vadd.f32 %v2826, %v2827
  %v2829 = vsel %vm87, %v2821, 0.0
  %v2830 = vrot.slane %v2829, 4
  %v2831 = vadd.f32 %v2829, %v2830
  %v2832 = vrot.slane %v2831, 2
  %v2833 = vadd.f32 %v2831, %v2832
  %v2834 = vrot.slane %v2833, 1
  %v2835 = vadd.f32 %v2833, %v2834
  %v2836 = vmul.f32 %v2828, %v2207
  %v2837 = vmul.f32 %v2835, %v2207
  %v2838 = vadd.f32 %v2836, 1e-05
  %v2839 = vadd.f32 %v2837, 1e-05
  %v2840 = vrsqrt.pop %v2838
  %v2841 = vmul.f32 %v2840, %v2838
  %v2842 = vmul.f32 %v2841, %v2840
  %v2843 = vmul.f32 0.5, %v2842
  %v2844 = vsub.f32 1.5, %v2843
  %v2845 = vmul.f32 %v2840, %v2844
  %vm2846 = vweird.f32 %v2838
  %vm2847 = vweird.f32 %v2840
  %vm2848 = vmor %vm2846, %vm2847
  %v2849 = vsel %vm2848, %v2840, %v2845
  %v2850 = vrsqrt.pop %v2839
  %v2851 = vmul.f32 %v2850, %v2839
  %v2852 = vmul.f32 %v2851, %v2850
  %v2853 = vmul.f32 0.5, %v2852
  %v2854 = vsub.f32 1.5, %v2853
  %v2855 = vmul.f32 %v2850, %v2854
  %vm2856 = vweird.f32 %v2839
  %vm2857 = vweird.f32 %v2850
  %vm2858 = vmor %vm2856, %vm2857
  %v2859 = vsel %vm2858, %v2850, %v2855
  %v2860 = vmul.f32 %v2818, %v2849
  %v2861 = vmul.f32 %v2819, %v2859
  %v2862 = vmax.f32 %v2860, 0.0
  %v2863 = vmax.f32 %v2861, 0.0
  %v2864 = vpack.c.bf16 %v2862, %v2862
  %v2865 = vpack.c.bf16 %v2863, %v2863
  %v2866 = vld [vmem:[%s6] sm:$0xf]
  %v2867 = vld [vmem:[%s6 + $0x4] sm:$0xf]
  %v2868 = vld [vmem:[%s6 + $0x8] sm:$0xf]
  %v2869 = vld [vmem:[%s6 + $0xc] sm:$0xf]
  %v2870 = vld [vmem:[%s6 + $0x10] sm:$0xf]
  %v2871 = vld [vmem:[%s6 + $0x14] sm:$0xf]
  %v2872 = vld [vmem:[%s6 + $0x18] sm:$0xf]
  %v2873 = vld [vmem:[%s6 + $0x1c] sm:$0xf]
  %v2874 = vld [vmem:[%s6 + $0x20] sm:$0xf]
  %v2875 = vld [vmem:[%s6 + $0x24] sm:$0xf]
  %v2876 = vld [vmem:[%s6 + $0x28] sm:$0xf]
  %v2877 = vld [vmem:[%s6 + $0x2c] sm:$0xf]
  %v2878 = vld [vmem:[%s6 + $0x30] sm:$0xf]
  %v2879 = vld [vmem:[%s6 + $0x34] sm:$0xf]
  %v2880 = vld [vmem:[%s6 + $0x38] sm:$0xf]
  %v2881 = vld [vmem:[%s6 + $0x3c] sm:$0xf]
  %v2882 = vld [vmem:[%s6 + $0x40] sm:$0xf]
  %v2883 = vld [vmem:[%s6 + $0x44] sm:$0xf]
  %v2884 = vld [vmem:[%s6 + $0x48] sm:$0xf]
  %v2885 = vld [vmem:[%s6 + $0x4c] sm:$0xf]
  %v2886 = vld [vmem:[%s6 + $0x50] sm:$0xf]
  %v2887 = vld [vmem:[%s6 + $0x54] sm:$0xf]
  %v2888 = vld [vmem:[%s6 + $0x58] sm:$0xf]
  %v2889 = vld [vmem:[%s6 + $0x5c] sm:$0xf]
  %v2890 = vld [vmem:[%s6 + $0x60] sm:$0xf]
  %v2891 = vld [vmem:[%s6 + $0x64] sm:$0xf]
  %v2892 = vld [vmem:[%s6 + $0x68] sm:$0xf]
  %v2893 = vld [vmem:[%s6 + $0x6c] sm:$0xf]
  %v2894 = vld [vmem:[%s6 + $0x70] sm:$0xf]
  %v2895 = vld [vmem:[%s6 + $0x74] sm:$0xf]
  %v2896 = vld [vmem:[%s6 + $0x78] sm:$0xf]
  %v2897 = vld [vmem:[%s6 + $0x7c] sm:$0xf]
  %v2898 = vld [vmem:[%s7] sm:$0x1]
  %v2900 = vperm.slane %v2898, 0
  %v2934 = vunpack.c.l.b16 %v2866
  %v2935 = vunpack.c.l.b16 %v2867
  %v2936 = vunpack.c.l.b16 %v2868
  %v2937 = vunpack.c.l.b16 %v2869
  %v2938 = vunpack.c.l.b16 %v2870
  %v2939 = vunpack.c.l.b16 %v2871
  %v2940 = vunpack.c.l.b16 %v2872
  %v2941 = vunpack.c.l.b16 %v2873
  %v2942 = vunpack.c.l.b16 %v2874
  %v2943 = vunpack.c.l.b16 %v2875
  %v2944 = vunpack.c.l.b16 %v2876
  %v2945 = vunpack.c.l.b16 %v2877
  %v2946 = vunpack.c.l.b16 %v2878
  %v2947 = vunpack.c.l.b16 %v2879
  %v2948 = vunpack.c.l.b16 %v2880
  %v2949 = vunpack.c.l.b16 %v2881
  %v2950 = vunpack.c.l.b16 %v2882
  %v2951 = vunpack.c.l.b16 %v2883
  %v2952 = vunpack.c.l.b16 %v2884
  %v2953 = vunpack.c.l.b16 %v2885
  %v2954 = vunpack.c.l.b16 %v2886
  %v2955 = vunpack.c.l.b16 %v2887
  %v2956 = vunpack.c.l.b16 %v2888
  %v2957 = vunpack.c.l.b16 %v2889
  %v2958 = vunpack.c.l.b16 %v2890
  %v2959 = vunpack.c.l.b16 %v2891
  %v2960 = vunpack.c.l.b16 %v2892
  %v2961 = vunpack.c.l.b16 %v2893
  %v2962 = vunpack.c.l.b16 %v2894
  %v2963 = vunpack.c.l.b16 %v2895
  %v2964 = vunpack.c.l.b16 %v2896
  %v2965 = vunpack.c.l.b16 %v2897
  %v2966 = vpack.c.b16 %v2935, %v2934
  %v2967 = vpack.c.b16 %v2937, %v2936
  %v2968 = vpack.c.b16 %v2939, %v2938
  %v2969 = vpack.c.b16 %v2941, %v2940
  %v2970 = vpack.c.b16 %v2943, %v2942
  %v2971 = vpack.c.b16 %v2945, %v2944
  %v2972 = vpack.c.b16 %v2947, %v2946
  %v2973 = vpack.c.b16 %v2949, %v2948
  %v2974 = vpack.c.b16 %v2951, %v2950
  %v2975 = vpack.c.b16 %v2953, %v2952
  %v2976 = vpack.c.b16 %v2955, %v2954
  %v2977 = vpack.c.b16 %v2957, %v2956
  %v2978 = vpack.c.b16 %v2959, %v2958
  %v2979 = vpack.c.b16 %v2961, %v2960
  %v2980 = vpack.c.b16 %v2963, %v2962
  %v2981 = vpack.c.b16 %v2965, %v2964
  %2998 = vmatpush.bf16.msra.mxu0 %v2973
  %2999 = vmatpush.bf16.msra.mxu0 %v2972
  %3000 = vmatpush.bf16.msra.mxu0 %v2971
  %3001 = vmatpush.bf16.msra.mxu0 %v2970
  %3002 = vmatpush.bf16.msra.mxu0 %v2969
  %3003 = vmatpush.bf16.msra.mxu0 %v2968
  %3004 = vmatpush.bf16.msra.mxu0 %v2967
  %3005 = vmatpush.bf16.msra.mxu0 %v2966
  %3006 = vmatmul.bf16.gmra.mxu0 %v2864
  %v3007 = vpop.f32.mrf.mxu0
  %v3008 = vadd.f32 %v2900, %v3007
  %v3009 = vpop.f32.mrf.mxu0
  %3010 = vdwg.mxu0
  %3011 = vmatpush.bf16.msra.mxu0 %v2981
  %3012 = vmatpush.bf16.msra.mxu0 %v2980
  %3013 = vmatpush.bf16.msra.mxu0 %v2979
  %3014 = vmatpush.bf16.msra.mxu0 %v2978
  %3015 = vmatpush.bf16.msra.mxu0 %v2977
  %3016 = vmatpush.bf16.msra.mxu0 %v2976
  %3017 = vmatpush.bf16.msra.mxu0 %v2975
  %3018 = vmatpush.bf16.msra.mxu0 %v2974
  %3019 = vmatmul.bf16.gmra.mxu0 %v2865
  %v3020 = vpop.f32.mrf.mxu0
  %v3021 = vadd.f32 %v3008, %v3020
  %v3022 = vpop.f32.mrf.mxu0
  %3023 = vdwg.mxu0
  %3024 = vst [vmem:[%s8] sm:$0xf] %v3021
  // Predicated region
  $region34: #{stnkd_forward.7} parent=0 // pred_check
    _
  $region35: #{stnkd_forward.7} parent=0 // pred_check_branch
    %3026 = sbr.rel (0) target = $region37
  $region36: #{stnkd_forward.7} parent=0 // pred_region
    _
  $region37: #{stnkd_forward.7} parent=0 // pred_fallthru
    _
  // Predicated region
  $region38: #{stnkd_forward.7} parent=0 // pred_check
    _
  $region39: #{stnkd_forward.7} parent=0 // pred_check_branch
    %3028 = sbr.rel (0) target = $region41
  $region40: #{stnkd_forward.7} parent=0 // pred_region
    _
  $region41: #{stnkd_forward.7} parent=0 // pred_fallthru
    _

</llo_original>
